<compile_context>
chip_gen: v7x
topology: tpu7x:2x2x1
jax: 0.10.0
libtpu: 0.0.40
codegen_flags: <defaults>
</compile_context>

<pallas_src>
import functools

import jax
import jax.numpy as jnp
from jax.experimental import pallas as pl
from jax.experimental.pallas import tpu as pltpu

NUM_CLASSES = 102

# 28 MiB double-buffered fc1 weight tile + small x/bias/out tiles ~= 28.1 MiB.
# 40 MiB leaves headroom everywhere, incl. v7x's 64 MiB physical VMEM, while
# lifting v5e's 16 MiB / v6e's 32 MiB default scoped limits.
_VMEM_LIMIT_BYTES = 40 * 1024 * 1024


# ----------------------------------------------------------------------------
# Kernel 1: tiled  y = relu(x @ W + b)
# grid = (N//tn, K//tk); K (reduction) is the last, "arbitrary" axis; the
# output block's index_map ignores k, so it stays resident in VMEM and is used
# directly as the f32 accumulator.
# ----------------------------------------------------------------------------
def _linear_relu_kernel(x_ref, w_ref, b_ref, o_ref):
    k = pl.program_id(1)

    @pl.when(k == 0)
    def _():
        o_ref[...] = jnp.zeros_like(o_ref)

    o_ref[...] += jnp.dot(
        x_ref[...], w_ref[...], preferred_element_type=jnp.float32
    )

    @pl.when(k == pl.num_programs(1) - 1)
    def _():
        o_ref[...] = jnp.maximum(o_ref[...] + b_ref[...], 0.0)


def linear_relu(x, w, b, *, tn, tk):
    M, K = x.shape
    Kw, N = w.shape
    assert Kw == K and K % tk == 0 and N % tn == 0
    b2 = b.reshape(1, N)
    return pl.pallas_call(
        _linear_relu_kernel,
        out_shape=jax.ShapeDtypeStruct((M, N), jnp.float32),
        grid_spec=pltpu.PrefetchScalarGridSpec(
            num_scalar_prefetch=0,
            grid=(N // tn, K // tk),
            in_specs=[
                pl.BlockSpec((M, tk), lambda j, k: (0, k)),
                pl.BlockSpec((tk, tn), lambda j, k: (k, j)),
                pl.BlockSpec((1, tn), lambda j, k: (0, j)),
            ],
            out_specs=pl.BlockSpec((M, tn), lambda j, k: (0, j)),
        ),
        compiler_params=pltpu.CompilerParams(
            dimension_semantics=("parallel", "arbitrary"),
            vmem_limit_bytes=_VMEM_LIMIT_BYTES,
        ),
    )(x, w, b2)


# ----------------------------------------------------------------------------
# Kernel 2: y = log_softmax(x @ W + b)
# Single block; W/b are pre-padded (once, at init) to a 128-lane multiple and
# the padded columns are masked to -inf before the row reduction.
# ----------------------------------------------------------------------------
def _linear_logsoftmax_kernel(x_ref, w_ref, b_ref, o_ref, *, num_classes):
    logits = (
        jnp.dot(x_ref[...], w_ref[...], preferred_element_type=jnp.float32)
        + b_ref[...]
    )
    col = jax.lax.broadcasted_iota(jnp.int32, logits.shape, 1)
    logits = jnp.where(col < num_classes, logits, -jnp.inf)
    m = jnp.max(logits, axis=1, keepdims=True)
    lse = m + jnp.log(jnp.sum(jnp.exp(logits - m), axis=1, keepdims=True))
    o_ref[...] = (logits - lse).astype(o_ref.dtype)


def linear_logsoftmax(x, w_pad, b_pad, *, num_classes=NUM_CLASSES):
    M, K = x.shape
    Kw, n_pad = w_pad.shape
    assert Kw == K and n_pad % 128 == 0
    out = pl.pallas_call(
        functools.partial(_linear_logsoftmax_kernel, num_classes=num_classes),
        out_shape=jax.ShapeDtypeStruct((M, n_pad), jnp.float32),
        grid_spec=pltpu.PrefetchScalarGridSpec(
            num_scalar_prefetch=0,
            grid=(1,),
            in_specs=[
                pl.BlockSpec((M, K), lambda i: (0, 0)),
                pl.BlockSpec((K, n_pad), lambda i: (0, 0)),
                pl.BlockSpec((1, n_pad), lambda i: (0, 0)),
            ],
            out_specs=pl.BlockSpec((M, n_pad), lambda i: (0, 0)),
        ),
        compiler_params=pltpu.CompilerParams(
            dimension_semantics=("arbitrary",),
            vmem_limit_bytes=_VMEM_LIMIT_BYTES,
        ),
    )(x, w_pad, b_pad)
    return out[:, :num_classes]


# ----------------------------------------------------------------------------
# Full Classifier forward (inference semantics; dropout = identity)
# ----------------------------------------------------------------------------
def classifier_forward(x, params):
    b = x.shape[0]
    x = x.reshape(b, -1)  # == torch x.view(B, -1) on NCHW
    # fc1: K=25088 -> tk=3584 (7 K steps), N=4096 -> tn=1024 (4 N blocks).
    x = linear_relu(x, params["w1"], params["b1"], tn=1024, tk=3584)
    # fc2: K=4096 -> tk=2048 (2 K steps), N=2048 -> tn=1024 (2 N blocks).
    x = linear_relu(x, params["w2"], params["b2"], tn=1024, tk=2048)
    # fc3 + log_softmax (weights pre-padded to 128 lanes at init).
    x = linear_logsoftmax(x, params["w3_pad"], params["b3_pad"])
    return x


def init_params(key):
    """Deterministic init mimicking nn.Linear's U(-1/sqrt(fan_in), +...)."""
    ks = jax.random.split(key, 6)

    def lin(kw, kb, fan_in, fan_out):
        bound = 1.0 / jnp.sqrt(fan_in)
        w = jax.random.uniform(kw, (fan_in, fan_out), jnp.float32, -bound, bound)
        b = jax.random.uniform(kb, (fan_out,), jnp.float32, -bound, bound)
        return w, b

    w1, b1 = lin(ks[0], ks[1], 25088, 4096)
    w2, b2 = lin(ks[2], ks[3], 4096, 2048)
    w3, b3 = lin(ks[4], ks[5], 2048, NUM_CLASSES)

    # Pad fc3 to a 128-lane multiple ONCE here (not on every forward call).
    n_pad = pl.cdiv(NUM_CLASSES, 128) * 128
    w3_pad = jnp.pad(w3, ((0, 0), (0, n_pad - NUM_CLASSES)))
    b3_pad = jnp.pad(
        b3.reshape(1, NUM_CLASSES), ((0, 0), (0, n_pad - NUM_CLASSES))
    )
    return dict(w1=w1, b1=b1, w2=w2, b2=b2, w3_pad=w3_pad, b3_pad=b3_pad)


if __name__ == "__main__":
    key = jax.random.PRNGKey(0)
    kx, kp = jax.random.split(key)
    # NCHW input like a VGG feature map: (B, 512, 7, 7) -> flatten to 25088.
    x = jax.random.normal(kx, (2, 512, 7, 7), jnp.float32)
    params = init_params(kp)

    out = classifier_forward(x, params)
    out = jax.block_until_ready(out)
    assert out.shape == (2, NUM_CLASSES)
    # log_softmax rows should (approximately) sum to 1 in prob space.
    assert jnp.allclose(jnp.sum(jnp.exp(out), axis=1), 1.0, atol=1e-3)
    print("KERNEL_OK")
</pallas_src>

<mosaic_0001>
module attributes {stable_mosaic.version = 11 : i64} {
  func.func @_linear_relu_kernel(%arg0: i32, %arg1: i32, %arg2: memref<2x3584xf32, #tpu.memory_space<vmem>>, %arg3: memref<3584x1024xf32, #tpu.memory_space<vmem>>, %arg4: memref<1x1024xf32, #tpu.memory_space<vmem>>, %arg5: memref<2x1024xf32, #tpu.memory_space<vmem>>) attributes {dimension_semantics = [#tpu.dimension_semantics<parallel>, #tpu.dimension_semantics<arbitrary>], iteration_bounds = array<i64: 4, 7>, scalar_prefetch = 0 : i64, scratch_operands = 0 : i64, tpu.core_type = #tpu.core_type<tc>, window_params = [{transform_indices = @transform_0, window_bounds = array<i64: 2, 3584>}, {transform_indices = @transform_1, window_bounds = array<i64: 3584, 1024>}, {transform_indices = @transform_2, window_bounds = array<i64: 1, 1024>}, {transform_indices = @transform_3, window_bounds = array<i64: 2, 1024>}]} {
    %c0_i32 = arith.constant 0 : i32
    %0 = arith.cmpi eq, %arg1, %c0_i32 : i32
    %1 = arith.extui %0 : i1 to i32
    %c0_i32_0 = arith.constant 0 : i32
    %2 = arith.cmpi ne, %1, %c0_i32_0 : i32
    scf.if %2 {
      %cst_9 = arith.constant 0.000000e+00 : f32
      %12 = vector.broadcast %cst_9 : f32 to vector<2x1024xf32>
      %c0_10 = arith.constant 0 : index
      %c0_11 = arith.constant 0 : index
      %13 = vector.load %arg5[%c0_10, %c0_11] : memref<2x1024xf32, #tpu.memory_space<vmem>>, vector<2x1024xf32>
      tpu.vector_store %arg5[%c0_10, %c0_11], %12 {strides = array<i32>} : memref<2x1024xf32, #tpu.memory_space<vmem>>, vector<2x1024xf32>,
    } else {
    }
    %c0 = arith.constant 0 : index
    %c0_1 = arith.constant 0 : index
    %3 = vector.load %arg5[%c0, %c0_1] : memref<2x1024xf32, #tpu.memory_space<vmem>>, vector<2x1024xf32>
    %c0_2 = arith.constant 0 : index
    %c0_3 = arith.constant 0 : index
    %4 = vector.load %arg2[%c0_2, %c0_3] : memref<2x3584xf32, #tpu.memory_space<vmem>>, vector<2x3584xf32>
    %c0_4 = arith.constant 0 : index
    %c0_5 = arith.constant 0 : index
    %5 = vector.load %arg3[%c0_4, %c0_5] : memref<3584x1024xf32, #tpu.memory_space<vmem>>, vector<3584x1024xf32>
    %cst = arith.constant dense<0.000000e+00> : vector<2x1024xf32>
    %6 = tpu.matmul %4, %5, %cst {dimension_numbers = #tpu.dot_dimension_numbers<[1], [0], [0], [1], [0, 0, 1, 1], [], []>} : vector<2x3584xf32>, vector<3584x1024xf32>, vector<2x1024xf32> -> vector<2x1024xf32>
    %7 = arith.addf %3, %6 : vector<2x1024xf32>
    %c0_6 = arith.constant 0 : index
    %c0_7 = arith.constant 0 : index
    %8 = vector.load %arg5[%c0_6, %c0_7] : memref<2x1024xf32, #tpu.memory_space<vmem>>, vector<2x1024xf32>
    tpu.vector_store %arg5[%c0_6, %c0_7], %7 {strides = array<i32>} : memref<2x1024xf32, #tpu.memory_space<vmem>>, vector<2x1024xf32>,
    %c6_i32 = arith.constant 6 : i32
    %9 = arith.cmpi eq, %arg1, %c6_i32 : i32
    %10 = arith.extui %9 : i1 to i32
    %c0_i32_8 = arith.constant 0 : i32
    %11 = arith.cmpi ne, %10, %c0_i32_8 : i32
    scf.if %11 {
      %c0_9 = arith.constant 0 : index
      %c0_10 = arith.constant 0 : index
      %12 = vector.load %arg5[%c0_9, %c0_10] : memref<2x1024xf32, #tpu.memory_space<vmem>>, vector<2x1024xf32>
      %c0_11 = arith.constant 0 : index
      %c0_12 = arith.constant 0 : index
      %13 = vector.load %arg4[%c0_11, %c0_12] : memref<1x1024xf32, #tpu.memory_space<vmem>>, vector<1x1024xf32>
      %14 = vector.broadcast %13 : vector<1x1024xf32> to vector<2x1024xf32>
      %15 = arith.addf %12, %14 : vector<2x1024xf32>
      %cst_13 = arith.constant 0.000000e+00 : f32
      %16 = vector.broadcast %cst_13 : f32 to vector<2x1024xf32>
      %17 = arith.maximumf %15, %16 : vector<2x1024xf32>
      %c0_14 = arith.constant 0 : index
      %c0_15 = arith.constant 0 : index
      %18 = vector.load %arg5[%c0_14, %c0_15] : memref<2x1024xf32, #tpu.memory_space<vmem>>, vector<2x1024xf32>
      tpu.vector_store %arg5[%c0_14, %c0_15], %17 {strides = array<i32>} : memref<2x1024xf32, #tpu.memory_space<vmem>>, vector<2x1024xf32>,
    } else {
    }
    return
  }
  func.func @transform_0(%arg0: i32, %arg1: i32) -> (i32, i32) {
    %c0_i32 = arith.constant 0 : i32
    %c0_i32_0 = arith.constant 0 : i32
    return %c0_i32, %arg1 : i32, i32
  }
  func.func @transform_1(%arg0: i32, %arg1: i32) -> (i32, i32) {
    %c0_i32 = arith.constant 0 : i32
    return %arg1, %arg0 : i32, i32
  }
  func.func @transform_2(%arg0: i32, %arg1: i32) -> (i32, i32) {
    %c0_i32 = arith.constant 0 : i32
    %c0_i32_0 = arith.constant 0 : i32
    return %c0_i32, %arg0 : i32, i32
  }
  func.func @transform_3(%arg0: i32, %arg1: i32) -> (i32, i32) {
    %c0_i32 = arith.constant 0 : i32
    %c0_i32_0 = arith.constant 0 : i32
    return %c0_i32, %arg0 : i32, i32
  }
}

</mosaic_0001>

<llo_original>
// kernel: tpu_custom_call.1
$region0: #{tpu_custom_call.1}
  #allocation0 [shape = 'u32[]', space=smem, size = 0x4, offset = 0x4, fixed_abs, tag = 'smem constant byte address 0x4 - core index']
  #allocation1 [shape = 'u32[144,128]{1,0:T(1,128)}', space=vmem, size = 0x12000, scoped, tag = 'internal scratch']
  %s0 = inlined_call_operand.hbm [shape: f32[2,25088], index: 0, kind: input, shape index: {}]
  %s1 = inlined_call_operand.hbm [shape: f32[25088,4096], index: 1, kind: input, shape index: {}]
  %s2 = inlined_call_operand.hbm [shape: f32[1,4096], index: 2, kind: input, shape index: {}]
  %s3 = inlined_call_operand.hbm [shape: f32[2,4096], index: 3, kind: output, shape index: {}]
  %s4 = sld [smem:[#allocation0]]
  $region65: #{tpu_custom_call.1} parent=0
    _
  %s6 = ssub.s32 1, %s4
  %s7 = scalar_select 0, %s6, %s4
  $region1: #{tpu_custom_call.1} parent=0
    #allocation2 [shape = 'u8[57344]{0}', space=vmem, size = 0xe000, scoped, tag = 'input window, operand 0']
    #allocation3 [shape = 's32[2]{0}', space=sflag, size = 0x8, scoped, tag = 'scoped memory for tpu_custom_call.1']
    #allocation4 [shape = 's32[2]{0}', space=sflag, size = 0x8, scoped, tag = 'scoped memory for tpu_custom_call.1']
    #allocation5 [shape = 'u8[29360128]{0}', space=vmem, size = 0x1c00000, scoped, tag = 'input window, operand 1']
    #allocation6 [shape = 's32[2]{0}', space=sflag, size = 0x8, scoped, tag = 'scoped memory for tpu_custom_call.1']
    #allocation7 [shape = 'u8[8192]{0}', space=vmem, size = 0x2000, scoped, tag = 'input window, operand 2']
    #allocation8 [shape = 'u8[16384]{0}', space=vmem, size = 0x4000, scoped, tag = 'output window, operand 0']
    %8 = vsyncpa [#allocation3], 0
    %s9 = scalar_lea.sflag [#allocation3], 1
    %10 = vsyncpa %s9, 0
    %11 = vsyncpa [#allocation6], 0
    %s12 = scalar_lea.sflag [#allocation6], 1
    %13 = vsyncpa %s12, 0
    %14 = vsyncpa [#allocation4], 0
    %s15 = scalar_lea.sflag [#allocation4], 1
    %16 = vsyncpa %s15, 0
    loop: start=0, step=1, limit=30
    $region2: #{tpu_custom_call.1} parent=1 // loop_pre_header
      _
    $region3: #{tpu_custom_call.1} parent=1 // loop_header
      %s18 = sphi 0, %s22
      %p19 = scmp.ge.s32.totalorder %s18, 30
      %s25 = sphi 0, %s37
      %s26 = sphi 0, %s33
      %s27 = sphi 0, %s25
      %s28 = sphi 0, %s26
      %s29 = sphi 0, %s27
      %s30 = sphi 0, %s28
      %s40 = sphi 0, %s42
      %s43 = sphi 0, %s40
      %s44 = sphi 0, %s43
      %s60 = sphi 0, %s44
      %s68 = sphi 0, %s70
      %s71 = sphi 0, %s68
      %s72 = sphi 0, %s71
      %s88 = sphi 0, %s72
      %s94 = sphi 0, %s96
      %s97 = sphi 0, %s94
      %s98 = sphi 0, %s97
      %s114 = sphi 0, %s98
      %s120 = sphi 0, %s122
      %s123 = sphi 0, %s120
      %s124 = sphi 0, %s123
      %s140 = sphi 0, %s124
    $region4: #{tpu_custom_call.1} parent=1 // loop_header_branch
      %21 = sbr.rel (%p19) target = $region8
    $region5: #{tpu_custom_call.1} parent=1 // loop_body
      %s23 = ssub.s32 %s18, 1
      %s24 = ssub.s32 %s18, 2
      %s31 = sadd.s32 1, %s26
      %p32 = scmp.ge.s32.totalorder %s31, 7
      %s33 = scalar_select %p32, 0, %s31
      %s34 = sadd.s32 1, %s25
      %s35 = scalar_select %p32, %s34, %s25
      %p36 = scmp.ge.s32.totalorder %s35, 4
      %s37 = scalar_select %p36, 0, %s35
      %s38 = ssub.s32 %s26, %s33
      %p39 = scmp.eq.s32.totalorder %s38, 0
      %s41 = sadd.s32 %s40, 1
      %s42 = scalar_select %p39, %s40, %s41
      %p45 = pneg %p39
      %p46 = scmp.eq.s32.totalorder %s18, 27
      %p47 = por %p45, %p46
      %p48 = scmp.ne.s32.totalorder %s40, %s43
      %p49 = scmp.eq.s32.totalorder %s18, 0
      %p50 = por %p48, %p49
      %p51 = scmp.ne.s32.totalorder %s40, %s43
      %p52 = scmp.eq.s32.totalorder %s23, 27
      %p53 = por %p51, %p52
      %p54 = scmp.ne.s32.totalorder %s43, %s44
      %p55 = scmp.eq.s32.totalorder %s23, 0
      %p56 = por %p54, %p55
      %p57 = scmp.ne.s32.totalorder %s43, %s44
      %p58 = scmp.eq.s32.totalorder %s24, 27
      %p59 = por %p57, %p58
      %p61 = scmp.ne.s32.totalorder %s44, %s60
      %p62 = scmp.eq.s32.totalorder %s24, 0
      %p63 = por %p61, %p62
      %s64 = ssub.s32 %s26, %s33
      %s65 = ssub.s32 %s25, %s37
      %s66 = sor.u32 %s64, %s65
      %p67 = scmp.eq.s32.totalorder %s66, 0
      %s69 = sadd.s32 %s68, 1
      %s70 = scalar_select %p67, %s68, %s69
      %p73 = pneg %p67
      %p74 = scmp.eq.s32.totalorder %s18, 27
      %p75 = por %p73, %p74
      %p76 = scmp.ne.s32.totalorder %s68, %s71
      %p77 = scmp.eq.s32.totalorder %s18, 0
      %p78 = por %p76, %p77
      %p79 = scmp.ne.s32.totalorder %s68, %s71
      %p80 = scmp.eq.s32.totalorder %s23, 27
      %p81 = por %p79, %p80
      %p82 = scmp.ne.s32.totalorder %s71, %s72
      %p83 = scmp.eq.s32.totalorder %s23, 0
      %p84 = por %p82, %p83
      %p85 = scmp.ne.s32.totalorder %s71, %s72
      %p86 = scmp.eq.s32.totalorder %s24, 27
      %p87 = por %p85, %p86
      %p89 = scmp.ne.s32.totalorder %s72, %s88
      %p90 = scmp.eq.s32.totalorder %s24, 0
      %p91 = por %p89, %p90
      %s92 = ssub.s32 %s25, %s37
      %p93 = scmp.eq.s32.totalorder %s92, 0
      %s95 = sadd.s32 %s94, 1
      %s96 = scalar_select %p93, %s94, %s95
      %p99 = pneg %p93
      %p100 = scmp.eq.s32.totalorder %s18, 27
      %p101 = por %p99, %p100
      %p102 = scmp.ne.s32.totalorder %s94, %s97
      %p103 = scmp.eq.s32.totalorder %s18, 0
      %p104 = por %p102, %p103
      %p105 = scmp.ne.s32.totalorder %s94, %s97
      %p106 = scmp.eq.s32.totalorder %s23, 27
      %p107 = por %p105, %p106
      %p108 = scmp.ne.s32.totalorder %s97, %s98
      %p109 = scmp.eq.s32.totalorder %s23, 0
      %p110 = por %p108, %p109
      %p111 = scmp.ne.s32.totalorder %s97, %s98
      %p112 = scmp.eq.s32.totalorder %s24, 27
      %p113 = por %p111, %p112
      %p115 = scmp.ne.s32.totalorder %s98, %s114
      %p116 = scmp.eq.s32.totalorder %s24, 0
      %p117 = por %p115, %p116
      %s118 = ssub.s32 %s25, %s37
      %p119 = scmp.eq.s32.totalorder %s118, 0
      %s121 = sadd.s32 %s120, 1
      %s122 = scalar_select %p119, %s120, %s121
      %p125 = pneg %p119
      %p126 = scmp.eq.s32.totalorder %s18, 27
      %p127 = por %p125, %p126
      %p128 = scmp.ne.s32.totalorder %s120, %s123
      %p129 = scmp.eq.s32.totalorder %s18, 0
      %p130 = por %p128, %p129
      %p131 = scmp.ne.s32.totalorder %s120, %s123
      %p132 = scmp.eq.s32.totalorder %s23, 27
      %p133 = por %p131, %p132
      %p134 = scmp.ne.s32.totalorder %s123, %s124
      %p135 = scmp.eq.s32.totalorder %s23, 0
      %p136 = por %p134, %p135
      %p137 = scmp.ne.s32.totalorder %s123, %s124
      %p138 = scmp.eq.s32.totalorder %s24, 27
      %p139 = por %p137, %p138
      %p141 = scmp.ne.s32.totalorder %s124, %s140
      %p142 = scmp.eq.s32.totalorder %s24, 0
      %p143 = por %p141, %p142
      %p144 = scmp.le.s32.totalorder 1, %s18
      %p145 = scmp.lt.s32.totalorder %s18, 29
      %p146 = pnand %p144, %p145
      %p147 = pneg %p146
      // Predicated region
      $region9: #{tpu_custom_call.1} parent=5 // pred_check
        _
      $region10: #{tpu_custom_call.1} parent=5 // pred_check_branch
        %149 = sbr.rel (%p146) target = $region12
      $region11: #{tpu_custom_call.1} parent=5 // pred_region
        %s150 = ssub.s32 %s18, 1
      $region12: #{tpu_custom_call.1} parent=5 // pred_fallthru
        _
      %p151 = scmp.lt.s32.totalorder %s18, 28
      // Predicated region
      $region13: #{tpu_custom_call.1} parent=5 // pred_check
        %p152 = pneg %p151
      $region14: #{tpu_custom_call.1} parent=5 // pred_check_branch
        %154 = sbr.rel (%p152) target = $region16
      $region15: #{tpu_custom_call.1} parent=5 // pred_region
        // Predicated region
        $region17: #{tpu_custom_call.1} parent=15 // pred_check
          %p155 = pneg %p50
        $region18: #{tpu_custom_call.1} parent=15 // pred_check_branch
          %157 = sbr.rel (%p155) target = $region20
        $region19: #{tpu_custom_call.1} parent=15 // pred_region
          %s158 = sand.u32 %s40, 1
          %s159 = scalar_lea.sflag [#allocation3], %s158
          %s160 = sand.u32 %s40, 1
          %s161 = smul.addr %s160, 56
          %s162 = scalar_lea.vmem [#allocation2], %s161
          %s163 = smul.u32 28, %s26
          %s165 = ssub.s32 896, 896
          %166 = vsyncadd %s159, %s165
          %s167 = smul.addr %s163, 32
          %s168 = scalar_lea.hbm %s0, %s167
          %s170 = sshll.u32 %s162, 4
          %s171 = int_to_ptr.vmem [resolvable:$true] %s170
          %173 = dma.hbm_to_vmem [thread:$0]  %s168, 896, %s171, %s159
        $region20: #{tpu_custom_call.1} parent=15 // pred_fallthru
          _
        // Predicated region
        $region21: #{tpu_custom_call.1} parent=15 // pred_check
          %p174 = pneg %p78
        $region22: #{tpu_custom_call.1} parent=15 // pred_check_branch
          %176 = sbr.rel (%p174) target = $region24
        $region23: #{tpu_custom_call.1} parent=15 // pred_region
          %s177 = sand.u32 %s18, 1
          %s178 = scalar_lea.sflag [#allocation6], %s177
          %s179 = sand.u32 %s68, 1
          %s180 = smul.addr %s179, 28672
          %s181 = scalar_lea.vmem [#allocation5], %s180
          %s182 = smul.u32 448, %s26
          %s183 = smul.u32 8, %s25
          %s185 = ssub.s32 458752, 458752
          %186 = vsyncadd %s178, %s185
          %s187 = smul.addr %s182, 32
          %s188 = sadd.s32 %s183, %s187
          %s189 = smul.addr %s188, 128
          %s190 = scalar_lea.hbm %s1, %s189
          %s191 = sshll.u32 %s181, 4
          %s192 = int_to_ptr.vmem [resolvable:$true] %s191
          %197 = dma.hbm_to_vmem [thread:$0]  %s190, 458752, %s192, %s178, 4096, 1024, 64
        $region24: #{tpu_custom_call.1} parent=15 // pred_fallthru
          _
        // Predicated region
        $region25: #{tpu_custom_call.1} parent=15 // pred_check
          %p198 = pneg %p104
        $region26: #{tpu_custom_call.1} parent=15 // pred_check_branch
          %200 = sbr.rel (%p198) target = $region28
        $region27: #{tpu_custom_call.1} parent=15 // pred_region
          %s201 = sand.u32 %s18, 1
          %s202 = scalar_lea.sflag [#allocation6], %s201
          %s203 = sand.u32 %s94, 1
          %s204 = smul.addr %s203, 8
          %s205 = scalar_lea.vmem [#allocation7], %s204
          %s206 = smul.u32 8, %s25
          %s208 = ssub.s32 128, 128
          %209 = vsyncadd %s202, %s208
          %s210 = smul.addr %s206, 16
          %s211 = scalar_lea.hbm %s2, %s210
          %s213 = sshll.u32 %s205, 4
          %s214 = int_to_ptr.vmem [resolvable:$true] %s213
          %216 = dma.hbm_to_vmem [thread:$0]  %s211, 128, %s214, %s202
        $region28: #{tpu_custom_call.1} parent=15 // pred_fallthru
          _
      $region16: #{tpu_custom_call.1} parent=5 // pred_fallthru
        _
      %p217 = scmp.le.s32.totalorder 1, %s18
      %p218 = scmp.lt.s32.totalorder %s18, 29
      %p219 = pnand %p217, %p218
      %p220 = pneg %p219
      // Predicated region
      $region29: #{tpu_custom_call.1} parent=5 // pred_check
        _
      $region30: #{tpu_custom_call.1} parent=5 // pred_check_branch
        %222 = sbr.rel (%p219) target = $region32
      $region31: #{tpu_custom_call.1} parent=5 // pred_region
        %s223 = ssub.s32 %s18, 1
        %s224 = sand.u32 %s43, 1
        %s225 = scalar_lea.sflag [#allocation3], %s224
        %s226 = sand.u32 %s43, 1
        %s227 = smul.addr %s226, 56
        %s228 = scalar_lea.vmem [#allocation2], %s227
        // Predicated region
        $region33: #{tpu_custom_call.1} parent=31 // pred_check
          %p229 = pneg %p56
        $region34: #{tpu_custom_call.1} parent=31 // pred_check_branch
          %231 = sbr.rel (%p229) target = $region36
        $region35: #{tpu_custom_call.1} parent=31 // pred_region
          %232 = dma.done %s225, 896
        $region36: #{tpu_custom_call.1} parent=31 // pred_fallthru
          _
        %s233 = sand.u32 %s23, 1
        %s234 = scalar_lea.sflag [#allocation6], %s233
        %s235 = sand.u32 %s71, 1
        %s236 = smul.addr %s235, 28672
        %s237 = scalar_lea.vmem [#allocation5], %s236
        // Predicated region
        $region37: #{tpu_custom_call.1} parent=31 // pred_check
          %p238 = pneg %p84
        $region38: #{tpu_custom_call.1} parent=31 // pred_check_branch
          %240 = sbr.rel (%p238) target = $region40
        $region39: #{tpu_custom_call.1} parent=31 // pred_region
          %241 = dma.done %s234, 458752
        $region40: #{tpu_custom_call.1} parent=31 // pred_fallthru
          _
        %s242 = sand.u32 %s23, 1
        %s243 = scalar_lea.sflag [#allocation6], %s242
        %s244 = sand.u32 %s97, 1
        %s245 = smul.addr %s244, 8
        %s246 = scalar_lea.vmem [#allocation7], %s245
        // Predicated region
        $region41: #{tpu_custom_call.1} parent=31 // pred_check
          %p247 = pneg %p110
        $region42: #{tpu_custom_call.1} parent=31 // pred_check_branch
          %249 = sbr.rel (%p247) target = $region44
        $region43: #{tpu_custom_call.1} parent=31 // pred_region
          %250 = dma.done %s243, 128
        $region44: #{tpu_custom_call.1} parent=31 // pred_fallthru
          _
        %s251 = sand.u32 %s43, 1
        %s252 = scalar_lea.sflag [#allocation3], %s251
        %s253 = sand.u32 %s43, 1
        %s254 = smul.addr %s253, 56
        %s255 = scalar_lea.vmem [#allocation2], %s254
        %p256 = pneg %p56
        %p257 = pneg %p53
        %s258 = sand.u32 %s23, 1
        %s259 = scalar_lea.sflag [#allocation6], %s258
        %s260 = sand.u32 %s71, 1
        %s261 = smul.addr %s260, 28672
        %s262 = scalar_lea.vmem [#allocation5], %s261
        %p263 = pneg %p84
        %p264 = pneg %p81
        %s265 = sand.u32 %s23, 1
        %s266 = scalar_lea.sflag [#allocation6], %s265
        %s267 = sand.u32 %s97, 1
        %s268 = smul.addr %s267, 8
        %s269 = scalar_lea.vmem [#allocation7], %s268
        %p270 = pneg %p110
        %p271 = pneg %p107
        %p272 = pneg %p136
        %p273 = pneg %p133
        %s274 = sand.u32 %s123, 1
        %s275 = scalar_lea.sflag [#allocation4], %s274
        %s276 = sand.u32 %s123, 1
        %s277 = smul.addr %s276, 16
        %s278 = scalar_lea.vmem [#allocation8], %s277
        %s279 = smul.u32 28, %s28
        %s280 = smul.u32 448, %s28
        %s281 = smul.u32 8, %s27
        %s282 = smul.u32 8, %s27
        %s283 = smul.u32 8, %s27
        %p284 = scmp.eq.s32.totalorder %s28, 0
        // Predicated region
        $region45: #{tpu_custom_call.1} parent=31 // pred_check
          %p285 = pneg %p284
        $region46: #{tpu_custom_call.1} parent=31 // pred_check_branch
          %287 = sbr.rel (%p285) target = $region48
        $region47: #{tpu_custom_call.1} parent=31 // pred_region
          %288 = vst [vmem:[%s278] sm:$0xff] 0.0
          %289 = vst [vmem:[%s278 + $0x8] sm:$0xff] 0.0
        $region48: #{tpu_custom_call.1} parent=31 // pred_fallthru
          _
        %v290 = vld [vmem:[%s278] sm:$0xff]
        %v291 = vld [vmem:[%s278 + $0x8] sm:$0xff]
        %v292 = vld [vmem:[%s228] sm:$0xff]
        %v293 = vld [vmem:[%s228 + $0x8] sm:$0xff]
        %v294 = vld [vmem:[%s228 + $0x10] sm:$0xff]
        %v295 = vld [vmem:[%s228 + $0x18] sm:$0xff]
        %v296 = vld [vmem:[%s228 + $0x20] sm:$0xff]
        %v297 = vld [vmem:[%s228 + $0x28] sm:$0xff]
        %v298 = vld [vmem:[%s228 + $0x30] sm:$0xff]
        %v299 = vld [vmem:[%s237] sm:$0xff]
        %v300 = vld [vmem:[%s237 + $0x8] sm:$0xff]
        %v301 = vld [vmem:[%s237 + $0x10] sm:$0xff]
        %v302 = vld [vmem:[%s237 + $0x18] sm:$0xff]
        %v303 = vld [vmem:[%s237 + $0x20] sm:$0xff]
        %v304 = vld [vmem:[%s237 + $0x28] sm:$0xff]
        %v305 = vld [vmem:[%s237 + $0x30] sm:$0xff]
        %v306 = vld [vmem:[%s237 + $0x38] sm:$0xff]
        %v307 = vld [vmem:[%s237 + $0x40] sm:$0xff]
        %v308 = vld [vmem:[%s237 + $0x48] sm:$0xff]
        %v309 = vld [vmem:[%s237 + $0x50] sm:$0xff]
        %v310 = vld [vmem:[%s237 + $0x58] sm:$0xff]
        %v311 = vld [vmem:[%s237 + $0x60] sm:$0xff]
        %v312 = vld [vmem:[%s237 + $0x68] sm:$0xff]
        %v313 = vld [vmem:[%s237 + $0x70] sm:$0xff]
        %v314 = vld [vmem:[%s237 + $0x78] sm:$0xff]
        %v315 = vld [vmem:[%s237 + $0x80] sm:$0xff]
        %v316 = vld [vmem:[%s237 + $0x88] sm:$0xff]
        %v317 = vld [vmem:[%s237 + $0x90] sm:$0xff]
        %v318 = vld [vmem:[%s237 + $0x98] sm:$0xff]
        %v319 = vld [vmem:[%s237 + $0xa0] sm:$0xff]
        %v320 = vld [vmem:[%s237 + $0xa8] sm:$0xff]
        %v321 = vld [vmem:[%s237 + $0xb0] sm:$0xff]
        %v322 = vld [vmem:[%s237 + $0xb8] sm:$0xff]
        %v323 = vld [vmem:[%s237 + $0xc0] sm:$0xff]
        %v324 = vld [vmem:[%s237 + $0xc8] sm:$0xff]
        %v325 = vld [vmem:[%s237 + $0xd0] sm:$0xff]
        %v326 = vld [vmem:[%s237 + $0xd8] sm:$0xff]
        %v327 = vld [vmem:[%s237 + $0xe0] sm:$0xff]
        %v328 = vld [vmem:[%s237 + $0xe8] sm:$0xff]
        %v329 = vld [vmem:[%s237 + $0xf0] sm:$0xff]
        %v330 = vld [vmem:[%s237 + $0xf8] sm:$0xff]
        %v331 = vld [vmem:[%s237 + $0x100] sm:$0xff]
        %v332 = vld [vmem:[%s237 + $0x108] sm:$0xff]
        %v333 = vld [vmem:[%s237 + $0x110] sm:$0xff]
        %v334 = vld [vmem:[%s237 + $0x118] sm:$0xff]
        %v335 = vld [vmem:[%s237 + $0x120] sm:$0xff]
        %v336 = vld [vmem:[%s237 + $0x128] sm:$0xff]
        %v337 = vld [vmem:[%s237 + $0x130] sm:$0xff]
        %v338 = vld [vmem:[%s237 + $0x138] sm:$0xff]
        %v339 = vld [vmem:[%s237 + $0x140] sm:$0xff]
        %v340 = vld [vmem:[%s237 + $0x148] sm:$0xff]
        %v341 = vld [vmem:[%s237 + $0x150] sm:$0xff]
        %v342 = vld [vmem:[%s237 + $0x158] sm:$0xff]
        %v343 = vld [vmem:[%s237 + $0x160] sm:$0xff]
        %v344 = vld [vmem:[%s237 + $0x168] sm:$0xff]
        %v345 = vld [vmem:[%s237 + $0x170] sm:$0xff]
        %v346 = vld [vmem:[%s237 + $0x178] sm:$0xff]
        %v347 = vld [vmem:[%s237 + $0x180] sm:$0xff]
        %v348 = vld [vmem:[%s237 + $0x188] sm:$0xff]
        %v349 = vld [vmem:[%s237 + $0x190] sm:$0xff]
        %v350 = vld [vmem:[%s237 + $0x198] sm:$0xff]
        %v351 = vld [vmem:[%s237 + $0x1a0] sm:$0xff]
        %v352 = vld [vmem:[%s237 + $0x1a8] sm:$0xff]
        %v353 = vld [vmem:[%s237 + $0x1b0] sm:$0xff]
        %v354 = vld [vmem:[%s237 + $0x1b8] sm:$0xff]
        %v355 = vld [vmem:[%s237 + $0x1c0] sm:$0xff]
        %v356 = vld [vmem:[%s237 + $0x1c8] sm:$0xff]
        %v357 = vld [vmem:[%s237 + $0x1d0] sm:$0xff]
        %v358 = vld [vmem:[%s237 + $0x1d8] sm:$0xff]
        %v359 = vld [vmem:[%s237 + $0x1e0] sm:$0xff]
        %v360 = vld [vmem:[%s237 + $0x1e8] sm:$0xff]
        %v361 = vld [vmem:[%s237 + $0x1f0] sm:$0xff]
        %v362 = vld [vmem:[%s237 + $0x1f8] sm:$0xff]
        %v363 = vld [vmem:[%s237 + $0x200] sm:$0xff]
        %v364 = vld [vmem:[%s237 + $0x208] sm:$0xff]
        %v365 = vld [vmem:[%s237 + $0x210] sm:$0xff]
        %v366 = vld [vmem:[%s237 + $0x218] sm:$0xff]
        %v367 = vld [vmem:[%s237 + $0x220] sm:$0xff]
        %v368 = vld [vmem:[%s237 + $0x228] sm:$0xff]
        %v369 = vld [vmem:[%s237 + $0x230] sm:$0xff]
        %v370 = vld [vmem:[%s237 + $0x238] sm:$0xff]
        %v371 = vld [vmem:[%s237 + $0x240] sm:$0xff]
        %v372 = vld [vmem:[%s237 + $0x248] sm:$0xff]
        %v373 = vld [vmem:[%s237 + $0x250] sm:$0xff]
        %v374 = vld [vmem:[%s237 + $0x258] sm:$0xff]
        %v375 = vld [vmem:[%s237 + $0x260] sm:$0xff]
        %v376 = vld [vmem:[%s237 + $0x268] sm:$0xff]
        %v377 = vld [vmem:[%s237 + $0x270] sm:$0xff]
        %v378 = vld [vmem:[%s237 + $0x278] sm:$0xff]
        %v379 = vld [vmem:[%s237 + $0x280] sm:$0xff]
        %v380 = vld [vmem:[%s237 + $0x288] sm:$0xff]
        %v381 = vld [vmem:[%s237 + $0x290] sm:$0xff]
        %v382 = vld [vmem:[%s237 + $0x298] sm:$0xff]
        %v383 = vld [vmem:[%s237 + $0x2a0] sm:$0xff]
        %v384 = vld [vmem:[%s237 + $0x2a8] sm:$0xff]
        %v385 = vld [vmem:[%s237 + $0x2b0] sm:$0xff]
        %v386 = vld [vmem:[%s237 + $0x2b8] sm:$0xff]
        %v387 = vld [vmem:[%s237 + $0x2c0] sm:$0xff]
        %v388 = vld [vmem:[%s237 + $0x2c8] sm:$0xff]
        %v389 = vld [vmem:[%s237 + $0x2d0] sm:$0xff]
        %v390 = vld [vmem:[%s237 + $0x2d8] sm:$0xff]
        %v391 = vld [vmem:[%s237 + $0x2e0] sm:$0xff]
        %v392 = vld [vmem:[%s237 + $0x2e8] sm:$0xff]
        %v393 = vld [vmem:[%s237 + $0x2f0] sm:$0xff]
        %v394 = vld [vmem:[%s237 + $0x2f8] sm:$0xff]
        %v395 = vld [vmem:[%s237 + $0x300] sm:$0xff]
        %v396 = vld [vmem:[%s237 + $0x308] sm:$0xff]
        %v397 = vld [vmem:[%s237 + $0x310] sm:$0xff]
        %v398 = vld [vmem:[%s237 + $0x318] sm:$0xff]
        %v399 = vld [vmem:[%s237 + $0x320] sm:$0xff]
        %v400 = vld [vmem:[%s237 + $0x328] sm:$0xff]
        %v401 = vld [vmem:[%s237 + $0x330] sm:$0xff]
        %v402 = vld [vmem:[%s237 + $0x338] sm:$0xff]
        %v403 = vld [vmem:[%s237 + $0x340] sm:$0xff]
        %v404 = vld [vmem:[%s237 + $0x348] sm:$0xff]
        %v405 = vld [vmem:[%s237 + $0x350] sm:$0xff]
        %v406 = vld [vmem:[%s237 + $0x358] sm:$0xff]
        %v407 = vld [vmem:[%s237 + $0x360] sm:$0xff]
        %v408 = vld [vmem:[%s237 + $0x368] sm:$0xff]
        %v409 = vld [vmem:[%s237 + $0x370] sm:$0xff]
        %v410 = vld [vmem:[%s237 + $0x378] sm:$0xff]
        %v411 = vld [vmem:[%s237 + $0x380] sm:$0xff]
        %v412 = vld [vmem:[%s237 + $0x388] sm:$0xff]
        %v413 = vld [vmem:[%s237 + $0x390] sm:$0xff]
        %v414 = vld [vmem:[%s237 + $0x398] sm:$0xff]
        %v415 = vld [vmem:[%s237 + $0x3a0] sm:$0xff]
        %v416 = vld [vmem:[%s237 + $0x3a8] sm:$0xff]
        %v417 = vld [vmem:[%s237 + $0x3b0] sm:$0xff]
        %v418 = vld [vmem:[%s237 + $0x3b8] sm:$0xff]
        %v419 = vld [vmem:[%s237 + $0x3c0] sm:$0xff]
        %v420 = vld [vmem:[%s237 + $0x3c8] sm:$0xff]
        %v421 = vld [vmem:[%s237 + $0x3d0] sm:$0xff]
        %v422 = vld [vmem:[%s237 + $0x3d8] sm:$0xff]
        %v423 = vld [vmem:[%s237 + $0x3e0] sm:$0xff]
        %v424 = vld [vmem:[%s237 + $0x3e8] sm:$0xff]
        %v425 = vld [vmem:[%s237 + $0x3f0] sm:$0xff]
        %v426 = vld [vmem:[%s237 + $0x3f8] sm:$0xff]
        %v427 = vld [vmem:[%s237 + $0x400] sm:$0xff]
        %v428 = vld [vmem:[%s237 + $0x408] sm:$0xff]
        %v429 = vld [vmem:[%s237 + $0x410] sm:$0xff]
        %v430 = vld [vmem:[%s237 + $0x418] sm:$0xff]
        %v431 = vld [vmem:[%s237 + $0x420] sm:$0xff]
        %v432 = vld [vmem:[%s237 + $0x428] sm:$0xff]
        %v433 = vld [vmem:[%s237 + $0x430] sm:$0xff]
        %v434 = vld [vmem:[%s237 + $0x438] sm:$0xff]
        %v435 = vld [vmem:[%s237 + $0x440] sm:$0xff]
        %v436 = vld [vmem:[%s237 + $0x448] sm:$0xff]
        %v437 = vld [vmem:[%s237 + $0x450] sm:$0xff]
        %v438 = vld [vmem:[%s237 + $0x458] sm:$0xff]
        %v439 = vld [vmem:[%s237 + $0x460] sm:$0xff]
        %v440 = vld [vmem:[%s237 + $0x468] sm:$0xff]
        %v441 = vld [vmem:[%s237 + $0x470] sm:$0xff]
        %v442 = vld [vmem:[%s237 + $0x478] sm:$0xff]
        %v443 = vld [vmem:[%s237 + $0x480] sm:$0xff]
        %v444 = vld [vmem:[%s237 + $0x488] sm:$0xff]
        %v445 = vld [vmem:[%s237 + $0x490] sm:$0xff]
        %v446 = vld [vmem:[%s237 + $0x498] sm:$0xff]
        %v447 = vld [vmem:[%s237 + $0x4a0] sm:$0xff]
        %v448 = vld [vmem:[%s237 + $0x4a8] sm:$0xff]
        %v449 = vld [vmem:[%s237 + $0x4b0] sm:$0xff]
        %v450 = vld [vmem:[%s237 + $0x4b8] sm:$0xff]
        %v451 = vld [vmem:[%s237 + $0x4c0] sm:$0xff]
        %v452 = vld [vmem:[%s237 + $0x4c8] sm:$0xff]
        %v453 = vld [vmem:[%s237 + $0x4d0] sm:$0xff]
        %v454 = vld [vmem:[%s237 + $0x4d8] sm:$0xff]
        %v455 = vld [vmem:[%s237 + $0x4e0] sm:$0xff]
        %v456 = vld [vmem:[%s237 + $0x4e8] sm:$0xff]
        %v457 = vld [vmem:[%s237 + $0x4f0] sm:$0xff]
        %v458 = vld [vmem:[%s237 + $0x4f8] sm:$0xff]
        %v459 = vld [vmem:[%s237 + $0x500] sm:$0xff]
        %v460 = vld [vmem:[%s237 + $0x508] sm:$0xff]
        %v461 = vld [vmem:[%s237 + $0x510] sm:$0xff]
        %v462 = vld [vmem:[%s237 + $0x518] sm:$0xff]
        %v463 = vld [vmem:[%s237 + $0x520] sm:$0xff]
        %v464 = vld [vmem:[%s237 + $0x528] sm:$0xff]
        %v465 = vld [vmem:[%s237 + $0x530] sm:$0xff]
        %v466 = vld [vmem:[%s237 + $0x538] sm:$0xff]
        %v467 = vld [vmem:[%s237 + $0x540] sm:$0xff]
        %v468 = vld [vmem:[%s237 + $0x548] sm:$0xff]
        %v469 = vld [vmem:[%s237 + $0x550] sm:$0xff]
        %v470 = vld [vmem:[%s237 + $0x558] sm:$0xff]
        %v471 = vld [vmem:[%s237 + $0x560] sm:$0xff]
        %v472 = vld [vmem:[%s237 + $0x568] sm:$0xff]
        %v473 = vld [vmem:[%s237 + $0x570] sm:$0xff]
        %v474 = vld [vmem:[%s237 + $0x578] sm:$0xff]
        %v475 = vld [vmem:[%s237 + $0x580] sm:$0xff]
        %v476 = vld [vmem:[%s237 + $0x588] sm:$0xff]
        %v477 = vld [vmem:[%s237 + $0x590] sm:$0xff]
        %v478 = vld [vmem:[%s237 + $0x598] sm:$0xff]
        %v479 = vld [vmem:[%s237 + $0x5a0] sm:$0xff]
        %v480 = vld [vmem:[%s237 + $0x5a8] sm:$0xff]
        %v481 = vld [vmem:[%s237 + $0x5b0] sm:$0xff]
        %v482 = vld [vmem:[%s237 + $0x5b8] sm:$0xff]
        %v483 = vld [vmem:[%s237 + $0x5c0] sm:$0xff]
        %v484 = vld [vmem:[%s237 + $0x5c8] sm:$0xff]
        %v485 = vld [vmem:[%s237 + $0x5d0] sm:$0xff]
        %v486 = vld [vmem:[%s237 + $0x5d8] sm:$0xff]
        %v487 = vld [vmem:[%s237 + $0x5e0] sm:$0xff]
        %v488 = vld [vmem:[%s237 + $0x5e8] sm:$0xff]
        %v489 = vld [vmem:[%s237 + $0x5f0] sm:$0xff]
        %v490 = vld [vmem:[%s237 + $0x5f8] sm:$0xff]
        %v491 = vld [vmem:[%s237 + $0x600] sm:$0xff]
        %v492 = vld [vmem:[%s237 + $0x608] sm:$0xff]
        %v493 = vld [vmem:[%s237 + $0x610] sm:$0xff]
        %v494 = vld [vmem:[%s237 + $0x618] sm:$0xff]
        %v495 = vld [vmem:[%s237 + $0x620] sm:$0xff]
        %v496 = vld [vmem:[%s237 + $0x628] sm:$0xff]
        %v497 = vld [vmem:[%s237 + $0x630] sm:$0xff]
        %v498 = vld [vmem:[%s237 + $0x638] sm:$0xff]
        %v499 = vld [vmem:[%s237 + $0x640] sm:$0xff]
        %v500 = vld [vmem:[%s237 + $0x648] sm:$0xff]
        %v501 = vld [vmem:[%s237 + $0x650] sm:$0xff]
        %v502 = vld [vmem:[%s237 + $0x658] sm:$0xff]
        %v503 = vld [vmem:[%s237 + $0x660] sm:$0xff]
        %v504 = vld [vmem:[%s237 + $0x668] sm:$0xff]
        %v505 = vld [vmem:[%s237 + $0x670] sm:$0xff]
        %v506 = vld [vmem:[%s237 + $0x678] sm:$0xff]
        %v507 = vld [vmem:[%s237 + $0x680] sm:$0xff]
        %v508 = vld [vmem:[%s237 + $0x688] sm:$0xff]
        %v509 = vld [vmem:[%s237 + $0x690] sm:$0xff]
        %v510 = vld [vmem:[%s237 + $0x698] sm:$0xff]
        %v511 = vld [vmem:[%s237 + $0x6a0] sm:$0xff]
        %v512 = vld [vmem:[%s237 + $0x6a8] sm:$0xff]
        %v513 = vld [vmem:[%s237 + $0x6b0] sm:$0xff]
        %v514 = vld [vmem:[%s237 + $0x6b8] sm:$0xff]
        %v515 = vld [vmem:[%s237 + $0x6c0] sm:$0xff]
        %v516 = vld [vmem:[%s237 + $0x6c8] sm:$0xff]
        %v517 = vld [vmem:[%s237 + $0x6d0] sm:$0xff]
        %v518 = vld [vmem:[%s237 + $0x6d8] sm:$0xff]
        %v519 = vld [vmem:[%s237 + $0x6e0] sm:$0xff]
        %v520 = vld [vmem:[%s237 + $0x6e8] sm:$0xff]
        %v521 = vld [vmem:[%s237 + $0x6f0] sm:$0xff]
        %v522 = vld [vmem:[%s237 + $0x6f8] sm:$0xff]
        %v523 = vld [vmem:[%s237 + $0x700] sm:$0xff]
        %v524 = vld [vmem:[%s237 + $0x708] sm:$0xff]
        %v525 = vld [vmem:[%s237 + $0x710] sm:$0xff]
        %v526 = vld [vmem:[%s237 + $0x718] sm:$0xff]
        %v527 = vld [vmem:[%s237 + $0x720] sm:$0xff]
        %v528 = vld [vmem:[%s237 + $0x728] sm:$0xff]
        %v529 = vld [vmem:[%s237 + $0x730] sm:$0xff]
        %v530 = vld [vmem:[%s237 + $0x738] sm:$0xff]
        %v531 = vld [vmem:[%s237 + $0x740] sm:$0xff]
        %v532 = vld [vmem:[%s237 + $0x748] sm:$0xff]
        %v533 = vld [vmem:[%s237 + $0x750] sm:$0xff]
        %v534 = vld [vmem:[%s237 + $0x758] sm:$0xff]
        %v535 = vld [vmem:[%s237 + $0x760] sm:$0xff]
        %v536 = vld [vmem:[%s237 + $0x768] sm:$0xff]
        %v537 = vld [vmem:[%s237 + $0x770] sm:$0xff]
        %v538 = vld [vmem:[%s237 + $0x778] sm:$0xff]
        %v539 = vld [vmem:[%s237 + $0x780] sm:$0xff]
        %v540 = vld [vmem:[%s237 + $0x788] sm:$0xff]
        %v541 = vld [vmem:[%s237 + $0x790] sm:$0xff]
        %v542 = vld [vmem:[%s237 + $0x798] sm:$0xff]
        %v543 = vld [vmem:[%s237 + $0x7a0] sm:$0xff]
        %v544 = vld [vmem:[%s237 + $0x7a8] sm:$0xff]
        %v545 = vld [vmem:[%s237 + $0x7b0] sm:$0xff]
        %v546 = vld [vmem:[%s237 + $0x7b8] sm:$0xff]
        %v547 = vld [vmem:[%s237 + $0x7c0] sm:$0xff]
        %v548 = vld [vmem:[%s237 + $0x7c8] sm:$0xff]
        %v549 = vld [vmem:[%s237 + $0x7d0] sm:$0xff]
        %v550 = vld [vmem:[%s237 + $0x7d8] sm:$0xff]
        %v551 = vld [vmem:[%s237 + $0x7e0] sm:$0xff]
        %v552 = vld [vmem:[%s237 + $0x7e8] sm:$0xff]
        %v553 = vld [vmem:[%s237 + $0x7f0] sm:$0xff]
        %v554 = vld [vmem:[%s237 + $0x7f8] sm:$0xff]
        %v555 = vld [vmem:[%s237 + $0x800] sm:$0xff]
        %v556 = vld [vmem:[%s237 + $0x808] sm:$0xff]
        %v557 = vld [vmem:[%s237 + $0x810] sm:$0xff]
        %v558 = vld [vmem:[%s237 + $0x818] sm:$0xff]
        %v559 = vld [vmem:[%s237 + $0x820] sm:$0xff]
        %v560 = vld [vmem:[%s237 + $0x828] sm:$0xff]
        %v561 = vld [vmem:[%s237 + $0x830] sm:$0xff]
        %v562 = vld [vmem:[%s237 + $0x838] sm:$0xff]
        %v563 = vld [vmem:[%s237 + $0x840] sm:$0xff]
        %v564 = vld [vmem:[%s237 + $0x848] sm:$0xff]
        %v565 = vld [vmem:[%s237 + $0x850] sm:$0xff]
        %v566 = vld [vmem:[%s237 + $0x858] sm:$0xff]
        %v567 = vld [vmem:[%s237 + $0x860] sm:$0xff]
        %v568 = vld [vmem:[%s237 + $0x868] sm:$0xff]
        %v569 = vld [vmem:[%s237 + $0x870] sm:$0xff]
        %v570 = vld [vmem:[%s237 + $0x878] sm:$0xff]
        %v571 = vld [vmem:[%s237 + $0x880] sm:$0xff]
        %v572 = vld [vmem:[%s237 + $0x888] sm:$0xff]
        %v573 = vld [vmem:[%s237 + $0x890] sm:$0xff]
        %v574 = vld [vmem:[%s237 + $0x898] sm:$0xff]
        %v575 = vld [vmem:[%s237 + $0x8a0] sm:$0xff]
        %v576 = vld [vmem:[%s237 + $0x8a8] sm:$0xff]
        %v577 = vld [vmem:[%s237 + $0x8b0] sm:$0xff]
        %v578 = vld [vmem:[%s237 + $0x8b8] sm:$0xff]
        %v579 = vld [vmem:[%s237 + $0x8c0] sm:$0xff]
        %v580 = vld [vmem:[%s237 + $0x8c8] sm:$0xff]
        %v581 = vld [vmem:[%s237 + $0x8d0] sm:$0xff]
        %v582 = vld [vmem:[%s237 + $0x8d8] sm:$0xff]
        %v583 = vld [vmem:[%s237 + $0x8e0] sm:$0xff]
        %v584 = vld [vmem:[%s237 + $0x8e8] sm:$0xff]
        %v585 = vld [vmem:[%s237 + $0x8f0] sm:$0xff]
        %v586 = vld [vmem:[%s237 + $0x8f8] sm:$0xff]
        %v587 = vld [vmem:[%s237 + $0x900] sm:$0xff]
        %v588 = vld [vmem:[%s237 + $0x908] sm:$0xff]
        %v589 = vld [vmem:[%s237 + $0x910] sm:$0xff]
        %v590 = vld [vmem:[%s237 + $0x918] sm:$0xff]
        %v591 = vld [vmem:[%s237 + $0x920] sm:$0xff]
        %v592 = vld [vmem:[%s237 + $0x928] sm:$0xff]
        %v593 = vld [vmem:[%s237 + $0x930] sm:$0xff]
        %v594 = vld [vmem:[%s237 + $0x938] sm:$0xff]
        %v595 = vld [vmem:[%s237 + $0x940] sm:$0xff]
        %v596 = vld [vmem:[%s237 + $0x948] sm:$0xff]
        %v597 = vld [vmem:[%s237 + $0x950] sm:$0xff]
        %v598 = vld [vmem:[%s237 + $0x958] sm:$0xff]
        %v599 = vld [vmem:[%s237 + $0x960] sm:$0xff]
        %v600 = vld [vmem:[%s237 + $0x968] sm:$0xff]
        %v601 = vld [vmem:[%s237 + $0x970] sm:$0xff]
        %v602 = vld [vmem:[%s237 + $0x978] sm:$0xff]
        %v603 = vld [vmem:[%s237 + $0x980] sm:$0xff]
        %v604 = vld [vmem:[%s237 + $0x988] sm:$0xff]
        %v605 = vld [vmem:[%s237 + $0x990] sm:$0xff]
        %v606 = vld [vmem:[%s237 + $0x998] sm:$0xff]
        %v607 = vld [vmem:[%s237 + $0x9a0] sm:$0xff]
        %v608 = vld [vmem:[%s237 + $0x9a8] sm:$0xff]
        %v609 = vld [vmem:[%s237 + $0x9b0] sm:$0xff]
        %v610 = vld [vmem:[%s237 + $0x9b8] sm:$0xff]
        %v611 = vld [vmem:[%s237 + $0x9c0] sm:$0xff]
        %v612 = vld [vmem:[%s237 + $0x9c8] sm:$0xff]
        %v613 = vld [vmem:[%s237 + $0x9d0] sm:$0xff]
        %v614 = vld [vmem:[%s237 + $0x9d8] sm:$0xff]
        %v615 = vld [vmem:[%s237 + $0x9e0] sm:$0xff]
        %v616 = vld [vmem:[%s237 + $0x9e8] sm:$0xff]
        %v617 = vld [vmem:[%s237 + $0x9f0] sm:$0xff]
        %v618 = vld [vmem:[%s237 + $0x9f8] sm:$0xff]
        %v619 = vld [vmem:[%s237 + $0xa00] sm:$0xff]
        %v620 = vld [vmem:[%s237 + $0xa08] sm:$0xff]
        %v621 = vld [vmem:[%s237 + $0xa10] sm:$0xff]
        %v622 = vld [vmem:[%s237 + $0xa18] sm:$0xff]
        %v623 = vld [vmem:[%s237 + $0xa20] sm:$0xff]
        %v624 = vld [vmem:[%s237 + $0xa28] sm:$0xff]
        %v625 = vld [vmem:[%s237 + $0xa30] sm:$0xff]
        %v626 = vld [vmem:[%s237 + $0xa38] sm:$0xff]
        %v627 = vld [vmem:[%s237 + $0xa40] sm:$0xff]
        %v628 = vld [vmem:[%s237 + $0xa48] sm:$0xff]
        %v629 = vld [vmem:[%s237 + $0xa50] sm:$0xff]
        %v630 = vld [vmem:[%s237 + $0xa58] sm:$0xff]
        %v631 = vld [vmem:[%s237 + $0xa60] sm:$0xff]
        %v632 = vld [vmem:[%s237 + $0xa68] sm:$0xff]
        %v633 = vld [vmem:[%s237 + $0xa70] sm:$0xff]
        %v634 = vld [vmem:[%s237 + $0xa78] sm:$0xff]
        %v635 = vld [vmem:[%s237 + $0xa80] sm:$0xff]
        %v636 = vld [vmem:[%s237 + $0xa88] sm:$0xff]
        %v637 = vld [vmem:[%s237 + $0xa90] sm:$0xff]
        %v638 = vld [vmem:[%s237 + $0xa98] sm:$0xff]
        %v639 = vld [vmem:[%s237 + $0xaa0] sm:$0xff]
        %v640 = vld [vmem:[%s237 + $0xaa8] sm:$0xff]
        %v641 = vld [vmem:[%s237 + $0xab0] sm:$0xff]
        %v642 = vld [vmem:[%s237 + $0xab8] sm:$0xff]
        %v643 = vld [vmem:[%s237 + $0xac0] sm:$0xff]
        %v644 = vld [vmem:[%s237 + $0xac8] sm:$0xff]
        %v645 = vld [vmem:[%s237 + $0xad0] sm:$0xff]
        %v646 = vld [vmem:[%s237 + $0xad8] sm:$0xff]
        %v647 = vld [vmem:[%s237 + $0xae0] sm:$0xff]
        %v648 = vld [vmem:[%s237 + $0xae8] sm:$0xff]
        %v649 = vld [vmem:[%s237 + $0xaf0] sm:$0xff]
        %v650 = vld [vmem:[%s237 + $0xaf8] sm:$0xff]
        %v651 = vld [vmem:[%s237 + $0xb00] sm:$0xff]
        %v652 = vld [vmem:[%s237 + $0xb08] sm:$0xff]
        %v653 = vld [vmem:[%s237 + $0xb10] sm:$0xff]
        %v654 = vld [vmem:[%s237 + $0xb18] sm:$0xff]
        %v655 = vld [vmem:[%s237 + $0xb20] sm:$0xff]
        %v656 = vld [vmem:[%s237 + $0xb28] sm:$0xff]
        %v657 = vld [vmem:[%s237 + $0xb30] sm:$0xff]
        %v658 = vld [vmem:[%s237 + $0xb38] sm:$0xff]
        %v659 = vld [vmem:[%s237 + $0xb40] sm:$0xff]
        %v660 = vld [vmem:[%s237 + $0xb48] sm:$0xff]
        %v661 = vld [vmem:[%s237 + $0xb50] sm:$0xff]
        %v662 = vld [vmem:[%s237 + $0xb58] sm:$0xff]
        %v663 = vld [vmem:[%s237 + $0xb60] sm:$0xff]
        %v664 = vld [vmem:[%s237 + $0xb68] sm:$0xff]
        %v665 = vld [vmem:[%s237 + $0xb70] sm:$0xff]
        %v666 = vld [vmem:[%s237 + $0xb78] sm:$0xff]
        %v667 = vld [vmem:[%s237 + $0xb80] sm:$0xff]
        %v668 = vld [vmem:[%s237 + $0xb88] sm:$0xff]
        %v669 = vld [vmem:[%s237 + $0xb90] sm:$0xff]
        %v670 = vld [vmem:[%s237 + $0xb98] sm:$0xff]
        %v671 = vld [vmem:[%s237 + $0xba0] sm:$0xff]
        %v672 = vld [vmem:[%s237 + $0xba8] sm:$0xff]
        %v673 = vld [vmem:[%s237 + $0xbb0] sm:$0xff]
        %v674 = vld [vmem:[%s237 + $0xbb8] sm:$0xff]
        %v675 = vld [vmem:[%s237 + $0xbc0] sm:$0xff]
        %v676 = vld [vmem:[%s237 + $0xbc8] sm:$0xff]
        %v677 = vld [vmem:[%s237 + $0xbd0] sm:$0xff]
        %v678 = vld [vmem:[%s237 + $0xbd8] sm:$0xff]
        %v679 = vld [vmem:[%s237 + $0xbe0] sm:$0xff]
        %v680 = vld [vmem:[%s237 + $0xbe8] sm:$0xff]
        %v681 = vld [vmem:[%s237 + $0xbf0] sm:$0xff]
        %v682 = vld [vmem:[%s237 + $0xbf8] sm:$0xff]
        %v683 = vld [vmem:[%s237 + $0xc00] sm:$0xff]
        %v684 = vld [vmem:[%s237 + $0xc08] sm:$0xff]
        %v685 = vld [vmem:[%s237 + $0xc10] sm:$0xff]
        %v686 = vld [vmem:[%s237 + $0xc18] sm:$0xff]
        %v687 = vld [vmem:[%s237 + $0xc20] sm:$0xff]
        %v688 = vld [vmem:[%s237 + $0xc28] sm:$0xff]
        %v689 = vld [vmem:[%s237 + $0xc30] sm:$0xff]
        %v690 = vld [vmem:[%s237 + $0xc38] sm:$0xff]
        %v691 = vld [vmem:[%s237 + $0xc40] sm:$0xff]
        %v692 = vld [vmem:[%s237 + $0xc48] sm:$0xff]
        %v693 = vld [vmem:[%s237 + $0xc50] sm:$0xff]
        %v694 = vld [vmem:[%s237 + $0xc58] sm:$0xff]
        %v695 = vld [vmem:[%s237 + $0xc60] sm:$0xff]
        %v696 = vld [vmem:[%s237 + $0xc68] sm:$0xff]
        %v697 = vld [vmem:[%s237 + $0xc70] sm:$0xff]
        %v698 = vld [vmem:[%s237 + $0xc78] sm:$0xff]
        %v699 = vld [vmem:[%s237 + $0xc80] sm:$0xff]
        %v700 = vld [vmem:[%s237 + $0xc88] sm:$0xff]
        %v701 = vld [vmem:[%s237 + $0xc90] sm:$0xff]
        %v702 = vld [vmem:[%s237 + $0xc98] sm:$0xff]
        %v703 = vld [vmem:[%s237 + $0xca0] sm:$0xff]
        %v704 = vld [vmem:[%s237 + $0xca8] sm:$0xff]
        %v705 = vld [vmem:[%s237 + $0xcb0] sm:$0xff]
        %v706 = vld [vmem:[%s237 + $0xcb8] sm:$0xff]
        %v707 = vld [vmem:[%s237 + $0xcc0] sm:$0xff]
        %v708 = vld [vmem:[%s237 + $0xcc8] sm:$0xff]
        %v709 = vld [vmem:[%s237 + $0xcd0] sm:$0xff]
        %v710 = vld [vmem:[%s237 + $0xcd8] sm:$0xff]
        %v711 = vld [vmem:[%s237 + $0xce0] sm:$0xff]
        %v712 = vld [vmem:[%s237 + $0xce8] sm:$0xff]
        %v713 = vld [vmem:[%s237 + $0xcf0] sm:$0xff]
        %v714 = vld [vmem:[%s237 + $0xcf8] sm:$0xff]
        %v715 = vld [vmem:[%s237 + $0xd00] sm:$0xff]
        %v716 = vld [vmem:[%s237 + $0xd08] sm:$0xff]
        %v717 = vld [vmem:[%s237 + $0xd10] sm:$0xff]
        %v718 = vld [vmem:[%s237 + $0xd18] sm:$0xff]
        %v719 = vld [vmem:[%s237 + $0xd20] sm:$0xff]
        %v720 = vld [vmem:[%s237 + $0xd28] sm:$0xff]
        %v721 = vld [vmem:[%s237 + $0xd30] sm:$0xff]
        %v722 = vld [vmem:[%s237 + $0xd38] sm:$0xff]
        %v723 = vld [vmem:[%s237 + $0xd40] sm:$0xff]
        %v724 = vld [vmem:[%s237 + $0xd48] sm:$0xff]
        %v725 = vld [vmem:[%s237 + $0xd50] sm:$0xff]
        %v726 = vld [vmem:[%s237 + $0xd58] sm:$0xff]
        %v727 = vld [vmem:[%s237 + $0xd60] sm:$0xff]
        %v728 = vld [vmem:[%s237 + $0xd68] sm:$0xff]
        %v729 = vld [vmem:[%s237 + $0xd70] sm:$0xff]
        %v730 = vld [vmem:[%s237 + $0xd78] sm:$0xff]
        %v731 = vld [vmem:[%s237 + $0xd80] sm:$0xff]
        %v732 = vld [vmem:[%s237 + $0xd88] sm:$0xff]
        %v733 = vld [vmem:[%s237 + $0xd90] sm:$0xff]
        %v734 = vld [vmem:[%s237 + $0xd98] sm:$0xff]
        %v735 = vld [vmem:[%s237 + $0xda0] sm:$0xff]
        %v736 = vld [vmem:[%s237 + $0xda8] sm:$0xff]
        %v737 = vld [vmem:[%s237 + $0xdb0] sm:$0xff]
        %v738 = vld [vmem:[%s237 + $0xdb8] sm:$0xff]
        %v739 = vld [vmem:[%s237 + $0xdc0] sm:$0xff]
        %v740 = vld [vmem:[%s237 + $0xdc8] sm:$0xff]
        %v741 = vld [vmem:[%s237 + $0xdd0] sm:$0xff]
        %v742 = vld [vmem:[%s237 + $0xdd8] sm:$0xff]
        %v743 = vld [vmem:[%s237 + $0xde0] sm:$0xff]
        %v744 = vld [vmem:[%s237 + $0xde8] sm:$0xff]
        %v745 = vld [vmem:[%s237 + $0xdf0] sm:$0xff]
        %v746 = vld [vmem:[%s237 + $0xdf8] sm:$0xff]
        %v747 = vld [vmem:[%s237 + $0xe00] sm:$0xff]
        %v748 = vld [vmem:[%s237 + $0xe08] sm:$0xff]
        %v749 = vld [vmem:[%s237 + $0xe10] sm:$0xff]
        %v750 = vld [vmem:[%s237 + $0xe18] sm:$0xff]
        %v751 = vld [vmem:[%s237 + $0xe20] sm:$0xff]
        %v752 = vld [vmem:[%s237 + $0xe28] sm:$0xff]
        %v753 = vld [vmem:[%s237 + $0xe30] sm:$0xff]
        %v754 = vld [vmem:[%s237 + $0xe38] sm:$0xff]
        %v755 = vld [vmem:[%s237 + $0xe40] sm:$0xff]
        %v756 = vld [vmem:[%s237 + $0xe48] sm:$0xff]
        %v757 = vld [vmem:[%s237 + $0xe50] sm:$0xff]
        %v758 = vld [vmem:[%s237 + $0xe58] sm:$0xff]
        %v759 = vld [vmem:[%s237 + $0xe60] sm:$0xff]
        %v760 = vld [vmem:[%s237 + $0xe68] sm:$0xff]
        %v761 = vld [vmem:[%s237 + $0xe70] sm:$0xff]
        %v762 = vld [vmem:[%s237 + $0xe78] sm:$0xff]
        %v763 = vld [vmem:[%s237 + $0xe80] sm:$0xff]
        %v764 = vld [vmem:[%s237 + $0xe88] sm:$0xff]
        %v765 = vld [vmem:[%s237 + $0xe90] sm:$0xff]
        %v766 = vld [vmem:[%s237 + $0xe98] sm:$0xff]
        %v767 = vld [vmem:[%s237 + $0xea0] sm:$0xff]
        %v768 = vld [vmem:[%s237 + $0xea8] sm:$0xff]
        %v769 = vld [vmem:[%s237 + $0xeb0] sm:$0xff]
        %v770 = vld [vmem:[%s237 + $0xeb8] sm:$0xff]
        %v771 = vld [vmem:[%s237 + $0xec0] sm:$0xff]
        %v772 = vld [vmem:[%s237 + $0xec8] sm:$0xff]
        %v773 = vld [vmem:[%s237 + $0xed0] sm:$0xff]
        %v774 = vld [vmem:[%s237 + $0xed8] sm:$0xff]
        %v775 = vld [vmem:[%s237 + $0xee0] sm:$0xff]
        %v776 = vld [vmem:[%s237 + $0xee8] sm:$0xff]
        %v777 = vld [vmem:[%s237 + $0xef0] sm:$0xff]
        %v778 = vld [vmem:[%s237 + $0xef8] sm:$0xff]
        %v779 = vld [vmem:[%s237 + $0xf00] sm:$0xff]
        %v780 = vld [vmem:[%s237 + $0xf08] sm:$0xff]
        %v781 = vld [vmem:[%s237 + $0xf10] sm:$0xff]
        %v782 = vld [vmem:[%s237 + $0xf18] sm:$0xff]
        %v783 = vld [vmem:[%s237 + $0xf20] sm:$0xff]
        %v784 = vld [vmem:[%s237 + $0xf28] sm:$0xff]
        %v785 = vld [vmem:[%s237 + $0xf30] sm:$0xff]
        %v786 = vld [vmem:[%s237 + $0xf38] sm:$0xff]
        %v787 = vld [vmem:[%s237 + $0xf40] sm:$0xff]
        %v788 = vld [vmem:[%s237 + $0xf48] sm:$0xff]
        %v789 = vld [vmem:[%s237 + $0xf50] sm:$0xff]
        %v790 = vld [vmem:[%s237 + $0xf58] sm:$0xff]
        %v791 = vld [vmem:[%s237 + $0xf60] sm:$0xff]
        %v792 = vld [vmem:[%s237 + $0xf68] sm:$0xff]
        %v793 = vld [vmem:[%s237 + $0xf70] sm:$0xff]
        %v794 = vld [vmem:[%s237 + $0xf78] sm:$0xff]
        %v795 = vld [vmem:[%s237 + $0xf80] sm:$0xff]
        %v796 = vld [vmem:[%s237 + $0xf88] sm:$0xff]
        %v797 = vld [vmem:[%s237 + $0xf90] sm:$0xff]
        %v798 = vld [vmem:[%s237 + $0xf98] sm:$0xff]
        %v799 = vld [vmem:[%s237 + $0xfa0] sm:$0xff]
        %v800 = vld [vmem:[%s237 + $0xfa8] sm:$0xff]
        %v801 = vld [vmem:[%s237 + $0xfb0] sm:$0xff]
        %v802 = vld [vmem:[%s237 + $0xfb8] sm:$0xff]
        %v803 = vld [vmem:[%s237 + $0xfc0] sm:$0xff]
        %v804 = vld [vmem:[%s237 + $0xfc8] sm:$0xff]
        %v805 = vld [vmem:[%s237 + $0xfd0] sm:$0xff]
        %v806 = vld [vmem:[%s237 + $0xfd8] sm:$0xff]
        %v807 = vld [vmem:[%s237 + $0xfe0] sm:$0xff]
        %v808 = vld [vmem:[%s237 + $0xfe8] sm:$0xff]
        %v809 = vld [vmem:[%s237 + $0xff0] sm:$0xff]
        %v810 = vld [vmem:[%s237 + $0xff8] sm:$0xff]
        %v811 = vld [vmem:[%s237 + $0x1000] sm:$0xff]
        %v812 = vld [vmem:[%s237 + $0x1008] sm:$0xff]
        %v813 = vld [vmem:[%s237 + $0x1010] sm:$0xff]
        %v814 = vld [vmem:[%s237 + $0x1018] sm:$0xff]
        %v815 = vld [vmem:[%s237 + $0x1020] sm:$0xff]
        %v816 = vld [vmem:[%s237 + $0x1028] sm:$0xff]
        %v817 = vld [vmem:[%s237 + $0x1030] sm:$0xff]
        %v818 = vld [vmem:[%s237 + $0x1038] sm:$0xff]
        %v819 = vld [vmem:[%s237 + $0x1040] sm:$0xff]
        %v820 = vld [vmem:[%s237 + $0x1048] sm:$0xff]
        %v821 = vld [vmem:[%s237 + $0x1050] sm:$0xff]
        %v822 = vld [vmem:[%s237 + $0x1058] sm:$0xff]
        %v823 = vld [vmem:[%s237 + $0x1060] sm:$0xff]
        %v824 = vld [vmem:[%s237 + $0x1068] sm:$0xff]
        %v825 = vld [vmem:[%s237 + $0x1070] sm:$0xff]
        %v826 = vld [vmem:[%s237 + $0x1078] sm:$0xff]
        %v827 = vld [vmem:[%s237 + $0x1080] sm:$0xff]
        %v828 = vld [vmem:[%s237 + $0x1088] sm:$0xff]
        %v829 = vld [vmem:[%s237 + $0x1090] sm:$0xff]
        %v830 = vld [vmem:[%s237 + $0x1098] sm:$0xff]
        %v831 = vld [vmem:[%s237 + $0x10a0] sm:$0xff]
        %v832 = vld [vmem:[%s237 + $0x10a8] sm:$0xff]
        %v833 = vld [vmem:[%s237 + $0x10b0] sm:$0xff]
        %v834 = vld [vmem:[%s237 + $0x10b8] sm:$0xff]
        %v835 = vld [vmem:[%s237 + $0x10c0] sm:$0xff]
        %v836 = vld [vmem:[%s237 + $0x10c8] sm:$0xff]
        %v837 = vld [vmem:[%s237 + $0x10d0] sm:$0xff]
        %v838 = vld [vmem:[%s237 + $0x10d8] sm:$0xff]
        %v839 = vld [vmem:[%s237 + $0x10e0] sm:$0xff]
        %v840 = vld [vmem:[%s237 + $0x10e8] sm:$0xff]
        %v841 = vld [vmem:[%s237 + $0x10f0] sm:$0xff]
        %v842 = vld [vmem:[%s237 + $0x10f8] sm:$0xff]
        %v843 = vld [vmem:[%s237 + $0x1100] sm:$0xff]
        %v844 = vld [vmem:[%s237 + $0x1108] sm:$0xff]
        %v845 = vld [vmem:[%s237 + $0x1110] sm:$0xff]
        %v846 = vld [vmem:[%s237 + $0x1118] sm:$0xff]
        %v847 = vld [vmem:[%s237 + $0x1120] sm:$0xff]
        %v848 = vld [vmem:[%s237 + $0x1128] sm:$0xff]
        %v849 = vld [vmem:[%s237 + $0x1130] sm:$0xff]
        %v850 = vld [vmem:[%s237 + $0x1138] sm:$0xff]
        %v851 = vld [vmem:[%s237 + $0x1140] sm:$0xff]
        %v852 = vld [vmem:[%s237 + $0x1148] sm:$0xff]
        %v853 = vld [vmem:[%s237 + $0x1150] sm:$0xff]
        %v854 = vld [vmem:[%s237 + $0x1158] sm:$0xff]
        %v855 = vld [vmem:[%s237 + $0x1160] sm:$0xff]
        %v856 = vld [vmem:[%s237 + $0x1168] sm:$0xff]
        %v857 = vld [vmem:[%s237 + $0x1170] sm:$0xff]
        %v858 = vld [vmem:[%s237 + $0x1178] sm:$0xff]
        %v859 = vld [vmem:[%s237 + $0x1180] sm:$0xff]
        %v860 = vld [vmem:[%s237 + $0x1188] sm:$0xff]
        %v861 = vld [vmem:[%s237 + $0x1190] sm:$0xff]
        %v862 = vld [vmem:[%s237 + $0x1198] sm:$0xff]
        %v863 = vld [vmem:[%s237 + $0x11a0] sm:$0xff]
        %v864 = vld [vmem:[%s237 + $0x11a8] sm:$0xff]
        %v865 = vld [vmem:[%s237 + $0x11b0] sm:$0xff]
        %v866 = vld [vmem:[%s237 + $0x11b8] sm:$0xff]
        %v867 = vld [vmem:[%s237 + $0x11c0] sm:$0xff]
        %v868 = vld [vmem:[%s237 + $0x11c8] sm:$0xff]
        %v869 = vld [vmem:[%s237 + $0x11d0] sm:$0xff]
        %v870 = vld [vmem:[%s237 + $0x11d8] sm:$0xff]
        %v871 = vld [vmem:[%s237 + $0x11e0] sm:$0xff]
        %v872 = vld [vmem:[%s237 + $0x11e8] sm:$0xff]
        %v873 = vld [vmem:[%s237 + $0x11f0] sm:$0xff]
        %v874 = vld [vmem:[%s237 + $0x11f8] sm:$0xff]
        %v875 = vld [vmem:[%s237 + $0x1200] sm:$0xff]
        %v876 = vld [vmem:[%s237 + $0x1208] sm:$0xff]
        %v877 = vld [vmem:[%s237 + $0x1210] sm:$0xff]
        %v878 = vld [vmem:[%s237 + $0x1218] sm:$0xff]
        %v879 = vld [vmem:[%s237 + $0x1220] sm:$0xff]
        %v880 = vld [vmem:[%s237 + $0x1228] sm:$0xff]
        %v881 = vld [vmem:[%s237 + $0x1230] sm:$0xff]
        %v882 = vld [vmem:[%s237 + $0x1238] sm:$0xff]
        %v883 = vld [vmem:[%s237 + $0x1240] sm:$0xff]
        %v884 = vld [vmem:[%s237 + $0x1248] sm:$0xff]
        %v885 = vld [vmem:[%s237 + $0x1250] sm:$0xff]
        %v886 = vld [vmem:[%s237 + $0x1258] sm:$0xff]
        %v887 = vld [vmem:[%s237 + $0x1260] sm:$0xff]
        %v888 = vld [vmem:[%s237 + $0x1268] sm:$0xff]
        %v889 = vld [vmem:[%s237 + $0x1270] sm:$0xff]
        %v890 = vld [vmem:[%s237 + $0x1278] sm:$0xff]
        %v891 = vld [vmem:[%s237 + $0x1280] sm:$0xff]
        %v892 = vld [vmem:[%s237 + $0x1288] sm:$0xff]
        %v893 = vld [vmem:[%s237 + $0x1290] sm:$0xff]
        %v894 = vld [vmem:[%s237 + $0x1298] sm:$0xff]
        %v895 = vld [vmem:[%s237 + $0x12a0] sm:$0xff]
        %v896 = vld [vmem:[%s237 + $0x12a8] sm:$0xff]
        %v897 = vld [vmem:[%s237 + $0x12b0] sm:$0xff]
        %v898 = vld [vmem:[%s237 + $0x12b8] sm:$0xff]
        %v899 = vld [vmem:[%s237 + $0x12c0] sm:$0xff]
        %v900 = vld [vmem:[%s237 + $0x12c8] sm:$0xff]
        %v901 = vld [vmem:[%s237 + $0x12d0] sm:$0xff]
        %v902 = vld [vmem:[%s237 + $0x12d8] sm:$0xff]
        %v903 = vld [vmem:[%s237 + $0x12e0] sm:$0xff]
        %v904 = vld [vmem:[%s237 + $0x12e8] sm:$0xff]
        %v905 = vld [vmem:[%s237 + $0x12f0] sm:$0xff]
        %v906 = vld [vmem:[%s237 + $0x12f8] sm:$0xff]
        %v907 = vld [vmem:[%s237 + $0x1300] sm:$0xff]
        %v908 = vld [vmem:[%s237 + $0x1308] sm:$0xff]
        %v909 = vld [vmem:[%s237 + $0x1310] sm:$0xff]
        %v910 = vld [vmem:[%s237 + $0x1318] sm:$0xff]
        %v911 = vld [vmem:[%s237 + $0x1320] sm:$0xff]
        %v912 = vld [vmem:[%s237 + $0x1328] sm:$0xff]
        %v913 = vld [vmem:[%s237 + $0x1330] sm:$0xff]
        %v914 = vld [vmem:[%s237 + $0x1338] sm:$0xff]
        %v915 = vld [vmem:[%s237 + $0x1340] sm:$0xff]
        %v916 = vld [vmem:[%s237 + $0x1348] sm:$0xff]
        %v917 = vld [vmem:[%s237 + $0x1350] sm:$0xff]
        %v918 = vld [vmem:[%s237 + $0x1358] sm:$0xff]
        %v919 = vld [vmem:[%s237 + $0x1360] sm:$0xff]
        %v920 = vld [vmem:[%s237 + $0x1368] sm:$0xff]
        %v921 = vld [vmem:[%s237 + $0x1370] sm:$0xff]
        %v922 = vld [vmem:[%s237 + $0x1378] sm:$0xff]
        %v923 = vld [vmem:[%s237 + $0x1380] sm:$0xff]
        %v924 = vld [vmem:[%s237 + $0x1388] sm:$0xff]
        %v925 = vld [vmem:[%s237 + $0x1390] sm:$0xff]
        %v926 = vld [vmem:[%s237 + $0x1398] sm:$0xff]
        %v927 = vld [vmem:[%s237 + $0x13a0] sm:$0xff]
        %v928 = vld [vmem:[%s237 + $0x13a8] sm:$0xff]
        %v929 = vld [vmem:[%s237 + $0x13b0] sm:$0xff]
        %v930 = vld [vmem:[%s237 + $0x13b8] sm:$0xff]
        %v931 = vld [vmem:[%s237 + $0x13c0] sm:$0xff]
        %v932 = vld [vmem:[%s237 + $0x13c8] sm:$0xff]
        %v933 = vld [vmem:[%s237 + $0x13d0] sm:$0xff]
        %v934 = vld [vmem:[%s237 + $0x13d8] sm:$0xff]
        %v935 = vld [vmem:[%s237 + $0x13e0] sm:$0xff]
        %v936 = vld [vmem:[%s237 + $0x13e8] sm:$0xff]
        %v937 = vld [vmem:[%s237 + $0x13f0] sm:$0xff]
        %v938 = vld [vmem:[%s237 + $0x13f8] sm:$0xff]
        %v939 = vld [vmem:[%s237 + $0x1400] sm:$0xff]
        %v940 = vld [vmem:[%s237 + $0x1408] sm:$0xff]
        %v941 = vld [vmem:[%s237 + $0x1410] sm:$0xff]
        %v942 = vld [vmem:[%s237 + $0x1418] sm:$0xff]
        %v943 = vld [vmem:[%s237 + $0x1420] sm:$0xff]
        %v944 = vld [vmem:[%s237 + $0x1428] sm:$0xff]
        %v945 = vld [vmem:[%s237 + $0x1430] sm:$0xff]
        %v946 = vld [vmem:[%s237 + $0x1438] sm:$0xff]
        %v947 = vld [vmem:[%s237 + $0x1440] sm:$0xff]
        %v948 = vld [vmem:[%s237 + $0x1448] sm:$0xff]
        %v949 = vld [vmem:[%s237 + $0x1450] sm:$0xff]
        %v950 = vld [vmem:[%s237 + $0x1458] sm:$0xff]
        %v951 = vld [vmem:[%s237 + $0x1460] sm:$0xff]
        %v952 = vld [vmem:[%s237 + $0x1468] sm:$0xff]
        %v953 = vld [vmem:[%s237 + $0x1470] sm:$0xff]
        %v954 = vld [vmem:[%s237 + $0x1478] sm:$0xff]
        %v955 = vld [vmem:[%s237 + $0x1480] sm:$0xff]
        %v956 = vld [vmem:[%s237 + $0x1488] sm:$0xff]
        %v957 = vld [vmem:[%s237 + $0x1490] sm:$0xff]
        %v958 = vld [vmem:[%s237 + $0x1498] sm:$0xff]
        %v959 = vld [vmem:[%s237 + $0x14a0] sm:$0xff]
        %v960 = vld [vmem:[%s237 + $0x14a8] sm:$0xff]
        %v961 = vld [vmem:[%s237 + $0x14b0] sm:$0xff]
        %v962 = vld [vmem:[%s237 + $0x14b8] sm:$0xff]
        %v963 = vld [vmem:[%s237 + $0x14c0] sm:$0xff]
        %v964 = vld [vmem:[%s237 + $0x14c8] sm:$0xff]
        %v965 = vld [vmem:[%s237 + $0x14d0] sm:$0xff]
        %v966 = vld [vmem:[%s237 + $0x14d8] sm:$0xff]
        %v967 = vld [vmem:[%s237 + $0x14e0] sm:$0xff]
        %v968 = vld [vmem:[%s237 + $0x14e8] sm:$0xff]
        %v969 = vld [vmem:[%s237 + $0x14f0] sm:$0xff]
        %v970 = vld [vmem:[%s237 + $0x14f8] sm:$0xff]
        %v971 = vld [vmem:[%s237 + $0x1500] sm:$0xff]
        %v972 = vld [vmem:[%s237 + $0x1508] sm:$0xff]
        %v973 = vld [vmem:[%s237 + $0x1510] sm:$0xff]
        %v974 = vld [vmem:[%s237 + $0x1518] sm:$0xff]
        %v975 = vld [vmem:[%s237 + $0x1520] sm:$0xff]
        %v976 = vld [vmem:[%s237 + $0x1528] sm:$0xff]
        %v977 = vld [vmem:[%s237 + $0x1530] sm:$0xff]
        %v978 = vld [vmem:[%s237 + $0x1538] sm:$0xff]
        %v979 = vld [vmem:[%s237 + $0x1540] sm:$0xff]
        %v980 = vld [vmem:[%s237 + $0x1548] sm:$0xff]
        %v981 = vld [vmem:[%s237 + $0x1550] sm:$0xff]
        %v982 = vld [vmem:[%s237 + $0x1558] sm:$0xff]
        %v983 = vld [vmem:[%s237 + $0x1560] sm:$0xff]
        %v984 = vld [vmem:[%s237 + $0x1568] sm:$0xff]
        %v985 = vld [vmem:[%s237 + $0x1570] sm:$0xff]
        %v986 = vld [vmem:[%s237 + $0x1578] sm:$0xff]
        %v987 = vld [vmem:[%s237 + $0x1580] sm:$0xff]
        %v988 = vld [vmem:[%s237 + $0x1588] sm:$0xff]
        %v989 = vld [vmem:[%s237 + $0x1590] sm:$0xff]
        %v990 = vld [vmem:[%s237 + $0x1598] sm:$0xff]
        %v991 = vld [vmem:[%s237 + $0x15a0] sm:$0xff]
        %v992 = vld [vmem:[%s237 + $0x15a8] sm:$0xff]
        %v993 = vld [vmem:[%s237 + $0x15b0] sm:$0xff]
        %v994 = vld [vmem:[%s237 + $0x15b8] sm:$0xff]
        %v995 = vld [vmem:[%s237 + $0x15c0] sm:$0xff]
        %v996 = vld [vmem:[%s237 + $0x15c8] sm:$0xff]
        %v997 = vld [vmem:[%s237 + $0x15d0] sm:$0xff]
        %v998 = vld [vmem:[%s237 + $0x15d8] sm:$0xff]
        %v999 = vld [vmem:[%s237 + $0x15e0] sm:$0xff]
        %v1000 = vld [vmem:[%s237 + $0x15e8] sm:$0xff]
        %v1001 = vld [vmem:[%s237 + $0x15f0] sm:$0xff]
        %v1002 = vld [vmem:[%s237 + $0x15f8] sm:$0xff]
        %v1003 = vld [vmem:[%s237 + $0x1600] sm:$0xff]
        %v1004 = vld [vmem:[%s237 + $0x1608] sm:$0xff]
        %v1005 = vld [vmem:[%s237 + $0x1610] sm:$0xff]
        %v1006 = vld [vmem:[%s237 + $0x1618] sm:$0xff]
        %v1007 = vld [vmem:[%s237 + $0x1620] sm:$0xff]
        %v1008 = vld [vmem:[%s237 + $0x1628] sm:$0xff]
        %v1009 = vld [vmem:[%s237 + $0x1630] sm:$0xff]
        %v1010 = vld [vmem:[%s237 + $0x1638] sm:$0xff]
        %v1011 = vld [vmem:[%s237 + $0x1640] sm:$0xff]
        %v1012 = vld [vmem:[%s237 + $0x1648] sm:$0xff]
        %v1013 = vld [vmem:[%s237 + $0x1650] sm:$0xff]
        %v1014 = vld [vmem:[%s237 + $0x1658] sm:$0xff]
        %v1015 = vld [vmem:[%s237 + $0x1660] sm:$0xff]
        %v1016 = vld [vmem:[%s237 + $0x1668] sm:$0xff]
        %v1017 = vld [vmem:[%s237 + $0x1670] sm:$0xff]
        %v1018 = vld [vmem:[%s237 + $0x1678] sm:$0xff]
        %v1019 = vld [vmem:[%s237 + $0x1680] sm:$0xff]
        %v1020 = vld [vmem:[%s237 + $0x1688] sm:$0xff]
        %v1021 = vld [vmem:[%s237 + $0x1690] sm:$0xff]
        %v1022 = vld [vmem:[%s237 + $0x1698] sm:$0xff]
        %v1023 = vld [vmem:[%s237 + $0x16a0] sm:$0xff]
        %v1024 = vld [vmem:[%s237 + $0x16a8] sm:$0xff]
        %v1025 = vld [vmem:[%s237 + $0x16b0] sm:$0xff]
        %v1026 = vld [vmem:[%s237 + $0x16b8] sm:$0xff]
        %v1027 = vld [vmem:[%s237 + $0x16c0] sm:$0xff]
        %v1028 = vld [vmem:[%s237 + $0x16c8] sm:$0xff]
        %v1029 = vld [vmem:[%s237 + $0x16d0] sm:$0xff]
        %v1030 = vld [vmem:[%s237 + $0x16d8] sm:$0xff]
        %v1031 = vld [vmem:[%s237 + $0x16e0] sm:$0xff]
        %v1032 = vld [vmem:[%s237 + $0x16e8] sm:$0xff]
        %v1033 = vld [vmem:[%s237 + $0x16f0] sm:$0xff]
        %v1034 = vld [vmem:[%s237 + $0x16f8] sm:$0xff]
        %v1035 = vld [vmem:[%s237 + $0x1700] sm:$0xff]
        %v1036 = vld [vmem:[%s237 + $0x1708] sm:$0xff]
        %v1037 = vld [vmem:[%s237 + $0x1710] sm:$0xff]
        %v1038 = vld [vmem:[%s237 + $0x1718] sm:$0xff]
        %v1039 = vld [vmem:[%s237 + $0x1720] sm:$0xff]
        %v1040 = vld [vmem:[%s237 + $0x1728] sm:$0xff]
        %v1041 = vld [vmem:[%s237 + $0x1730] sm:$0xff]
        %v1042 = vld [vmem:[%s237 + $0x1738] sm:$0xff]
        %v1043 = vld [vmem:[%s237 + $0x1740] sm:$0xff]
        %v1044 = vld [vmem:[%s237 + $0x1748] sm:$0xff]
        %v1045 = vld [vmem:[%s237 + $0x1750] sm:$0xff]
        %v1046 = vld [vmem:[%s237 + $0x1758] sm:$0xff]
        %v1047 = vld [vmem:[%s237 + $0x1760] sm:$0xff]
        %v1048 = vld [vmem:[%s237 + $0x1768] sm:$0xff]
        %v1049 = vld [vmem:[%s237 + $0x1770] sm:$0xff]
        %v1050 = vld [vmem:[%s237 + $0x1778] sm:$0xff]
        %v1051 = vld [vmem:[%s237 + $0x1780] sm:$0xff]
        %v1052 = vld [vmem:[%s237 + $0x1788] sm:$0xff]
        %v1053 = vld [vmem:[%s237 + $0x1790] sm:$0xff]
        %v1054 = vld [vmem:[%s237 + $0x1798] sm:$0xff]
        %v1055 = vld [vmem:[%s237 + $0x17a0] sm:$0xff]
        %v1056 = vld [vmem:[%s237 + $0x17a8] sm:$0xff]
        %v1057 = vld [vmem:[%s237 + $0x17b0] sm:$0xff]
        %v1058 = vld [vmem:[%s237 + $0x17b8] sm:$0xff]
        %v1059 = vld [vmem:[%s237 + $0x17c0] sm:$0xff]
        %v1060 = vld [vmem:[%s237 + $0x17c8] sm:$0xff]
        %v1061 = vld [vmem:[%s237 + $0x17d0] sm:$0xff]
        %v1062 = vld [vmem:[%s237 + $0x17d8] sm:$0xff]
        %v1063 = vld [vmem:[%s237 + $0x17e0] sm:$0xff]
        %v1064 = vld [vmem:[%s237 + $0x17e8] sm:$0xff]
        %v1065 = vld [vmem:[%s237 + $0x17f0] sm:$0xff]
        %v1066 = vld [vmem:[%s237 + $0x17f8] sm:$0xff]
        %v1067 = vld [vmem:[%s237 + $0x1800] sm:$0xff]
        %v1068 = vld [vmem:[%s237 + $0x1808] sm:$0xff]
        %v1069 = vld [vmem:[%s237 + $0x1810] sm:$0xff]
        %v1070 = vld [vmem:[%s237 + $0x1818] sm:$0xff]
        %v1071 = vld [vmem:[%s237 + $0x1820] sm:$0xff]
        %v1072 = vld [vmem:[%s237 + $0x1828] sm:$0xff]
        %v1073 = vld [vmem:[%s237 + $0x1830] sm:$0xff]
        %v1074 = vld [vmem:[%s237 + $0x1838] sm:$0xff]
        %v1075 = vld [vmem:[%s237 + $0x1840] sm:$0xff]
        %v1076 = vld [vmem:[%s237 + $0x1848] sm:$0xff]
        %v1077 = vld [vmem:[%s237 + $0x1850] sm:$0xff]
        %v1078 = vld [vmem:[%s237 + $0x1858] sm:$0xff]
        %v1079 = vld [vmem:[%s237 + $0x1860] sm:$0xff]
        %v1080 = vld [vmem:[%s237 + $0x1868] sm:$0xff]
        %v1081 = vld [vmem:[%s237 + $0x1870] sm:$0xff]
        %v1082 = vld [vmem:[%s237 + $0x1878] sm:$0xff]
        %v1083 = vld [vmem:[%s237 + $0x1880] sm:$0xff]
        %v1084 = vld [vmem:[%s237 + $0x1888] sm:$0xff]
        %v1085 = vld [vmem:[%s237 + $0x1890] sm:$0xff]
        %v1086 = vld [vmem:[%s237 + $0x1898] sm:$0xff]
        %v1087 = vld [vmem:[%s237 + $0x18a0] sm:$0xff]
        %v1088 = vld [vmem:[%s237 + $0x18a8] sm:$0xff]
        %v1089 = vld [vmem:[%s237 + $0x18b0] sm:$0xff]
        %v1090 = vld [vmem:[%s237 + $0x18b8] sm:$0xff]
        %v1091 = vld [vmem:[%s237 + $0x18c0] sm:$0xff]
        %v1092 = vld [vmem:[%s237 + $0x18c8] sm:$0xff]
        %v1093 = vld [vmem:[%s237 + $0x18d0] sm:$0xff]
        %v1094 = vld [vmem:[%s237 + $0x18d8] sm:$0xff]
        %v1095 = vld [vmem:[%s237 + $0x18e0] sm:$0xff]
        %v1096 = vld [vmem:[%s237 + $0x18e8] sm:$0xff]
        %v1097 = vld [vmem:[%s237 + $0x18f0] sm:$0xff]
        %v1098 = vld [vmem:[%s237 + $0x18f8] sm:$0xff]
        %v1099 = vld [vmem:[%s237 + $0x1900] sm:$0xff]
        %v1100 = vld [vmem:[%s237 + $0x1908] sm:$0xff]
        %v1101 = vld [vmem:[%s237 + $0x1910] sm:$0xff]
        %v1102 = vld [vmem:[%s237 + $0x1918] sm:$0xff]
        %v1103 = vld [vmem:[%s237 + $0x1920] sm:$0xff]
        %v1104 = vld [vmem:[%s237 + $0x1928] sm:$0xff]
        %v1105 = vld [vmem:[%s237 + $0x1930] sm:$0xff]
        %v1106 = vld [vmem:[%s237 + $0x1938] sm:$0xff]
        %v1107 = vld [vmem:[%s237 + $0x1940] sm:$0xff]
        %v1108 = vld [vmem:[%s237 + $0x1948] sm:$0xff]
        %v1109 = vld [vmem:[%s237 + $0x1950] sm:$0xff]
        %v1110 = vld [vmem:[%s237 + $0x1958] sm:$0xff]
        %v1111 = vld [vmem:[%s237 + $0x1960] sm:$0xff]
        %v1112 = vld [vmem:[%s237 + $0x1968] sm:$0xff]
        %v1113 = vld [vmem:[%s237 + $0x1970] sm:$0xff]
        %v1114 = vld [vmem:[%s237 + $0x1978] sm:$0xff]
        %v1115 = vld [vmem:[%s237 + $0x1980] sm:$0xff]
        %v1116 = vld [vmem:[%s237 + $0x1988] sm:$0xff]
        %v1117 = vld [vmem:[%s237 + $0x1990] sm:$0xff]
        %v1118 = vld [vmem:[%s237 + $0x1998] sm:$0xff]
        %v1119 = vld [vmem:[%s237 + $0x19a0] sm:$0xff]
        %v1120 = vld [vmem:[%s237 + $0x19a8] sm:$0xff]
        %v1121 = vld [vmem:[%s237 + $0x19b0] sm:$0xff]
        %v1122 = vld [vmem:[%s237 + $0x19b8] sm:$0xff]
        %v1123 = vld [vmem:[%s237 + $0x19c0] sm:$0xff]
        %v1124 = vld [vmem:[%s237 + $0x19c8] sm:$0xff]
        %v1125 = vld [vmem:[%s237 + $0x19d0] sm:$0xff]
        %v1126 = vld [vmem:[%s237 + $0x19d8] sm:$0xff]
        %v1127 = vld [vmem:[%s237 + $0x19e0] sm:$0xff]
        %v1128 = vld [vmem:[%s237 + $0x19e8] sm:$0xff]
        %v1129 = vld [vmem:[%s237 + $0x19f0] sm:$0xff]
        %v1130 = vld [vmem:[%s237 + $0x19f8] sm:$0xff]
        %v1131 = vld [vmem:[%s237 + $0x1a00] sm:$0xff]
        %v1132 = vld [vmem:[%s237 + $0x1a08] sm:$0xff]
        %v1133 = vld [vmem:[%s237 + $0x1a10] sm:$0xff]
        %v1134 = vld [vmem:[%s237 + $0x1a18] sm:$0xff]
        %v1135 = vld [vmem:[%s237 + $0x1a20] sm:$0xff]
        %v1136 = vld [vmem:[%s237 + $0x1a28] sm:$0xff]
        %v1137 = vld [vmem:[%s237 + $0x1a30] sm:$0xff]
        %v1138 = vld [vmem:[%s237 + $0x1a38] sm:$0xff]
        %v1139 = vld [vmem:[%s237 + $0x1a40] sm:$0xff]
        %v1140 = vld [vmem:[%s237 + $0x1a48] sm:$0xff]
        %v1141 = vld [vmem:[%s237 + $0x1a50] sm:$0xff]
        %v1142 = vld [vmem:[%s237 + $0x1a58] sm:$0xff]
        %v1143 = vld [vmem:[%s237 + $0x1a60] sm:$0xff]
        %v1144 = vld [vmem:[%s237 + $0x1a68] sm:$0xff]
        %v1145 = vld [vmem:[%s237 + $0x1a70] sm:$0xff]
        %v1146 = vld [vmem:[%s237 + $0x1a78] sm:$0xff]
        %v1147 = vld [vmem:[%s237 + $0x1a80] sm:$0xff]
        %v1148 = vld [vmem:[%s237 + $0x1a88] sm:$0xff]
        %v1149 = vld [vmem:[%s237 + $0x1a90] sm:$0xff]
        %v1150 = vld [vmem:[%s237 + $0x1a98] sm:$0xff]
        %v1151 = vld [vmem:[%s237 + $0x1aa0] sm:$0xff]
        %v1152 = vld [vmem:[%s237 + $0x1aa8] sm:$0xff]
        %v1153 = vld [vmem:[%s237 + $0x1ab0] sm:$0xff]
        %v1154 = vld [vmem:[%s237 + $0x1ab8] sm:$0xff]
        %v1155 = vld [vmem:[%s237 + $0x1ac0] sm:$0xff]
        %v1156 = vld [vmem:[%s237 + $0x1ac8] sm:$0xff]
        %v1157 = vld [vmem:[%s237 + $0x1ad0] sm:$0xff]
        %v1158 = vld [vmem:[%s237 + $0x1ad8] sm:$0xff]
        %v1159 = vld [vmem:[%s237 + $0x1ae0] sm:$0xff]
        %v1160 = vld [vmem:[%s237 + $0x1ae8] sm:$0xff]
        %v1161 = vld [vmem:[%s237 + $0x1af0] sm:$0xff]
        %v1162 = vld [vmem:[%s237 + $0x1af8] sm:$0xff]
        %v1163 = vld [vmem:[%s237 + $0x1b00] sm:$0xff]
        %v1164 = vld [vmem:[%s237 + $0x1b08] sm:$0xff]
        %v1165 = vld [vmem:[%s237 + $0x1b10] sm:$0xff]
        %v1166 = vld [vmem:[%s237 + $0x1b18] sm:$0xff]
        %v1167 = vld [vmem:[%s237 + $0x1b20] sm:$0xff]
        %v1168 = vld [vmem:[%s237 + $0x1b28] sm:$0xff]
        %v1169 = vld [vmem:[%s237 + $0x1b30] sm:$0xff]
        %v1170 = vld [vmem:[%s237 + $0x1b38] sm:$0xff]
        %v1171 = vld [vmem:[%s237 + $0x1b40] sm:$0xff]
        %v1172 = vld [vmem:[%s237 + $0x1b48] sm:$0xff]
        %v1173 = vld [vmem:[%s237 + $0x1b50] sm:$0xff]
        %v1174 = vld [vmem:[%s237 + $0x1b58] sm:$0xff]
        %v1175 = vld [vmem:[%s237 + $0x1b60] sm:$0xff]
        %v1176 = vld [vmem:[%s237 + $0x1b68] sm:$0xff]
        %v1177 = vld [vmem:[%s237 + $0x1b70] sm:$0xff]
        %v1178 = vld [vmem:[%s237 + $0x1b78] sm:$0xff]
        %v1179 = vld [vmem:[%s237 + $0x1b80] sm:$0xff]
        %v1180 = vld [vmem:[%s237 + $0x1b88] sm:$0xff]
        %v1181 = vld [vmem:[%s237 + $0x1b90] sm:$0xff]
        %v1182 = vld [vmem:[%s237 + $0x1b98] sm:$0xff]
        %v1183 = vld [vmem:[%s237 + $0x1ba0] sm:$0xff]
        %v1184 = vld [vmem:[%s237 + $0x1ba8] sm:$0xff]
        %v1185 = vld [vmem:[%s237 + $0x1bb0] sm:$0xff]
        %v1186 = vld [vmem:[%s237 + $0x1bb8] sm:$0xff]
        %v1187 = vld [vmem:[%s237 + $0x1bc0] sm:$0xff]
        %v1188 = vld [vmem:[%s237 + $0x1bc8] sm:$0xff]
        %v1189 = vld [vmem:[%s237 + $0x1bd0] sm:$0xff]
        %v1190 = vld [vmem:[%s237 + $0x1bd8] sm:$0xff]
        %v1191 = vld [vmem:[%s237 + $0x1be0] sm:$0xff]
        %v1192 = vld [vmem:[%s237 + $0x1be8] sm:$0xff]
        %v1193 = vld [vmem:[%s237 + $0x1bf0] sm:$0xff]
        %v1194 = vld [vmem:[%s237 + $0x1bf8] sm:$0xff]
        %v1195 = vld [vmem:[%s237 + $0x1c00] sm:$0xff]
        %v1196 = vld [vmem:[%s237 + $0x1c08] sm:$0xff]
        %v1197 = vld [vmem:[%s237 + $0x1c10] sm:$0xff]
        %v1198 = vld [vmem:[%s237 + $0x1c18] sm:$0xff]
        %v1199 = vld [vmem:[%s237 + $0x1c20] sm:$0xff]
        %v1200 = vld [vmem:[%s237 + $0x1c28] sm:$0xff]
        %v1201 = vld [vmem:[%s237 + $0x1c30] sm:$0xff]
        %v1202 = vld [vmem:[%s237 + $0x1c38] sm:$0xff]
        %v1203 = vld [vmem:[%s237 + $0x1c40] sm:$0xff]
        %v1204 = vld [vmem:[%s237 + $0x1c48] sm:$0xff]
        %v1205 = vld [vmem:[%s237 + $0x1c50] sm:$0xff]
        %v1206 = vld [vmem:[%s237 + $0x1c58] sm:$0xff]
        %v1207 = vld [vmem:[%s237 + $0x1c60] sm:$0xff]
        %v1208 = vld [vmem:[%s237 + $0x1c68] sm:$0xff]
        %v1209 = vld [vmem:[%s237 + $0x1c70] sm:$0xff]
        %v1210 = vld [vmem:[%s237 + $0x1c78] sm:$0xff]
        %v1211 = vld [vmem:[%s237 + $0x1c80] sm:$0xff]
        %v1212 = vld [vmem:[%s237 + $0x1c88] sm:$0xff]
        %v1213 = vld [vmem:[%s237 + $0x1c90] sm:$0xff]
        %v1214 = vld [vmem:[%s237 + $0x1c98] sm:$0xff]
        %v1215 = vld [vmem:[%s237 + $0x1ca0] sm:$0xff]
        %v1216 = vld [vmem:[%s237 + $0x1ca8] sm:$0xff]
        %v1217 = vld [vmem:[%s237 + $0x1cb0] sm:$0xff]
        %v1218 = vld [vmem:[%s237 + $0x1cb8] sm:$0xff]
        %v1219 = vld [vmem:[%s237 + $0x1cc0] sm:$0xff]
        %v1220 = vld [vmem:[%s237 + $0x1cc8] sm:$0xff]
        %v1221 = vld [vmem:[%s237 + $0x1cd0] sm:$0xff]
        %v1222 = vld [vmem:[%s237 + $0x1cd8] sm:$0xff]
        %v1223 = vld [vmem:[%s237 + $0x1ce0] sm:$0xff]
        %v1224 = vld [vmem:[%s237 + $0x1ce8] sm:$0xff]
        %v1225 = vld [vmem:[%s237 + $0x1cf0] sm:$0xff]
        %v1226 = vld [vmem:[%s237 + $0x1cf8] sm:$0xff]
        %v1227 = vld [vmem:[%s237 + $0x1d00] sm:$0xff]
        %v1228 = vld [vmem:[%s237 + $0x1d08] sm:$0xff]
        %v1229 = vld [vmem:[%s237 + $0x1d10] sm:$0xff]
        %v1230 = vld [vmem:[%s237 + $0x1d18] sm:$0xff]
        %v1231 = vld [vmem:[%s237 + $0x1d20] sm:$0xff]
        %v1232 = vld [vmem:[%s237 + $0x1d28] sm:$0xff]
        %v1233 = vld [vmem:[%s237 + $0x1d30] sm:$0xff]
        %v1234 = vld [vmem:[%s237 + $0x1d38] sm:$0xff]
        %v1235 = vld [vmem:[%s237 + $0x1d40] sm:$0xff]
        %v1236 = vld [vmem:[%s237 + $0x1d48] sm:$0xff]
        %v1237 = vld [vmem:[%s237 + $0x1d50] sm:$0xff]
        %v1238 = vld [vmem:[%s237 + $0x1d58] sm:$0xff]
        %v1239 = vld [vmem:[%s237 + $0x1d60] sm:$0xff]
        %v1240 = vld [vmem:[%s237 + $0x1d68] sm:$0xff]
        %v1241 = vld [vmem:[%s237 + $0x1d70] sm:$0xff]
        %v1242 = vld [vmem:[%s237 + $0x1d78] sm:$0xff]
        %v1243 = vld [vmem:[%s237 + $0x1d80] sm:$0xff]
        %v1244 = vld [vmem:[%s237 + $0x1d88] sm:$0xff]
        %v1245 = vld [vmem:[%s237 + $0x1d90] sm:$0xff]
        %v1246 = vld [vmem:[%s237 + $0x1d98] sm:$0xff]
        %v1247 = vld [vmem:[%s237 + $0x1da0] sm:$0xff]
        %v1248 = vld [vmem:[%s237 + $0x1da8] sm:$0xff]
        %v1249 = vld [vmem:[%s237 + $0x1db0] sm:$0xff]
        %v1250 = vld [vmem:[%s237 + $0x1db8] sm:$0xff]
        %v1251 = vld [vmem:[%s237 + $0x1dc0] sm:$0xff]
        %v1252 = vld [vmem:[%s237 + $0x1dc8] sm:$0xff]
        %v1253 = vld [vmem:[%s237 + $0x1dd0] sm:$0xff]
        %v1254 = vld [vmem:[%s237 + $0x1dd8] sm:$0xff]
        %v1255 = vld [vmem:[%s237 + $0x1de0] sm:$0xff]
        %v1256 = vld [vmem:[%s237 + $0x1de8] sm:$0xff]
        %v1257 = vld [vmem:[%s237 + $0x1df0] sm:$0xff]
        %v1258 = vld [vmem:[%s237 + $0x1df8] sm:$0xff]
        %v1259 = vld [vmem:[%s237 + $0x1e00] sm:$0xff]
        %v1260 = vld [vmem:[%s237 + $0x1e08] sm:$0xff]
        %v1261 = vld [vmem:[%s237 + $0x1e10] sm:$0xff]
        %v1262 = vld [vmem:[%s237 + $0x1e18] sm:$0xff]
        %v1263 = vld [vmem:[%s237 + $0x1e20] sm:$0xff]
        %v1264 = vld [vmem:[%s237 + $0x1e28] sm:$0xff]
        %v1265 = vld [vmem:[%s237 + $0x1e30] sm:$0xff]
        %v1266 = vld [vmem:[%s237 + $0x1e38] sm:$0xff]
        %v1267 = vld [vmem:[%s237 + $0x1e40] sm:$0xff]
        %v1268 = vld [vmem:[%s237 + $0x1e48] sm:$0xff]
        %v1269 = vld [vmem:[%s237 + $0x1e50] sm:$0xff]
        %v1270 = vld [vmem:[%s237 + $0x1e58] sm:$0xff]
        %v1271 = vld [vmem:[%s237 + $0x1e60] sm:$0xff]
        %v1272 = vld [vmem:[%s237 + $0x1e68] sm:$0xff]
        %v1273 = vld [vmem:[%s237 + $0x1e70] sm:$0xff]
        %v1274 = vld [vmem:[%s237 + $0x1e78] sm:$0xff]
        %v1275 = vld [vmem:[%s237 + $0x1e80] sm:$0xff]
        %v1276 = vld [vmem:[%s237 + $0x1e88] sm:$0xff]
        %v1277 = vld [vmem:[%s237 + $0x1e90] sm:$0xff]
        %v1278 = vld [vmem:[%s237 + $0x1e98] sm:$0xff]
        %v1279 = vld [vmem:[%s237 + $0x1ea0] sm:$0xff]
        %v1280 = vld [vmem:[%s237 + $0x1ea8] sm:$0xff]
        %v1281 = vld [vmem:[%s237 + $0x1eb0] sm:$0xff]
        %v1282 = vld [vmem:[%s237 + $0x1eb8] sm:$0xff]
        %v1283 = vld [vmem:[%s237 + $0x1ec0] sm:$0xff]
        %v1284 = vld [vmem:[%s237 + $0x1ec8] sm:$0xff]
        %v1285 = vld [vmem:[%s237 + $0x1ed0] sm:$0xff]
        %v1286 = vld [vmem:[%s237 + $0x1ed8] sm:$0xff]
        %v1287 = vld [vmem:[%s237 + $0x1ee0] sm:$0xff]
        %v1288 = vld [vmem:[%s237 + $0x1ee8] sm:$0xff]
        %v1289 = vld [vmem:[%s237 + $0x1ef0] sm:$0xff]
        %v1290 = vld [vmem:[%s237 + $0x1ef8] sm:$0xff]
        %v1291 = vld [vmem:[%s237 + $0x1f00] sm:$0xff]
        %v1292 = vld [vmem:[%s237 + $0x1f08] sm:$0xff]
        %v1293 = vld [vmem:[%s237 + $0x1f10] sm:$0xff]
        %v1294 = vld [vmem:[%s237 + $0x1f18] sm:$0xff]
        %v1295 = vld [vmem:[%s237 + $0x1f20] sm:$0xff]
        %v1296 = vld [vmem:[%s237 + $0x1f28] sm:$0xff]
        %v1297 = vld [vmem:[%s237 + $0x1f30] sm:$0xff]
        %v1298 = vld [vmem:[%s237 + $0x1f38] sm:$0xff]
        %v1299 = vld [vmem:[%s237 + $0x1f40] sm:$0xff]
        %v1300 = vld [vmem:[%s237 + $0x1f48] sm:$0xff]
        %v1301 = vld [vmem:[%s237 + $0x1f50] sm:$0xff]
        %v1302 = vld [vmem:[%s237 + $0x1f58] sm:$0xff]
        %v1303 = vld [vmem:[%s237 + $0x1f60] sm:$0xff]
        %v1304 = vld [vmem:[%s237 + $0x1f68] sm:$0xff]
        %v1305 = vld [vmem:[%s237 + $0x1f70] sm:$0xff]
        %v1306 = vld [vmem:[%s237 + $0x1f78] sm:$0xff]
        %v1307 = vld [vmem:[%s237 + $0x1f80] sm:$0xff]
        %v1308 = vld [vmem:[%s237 + $0x1f88] sm:$0xff]
        %v1309 = vld [vmem:[%s237 + $0x1f90] sm:$0xff]
        %v1310 = vld [vmem:[%s237 + $0x1f98] sm:$0xff]
        %v1311 = vld [vmem:[%s237 + $0x1fa0] sm:$0xff]
        %v1312 = vld [vmem:[%s237 + $0x1fa8] sm:$0xff]
        %v1313 = vld [vmem:[%s237 + $0x1fb0] sm:$0xff]
        %v1314 = vld [vmem:[%s237 + $0x1fb8] sm:$0xff]
        %v1315 = vld [vmem:[%s237 + $0x1fc0] sm:$0xff]
        %v1316 = vld [vmem:[%s237 + $0x1fc8] sm:$0xff]
        %v1317 = vld [vmem:[%s237 + $0x1fd0] sm:$0xff]
        %v1318 = vld [vmem:[%s237 + $0x1fd8] sm:$0xff]
        %v1319 = vld [vmem:[%s237 + $0x1fe0] sm:$0xff]
        %v1320 = vld [vmem:[%s237 + $0x1fe8] sm:$0xff]
        %v1321 = vld [vmem:[%s237 + $0x1ff0] sm:$0xff]
        %v1322 = vld [vmem:[%s237 + $0x1ff8] sm:$0xff]
        %v1323 = vld [vmem:[%s237 + $0x2000] sm:$0xff]
        %v1324 = vld [vmem:[%s237 + $0x2008] sm:$0xff]
        %v1325 = vld [vmem:[%s237 + $0x2010] sm:$0xff]
        %v1326 = vld [vmem:[%s237 + $0x2018] sm:$0xff]
        %v1327 = vld [vmem:[%s237 + $0x2020] sm:$0xff]
        %v1328 = vld [vmem:[%s237 + $0x2028] sm:$0xff]
        %v1329 = vld [vmem:[%s237 + $0x2030] sm:$0xff]
        %v1330 = vld [vmem:[%s237 + $0x2038] sm:$0xff]
        %v1331 = vld [vmem:[%s237 + $0x2040] sm:$0xff]
        %v1332 = vld [vmem:[%s237 + $0x2048] sm:$0xff]
        %v1333 = vld [vmem:[%s237 + $0x2050] sm:$0xff]
        %v1334 = vld [vmem:[%s237 + $0x2058] sm:$0xff]
        %v1335 = vld [vmem:[%s237 + $0x2060] sm:$0xff]
        %v1336 = vld [vmem:[%s237 + $0x2068] sm:$0xff]
        %v1337 = vld [vmem:[%s237 + $0x2070] sm:$0xff]
        %v1338 = vld [vmem:[%s237 + $0x2078] sm:$0xff]
        %v1339 = vld [vmem:[%s237 + $0x2080] sm:$0xff]
        %v1340 = vld [vmem:[%s237 + $0x2088] sm:$0xff]
        %v1341 = vld [vmem:[%s237 + $0x2090] sm:$0xff]
        %v1342 = vld [vmem:[%s237 + $0x2098] sm:$0xff]
        %v1343 = vld [vmem:[%s237 + $0x20a0] sm:$0xff]
        %v1344 = vld [vmem:[%s237 + $0x20a8] sm:$0xff]
        %v1345 = vld [vmem:[%s237 + $0x20b0] sm:$0xff]
        %v1346 = vld [vmem:[%s237 + $0x20b8] sm:$0xff]
        %v1347 = vld [vmem:[%s237 + $0x20c0] sm:$0xff]
        %v1348 = vld [vmem:[%s237 + $0x20c8] sm:$0xff]
        %v1349 = vld [vmem:[%s237 + $0x20d0] sm:$0xff]
        %v1350 = vld [vmem:[%s237 + $0x20d8] sm:$0xff]
        %v1351 = vld [vmem:[%s237 + $0x20e0] sm:$0xff]
        %v1352 = vld [vmem:[%s237 + $0x20e8] sm:$0xff]
        %v1353 = vld [vmem:[%s237 + $0x20f0] sm:$0xff]
        %v1354 = vld [vmem:[%s237 + $0x20f8] sm:$0xff]
        %v1355 = vld [vmem:[%s237 + $0x2100] sm:$0xff]
        %v1356 = vld [vmem:[%s237 + $0x2108] sm:$0xff]
        %v1357 = vld [vmem:[%s237 + $0x2110] sm:$0xff]
        %v1358 = vld [vmem:[%s237 + $0x2118] sm:$0xff]
        %v1359 = vld [vmem:[%s237 + $0x2120] sm:$0xff]
        %v1360 = vld [vmem:[%s237 + $0x2128] sm:$0xff]
        %v1361 = vld [vmem:[%s237 + $0x2130] sm:$0xff]
        %v1362 = vld [vmem:[%s237 + $0x2138] sm:$0xff]
        %v1363 = vld [vmem:[%s237 + $0x2140] sm:$0xff]
        %v1364 = vld [vmem:[%s237 + $0x2148] sm:$0xff]
        %v1365 = vld [vmem:[%s237 + $0x2150] sm:$0xff]
        %v1366 = vld [vmem:[%s237 + $0x2158] sm:$0xff]
        %v1367 = vld [vmem:[%s237 + $0x2160] sm:$0xff]
        %v1368 = vld [vmem:[%s237 + $0x2168] sm:$0xff]
        %v1369 = vld [vmem:[%s237 + $0x2170] sm:$0xff]
        %v1370 = vld [vmem:[%s237 + $0x2178] sm:$0xff]
        %v1371 = vld [vmem:[%s237 + $0x2180] sm:$0xff]
        %v1372 = vld [vmem:[%s237 + $0x2188] sm:$0xff]
        %v1373 = vld [vmem:[%s237 + $0x2190] sm:$0xff]
        %v1374 = vld [vmem:[%s237 + $0x2198] sm:$0xff]
        %v1375 = vld [vmem:[%s237 + $0x21a0] sm:$0xff]
        %v1376 = vld [vmem:[%s237 + $0x21a8] sm:$0xff]
        %v1377 = vld [vmem:[%s237 + $0x21b0] sm:$0xff]
        %v1378 = vld [vmem:[%s237 + $0x21b8] sm:$0xff]
        %v1379 = vld [vmem:[%s237 + $0x21c0] sm:$0xff]
        %v1380 = vld [vmem:[%s237 + $0x21c8] sm:$0xff]
        %v1381 = vld [vmem:[%s237 + $0x21d0] sm:$0xff]
        %v1382 = vld [vmem:[%s237 + $0x21d8] sm:$0xff]
        %v1383 = vld [vmem:[%s237 + $0x21e0] sm:$0xff]
        %v1384 = vld [vmem:[%s237 + $0x21e8] sm:$0xff]
        %v1385 = vld [vmem:[%s237 + $0x21f0] sm:$0xff]
        %v1386 = vld [vmem:[%s237 + $0x21f8] sm:$0xff]
        %v1387 = vld [vmem:[%s237 + $0x2200] sm:$0xff]
        %v1388 = vld [vmem:[%s237 + $0x2208] sm:$0xff]
        %v1389 = vld [vmem:[%s237 + $0x2210] sm:$0xff]
        %v1390 = vld [vmem:[%s237 + $0x2218] sm:$0xff]
        %v1391 = vld [vmem:[%s237 + $0x2220] sm:$0xff]
        %v1392 = vld [vmem:[%s237 + $0x2228] sm:$0xff]
        %v1393 = vld [vmem:[%s237 + $0x2230] sm:$0xff]
        %v1394 = vld [vmem:[%s237 + $0x2238] sm:$0xff]
        %v1395 = vld [vmem:[%s237 + $0x2240] sm:$0xff]
        %v1396 = vld [vmem:[%s237 + $0x2248] sm:$0xff]
        %v1397 = vld [vmem:[%s237 + $0x2250] sm:$0xff]
        %v1398 = vld [vmem:[%s237 + $0x2258] sm:$0xff]
        %v1399 = vld [vmem:[%s237 + $0x2260] sm:$0xff]
        %v1400 = vld [vmem:[%s237 + $0x2268] sm:$0xff]
        %v1401 = vld [vmem:[%s237 + $0x2270] sm:$0xff]
        %v1402 = vld [vmem:[%s237 + $0x2278] sm:$0xff]
        %v1403 = vld [vmem:[%s237 + $0x2280] sm:$0xff]
        %v1404 = vld [vmem:[%s237 + $0x2288] sm:$0xff]
        %v1405 = vld [vmem:[%s237 + $0x2290] sm:$0xff]
        %v1406 = vld [vmem:[%s237 + $0x2298] sm:$0xff]
        %v1407 = vld [vmem:[%s237 + $0x22a0] sm:$0xff]
        %v1408 = vld [vmem:[%s237 + $0x22a8] sm:$0xff]
        %v1409 = vld [vmem:[%s237 + $0x22b0] sm:$0xff]
        %v1410 = vld [vmem:[%s237 + $0x22b8] sm:$0xff]
        %v1411 = vld [vmem:[%s237 + $0x22c0] sm:$0xff]
        %v1412 = vld [vmem:[%s237 + $0x22c8] sm:$0xff]
        %v1413 = vld [vmem:[%s237 + $0x22d0] sm:$0xff]
        %v1414 = vld [vmem:[%s237 + $0x22d8] sm:$0xff]
        %v1415 = vld [vmem:[%s237 + $0x22e0] sm:$0xff]
        %v1416 = vld [vmem:[%s237 + $0x22e8] sm:$0xff]
        %v1417 = vld [vmem:[%s237 + $0x22f0] sm:$0xff]
        %v1418 = vld [vmem:[%s237 + $0x22f8] sm:$0xff]
        %v1419 = vld [vmem:[%s237 + $0x2300] sm:$0xff]
        %v1420 = vld [vmem:[%s237 + $0x2308] sm:$0xff]
        %v1421 = vld [vmem:[%s237 + $0x2310] sm:$0xff]
        %v1422 = vld [vmem:[%s237 + $0x2318] sm:$0xff]
        %v1423 = vld [vmem:[%s237 + $0x2320] sm:$0xff]
        %v1424 = vld [vmem:[%s237 + $0x2328] sm:$0xff]
        %v1425 = vld [vmem:[%s237 + $0x2330] sm:$0xff]
        %v1426 = vld [vmem:[%s237 + $0x2338] sm:$0xff]
        %v1427 = vld [vmem:[%s237 + $0x2340] sm:$0xff]
        %v1428 = vld [vmem:[%s237 + $0x2348] sm:$0xff]
        %v1429 = vld [vmem:[%s237 + $0x2350] sm:$0xff]
        %v1430 = vld [vmem:[%s237 + $0x2358] sm:$0xff]
        %v1431 = vld [vmem:[%s237 + $0x2360] sm:$0xff]
        %v1432 = vld [vmem:[%s237 + $0x2368] sm:$0xff]
        %v1433 = vld [vmem:[%s237 + $0x2370] sm:$0xff]
        %v1434 = vld [vmem:[%s237 + $0x2378] sm:$0xff]
        %v1435 = vld [vmem:[%s237 + $0x2380] sm:$0xff]
        %v1436 = vld [vmem:[%s237 + $0x2388] sm:$0xff]
        %v1437 = vld [vmem:[%s237 + $0x2390] sm:$0xff]
        %v1438 = vld [vmem:[%s237 + $0x2398] sm:$0xff]
        %v1439 = vld [vmem:[%s237 + $0x23a0] sm:$0xff]
        %v1440 = vld [vmem:[%s237 + $0x23a8] sm:$0xff]
        %v1441 = vld [vmem:[%s237 + $0x23b0] sm:$0xff]
        %v1442 = vld [vmem:[%s237 + $0x23b8] sm:$0xff]
        %v1443 = vld [vmem:[%s237 + $0x23c0] sm:$0xff]
        %v1444 = vld [vmem:[%s237 + $0x23c8] sm:$0xff]
        %v1445 = vld [vmem:[%s237 + $0x23d0] sm:$0xff]
        %v1446 = vld [vmem:[%s237 + $0x23d8] sm:$0xff]
        %v1447 = vld [vmem:[%s237 + $0x23e0] sm:$0xff]
        %v1448 = vld [vmem:[%s237 + $0x23e8] sm:$0xff]
        %v1449 = vld [vmem:[%s237 + $0x23f0] sm:$0xff]
        %v1450 = vld [vmem:[%s237 + $0x23f8] sm:$0xff]
        %v1451 = vld [vmem:[%s237 + $0x2400] sm:$0xff]
        %v1452 = vld [vmem:[%s237 + $0x2408] sm:$0xff]
        %v1453 = vld [vmem:[%s237 + $0x2410] sm:$0xff]
        %v1454 = vld [vmem:[%s237 + $0x2418] sm:$0xff]
        %v1455 = vld [vmem:[%s237 + $0x2420] sm:$0xff]
        %v1456 = vld [vmem:[%s237 + $0x2428] sm:$0xff]
        %v1457 = vld [vmem:[%s237 + $0x2430] sm:$0xff]
        %v1458 = vld [vmem:[%s237 + $0x2438] sm:$0xff]
        %v1459 = vld [vmem:[%s237 + $0x2440] sm:$0xff]
        %v1460 = vld [vmem:[%s237 + $0x2448] sm:$0xff]
        %v1461 = vld [vmem:[%s237 + $0x2450] sm:$0xff]
        %v1462 = vld [vmem:[%s237 + $0x2458] sm:$0xff]
        %v1463 = vld [vmem:[%s237 + $0x2460] sm:$0xff]
        %v1464 = vld [vmem:[%s237 + $0x2468] sm:$0xff]
        %v1465 = vld [vmem:[%s237 + $0x2470] sm:$0xff]
        %v1466 = vld [vmem:[%s237 + $0x2478] sm:$0xff]
        %v1467 = vld [vmem:[%s237 + $0x2480] sm:$0xff]
        %v1468 = vld [vmem:[%s237 + $0x2488] sm:$0xff]
        %v1469 = vld [vmem:[%s237 + $0x2490] sm:$0xff]
        %v1470 = vld [vmem:[%s237 + $0x2498] sm:$0xff]
        %v1471 = vld [vmem:[%s237 + $0x24a0] sm:$0xff]
        %v1472 = vld [vmem:[%s237 + $0x24a8] sm:$0xff]
        %v1473 = vld [vmem:[%s237 + $0x24b0] sm:$0xff]
        %v1474 = vld [vmem:[%s237 + $0x24b8] sm:$0xff]
        %v1475 = vld [vmem:[%s237 + $0x24c0] sm:$0xff]
        %v1476 = vld [vmem:[%s237 + $0x24c8] sm:$0xff]
        %v1477 = vld [vmem:[%s237 + $0x24d0] sm:$0xff]
        %v1478 = vld [vmem:[%s237 + $0x24d8] sm:$0xff]
        %v1479 = vld [vmem:[%s237 + $0x24e0] sm:$0xff]
        %v1480 = vld [vmem:[%s237 + $0x24e8] sm:$0xff]
        %v1481 = vld [vmem:[%s237 + $0x24f0] sm:$0xff]
        %v1482 = vld [vmem:[%s237 + $0x24f8] sm:$0xff]
        %v1483 = vld [vmem:[%s237 + $0x2500] sm:$0xff]
        %v1484 = vld [vmem:[%s237 + $0x2508] sm:$0xff]
        %v1485 = vld [vmem:[%s237 + $0x2510] sm:$0xff]
        %v1486 = vld [vmem:[%s237 + $0x2518] sm:$0xff]
        %v1487 = vld [vmem:[%s237 + $0x2520] sm:$0xff]
        %v1488 = vld [vmem:[%s237 + $0x2528] sm:$0xff]
        %v1489 = vld [vmem:[%s237 + $0x2530] sm:$0xff]
        %v1490 = vld [vmem:[%s237 + $0x2538] sm:$0xff]
        %v1491 = vld [vmem:[%s237 + $0x2540] sm:$0xff]
        %v1492 = vld [vmem:[%s237 + $0x2548] sm:$0xff]
        %v1493 = vld [vmem:[%s237 + $0x2550] sm:$0xff]
        %v1494 = vld [vmem:[%s237 + $0x2558] sm:$0xff]
        %v1495 = vld [vmem:[%s237 + $0x2560] sm:$0xff]
        %v1496 = vld [vmem:[%s237 + $0x2568] sm:$0xff]
        %v1497 = vld [vmem:[%s237 + $0x2570] sm:$0xff]
        %v1498 = vld [vmem:[%s237 + $0x2578] sm:$0xff]
        %v1499 = vld [vmem:[%s237 + $0x2580] sm:$0xff]
        %v1500 = vld [vmem:[%s237 + $0x2588] sm:$0xff]
        %v1501 = vld [vmem:[%s237 + $0x2590] sm:$0xff]
        %v1502 = vld [vmem:[%s237 + $0x2598] sm:$0xff]
        %v1503 = vld [vmem:[%s237 + $0x25a0] sm:$0xff]
        %v1504 = vld [vmem:[%s237 + $0x25a8] sm:$0xff]
        %v1505 = vld [vmem:[%s237 + $0x25b0] sm:$0xff]
        %v1506 = vld [vmem:[%s237 + $0x25b8] sm:$0xff]
        %v1507 = vld [vmem:[%s237 + $0x25c0] sm:$0xff]
        %v1508 = vld [vmem:[%s237 + $0x25c8] sm:$0xff]
        %v1509 = vld [vmem:[%s237 + $0x25d0] sm:$0xff]
        %v1510 = vld [vmem:[%s237 + $0x25d8] sm:$0xff]
        %v1511 = vld [vmem:[%s237 + $0x25e0] sm:$0xff]
        %v1512 = vld [vmem:[%s237 + $0x25e8] sm:$0xff]
        %v1513 = vld [vmem:[%s237 + $0x25f0] sm:$0xff]
        %v1514 = vld [vmem:[%s237 + $0x25f8] sm:$0xff]
        %v1515 = vld [vmem:[%s237 + $0x2600] sm:$0xff]
        %v1516 = vld [vmem:[%s237 + $0x2608] sm:$0xff]
        %v1517 = vld [vmem:[%s237 + $0x2610] sm:$0xff]
        %v1518 = vld [vmem:[%s237 + $0x2618] sm:$0xff]
        %v1519 = vld [vmem:[%s237 + $0x2620] sm:$0xff]
        %v1520 = vld [vmem:[%s237 + $0x2628] sm:$0xff]
        %v1521 = vld [vmem:[%s237 + $0x2630] sm:$0xff]
        %v1522 = vld [vmem:[%s237 + $0x2638] sm:$0xff]
        %v1523 = vld [vmem:[%s237 + $0x2640] sm:$0xff]
        %v1524 = vld [vmem:[%s237 + $0x2648] sm:$0xff]
        %v1525 = vld [vmem:[%s237 + $0x2650] sm:$0xff]
        %v1526 = vld [vmem:[%s237 + $0x2658] sm:$0xff]
        %v1527 = vld [vmem:[%s237 + $0x2660] sm:$0xff]
        %v1528 = vld [vmem:[%s237 + $0x2668] sm:$0xff]
        %v1529 = vld [vmem:[%s237 + $0x2670] sm:$0xff]
        %v1530 = vld [vmem:[%s237 + $0x2678] sm:$0xff]
        %v1531 = vld [vmem:[%s237 + $0x2680] sm:$0xff]
        %v1532 = vld [vmem:[%s237 + $0x2688] sm:$0xff]
        %v1533 = vld [vmem:[%s237 + $0x2690] sm:$0xff]
        %v1534 = vld [vmem:[%s237 + $0x2698] sm:$0xff]
        %v1535 = vld [vmem:[%s237 + $0x26a0] sm:$0xff]
        %v1536 = vld [vmem:[%s237 + $0x26a8] sm:$0xff]
        %v1537 = vld [vmem:[%s237 + $0x26b0] sm:$0xff]
        %v1538 = vld [vmem:[%s237 + $0x26b8] sm:$0xff]
        %v1539 = vld [vmem:[%s237 + $0x26c0] sm:$0xff]
        %v1540 = vld [vmem:[%s237 + $0x26c8] sm:$0xff]
        %v1541 = vld [vmem:[%s237 + $0x26d0] sm:$0xff]
        %v1542 = vld [vmem:[%s237 + $0x26d8] sm:$0xff]
        %v1543 = vld [vmem:[%s237 + $0x26e0] sm:$0xff]
        %v1544 = vld [vmem:[%s237 + $0x26e8] sm:$0xff]
        %v1545 = vld [vmem:[%s237 + $0x26f0] sm:$0xff]
        %v1546 = vld [vmem:[%s237 + $0x26f8] sm:$0xff]
        %v1547 = vld [vmem:[%s237 + $0x2700] sm:$0xff]
        %v1548 = vld [vmem:[%s237 + $0x2708] sm:$0xff]
        %v1549 = vld [vmem:[%s237 + $0x2710] sm:$0xff]
        %v1550 = vld [vmem:[%s237 + $0x2718] sm:$0xff]
        %v1551 = vld [vmem:[%s237 + $0x2720] sm:$0xff]
        %v1552 = vld [vmem:[%s237 + $0x2728] sm:$0xff]
        %v1553 = vld [vmem:[%s237 + $0x2730] sm:$0xff]
        %v1554 = vld [vmem:[%s237 + $0x2738] sm:$0xff]
        %v1555 = vld [vmem:[%s237 + $0x2740] sm:$0xff]
        %v1556 = vld [vmem:[%s237 + $0x2748] sm:$0xff]
        %v1557 = vld [vmem:[%s237 + $0x2750] sm:$0xff]
        %v1558 = vld [vmem:[%s237 + $0x2758] sm:$0xff]
        %v1559 = vld [vmem:[%s237 + $0x2760] sm:$0xff]
        %v1560 = vld [vmem:[%s237 + $0x2768] sm:$0xff]
        %v1561 = vld [vmem:[%s237 + $0x2770] sm:$0xff]
        %v1562 = vld [vmem:[%s237 + $0x2778] sm:$0xff]
        %v1563 = vld [vmem:[%s237 + $0x2780] sm:$0xff]
        %v1564 = vld [vmem:[%s237 + $0x2788] sm:$0xff]
        %v1565 = vld [vmem:[%s237 + $0x2790] sm:$0xff]
        %v1566 = vld [vmem:[%s237 + $0x2798] sm:$0xff]
        %v1567 = vld [vmem:[%s237 + $0x27a0] sm:$0xff]
        %v1568 = vld [vmem:[%s237 + $0x27a8] sm:$0xff]
        %v1569 = vld [vmem:[%s237 + $0x27b0] sm:$0xff]
        %v1570 = vld [vmem:[%s237 + $0x27b8] sm:$0xff]
        %v1571 = vld [vmem:[%s237 + $0x27c0] sm:$0xff]
        %v1572 = vld [vmem:[%s237 + $0x27c8] sm:$0xff]
        %v1573 = vld [vmem:[%s237 + $0x27d0] sm:$0xff]
        %v1574 = vld [vmem:[%s237 + $0x27d8] sm:$0xff]
        %v1575 = vld [vmem:[%s237 + $0x27e0] sm:$0xff]
        %v1576 = vld [vmem:[%s237 + $0x27e8] sm:$0xff]
        %v1577 = vld [vmem:[%s237 + $0x27f0] sm:$0xff]
        %v1578 = vld [vmem:[%s237 + $0x27f8] sm:$0xff]
        %v1579 = vld [vmem:[%s237 + $0x2800] sm:$0xff]
        %v1580 = vld [vmem:[%s237 + $0x2808] sm:$0xff]
        %v1581 = vld [vmem:[%s237 + $0x2810] sm:$0xff]
        %v1582 = vld [vmem:[%s237 + $0x2818] sm:$0xff]
        %v1583 = vld [vmem:[%s237 + $0x2820] sm:$0xff]
        %v1584 = vld [vmem:[%s237 + $0x2828] sm:$0xff]
        %v1585 = vld [vmem:[%s237 + $0x2830] sm:$0xff]
        %v1586 = vld [vmem:[%s237 + $0x2838] sm:$0xff]
        %v1587 = vld [vmem:[%s237 + $0x2840] sm:$0xff]
        %v1588 = vld [vmem:[%s237 + $0x2848] sm:$0xff]
        %v1589 = vld [vmem:[%s237 + $0x2850] sm:$0xff]
        %v1590 = vld [vmem:[%s237 + $0x2858] sm:$0xff]
        %v1591 = vld [vmem:[%s237 + $0x2860] sm:$0xff]
        %v1592 = vld [vmem:[%s237 + $0x2868] sm:$0xff]
        %v1593 = vld [vmem:[%s237 + $0x2870] sm:$0xff]
        %v1594 = vld [vmem:[%s237 + $0x2878] sm:$0xff]
        %v1595 = vld [vmem:[%s237 + $0x2880] sm:$0xff]
        %v1596 = vld [vmem:[%s237 + $0x2888] sm:$0xff]
        %v1597 = vld [vmem:[%s237 + $0x2890] sm:$0xff]
        %v1598 = vld [vmem:[%s237 + $0x2898] sm:$0xff]
        %v1599 = vld [vmem:[%s237 + $0x28a0] sm:$0xff]
        %v1600 = vld [vmem:[%s237 + $0x28a8] sm:$0xff]
        %v1601 = vld [vmem:[%s237 + $0x28b0] sm:$0xff]
        %v1602 = vld [vmem:[%s237 + $0x28b8] sm:$0xff]
        %v1603 = vld [vmem:[%s237 + $0x28c0] sm:$0xff]
        %v1604 = vld [vmem:[%s237 + $0x28c8] sm:$0xff]
        %v1605 = vld [vmem:[%s237 + $0x28d0] sm:$0xff]
        %v1606 = vld [vmem:[%s237 + $0x28d8] sm:$0xff]
        %v1607 = vld [vmem:[%s237 + $0x28e0] sm:$0xff]
        %v1608 = vld [vmem:[%s237 + $0x28e8] sm:$0xff]
        %v1609 = vld [vmem:[%s237 + $0x28f0] sm:$0xff]
        %v1610 = vld [vmem:[%s237 + $0x28f8] sm:$0xff]
        %v1611 = vld [vmem:[%s237 + $0x2900] sm:$0xff]
        %v1612 = vld [vmem:[%s237 + $0x2908] sm:$0xff]
        %v1613 = vld [vmem:[%s237 + $0x2910] sm:$0xff]
        %v1614 = vld [vmem:[%s237 + $0x2918] sm:$0xff]
        %v1615 = vld [vmem:[%s237 + $0x2920] sm:$0xff]
        %v1616 = vld [vmem:[%s237 + $0x2928] sm:$0xff]
        %v1617 = vld [vmem:[%s237 + $0x2930] sm:$0xff]
        %v1618 = vld [vmem:[%s237 + $0x2938] sm:$0xff]
        %v1619 = vld [vmem:[%s237 + $0x2940] sm:$0xff]
        %v1620 = vld [vmem:[%s237 + $0x2948] sm:$0xff]
        %v1621 = vld [vmem:[%s237 + $0x2950] sm:$0xff]
        %v1622 = vld [vmem:[%s237 + $0x2958] sm:$0xff]
        %v1623 = vld [vmem:[%s237 + $0x2960] sm:$0xff]
        %v1624 = vld [vmem:[%s237 + $0x2968] sm:$0xff]
        %v1625 = vld [vmem:[%s237 + $0x2970] sm:$0xff]
        %v1626 = vld [vmem:[%s237 + $0x2978] sm:$0xff]
        %v1627 = vld [vmem:[%s237 + $0x2980] sm:$0xff]
        %v1628 = vld [vmem:[%s237 + $0x2988] sm:$0xff]
        %v1629 = vld [vmem:[%s237 + $0x2990] sm:$0xff]
        %v1630 = vld [vmem:[%s237 + $0x2998] sm:$0xff]
        %v1631 = vld [vmem:[%s237 + $0x29a0] sm:$0xff]
        %v1632 = vld [vmem:[%s237 + $0x29a8] sm:$0xff]
        %v1633 = vld [vmem:[%s237 + $0x29b0] sm:$0xff]
        %v1634 = vld [vmem:[%s237 + $0x29b8] sm:$0xff]
        %v1635 = vld [vmem:[%s237 + $0x29c0] sm:$0xff]
        %v1636 = vld [vmem:[%s237 + $0x29c8] sm:$0xff]
        %v1637 = vld [vmem:[%s237 + $0x29d0] sm:$0xff]
        %v1638 = vld [vmem:[%s237 + $0x29d8] sm:$0xff]
        %v1639 = vld [vmem:[%s237 + $0x29e0] sm:$0xff]
        %v1640 = vld [vmem:[%s237 + $0x29e8] sm:$0xff]
        %v1641 = vld [vmem:[%s237 + $0x29f0] sm:$0xff]
        %v1642 = vld [vmem:[%s237 + $0x29f8] sm:$0xff]
        %v1643 = vld [vmem:[%s237 + $0x2a00] sm:$0xff]
        %v1644 = vld [vmem:[%s237 + $0x2a08] sm:$0xff]
        %v1645 = vld [vmem:[%s237 + $0x2a10] sm:$0xff]
        %v1646 = vld [vmem:[%s237 + $0x2a18] sm:$0xff]
        %v1647 = vld [vmem:[%s237 + $0x2a20] sm:$0xff]
        %v1648 = vld [vmem:[%s237 + $0x2a28] sm:$0xff]
        %v1649 = vld [vmem:[%s237 + $0x2a30] sm:$0xff]
        %v1650 = vld [vmem:[%s237 + $0x2a38] sm:$0xff]
        %v1651 = vld [vmem:[%s237 + $0x2a40] sm:$0xff]
        %v1652 = vld [vmem:[%s237 + $0x2a48] sm:$0xff]
        %v1653 = vld [vmem:[%s237 + $0x2a50] sm:$0xff]
        %v1654 = vld [vmem:[%s237 + $0x2a58] sm:$0xff]
        %v1655 = vld [vmem:[%s237 + $0x2a60] sm:$0xff]
        %v1656 = vld [vmem:[%s237 + $0x2a68] sm:$0xff]
        %v1657 = vld [vmem:[%s237 + $0x2a70] sm:$0xff]
        %v1658 = vld [vmem:[%s237 + $0x2a78] sm:$0xff]
        %v1659 = vld [vmem:[%s237 + $0x2a80] sm:$0xff]
        %v1660 = vld [vmem:[%s237 + $0x2a88] sm:$0xff]
        %v1661 = vld [vmem:[%s237 + $0x2a90] sm:$0xff]
        %v1662 = vld [vmem:[%s237 + $0x2a98] sm:$0xff]
        %v1663 = vld [vmem:[%s237 + $0x2aa0] sm:$0xff]
        %v1664 = vld [vmem:[%s237 + $0x2aa8] sm:$0xff]
        %v1665 = vld [vmem:[%s237 + $0x2ab0] sm:$0xff]
        %v1666 = vld [vmem:[%s237 + $0x2ab8] sm:$0xff]
        %v1667 = vld [vmem:[%s237 + $0x2ac0] sm:$0xff]
        %v1668 = vld [vmem:[%s237 + $0x2ac8] sm:$0xff]
        %v1669 = vld [vmem:[%s237 + $0x2ad0] sm:$0xff]
        %v1670 = vld [vmem:[%s237 + $0x2ad8] sm:$0xff]
        %v1671 = vld [vmem:[%s237 + $0x2ae0] sm:$0xff]
        %v1672 = vld [vmem:[%s237 + $0x2ae8] sm:$0xff]
        %v1673 = vld [vmem:[%s237 + $0x2af0] sm:$0xff]
        %v1674 = vld [vmem:[%s237 + $0x2af8] sm:$0xff]
        %v1675 = vld [vmem:[%s237 + $0x2b00] sm:$0xff]
        %v1676 = vld [vmem:[%s237 + $0x2b08] sm:$0xff]
        %v1677 = vld [vmem:[%s237 + $0x2b10] sm:$0xff]
        %v1678 = vld [vmem:[%s237 + $0x2b18] sm:$0xff]
        %v1679 = vld [vmem:[%s237 + $0x2b20] sm:$0xff]
        %v1680 = vld [vmem:[%s237 + $0x2b28] sm:$0xff]
        %v1681 = vld [vmem:[%s237 + $0x2b30] sm:$0xff]
        %v1682 = vld [vmem:[%s237 + $0x2b38] sm:$0xff]
        %v1683 = vld [vmem:[%s237 + $0x2b40] sm:$0xff]
        %v1684 = vld [vmem:[%s237 + $0x2b48] sm:$0xff]
        %v1685 = vld [vmem:[%s237 + $0x2b50] sm:$0xff]
        %v1686 = vld [vmem:[%s237 + $0x2b58] sm:$0xff]
        %v1687 = vld [vmem:[%s237 + $0x2b60] sm:$0xff]
        %v1688 = vld [vmem:[%s237 + $0x2b68] sm:$0xff]
        %v1689 = vld [vmem:[%s237 + $0x2b70] sm:$0xff]
        %v1690 = vld [vmem:[%s237 + $0x2b78] sm:$0xff]
        %v1691 = vld [vmem:[%s237 + $0x2b80] sm:$0xff]
        %v1692 = vld [vmem:[%s237 + $0x2b88] sm:$0xff]
        %v1693 = vld [vmem:[%s237 + $0x2b90] sm:$0xff]
        %v1694 = vld [vmem:[%s237 + $0x2b98] sm:$0xff]
        %v1695 = vld [vmem:[%s237 + $0x2ba0] sm:$0xff]
        %v1696 = vld [vmem:[%s237 + $0x2ba8] sm:$0xff]
        %v1697 = vld [vmem:[%s237 + $0x2bb0] sm:$0xff]
        %v1698 = vld [vmem:[%s237 + $0x2bb8] sm:$0xff]
        %v1699 = vld [vmem:[%s237 + $0x2bc0] sm:$0xff]
        %v1700 = vld [vmem:[%s237 + $0x2bc8] sm:$0xff]
        %v1701 = vld [vmem:[%s237 + $0x2bd0] sm:$0xff]
        %v1702 = vld [vmem:[%s237 + $0x2bd8] sm:$0xff]
        %v1703 = vld [vmem:[%s237 + $0x2be0] sm:$0xff]
        %v1704 = vld [vmem:[%s237 + $0x2be8] sm:$0xff]
        %v1705 = vld [vmem:[%s237 + $0x2bf0] sm:$0xff]
        %v1706 = vld [vmem:[%s237 + $0x2bf8] sm:$0xff]
        %v1707 = vld [vmem:[%s237 + $0x2c00] sm:$0xff]
        %v1708 = vld [vmem:[%s237 + $0x2c08] sm:$0xff]
        %v1709 = vld [vmem:[%s237 + $0x2c10] sm:$0xff]
        %v1710 = vld [vmem:[%s237 + $0x2c18] sm:$0xff]
        %v1711 = vld [vmem:[%s237 + $0x2c20] sm:$0xff]
        %v1712 = vld [vmem:[%s237 + $0x2c28] sm:$0xff]
        %v1713 = vld [vmem:[%s237 + $0x2c30] sm:$0xff]
        %v1714 = vld [vmem:[%s237 + $0x2c38] sm:$0xff]
        %v1715 = vld [vmem:[%s237 + $0x2c40] sm:$0xff]
        %v1716 = vld [vmem:[%s237 + $0x2c48] sm:$0xff]
        %v1717 = vld [vmem:[%s237 + $0x2c50] sm:$0xff]
        %v1718 = vld [vmem:[%s237 + $0x2c58] sm:$0xff]
        %v1719 = vld [vmem:[%s237 + $0x2c60] sm:$0xff]
        %v1720 = vld [vmem:[%s237 + $0x2c68] sm:$0xff]
        %v1721 = vld [vmem:[%s237 + $0x2c70] sm:$0xff]
        %v1722 = vld [vmem:[%s237 + $0x2c78] sm:$0xff]
        %v1723 = vld [vmem:[%s237 + $0x2c80] sm:$0xff]
        %v1724 = vld [vmem:[%s237 + $0x2c88] sm:$0xff]
        %v1725 = vld [vmem:[%s237 + $0x2c90] sm:$0xff]
        %v1726 = vld [vmem:[%s237 + $0x2c98] sm:$0xff]
        %v1727 = vld [vmem:[%s237 + $0x2ca0] sm:$0xff]
        %v1728 = vld [vmem:[%s237 + $0x2ca8] sm:$0xff]
        %v1729 = vld [vmem:[%s237 + $0x2cb0] sm:$0xff]
        %v1730 = vld [vmem:[%s237 + $0x2cb8] sm:$0xff]
        %v1731 = vld [vmem:[%s237 + $0x2cc0] sm:$0xff]
        %v1732 = vld [vmem:[%s237 + $0x2cc8] sm:$0xff]
        %v1733 = vld [vmem:[%s237 + $0x2cd0] sm:$0xff]
        %v1734 = vld [vmem:[%s237 + $0x2cd8] sm:$0xff]
        %v1735 = vld [vmem:[%s237 + $0x2ce0] sm:$0xff]
        %v1736 = vld [vmem:[%s237 + $0x2ce8] sm:$0xff]
        %v1737 = vld [vmem:[%s237 + $0x2cf0] sm:$0xff]
        %v1738 = vld [vmem:[%s237 + $0x2cf8] sm:$0xff]
        %v1739 = vld [vmem:[%s237 + $0x2d00] sm:$0xff]
        %v1740 = vld [vmem:[%s237 + $0x2d08] sm:$0xff]
        %v1741 = vld [vmem:[%s237 + $0x2d10] sm:$0xff]
        %v1742 = vld [vmem:[%s237 + $0x2d18] sm:$0xff]
        %v1743 = vld [vmem:[%s237 + $0x2d20] sm:$0xff]
        %v1744 = vld [vmem:[%s237 + $0x2d28] sm:$0xff]
        %v1745 = vld [vmem:[%s237 + $0x2d30] sm:$0xff]
        %v1746 = vld [vmem:[%s237 + $0x2d38] sm:$0xff]
        %v1747 = vld [vmem:[%s237 + $0x2d40] sm:$0xff]
        %v1748 = vld [vmem:[%s237 + $0x2d48] sm:$0xff]
        %v1749 = vld [vmem:[%s237 + $0x2d50] sm:$0xff]
        %v1750 = vld [vmem:[%s237 + $0x2d58] sm:$0xff]
        %v1751 = vld [vmem:[%s237 + $0x2d60] sm:$0xff]
        %v1752 = vld [vmem:[%s237 + $0x2d68] sm:$0xff]
        %v1753 = vld [vmem:[%s237 + $0x2d70] sm:$0xff]
        %v1754 = vld [vmem:[%s237 + $0x2d78] sm:$0xff]
        %v1755 = vld [vmem:[%s237 + $0x2d80] sm:$0xff]
        %v1756 = vld [vmem:[%s237 + $0x2d88] sm:$0xff]
        %v1757 = vld [vmem:[%s237 + $0x2d90] sm:$0xff]
        %v1758 = vld [vmem:[%s237 + $0x2d98] sm:$0xff]
        %v1759 = vld [vmem:[%s237 + $0x2da0] sm:$0xff]
        %v1760 = vld [vmem:[%s237 + $0x2da8] sm:$0xff]
        %v1761 = vld [vmem:[%s237 + $0x2db0] sm:$0xff]
        %v1762 = vld [vmem:[%s237 + $0x2db8] sm:$0xff]
        %v1763 = vld [vmem:[%s237 + $0x2dc0] sm:$0xff]
        %v1764 = vld [vmem:[%s237 + $0x2dc8] sm:$0xff]
        %v1765 = vld [vmem:[%s237 + $0x2dd0] sm:$0xff]
        %v1766 = vld [vmem:[%s237 + $0x2dd8] sm:$0xff]
        %v1767 = vld [vmem:[%s237 + $0x2de0] sm:$0xff]
        %v1768 = vld [vmem:[%s237 + $0x2de8] sm:$0xff]
        %v1769 = vld [vmem:[%s237 + $0x2df0] sm:$0xff]
        %v1770 = vld [vmem:[%s237 + $0x2df8] sm:$0xff]
        %v1771 = vld [vmem:[%s237 + $0x2e00] sm:$0xff]
        %v1772 = vld [vmem:[%s237 + $0x2e08] sm:$0xff]
        %v1773 = vld [vmem:[%s237 + $0x2e10] sm:$0xff]
        %v1774 = vld [vmem:[%s237 + $0x2e18] sm:$0xff]
        %v1775 = vld [vmem:[%s237 + $0x2e20] sm:$0xff]
        %v1776 = vld [vmem:[%s237 + $0x2e28] sm:$0xff]
        %v1777 = vld [vmem:[%s237 + $0x2e30] sm:$0xff]
        %v1778 = vld [vmem:[%s237 + $0x2e38] sm:$0xff]
        %v1779 = vld [vmem:[%s237 + $0x2e40] sm:$0xff]
        %v1780 = vld [vmem:[%s237 + $0x2e48] sm:$0xff]
        %v1781 = vld [vmem:[%s237 + $0x2e50] sm:$0xff]
        %v1782 = vld [vmem:[%s237 + $0x2e58] sm:$0xff]
        %v1783 = vld [vmem:[%s237 + $0x2e60] sm:$0xff]
        %v1784 = vld [vmem:[%s237 + $0x2e68] sm:$0xff]
        %v1785 = vld [vmem:[%s237 + $0x2e70] sm:$0xff]
        %v1786 = vld [vmem:[%s237 + $0x2e78] sm:$0xff]
        %v1787 = vld [vmem:[%s237 + $0x2e80] sm:$0xff]
        %v1788 = vld [vmem:[%s237 + $0x2e88] sm:$0xff]
        %v1789 = vld [vmem:[%s237 + $0x2e90] sm:$0xff]
        %v1790 = vld [vmem:[%s237 + $0x2e98] sm:$0xff]
        %v1791 = vld [vmem:[%s237 + $0x2ea0] sm:$0xff]
        %v1792 = vld [vmem:[%s237 + $0x2ea8] sm:$0xff]
        %v1793 = vld [vmem:[%s237 + $0x2eb0] sm:$0xff]
        %v1794 = vld [vmem:[%s237 + $0x2eb8] sm:$0xff]
        %v1795 = vld [vmem:[%s237 + $0x2ec0] sm:$0xff]
        %v1796 = vld [vmem:[%s237 + $0x2ec8] sm:$0xff]
        %v1797 = vld [vmem:[%s237 + $0x2ed0] sm:$0xff]
        %v1798 = vld [vmem:[%s237 + $0x2ed8] sm:$0xff]
        %v1799 = vld [vmem:[%s237 + $0x2ee0] sm:$0xff]
        %v1800 = vld [vmem:[%s237 + $0x2ee8] sm:$0xff]
        %v1801 = vld [vmem:[%s237 + $0x2ef0] sm:$0xff]
        %v1802 = vld [vmem:[%s237 + $0x2ef8] sm:$0xff]
        %v1803 = vld [vmem:[%s237 + $0x2f00] sm:$0xff]
        %v1804 = vld [vmem:[%s237 + $0x2f08] sm:$0xff]
        %v1805 = vld [vmem:[%s237 + $0x2f10] sm:$0xff]
        %v1806 = vld [vmem:[%s237 + $0x2f18] sm:$0xff]
        %v1807 = vld [vmem:[%s237 + $0x2f20] sm:$0xff]
        %v1808 = vld [vmem:[%s237 + $0x2f28] sm:$0xff]
        %v1809 = vld [vmem:[%s237 + $0x2f30] sm:$0xff]
        %v1810 = vld [vmem:[%s237 + $0x2f38] sm:$0xff]
        %v1811 = vld [vmem:[%s237 + $0x2f40] sm:$0xff]
        %v1812 = vld [vmem:[%s237 + $0x2f48] sm:$0xff]
        %v1813 = vld [vmem:[%s237 + $0x2f50] sm:$0xff]
        %v1814 = vld [vmem:[%s237 + $0x2f58] sm:$0xff]
        %v1815 = vld [vmem:[%s237 + $0x2f60] sm:$0xff]
        %v1816 = vld [vmem:[%s237 + $0x2f68] sm:$0xff]
        %v1817 = vld [vmem:[%s237 + $0x2f70] sm:$0xff]
        %v1818 = vld [vmem:[%s237 + $0x2f78] sm:$0xff]
        %v1819 = vld [vmem:[%s237 + $0x2f80] sm:$0xff]
        %v1820 = vld [vmem:[%s237 + $0x2f88] sm:$0xff]
        %v1821 = vld [vmem:[%s237 + $0x2f90] sm:$0xff]
        %v1822 = vld [vmem:[%s237 + $0x2f98] sm:$0xff]
        %v1823 = vld [vmem:[%s237 + $0x2fa0] sm:$0xff]
        %v1824 = vld [vmem:[%s237 + $0x2fa8] sm:$0xff]
        %v1825 = vld [vmem:[%s237 + $0x2fb0] sm:$0xff]
        %v1826 = vld [vmem:[%s237 + $0x2fb8] sm:$0xff]
        %v1827 = vld [vmem:[%s237 + $0x2fc0] sm:$0xff]
        %v1828 = vld [vmem:[%s237 + $0x2fc8] sm:$0xff]
        %v1829 = vld [vmem:[%s237 + $0x2fd0] sm:$0xff]
        %v1830 = vld [vmem:[%s237 + $0x2fd8] sm:$0xff]
        %v1831 = vld [vmem:[%s237 + $0x2fe0] sm:$0xff]
        %v1832 = vld [vmem:[%s237 + $0x2fe8] sm:$0xff]
        %v1833 = vld [vmem:[%s237 + $0x2ff0] sm:$0xff]
        %v1834 = vld [vmem:[%s237 + $0x2ff8] sm:$0xff]
        %v1835 = vld [vmem:[%s237 + $0x3000] sm:$0xff]
        %v1836 = vld [vmem:[%s237 + $0x3008] sm:$0xff]
        %v1837 = vld [vmem:[%s237 + $0x3010] sm:$0xff]
        %v1838 = vld [vmem:[%s237 + $0x3018] sm:$0xff]
        %v1839 = vld [vmem:[%s237 + $0x3020] sm:$0xff]
        %v1840 = vld [vmem:[%s237 + $0x3028] sm:$0xff]
        %v1841 = vld [vmem:[%s237 + $0x3030] sm:$0xff]
        %v1842 = vld [vmem:[%s237 + $0x3038] sm:$0xff]
        %v1843 = vld [vmem:[%s237 + $0x3040] sm:$0xff]
        %v1844 = vld [vmem:[%s237 + $0x3048] sm:$0xff]
        %v1845 = vld [vmem:[%s237 + $0x3050] sm:$0xff]
        %v1846 = vld [vmem:[%s237 + $0x3058] sm:$0xff]
        %v1847 = vld [vmem:[%s237 + $0x3060] sm:$0xff]
        %v1848 = vld [vmem:[%s237 + $0x3068] sm:$0xff]
        %v1849 = vld [vmem:[%s237 + $0x3070] sm:$0xff]
        %v1850 = vld [vmem:[%s237 + $0x3078] sm:$0xff]
        %v1851 = vld [vmem:[%s237 + $0x3080] sm:$0xff]
        %v1852 = vld [vmem:[%s237 + $0x3088] sm:$0xff]
        %v1853 = vld [vmem:[%s237 + $0x3090] sm:$0xff]
        %v1854 = vld [vmem:[%s237 + $0x3098] sm:$0xff]
        %v1855 = vld [vmem:[%s237 + $0x30a0] sm:$0xff]
        %v1856 = vld [vmem:[%s237 + $0x30a8] sm:$0xff]
        %v1857 = vld [vmem:[%s237 + $0x30b0] sm:$0xff]
        %v1858 = vld [vmem:[%s237 + $0x30b8] sm:$0xff]
        %v1859 = vld [vmem:[%s237 + $0x30c0] sm:$0xff]
        %v1860 = vld [vmem:[%s237 + $0x30c8] sm:$0xff]
        %v1861 = vld [vmem:[%s237 + $0x30d0] sm:$0xff]
        %v1862 = vld [vmem:[%s237 + $0x30d8] sm:$0xff]
        %v1863 = vld [vmem:[%s237 + $0x30e0] sm:$0xff]
        %v1864 = vld [vmem:[%s237 + $0x30e8] sm:$0xff]
        %v1865 = vld [vmem:[%s237 + $0x30f0] sm:$0xff]
        %v1866 = vld [vmem:[%s237 + $0x30f8] sm:$0xff]
        %v1867 = vld [vmem:[%s237 + $0x3100] sm:$0xff]
        %v1868 = vld [vmem:[%s237 + $0x3108] sm:$0xff]
        %v1869 = vld [vmem:[%s237 + $0x3110] sm:$0xff]
        %v1870 = vld [vmem:[%s237 + $0x3118] sm:$0xff]
        %v1871 = vld [vmem:[%s237 + $0x3120] sm:$0xff]
        %v1872 = vld [vmem:[%s237 + $0x3128] sm:$0xff]
        %v1873 = vld [vmem:[%s237 + $0x3130] sm:$0xff]
        %v1874 = vld [vmem:[%s237 + $0x3138] sm:$0xff]
        %v1875 = vld [vmem:[%s237 + $0x3140] sm:$0xff]
        %v1876 = vld [vmem:[%s237 + $0x3148] sm:$0xff]
        %v1877 = vld [vmem:[%s237 + $0x3150] sm:$0xff]
        %v1878 = vld [vmem:[%s237 + $0x3158] sm:$0xff]
        %v1879 = vld [vmem:[%s237 + $0x3160] sm:$0xff]
        %v1880 = vld [vmem:[%s237 + $0x3168] sm:$0xff]
        %v1881 = vld [vmem:[%s237 + $0x3170] sm:$0xff]
        %v1882 = vld [vmem:[%s237 + $0x3178] sm:$0xff]
        %v1883 = vld [vmem:[%s237 + $0x3180] sm:$0xff]
        %v1884 = vld [vmem:[%s237 + $0x3188] sm:$0xff]
        %v1885 = vld [vmem:[%s237 + $0x3190] sm:$0xff]
        %v1886 = vld [vmem:[%s237 + $0x3198] sm:$0xff]
        %v1887 = vld [vmem:[%s237 + $0x31a0] sm:$0xff]
        %v1888 = vld [vmem:[%s237 + $0x31a8] sm:$0xff]
        %v1889 = vld [vmem:[%s237 + $0x31b0] sm:$0xff]
        %v1890 = vld [vmem:[%s237 + $0x31b8] sm:$0xff]
        %v1891 = vld [vmem:[%s237 + $0x31c0] sm:$0xff]
        %v1892 = vld [vmem:[%s237 + $0x31c8] sm:$0xff]
        %v1893 = vld [vmem:[%s237 + $0x31d0] sm:$0xff]
        %v1894 = vld [vmem:[%s237 + $0x31d8] sm:$0xff]
        %v1895 = vld [vmem:[%s237 + $0x31e0] sm:$0xff]
        %v1896 = vld [vmem:[%s237 + $0x31e8] sm:$0xff]
        %v1897 = vld [vmem:[%s237 + $0x31f0] sm:$0xff]
        %v1898 = vld [vmem:[%s237 + $0x31f8] sm:$0xff]
        %v1899 = vld [vmem:[%s237 + $0x3200] sm:$0xff]
        %v1900 = vld [vmem:[%s237 + $0x3208] sm:$0xff]
        %v1901 = vld [vmem:[%s237 + $0x3210] sm:$0xff]
        %v1902 = vld [vmem:[%s237 + $0x3218] sm:$0xff]
        %v1903 = vld [vmem:[%s237 + $0x3220] sm:$0xff]
        %v1904 = vld [vmem:[%s237 + $0x3228] sm:$0xff]
        %v1905 = vld [vmem:[%s237 + $0x3230] sm:$0xff]
        %v1906 = vld [vmem:[%s237 + $0x3238] sm:$0xff]
        %v1907 = vld [vmem:[%s237 + $0x3240] sm:$0xff]
        %v1908 = vld [vmem:[%s237 + $0x3248] sm:$0xff]
        %v1909 = vld [vmem:[%s237 + $0x3250] sm:$0xff]
        %v1910 = vld [vmem:[%s237 + $0x3258] sm:$0xff]
        %v1911 = vld [vmem:[%s237 + $0x3260] sm:$0xff]
        %v1912 = vld [vmem:[%s237 + $0x3268] sm:$0xff]
        %v1913 = vld [vmem:[%s237 + $0x3270] sm:$0xff]
        %v1914 = vld [vmem:[%s237 + $0x3278] sm:$0xff]
        %v1915 = vld [vmem:[%s237 + $0x3280] sm:$0xff]
        %v1916 = vld [vmem:[%s237 + $0x3288] sm:$0xff]
        %v1917 = vld [vmem:[%s237 + $0x3290] sm:$0xff]
        %v1918 = vld [vmem:[%s237 + $0x3298] sm:$0xff]
        %v1919 = vld [vmem:[%s237 + $0x32a0] sm:$0xff]
        %v1920 = vld [vmem:[%s237 + $0x32a8] sm:$0xff]
        %v1921 = vld [vmem:[%s237 + $0x32b0] sm:$0xff]
        %v1922 = vld [vmem:[%s237 + $0x32b8] sm:$0xff]
        %v1923 = vld [vmem:[%s237 + $0x32c0] sm:$0xff]
        %v1924 = vld [vmem:[%s237 + $0x32c8] sm:$0xff]
        %v1925 = vld [vmem:[%s237 + $0x32d0] sm:$0xff]
        %v1926 = vld [vmem:[%s237 + $0x32d8] sm:$0xff]
        %v1927 = vld [vmem:[%s237 + $0x32e0] sm:$0xff]
        %v1928 = vld [vmem:[%s237 + $0x32e8] sm:$0xff]
        %v1929 = vld [vmem:[%s237 + $0x32f0] sm:$0xff]
        %v1930 = vld [vmem:[%s237 + $0x32f8] sm:$0xff]
        %v1931 = vld [vmem:[%s237 + $0x3300] sm:$0xff]
        %v1932 = vld [vmem:[%s237 + $0x3308] sm:$0xff]
        %v1933 = vld [vmem:[%s237 + $0x3310] sm:$0xff]
        %v1934 = vld [vmem:[%s237 + $0x3318] sm:$0xff]
        %v1935 = vld [vmem:[%s237 + $0x3320] sm:$0xff]
        %v1936 = vld [vmem:[%s237 + $0x3328] sm:$0xff]
        %v1937 = vld [vmem:[%s237 + $0x3330] sm:$0xff]
        %v1938 = vld [vmem:[%s237 + $0x3338] sm:$0xff]
        %v1939 = vld [vmem:[%s237 + $0x3340] sm:$0xff]
        %v1940 = vld [vmem:[%s237 + $0x3348] sm:$0xff]
        %v1941 = vld [vmem:[%s237 + $0x3350] sm:$0xff]
        %v1942 = vld [vmem:[%s237 + $0x3358] sm:$0xff]
        %v1943 = vld [vmem:[%s237 + $0x3360] sm:$0xff]
        %v1944 = vld [vmem:[%s237 + $0x3368] sm:$0xff]
        %v1945 = vld [vmem:[%s237 + $0x3370] sm:$0xff]
        %v1946 = vld [vmem:[%s237 + $0x3378] sm:$0xff]
        %v1947 = vld [vmem:[%s237 + $0x3380] sm:$0xff]
        %v1948 = vld [vmem:[%s237 + $0x3388] sm:$0xff]
        %v1949 = vld [vmem:[%s237 + $0x3390] sm:$0xff]
        %v1950 = vld [vmem:[%s237 + $0x3398] sm:$0xff]
        %v1951 = vld [vmem:[%s237 + $0x33a0] sm:$0xff]
        %v1952 = vld [vmem:[%s237 + $0x33a8] sm:$0xff]
        %v1953 = vld [vmem:[%s237 + $0x33b0] sm:$0xff]
        %v1954 = vld [vmem:[%s237 + $0x33b8] sm:$0xff]
        %v1955 = vld [vmem:[%s237 + $0x33c0] sm:$0xff]
        %v1956 = vld [vmem:[%s237 + $0x33c8] sm:$0xff]
        %v1957 = vld [vmem:[%s237 + $0x33d0] sm:$0xff]
        %v1958 = vld [vmem:[%s237 + $0x33d8] sm:$0xff]
        %v1959 = vld [vmem:[%s237 + $0x33e0] sm:$0xff]
        %v1960 = vld [vmem:[%s237 + $0x33e8] sm:$0xff]
        %v1961 = vld [vmem:[%s237 + $0x33f0] sm:$0xff]
        %v1962 = vld [vmem:[%s237 + $0x33f8] sm:$0xff]
        %v1963 = vld [vmem:[%s237 + $0x3400] sm:$0xff]
        %v1964 = vld [vmem:[%s237 + $0x3408] sm:$0xff]
        %v1965 = vld [vmem:[%s237 + $0x3410] sm:$0xff]
        %v1966 = vld [vmem:[%s237 + $0x3418] sm:$0xff]
        %v1967 = vld [vmem:[%s237 + $0x3420] sm:$0xff]
        %v1968 = vld [vmem:[%s237 + $0x3428] sm:$0xff]
        %v1969 = vld [vmem:[%s237 + $0x3430] sm:$0xff]
        %v1970 = vld [vmem:[%s237 + $0x3438] sm:$0xff]
        %v1971 = vld [vmem:[%s237 + $0x3440] sm:$0xff]
        %v1972 = vld [vmem:[%s237 + $0x3448] sm:$0xff]
        %v1973 = vld [vmem:[%s237 + $0x3450] sm:$0xff]
        %v1974 = vld [vmem:[%s237 + $0x3458] sm:$0xff]
        %v1975 = vld [vmem:[%s237 + $0x3460] sm:$0xff]
        %v1976 = vld [vmem:[%s237 + $0x3468] sm:$0xff]
        %v1977 = vld [vmem:[%s237 + $0x3470] sm:$0xff]
        %v1978 = vld [vmem:[%s237 + $0x3478] sm:$0xff]
        %v1979 = vld [vmem:[%s237 + $0x3480] sm:$0xff]
        %v1980 = vld [vmem:[%s237 + $0x3488] sm:$0xff]
        %v1981 = vld [vmem:[%s237 + $0x3490] sm:$0xff]
        %v1982 = vld [vmem:[%s237 + $0x3498] sm:$0xff]
        %v1983 = vld [vmem:[%s237 + $0x34a0] sm:$0xff]
        %v1984 = vld [vmem:[%s237 + $0x34a8] sm:$0xff]
        %v1985 = vld [vmem:[%s237 + $0x34b0] sm:$0xff]
        %v1986 = vld [vmem:[%s237 + $0x34b8] sm:$0xff]
        %v1987 = vld [vmem:[%s237 + $0x34c0] sm:$0xff]
        %v1988 = vld [vmem:[%s237 + $0x34c8] sm:$0xff]
        %v1989 = vld [vmem:[%s237 + $0x34d0] sm:$0xff]
        %v1990 = vld [vmem:[%s237 + $0x34d8] sm:$0xff]
        %v1991 = vld [vmem:[%s237 + $0x34e0] sm:$0xff]
        %v1992 = vld [vmem:[%s237 + $0x34e8] sm:$0xff]
        %v1993 = vld [vmem:[%s237 + $0x34f0] sm:$0xff]
        %v1994 = vld [vmem:[%s237 + $0x34f8] sm:$0xff]
        %v1995 = vld [vmem:[%s237 + $0x3500] sm:$0xff]
        %v1996 = vld [vmem:[%s237 + $0x3508] sm:$0xff]
        %v1997 = vld [vmem:[%s237 + $0x3510] sm:$0xff]
        %v1998 = vld [vmem:[%s237 + $0x3518] sm:$0xff]
        %v1999 = vld [vmem:[%s237 + $0x3520] sm:$0xff]
        %v2000 = vld [vmem:[%s237 + $0x3528] sm:$0xff]
        %v2001 = vld [vmem:[%s237 + $0x3530] sm:$0xff]
        %v2002 = vld [vmem:[%s237 + $0x3538] sm:$0xff]
        %v2003 = vld [vmem:[%s237 + $0x3540] sm:$0xff]
        %v2004 = vld [vmem:[%s237 + $0x3548] sm:$0xff]
        %v2005 = vld [vmem:[%s237 + $0x3550] sm:$0xff]
        %v2006 = vld [vmem:[%s237 + $0x3558] sm:$0xff]
        %v2007 = vld [vmem:[%s237 + $0x3560] sm:$0xff]
        %v2008 = vld [vmem:[%s237 + $0x3568] sm:$0xff]
        %v2009 = vld [vmem:[%s237 + $0x3570] sm:$0xff]
        %v2010 = vld [vmem:[%s237 + $0x3578] sm:$0xff]
        %v2011 = vld [vmem:[%s237 + $0x3580] sm:$0xff]
        %v2012 = vld [vmem:[%s237 + $0x3588] sm:$0xff]
        %v2013 = vld [vmem:[%s237 + $0x3590] sm:$0xff]
        %v2014 = vld [vmem:[%s237 + $0x3598] sm:$0xff]
        %v2015 = vld [vmem:[%s237 + $0x35a0] sm:$0xff]
        %v2016 = vld [vmem:[%s237 + $0x35a8] sm:$0xff]
        %v2017 = vld [vmem:[%s237 + $0x35b0] sm:$0xff]
        %v2018 = vld [vmem:[%s237 + $0x35b8] sm:$0xff]
        %v2019 = vld [vmem:[%s237 + $0x35c0] sm:$0xff]
        %v2020 = vld [vmem:[%s237 + $0x35c8] sm:$0xff]
        %v2021 = vld [vmem:[%s237 + $0x35d0] sm:$0xff]
        %v2022 = vld [vmem:[%s237 + $0x35d8] sm:$0xff]
        %v2023 = vld [vmem:[%s237 + $0x35e0] sm:$0xff]
        %v2024 = vld [vmem:[%s237 + $0x35e8] sm:$0xff]
        %v2025 = vld [vmem:[%s237 + $0x35f0] sm:$0xff]
        %v2026 = vld [vmem:[%s237 + $0x35f8] sm:$0xff]
        %v2027 = vld [vmem:[%s237 + $0x3600] sm:$0xff]
        %v2028 = vld [vmem:[%s237 + $0x3608] sm:$0xff]
        %v2029 = vld [vmem:[%s237 + $0x3610] sm:$0xff]
        %v2030 = vld [vmem:[%s237 + $0x3618] sm:$0xff]
        %v2031 = vld [vmem:[%s237 + $0x3620] sm:$0xff]
        %v2032 = vld [vmem:[%s237 + $0x3628] sm:$0xff]
        %v2033 = vld [vmem:[%s237 + $0x3630] sm:$0xff]
        %v2034 = vld [vmem:[%s237 + $0x3638] sm:$0xff]
        %v2035 = vld [vmem:[%s237 + $0x3640] sm:$0xff]
        %v2036 = vld [vmem:[%s237 + $0x3648] sm:$0xff]
        %v2037 = vld [vmem:[%s237 + $0x3650] sm:$0xff]
        %v2038 = vld [vmem:[%s237 + $0x3658] sm:$0xff]
        %v2039 = vld [vmem:[%s237 + $0x3660] sm:$0xff]
        %v2040 = vld [vmem:[%s237 + $0x3668] sm:$0xff]
        %v2041 = vld [vmem:[%s237 + $0x3670] sm:$0xff]
        %v2042 = vld [vmem:[%s237 + $0x3678] sm:$0xff]
        %v2043 = vld [vmem:[%s237 + $0x3680] sm:$0xff]
        %v2044 = vld [vmem:[%s237 + $0x3688] sm:$0xff]
        %v2045 = vld [vmem:[%s237 + $0x3690] sm:$0xff]
        %v2046 = vld [vmem:[%s237 + $0x3698] sm:$0xff]
        %v2047 = vld [vmem:[%s237 + $0x36a0] sm:$0xff]
        %v2048 = vld [vmem:[%s237 + $0x36a8] sm:$0xff]
        %v2049 = vld [vmem:[%s237 + $0x36b0] sm:$0xff]
        %v2050 = vld [vmem:[%s237 + $0x36b8] sm:$0xff]
        %v2051 = vld [vmem:[%s237 + $0x36c0] sm:$0xff]
        %v2052 = vld [vmem:[%s237 + $0x36c8] sm:$0xff]
        %v2053 = vld [vmem:[%s237 + $0x36d0] sm:$0xff]
        %v2054 = vld [vmem:[%s237 + $0x36d8] sm:$0xff]
        %v2055 = vld [vmem:[%s237 + $0x36e0] sm:$0xff]
        %v2056 = vld [vmem:[%s237 + $0x36e8] sm:$0xff]
        %v2057 = vld [vmem:[%s237 + $0x36f0] sm:$0xff]
        %v2058 = vld [vmem:[%s237 + $0x36f8] sm:$0xff]
        %v2059 = vld [vmem:[%s237 + $0x3700] sm:$0xff]
        %v2060 = vld [vmem:[%s237 + $0x3708] sm:$0xff]
        %v2061 = vld [vmem:[%s237 + $0x3710] sm:$0xff]
        %v2062 = vld [vmem:[%s237 + $0x3718] sm:$0xff]
        %v2063 = vld [vmem:[%s237 + $0x3720] sm:$0xff]
        %v2064 = vld [vmem:[%s237 + $0x3728] sm:$0xff]
        %v2065 = vld [vmem:[%s237 + $0x3730] sm:$0xff]
        %v2066 = vld [vmem:[%s237 + $0x3738] sm:$0xff]
        %v2067 = vld [vmem:[%s237 + $0x3740] sm:$0xff]
        %v2068 = vld [vmem:[%s237 + $0x3748] sm:$0xff]
        %v2069 = vld [vmem:[%s237 + $0x3750] sm:$0xff]
        %v2070 = vld [vmem:[%s237 + $0x3758] sm:$0xff]
        %v2071 = vld [vmem:[%s237 + $0x3760] sm:$0xff]
        %v2072 = vld [vmem:[%s237 + $0x3768] sm:$0xff]
        %v2073 = vld [vmem:[%s237 + $0x3770] sm:$0xff]
        %v2074 = vld [vmem:[%s237 + $0x3778] sm:$0xff]
        %v2075 = vld [vmem:[%s237 + $0x3780] sm:$0xff]
        %v2076 = vld [vmem:[%s237 + $0x3788] sm:$0xff]
        %v2077 = vld [vmem:[%s237 + $0x3790] sm:$0xff]
        %v2078 = vld [vmem:[%s237 + $0x3798] sm:$0xff]
        %v2079 = vld [vmem:[%s237 + $0x37a0] sm:$0xff]
        %v2080 = vld [vmem:[%s237 + $0x37a8] sm:$0xff]
        %v2081 = vld [vmem:[%s237 + $0x37b0] sm:$0xff]
        %v2082 = vld [vmem:[%s237 + $0x37b8] sm:$0xff]
        %v2083 = vld [vmem:[%s237 + $0x37c0] sm:$0xff]
        %v2084 = vld [vmem:[%s237 + $0x37c8] sm:$0xff]
        %v2085 = vld [vmem:[%s237 + $0x37d0] sm:$0xff]
        %v2086 = vld [vmem:[%s237 + $0x37d8] sm:$0xff]
        %v2087 = vld [vmem:[%s237 + $0x37e0] sm:$0xff]
        %v2088 = vld [vmem:[%s237 + $0x37e8] sm:$0xff]
        %v2089 = vld [vmem:[%s237 + $0x37f0] sm:$0xff]
        %v2090 = vld [vmem:[%s237 + $0x37f8] sm:$0xff]
        %v2091 = vld [vmem:[%s237 + $0x3800] sm:$0xff]
        %v2092 = vld [vmem:[%s237 + $0x3808] sm:$0xff]
        %v2093 = vld [vmem:[%s237 + $0x3810] sm:$0xff]
        %v2094 = vld [vmem:[%s237 + $0x3818] sm:$0xff]
        %v2095 = vld [vmem:[%s237 + $0x3820] sm:$0xff]
        %v2096 = vld [vmem:[%s237 + $0x3828] sm:$0xff]
        %v2097 = vld [vmem:[%s237 + $0x3830] sm:$0xff]
        %v2098 = vld [vmem:[%s237 + $0x3838] sm:$0xff]
        %v2099 = vld [vmem:[%s237 + $0x3840] sm:$0xff]
        %v2100 = vld [vmem:[%s237 + $0x3848] sm:$0xff]
        %v2101 = vld [vmem:[%s237 + $0x3850] sm:$0xff]
        %v2102 = vld [vmem:[%s237 + $0x3858] sm:$0xff]
        %v2103 = vld [vmem:[%s237 + $0x3860] sm:$0xff]
        %v2104 = vld [vmem:[%s237 + $0x3868] sm:$0xff]
        %v2105 = vld [vmem:[%s237 + $0x3870] sm:$0xff]
        %v2106 = vld [vmem:[%s237 + $0x3878] sm:$0xff]
        %v2107 = vld [vmem:[%s237 + $0x3880] sm:$0xff]
        %v2108 = vld [vmem:[%s237 + $0x3888] sm:$0xff]
        %v2109 = vld [vmem:[%s237 + $0x3890] sm:$0xff]
        %v2110 = vld [vmem:[%s237 + $0x3898] sm:$0xff]
        %v2111 = vld [vmem:[%s237 + $0x38a0] sm:$0xff]
        %v2112 = vld [vmem:[%s237 + $0x38a8] sm:$0xff]
        %v2113 = vld [vmem:[%s237 + $0x38b0] sm:$0xff]
        %v2114 = vld [vmem:[%s237 + $0x38b8] sm:$0xff]
        %v2115 = vld [vmem:[%s237 + $0x38c0] sm:$0xff]
        %v2116 = vld [vmem:[%s237 + $0x38c8] sm:$0xff]
        %v2117 = vld [vmem:[%s237 + $0x38d0] sm:$0xff]
        %v2118 = vld [vmem:[%s237 + $0x38d8] sm:$0xff]
        %v2119 = vld [vmem:[%s237 + $0x38e0] sm:$0xff]
        %v2120 = vld [vmem:[%s237 + $0x38e8] sm:$0xff]
        %v2121 = vld [vmem:[%s237 + $0x38f0] sm:$0xff]
        %v2122 = vld [vmem:[%s237 + $0x38f8] sm:$0xff]
        %v2123 = vld [vmem:[%s237 + $0x3900] sm:$0xff]
        %v2124 = vld [vmem:[%s237 + $0x3908] sm:$0xff]
        %v2125 = vld [vmem:[%s237 + $0x3910] sm:$0xff]
        %v2126 = vld [vmem:[%s237 + $0x3918] sm:$0xff]
        %v2127 = vld [vmem:[%s237 + $0x3920] sm:$0xff]
        %v2128 = vld [vmem:[%s237 + $0x3928] sm:$0xff]
        %v2129 = vld [vmem:[%s237 + $0x3930] sm:$0xff]
        %v2130 = vld [vmem:[%s237 + $0x3938] sm:$0xff]
        %v2131 = vld [vmem:[%s237 + $0x3940] sm:$0xff]
        %v2132 = vld [vmem:[%s237 + $0x3948] sm:$0xff]
        %v2133 = vld [vmem:[%s237 + $0x3950] sm:$0xff]
        %v2134 = vld [vmem:[%s237 + $0x3958] sm:$0xff]
        %v2135 = vld [vmem:[%s237 + $0x3960] sm:$0xff]
        %v2136 = vld [vmem:[%s237 + $0x3968] sm:$0xff]
        %v2137 = vld [vmem:[%s237 + $0x3970] sm:$0xff]
        %v2138 = vld [vmem:[%s237 + $0x3978] sm:$0xff]
        %v2139 = vld [vmem:[%s237 + $0x3980] sm:$0xff]
        %v2140 = vld [vmem:[%s237 + $0x3988] sm:$0xff]
        %v2141 = vld [vmem:[%s237 + $0x3990] sm:$0xff]
        %v2142 = vld [vmem:[%s237 + $0x3998] sm:$0xff]
        %v2143 = vld [vmem:[%s237 + $0x39a0] sm:$0xff]
        %v2144 = vld [vmem:[%s237 + $0x39a8] sm:$0xff]
        %v2145 = vld [vmem:[%s237 + $0x39b0] sm:$0xff]
        %v2146 = vld [vmem:[%s237 + $0x39b8] sm:$0xff]
        %v2147 = vld [vmem:[%s237 + $0x39c0] sm:$0xff]
        %v2148 = vld [vmem:[%s237 + $0x39c8] sm:$0xff]
        %v2149 = vld [vmem:[%s237 + $0x39d0] sm:$0xff]
        %v2150 = vld [vmem:[%s237 + $0x39d8] sm:$0xff]
        %v2151 = vld [vmem:[%s237 + $0x39e0] sm:$0xff]
        %v2152 = vld [vmem:[%s237 + $0x39e8] sm:$0xff]
        %v2153 = vld [vmem:[%s237 + $0x39f0] sm:$0xff]
        %v2154 = vld [vmem:[%s237 + $0x39f8] sm:$0xff]
        %v2155 = vld [vmem:[%s237 + $0x3a00] sm:$0xff]
        %v2156 = vld [vmem:[%s237 + $0x3a08] sm:$0xff]
        %v2157 = vld [vmem:[%s237 + $0x3a10] sm:$0xff]
        %v2158 = vld [vmem:[%s237 + $0x3a18] sm:$0xff]
        %v2159 = vld [vmem:[%s237 + $0x3a20] sm:$0xff]
        %v2160 = vld [vmem:[%s237 + $0x3a28] sm:$0xff]
        %v2161 = vld [vmem:[%s237 + $0x3a30] sm:$0xff]
        %v2162 = vld [vmem:[%s237 + $0x3a38] sm:$0xff]
        %v2163 = vld [vmem:[%s237 + $0x3a40] sm:$0xff]
        %v2164 = vld [vmem:[%s237 + $0x3a48] sm:$0xff]
        %v2165 = vld [vmem:[%s237 + $0x3a50] sm:$0xff]
        %v2166 = vld [vmem:[%s237 + $0x3a58] sm:$0xff]
        %v2167 = vld [vmem:[%s237 + $0x3a60] sm:$0xff]
        %v2168 = vld [vmem:[%s237 + $0x3a68] sm:$0xff]
        %v2169 = vld [vmem:[%s237 + $0x3a70] sm:$0xff]
        %v2170 = vld [vmem:[%s237 + $0x3a78] sm:$0xff]
        %v2171 = vld [vmem:[%s237 + $0x3a80] sm:$0xff]
        %v2172 = vld [vmem:[%s237 + $0x3a88] sm:$0xff]
        %v2173 = vld [vmem:[%s237 + $0x3a90] sm:$0xff]
        %v2174 = vld [vmem:[%s237 + $0x3a98] sm:$0xff]
        %v2175 = vld [vmem:[%s237 + $0x3aa0] sm:$0xff]
        %v2176 = vld [vmem:[%s237 + $0x3aa8] sm:$0xff]
        %v2177 = vld [vmem:[%s237 + $0x3ab0] sm:$0xff]
        %v2178 = vld [vmem:[%s237 + $0x3ab8] sm:$0xff]
        %v2179 = vld [vmem:[%s237 + $0x3ac0] sm:$0xff]
        %v2180 = vld [vmem:[%s237 + $0x3ac8] sm:$0xff]
        %v2181 = vld [vmem:[%s237 + $0x3ad0] sm:$0xff]
        %v2182 = vld [vmem:[%s237 + $0x3ad8] sm:$0xff]
        %v2183 = vld [vmem:[%s237 + $0x3ae0] sm:$0xff]
        %v2184 = vld [vmem:[%s237 + $0x3ae8] sm:$0xff]
        %v2185 = vld [vmem:[%s237 + $0x3af0] sm:$0xff]
        %v2186 = vld [vmem:[%s237 + $0x3af8] sm:$0xff]
        %v2187 = vld [vmem:[%s237 + $0x3b00] sm:$0xff]
        %v2188 = vld [vmem:[%s237 + $0x3b08] sm:$0xff]
        %v2189 = vld [vmem:[%s237 + $0x3b10] sm:$0xff]
        %v2190 = vld [vmem:[%s237 + $0x3b18] sm:$0xff]
        %v2191 = vld [vmem:[%s237 + $0x3b20] sm:$0xff]
        %v2192 = vld [vmem:[%s237 + $0x3b28] sm:$0xff]
        %v2193 = vld [vmem:[%s237 + $0x3b30] sm:$0xff]
        %v2194 = vld [vmem:[%s237 + $0x3b38] sm:$0xff]
        %v2195 = vld [vmem:[%s237 + $0x3b40] sm:$0xff]
        %v2196 = vld [vmem:[%s237 + $0x3b48] sm:$0xff]
        %v2197 = vld [vmem:[%s237 + $0x3b50] sm:$0xff]
        %v2198 = vld [vmem:[%s237 + $0x3b58] sm:$0xff]
        %v2199 = vld [vmem:[%s237 + $0x3b60] sm:$0xff]
        %v2200 = vld [vmem:[%s237 + $0x3b68] sm:$0xff]
        %v2201 = vld [vmem:[%s237 + $0x3b70] sm:$0xff]
        %v2202 = vld [vmem:[%s237 + $0x3b78] sm:$0xff]
        %v2203 = vld [vmem:[%s237 + $0x3b80] sm:$0xff]
        %v2204 = vld [vmem:[%s237 + $0x3b88] sm:$0xff]
        %v2205 = vld [vmem:[%s237 + $0x3b90] sm:$0xff]
        %v2206 = vld [vmem:[%s237 + $0x3b98] sm:$0xff]
        %v2207 = vld [vmem:[%s237 + $0x3ba0] sm:$0xff]
        %v2208 = vld [vmem:[%s237 + $0x3ba8] sm:$0xff]
        %v2209 = vld [vmem:[%s237 + $0x3bb0] sm:$0xff]
        %v2210 = vld [vmem:[%s237 + $0x3bb8] sm:$0xff]
        %v2211 = vld [vmem:[%s237 + $0x3bc0] sm:$0xff]
        %v2212 = vld [vmem:[%s237 + $0x3bc8] sm:$0xff]
        %v2213 = vld [vmem:[%s237 + $0x3bd0] sm:$0xff]
        %v2214 = vld [vmem:[%s237 + $0x3bd8] sm:$0xff]
        %v2215 = vld [vmem:[%s237 + $0x3be0] sm:$0xff]
        %v2216 = vld [vmem:[%s237 + $0x3be8] sm:$0xff]
        %v2217 = vld [vmem:[%s237 + $0x3bf0] sm:$0xff]
        %v2218 = vld [vmem:[%s237 + $0x3bf8] sm:$0xff]
        %v2219 = vld [vmem:[%s237 + $0x3c00] sm:$0xff]
        %v2220 = vld [vmem:[%s237 + $0x3c08] sm:$0xff]
        %v2221 = vld [vmem:[%s237 + $0x3c10] sm:$0xff]
        %v2222 = vld [vmem:[%s237 + $0x3c18] sm:$0xff]
        %v2223 = vld [vmem:[%s237 + $0x3c20] sm:$0xff]
        %v2224 = vld [vmem:[%s237 + $0x3c28] sm:$0xff]
        %v2225 = vld [vmem:[%s237 + $0x3c30] sm:$0xff]
        %v2226 = vld [vmem:[%s237 + $0x3c38] sm:$0xff]
        %v2227 = vld [vmem:[%s237 + $0x3c40] sm:$0xff]
        %v2228 = vld [vmem:[%s237 + $0x3c48] sm:$0xff]
        %v2229 = vld [vmem:[%s237 + $0x3c50] sm:$0xff]
        %v2230 = vld [vmem:[%s237 + $0x3c58] sm:$0xff]
        %v2231 = vld [vmem:[%s237 + $0x3c60] sm:$0xff]
        %v2232 = vld [vmem:[%s237 + $0x3c68] sm:$0xff]
        %v2233 = vld [vmem:[%s237 + $0x3c70] sm:$0xff]
        %v2234 = vld [vmem:[%s237 + $0x3c78] sm:$0xff]
        %v2235 = vld [vmem:[%s237 + $0x3c80] sm:$0xff]
        %v2236 = vld [vmem:[%s237 + $0x3c88] sm:$0xff]
        %v2237 = vld [vmem:[%s237 + $0x3c90] sm:$0xff]
        %v2238 = vld [vmem:[%s237 + $0x3c98] sm:$0xff]
        %v2239 = vld [vmem:[%s237 + $0x3ca0] sm:$0xff]
        %v2240 = vld [vmem:[%s237 + $0x3ca8] sm:$0xff]
        %v2241 = vld [vmem:[%s237 + $0x3cb0] sm:$0xff]
        %v2242 = vld [vmem:[%s237 + $0x3cb8] sm:$0xff]
        %v2243 = vld [vmem:[%s237 + $0x3cc0] sm:$0xff]
        %v2244 = vld [vmem:[%s237 + $0x3cc8] sm:$0xff]
        %v2245 = vld [vmem:[%s237 + $0x3cd0] sm:$0xff]
        %v2246 = vld [vmem:[%s237 + $0x3cd8] sm:$0xff]
        %v2247 = vld [vmem:[%s237 + $0x3ce0] sm:$0xff]
        %v2248 = vld [vmem:[%s237 + $0x3ce8] sm:$0xff]
        %v2249 = vld [vmem:[%s237 + $0x3cf0] sm:$0xff]
        %v2250 = vld [vmem:[%s237 + $0x3cf8] sm:$0xff]
        %v2251 = vld [vmem:[%s237 + $0x3d00] sm:$0xff]
        %v2252 = vld [vmem:[%s237 + $0x3d08] sm:$0xff]
        %v2253 = vld [vmem:[%s237 + $0x3d10] sm:$0xff]
        %v2254 = vld [vmem:[%s237 + $0x3d18] sm:$0xff]
        %v2255 = vld [vmem:[%s237 + $0x3d20] sm:$0xff]
        %v2256 = vld [vmem:[%s237 + $0x3d28] sm:$0xff]
        %v2257 = vld [vmem:[%s237 + $0x3d30] sm:$0xff]
        %v2258 = vld [vmem:[%s237 + $0x3d38] sm:$0xff]
        %v2259 = vld [vmem:[%s237 + $0x3d40] sm:$0xff]
        %v2260 = vld [vmem:[%s237 + $0x3d48] sm:$0xff]
        %v2261 = vld [vmem:[%s237 + $0x3d50] sm:$0xff]
        %v2262 = vld [vmem:[%s237 + $0x3d58] sm:$0xff]
        %v2263 = vld [vmem:[%s237 + $0x3d60] sm:$0xff]
        %v2264 = vld [vmem:[%s237 + $0x3d68] sm:$0xff]
        %v2265 = vld [vmem:[%s237 + $0x3d70] sm:$0xff]
        %v2266 = vld [vmem:[%s237 + $0x3d78] sm:$0xff]
        %v2267 = vld [vmem:[%s237 + $0x3d80] sm:$0xff]
        %v2268 = vld [vmem:[%s237 + $0x3d88] sm:$0xff]
        %v2269 = vld [vmem:[%s237 + $0x3d90] sm:$0xff]
        %v2270 = vld [vmem:[%s237 + $0x3d98] sm:$0xff]
        %v2271 = vld [vmem:[%s237 + $0x3da0] sm:$0xff]
        %v2272 = vld [vmem:[%s237 + $0x3da8] sm:$0xff]
        %v2273 = vld [vmem:[%s237 + $0x3db0] sm:$0xff]
        %v2274 = vld [vmem:[%s237 + $0x3db8] sm:$0xff]
        %v2275 = vld [vmem:[%s237 + $0x3dc0] sm:$0xff]
        %v2276 = vld [vmem:[%s237 + $0x3dc8] sm:$0xff]
        %v2277 = vld [vmem:[%s237 + $0x3dd0] sm:$0xff]
        %v2278 = vld [vmem:[%s237 + $0x3dd8] sm:$0xff]
        %v2279 = vld [vmem:[%s237 + $0x3de0] sm:$0xff]
        %v2280 = vld [vmem:[%s237 + $0x3de8] sm:$0xff]
        %v2281 = vld [vmem:[%s237 + $0x3df0] sm:$0xff]
        %v2282 = vld [vmem:[%s237 + $0x3df8] sm:$0xff]
        %v2283 = vld [vmem:[%s237 + $0x3e00] sm:$0xff]
        %v2284 = vld [vmem:[%s237 + $0x3e08] sm:$0xff]
        %v2285 = vld [vmem:[%s237 + $0x3e10] sm:$0xff]
        %v2286 = vld [vmem:[%s237 + $0x3e18] sm:$0xff]
        %v2287 = vld [vmem:[%s237 + $0x3e20] sm:$0xff]
        %v2288 = vld [vmem:[%s237 + $0x3e28] sm:$0xff]
        %v2289 = vld [vmem:[%s237 + $0x3e30] sm:$0xff]
        %v2290 = vld [vmem:[%s237 + $0x3e38] sm:$0xff]
        %v2291 = vld [vmem:[%s237 + $0x3e40] sm:$0xff]
        %v2292 = vld [vmem:[%s237 + $0x3e48] sm:$0xff]
        %v2293 = vld [vmem:[%s237 + $0x3e50] sm:$0xff]
        %v2294 = vld [vmem:[%s237 + $0x3e58] sm:$0xff]
        %v2295 = vld [vmem:[%s237 + $0x3e60] sm:$0xff]
        %v2296 = vld [vmem:[%s237 + $0x3e68] sm:$0xff]
        %v2297 = vld [vmem:[%s237 + $0x3e70] sm:$0xff]
        %v2298 = vld [vmem:[%s237 + $0x3e78] sm:$0xff]
        %v2299 = vld [vmem:[%s237 + $0x3e80] sm:$0xff]
        %v2300 = vld [vmem:[%s237 + $0x3e88] sm:$0xff]
        %v2301 = vld [vmem:[%s237 + $0x3e90] sm:$0xff]
        %v2302 = vld [vmem:[%s237 + $0x3e98] sm:$0xff]
        %v2303 = vld [vmem:[%s237 + $0x3ea0] sm:$0xff]
        %v2304 = vld [vmem:[%s237 + $0x3ea8] sm:$0xff]
        %v2305 = vld [vmem:[%s237 + $0x3eb0] sm:$0xff]
        %v2306 = vld [vmem:[%s237 + $0x3eb8] sm:$0xff]
        %v2307 = vld [vmem:[%s237 + $0x3ec0] sm:$0xff]
        %v2308 = vld [vmem:[%s237 + $0x3ec8] sm:$0xff]
        %v2309 = vld [vmem:[%s237 + $0x3ed0] sm:$0xff]
        %v2310 = vld [vmem:[%s237 + $0x3ed8] sm:$0xff]
        %v2311 = vld [vmem:[%s237 + $0x3ee0] sm:$0xff]
        %v2312 = vld [vmem:[%s237 + $0x3ee8] sm:$0xff]
        %v2313 = vld [vmem:[%s237 + $0x3ef0] sm:$0xff]
        %v2314 = vld [vmem:[%s237 + $0x3ef8] sm:$0xff]
        %v2315 = vld [vmem:[%s237 + $0x3f00] sm:$0xff]
        %v2316 = vld [vmem:[%s237 + $0x3f08] sm:$0xff]
        %v2317 = vld [vmem:[%s237 + $0x3f10] sm:$0xff]
        %v2318 = vld [vmem:[%s237 + $0x3f18] sm:$0xff]
        %v2319 = vld [vmem:[%s237 + $0x3f20] sm:$0xff]
        %v2320 = vld [vmem:[%s237 + $0x3f28] sm:$0xff]
        %v2321 = vld [vmem:[%s237 + $0x3f30] sm:$0xff]
        %v2322 = vld [vmem:[%s237 + $0x3f38] sm:$0xff]
        %v2323 = vld [vmem:[%s237 + $0x3f40] sm:$0xff]
        %v2324 = vld [vmem:[%s237 + $0x3f48] sm:$0xff]
        %v2325 = vld [vmem:[%s237 + $0x3f50] sm:$0xff]
        %v2326 = vld [vmem:[%s237 + $0x3f58] sm:$0xff]
        %v2327 = vld [vmem:[%s237 + $0x3f60] sm:$0xff]
        %v2328 = vld [vmem:[%s237 + $0x3f68] sm:$0xff]
        %v2329 = vld [vmem:[%s237 + $0x3f70] sm:$0xff]
        %v2330 = vld [vmem:[%s237 + $0x3f78] sm:$0xff]
        %v2331 = vld [vmem:[%s237 + $0x3f80] sm:$0xff]
        %v2332 = vld [vmem:[%s237 + $0x3f88] sm:$0xff]
        %v2333 = vld [vmem:[%s237 + $0x3f90] sm:$0xff]
        %v2334 = vld [vmem:[%s237 + $0x3f98] sm:$0xff]
        %v2335 = vld [vmem:[%s237 + $0x3fa0] sm:$0xff]
        %v2336 = vld [vmem:[%s237 + $0x3fa8] sm:$0xff]
        %v2337 = vld [vmem:[%s237 + $0x3fb0] sm:$0xff]
        %v2338 = vld [vmem:[%s237 + $0x3fb8] sm:$0xff]
        %v2339 = vld [vmem:[%s237 + $0x3fc0] sm:$0xff]
        %v2340 = vld [vmem:[%s237 + $0x3fc8] sm:$0xff]
        %v2341 = vld [vmem:[%s237 + $0x3fd0] sm:$0xff]
        %v2342 = vld [vmem:[%s237 + $0x3fd8] sm:$0xff]
        %v2343 = vld [vmem:[%s237 + $0x3fe0] sm:$0xff]
        %v2344 = vld [vmem:[%s237 + $0x3fe8] sm:$0xff]
        %v2345 = vld [vmem:[%s237 + $0x3ff0] sm:$0xff]
        %v2346 = vld [vmem:[%s237 + $0x3ff8] sm:$0xff]
        %v2347 = vld [vmem:[%s237 + $0x4000] sm:$0xff]
        %v2348 = vld [vmem:[%s237 + $0x4008] sm:$0xff]
        %v2349 = vld [vmem:[%s237 + $0x4010] sm:$0xff]
        %v2350 = vld [vmem:[%s237 + $0x4018] sm:$0xff]
        %v2351 = vld [vmem:[%s237 + $0x4020] sm:$0xff]
        %v2352 = vld [vmem:[%s237 + $0x4028] sm:$0xff]
        %v2353 = vld [vmem:[%s237 + $0x4030] sm:$0xff]
        %v2354 = vld [vmem:[%s237 + $0x4038] sm:$0xff]
        %v2355 = vld [vmem:[%s237 + $0x4040] sm:$0xff]
        %v2356 = vld [vmem:[%s237 + $0x4048] sm:$0xff]
        %v2357 = vld [vmem:[%s237 + $0x4050] sm:$0xff]
        %v2358 = vld [vmem:[%s237 + $0x4058] sm:$0xff]
        %v2359 = vld [vmem:[%s237 + $0x4060] sm:$0xff]
        %v2360 = vld [vmem:[%s237 + $0x4068] sm:$0xff]
        %v2361 = vld [vmem:[%s237 + $0x4070] sm:$0xff]
        %v2362 = vld [vmem:[%s237 + $0x4078] sm:$0xff]
        %v2363 = vld [vmem:[%s237 + $0x4080] sm:$0xff]
        %v2364 = vld [vmem:[%s237 + $0x4088] sm:$0xff]
        %v2365 = vld [vmem:[%s237 + $0x4090] sm:$0xff]
        %v2366 = vld [vmem:[%s237 + $0x4098] sm:$0xff]
        %v2367 = vld [vmem:[%s237 + $0x40a0] sm:$0xff]
        %v2368 = vld [vmem:[%s237 + $0x40a8] sm:$0xff]
        %v2369 = vld [vmem:[%s237 + $0x40b0] sm:$0xff]
        %v2370 = vld [vmem:[%s237 + $0x40b8] sm:$0xff]
        %v2371 = vld [vmem:[%s237 + $0x40c0] sm:$0xff]
        %v2372 = vld [vmem:[%s237 + $0x40c8] sm:$0xff]
        %v2373 = vld [vmem:[%s237 + $0x40d0] sm:$0xff]
        %v2374 = vld [vmem:[%s237 + $0x40d8] sm:$0xff]
        %v2375 = vld [vmem:[%s237 + $0x40e0] sm:$0xff]
        %v2376 = vld [vmem:[%s237 + $0x40e8] sm:$0xff]
        %v2377 = vld [vmem:[%s237 + $0x40f0] sm:$0xff]
        %v2378 = vld [vmem:[%s237 + $0x40f8] sm:$0xff]
        %v2379 = vld [vmem:[%s237 + $0x4100] sm:$0xff]
        %v2380 = vld [vmem:[%s237 + $0x4108] sm:$0xff]
        %v2381 = vld [vmem:[%s237 + $0x4110] sm:$0xff]
        %v2382 = vld [vmem:[%s237 + $0x4118] sm:$0xff]
        %v2383 = vld [vmem:[%s237 + $0x4120] sm:$0xff]
        %v2384 = vld [vmem:[%s237 + $0x4128] sm:$0xff]
        %v2385 = vld [vmem:[%s237 + $0x4130] sm:$0xff]
        %v2386 = vld [vmem:[%s237 + $0x4138] sm:$0xff]
        %v2387 = vld [vmem:[%s237 + $0x4140] sm:$0xff]
        %v2388 = vld [vmem:[%s237 + $0x4148] sm:$0xff]
        %v2389 = vld [vmem:[%s237 + $0x4150] sm:$0xff]
        %v2390 = vld [vmem:[%s237 + $0x4158] sm:$0xff]
        %v2391 = vld [vmem:[%s237 + $0x4160] sm:$0xff]
        %v2392 = vld [vmem:[%s237 + $0x4168] sm:$0xff]
        %v2393 = vld [vmem:[%s237 + $0x4170] sm:$0xff]
        %v2394 = vld [vmem:[%s237 + $0x4178] sm:$0xff]
        %v2395 = vld [vmem:[%s237 + $0x4180] sm:$0xff]
        %v2396 = vld [vmem:[%s237 + $0x4188] sm:$0xff]
        %v2397 = vld [vmem:[%s237 + $0x4190] sm:$0xff]
        %v2398 = vld [vmem:[%s237 + $0x4198] sm:$0xff]
        %v2399 = vld [vmem:[%s237 + $0x41a0] sm:$0xff]
        %v2400 = vld [vmem:[%s237 + $0x41a8] sm:$0xff]
        %v2401 = vld [vmem:[%s237 + $0x41b0] sm:$0xff]
        %v2402 = vld [vmem:[%s237 + $0x41b8] sm:$0xff]
        %v2403 = vld [vmem:[%s237 + $0x41c0] sm:$0xff]
        %v2404 = vld [vmem:[%s237 + $0x41c8] sm:$0xff]
        %v2405 = vld [vmem:[%s237 + $0x41d0] sm:$0xff]
        %v2406 = vld [vmem:[%s237 + $0x41d8] sm:$0xff]
        %v2407 = vld [vmem:[%s237 + $0x41e0] sm:$0xff]
        %v2408 = vld [vmem:[%s237 + $0x41e8] sm:$0xff]
        %v2409 = vld [vmem:[%s237 + $0x41f0] sm:$0xff]
        %v2410 = vld [vmem:[%s237 + $0x41f8] sm:$0xff]
        %v2411 = vld [vmem:[%s237 + $0x4200] sm:$0xff]
        %v2412 = vld [vmem:[%s237 + $0x4208] sm:$0xff]
        %v2413 = vld [vmem:[%s237 + $0x4210] sm:$0xff]
        %v2414 = vld [vmem:[%s237 + $0x4218] sm:$0xff]
        %v2415 = vld [vmem:[%s237 + $0x4220] sm:$0xff]
        %v2416 = vld [vmem:[%s237 + $0x4228] sm:$0xff]
        %v2417 = vld [vmem:[%s237 + $0x4230] sm:$0xff]
        %v2418 = vld [vmem:[%s237 + $0x4238] sm:$0xff]
        %v2419 = vld [vmem:[%s237 + $0x4240] sm:$0xff]
        %v2420 = vld [vmem:[%s237 + $0x4248] sm:$0xff]
        %v2421 = vld [vmem:[%s237 + $0x4250] sm:$0xff]
        %v2422 = vld [vmem:[%s237 + $0x4258] sm:$0xff]
        %v2423 = vld [vmem:[%s237 + $0x4260] sm:$0xff]
        %v2424 = vld [vmem:[%s237 + $0x4268] sm:$0xff]
        %v2425 = vld [vmem:[%s237 + $0x4270] sm:$0xff]
        %v2426 = vld [vmem:[%s237 + $0x4278] sm:$0xff]
        %v2427 = vld [vmem:[%s237 + $0x4280] sm:$0xff]
        %v2428 = vld [vmem:[%s237 + $0x4288] sm:$0xff]
        %v2429 = vld [vmem:[%s237 + $0x4290] sm:$0xff]
        %v2430 = vld [vmem:[%s237 + $0x4298] sm:$0xff]
        %v2431 = vld [vmem:[%s237 + $0x42a0] sm:$0xff]
        %v2432 = vld [vmem:[%s237 + $0x42a8] sm:$0xff]
        %v2433 = vld [vmem:[%s237 + $0x42b0] sm:$0xff]
        %v2434 = vld [vmem:[%s237 + $0x42b8] sm:$0xff]
        %v2435 = vld [vmem:[%s237 + $0x42c0] sm:$0xff]
        %v2436 = vld [vmem:[%s237 + $0x42c8] sm:$0xff]
        %v2437 = vld [vmem:[%s237 + $0x42d0] sm:$0xff]
        %v2438 = vld [vmem:[%s237 + $0x42d8] sm:$0xff]
        %v2439 = vld [vmem:[%s237 + $0x42e0] sm:$0xff]
        %v2440 = vld [vmem:[%s237 + $0x42e8] sm:$0xff]
        %v2441 = vld [vmem:[%s237 + $0x42f0] sm:$0xff]
        %v2442 = vld [vmem:[%s237 + $0x42f8] sm:$0xff]
        %v2443 = vld [vmem:[%s237 + $0x4300] sm:$0xff]
        %v2444 = vld [vmem:[%s237 + $0x4308] sm:$0xff]
        %v2445 = vld [vmem:[%s237 + $0x4310] sm:$0xff]
        %v2446 = vld [vmem:[%s237 + $0x4318] sm:$0xff]
        %v2447 = vld [vmem:[%s237 + $0x4320] sm:$0xff]
        %v2448 = vld [vmem:[%s237 + $0x4328] sm:$0xff]
        %v2449 = vld [vmem:[%s237 + $0x4330] sm:$0xff]
        %v2450 = vld [vmem:[%s237 + $0x4338] sm:$0xff]
        %v2451 = vld [vmem:[%s237 + $0x4340] sm:$0xff]
        %v2452 = vld [vmem:[%s237 + $0x4348] sm:$0xff]
        %v2453 = vld [vmem:[%s237 + $0x4350] sm:$0xff]
        %v2454 = vld [vmem:[%s237 + $0x4358] sm:$0xff]
        %v2455 = vld [vmem:[%s237 + $0x4360] sm:$0xff]
        %v2456 = vld [vmem:[%s237 + $0x4368] sm:$0xff]
        %v2457 = vld [vmem:[%s237 + $0x4370] sm:$0xff]
        %v2458 = vld [vmem:[%s237 + $0x4378] sm:$0xff]
        %v2459 = vld [vmem:[%s237 + $0x4380] sm:$0xff]
        %v2460 = vld [vmem:[%s237 + $0x4388] sm:$0xff]
        %v2461 = vld [vmem:[%s237 + $0x4390] sm:$0xff]
        %v2462 = vld [vmem:[%s237 + $0x4398] sm:$0xff]
        %v2463 = vld [vmem:[%s237 + $0x43a0] sm:$0xff]
        %v2464 = vld [vmem:[%s237 + $0x43a8] sm:$0xff]
        %v2465 = vld [vmem:[%s237 + $0x43b0] sm:$0xff]
        %v2466 = vld [vmem:[%s237 + $0x43b8] sm:$0xff]
        %v2467 = vld [vmem:[%s237 + $0x43c0] sm:$0xff]
        %v2468 = vld [vmem:[%s237 + $0x43c8] sm:$0xff]
        %v2469 = vld [vmem:[%s237 + $0x43d0] sm:$0xff]
        %v2470 = vld [vmem:[%s237 + $0x43d8] sm:$0xff]
        %v2471 = vld [vmem:[%s237 + $0x43e0] sm:$0xff]
        %v2472 = vld [vmem:[%s237 + $0x43e8] sm:$0xff]
        %v2473 = vld [vmem:[%s237 + $0x43f0] sm:$0xff]
        %v2474 = vld [vmem:[%s237 + $0x43f8] sm:$0xff]
        %v2475 = vld [vmem:[%s237 + $0x4400] sm:$0xff]
        %v2476 = vld [vmem:[%s237 + $0x4408] sm:$0xff]
        %v2477 = vld [vmem:[%s237 + $0x4410] sm:$0xff]
        %v2478 = vld [vmem:[%s237 + $0x4418] sm:$0xff]
        %v2479 = vld [vmem:[%s237 + $0x4420] sm:$0xff]
        %v2480 = vld [vmem:[%s237 + $0x4428] sm:$0xff]
        %v2481 = vld [vmem:[%s237 + $0x4430] sm:$0xff]
        %v2482 = vld [vmem:[%s237 + $0x4438] sm:$0xff]
        %v2483 = vld [vmem:[%s237 + $0x4440] sm:$0xff]
        %v2484 = vld [vmem:[%s237 + $0x4448] sm:$0xff]
        %v2485 = vld [vmem:[%s237 + $0x4450] sm:$0xff]
        %v2486 = vld [vmem:[%s237 + $0x4458] sm:$0xff]
        %v2487 = vld [vmem:[%s237 + $0x4460] sm:$0xff]
        %v2488 = vld [vmem:[%s237 + $0x4468] sm:$0xff]
        %v2489 = vld [vmem:[%s237 + $0x4470] sm:$0xff]
        %v2490 = vld [vmem:[%s237 + $0x4478] sm:$0xff]
        %v2491 = vld [vmem:[%s237 + $0x4480] sm:$0xff]
        %v2492 = vld [vmem:[%s237 + $0x4488] sm:$0xff]
        %v2493 = vld [vmem:[%s237 + $0x4490] sm:$0xff]
        %v2494 = vld [vmem:[%s237 + $0x4498] sm:$0xff]
        %v2495 = vld [vmem:[%s237 + $0x44a0] sm:$0xff]
        %v2496 = vld [vmem:[%s237 + $0x44a8] sm:$0xff]
        %v2497 = vld [vmem:[%s237 + $0x44b0] sm:$0xff]
        %v2498 = vld [vmem:[%s237 + $0x44b8] sm:$0xff]
        %v2499 = vld [vmem:[%s237 + $0x44c0] sm:$0xff]
        %v2500 = vld [vmem:[%s237 + $0x44c8] sm:$0xff]
        %v2501 = vld [vmem:[%s237 + $0x44d0] sm:$0xff]
        %v2502 = vld [vmem:[%s237 + $0x44d8] sm:$0xff]
        %v2503 = vld [vmem:[%s237 + $0x44e0] sm:$0xff]
        %v2504 = vld [vmem:[%s237 + $0x44e8] sm:$0xff]
        %v2505 = vld [vmem:[%s237 + $0x44f0] sm:$0xff]
        %v2506 = vld [vmem:[%s237 + $0x44f8] sm:$0xff]
        %v2507 = vld [vmem:[%s237 + $0x4500] sm:$0xff]
        %v2508 = vld [vmem:[%s237 + $0x4508] sm:$0xff]
        %v2509 = vld [vmem:[%s237 + $0x4510] sm:$0xff]
        %v2510 = vld [vmem:[%s237 + $0x4518] sm:$0xff]
        %v2511 = vld [vmem:[%s237 + $0x4520] sm:$0xff]
        %v2512 = vld [vmem:[%s237 + $0x4528] sm:$0xff]
        %v2513 = vld [vmem:[%s237 + $0x4530] sm:$0xff]
        %v2514 = vld [vmem:[%s237 + $0x4538] sm:$0xff]
        %v2515 = vld [vmem:[%s237 + $0x4540] sm:$0xff]
        %v2516 = vld [vmem:[%s237 + $0x4548] sm:$0xff]
        %v2517 = vld [vmem:[%s237 + $0x4550] sm:$0xff]
        %v2518 = vld [vmem:[%s237 + $0x4558] sm:$0xff]
        %v2519 = vld [vmem:[%s237 + $0x4560] sm:$0xff]
        %v2520 = vld [vmem:[%s237 + $0x4568] sm:$0xff]
        %v2521 = vld [vmem:[%s237 + $0x4570] sm:$0xff]
        %v2522 = vld [vmem:[%s237 + $0x4578] sm:$0xff]
        %v2523 = vld [vmem:[%s237 + $0x4580] sm:$0xff]
        %v2524 = vld [vmem:[%s237 + $0x4588] sm:$0xff]
        %v2525 = vld [vmem:[%s237 + $0x4590] sm:$0xff]
        %v2526 = vld [vmem:[%s237 + $0x4598] sm:$0xff]
        %v2527 = vld [vmem:[%s237 + $0x45a0] sm:$0xff]
        %v2528 = vld [vmem:[%s237 + $0x45a8] sm:$0xff]
        %v2529 = vld [vmem:[%s237 + $0x45b0] sm:$0xff]
        %v2530 = vld [vmem:[%s237 + $0x45b8] sm:$0xff]
        %v2531 = vld [vmem:[%s237 + $0x45c0] sm:$0xff]
        %v2532 = vld [vmem:[%s237 + $0x45c8] sm:$0xff]
        %v2533 = vld [vmem:[%s237 + $0x45d0] sm:$0xff]
        %v2534 = vld [vmem:[%s237 + $0x45d8] sm:$0xff]
        %v2535 = vld [vmem:[%s237 + $0x45e0] sm:$0xff]
        %v2536 = vld [vmem:[%s237 + $0x45e8] sm:$0xff]
        %v2537 = vld [vmem:[%s237 + $0x45f0] sm:$0xff]
        %v2538 = vld [vmem:[%s237 + $0x45f8] sm:$0xff]
        %v2539 = vld [vmem:[%s237 + $0x4600] sm:$0xff]
        %v2540 = vld [vmem:[%s237 + $0x4608] sm:$0xff]
        %v2541 = vld [vmem:[%s237 + $0x4610] sm:$0xff]
        %v2542 = vld [vmem:[%s237 + $0x4618] sm:$0xff]
        %v2543 = vld [vmem:[%s237 + $0x4620] sm:$0xff]
        %v2544 = vld [vmem:[%s237 + $0x4628] sm:$0xff]
        %v2545 = vld [vmem:[%s237 + $0x4630] sm:$0xff]
        %v2546 = vld [vmem:[%s237 + $0x4638] sm:$0xff]
        %v2547 = vld [vmem:[%s237 + $0x4640] sm:$0xff]
        %v2548 = vld [vmem:[%s237 + $0x4648] sm:$0xff]
        %v2549 = vld [vmem:[%s237 + $0x4650] sm:$0xff]
        %v2550 = vld [vmem:[%s237 + $0x4658] sm:$0xff]
        %v2551 = vld [vmem:[%s237 + $0x4660] sm:$0xff]
        %v2552 = vld [vmem:[%s237 + $0x4668] sm:$0xff]
        %v2553 = vld [vmem:[%s237 + $0x4670] sm:$0xff]
        %v2554 = vld [vmem:[%s237 + $0x4678] sm:$0xff]
        %v2555 = vld [vmem:[%s237 + $0x4680] sm:$0xff]
        %v2556 = vld [vmem:[%s237 + $0x4688] sm:$0xff]
        %v2557 = vld [vmem:[%s237 + $0x4690] sm:$0xff]
        %v2558 = vld [vmem:[%s237 + $0x4698] sm:$0xff]
        %v2559 = vld [vmem:[%s237 + $0x46a0] sm:$0xff]
        %v2560 = vld [vmem:[%s237 + $0x46a8] sm:$0xff]
        %v2561 = vld [vmem:[%s237 + $0x46b0] sm:$0xff]
        %v2562 = vld [vmem:[%s237 + $0x46b8] sm:$0xff]
        %v2563 = vld [vmem:[%s237 + $0x46c0] sm:$0xff]
        %v2564 = vld [vmem:[%s237 + $0x46c8] sm:$0xff]
        %v2565 = vld [vmem:[%s237 + $0x46d0] sm:$0xff]
        %v2566 = vld [vmem:[%s237 + $0x46d8] sm:$0xff]
        %v2567 = vld [vmem:[%s237 + $0x46e0] sm:$0xff]
        %v2568 = vld [vmem:[%s237 + $0x46e8] sm:$0xff]
        %v2569 = vld [vmem:[%s237 + $0x46f0] sm:$0xff]
        %v2570 = vld [vmem:[%s237 + $0x46f8] sm:$0xff]
        %v2571 = vld [vmem:[%s237 + $0x4700] sm:$0xff]
        %v2572 = vld [vmem:[%s237 + $0x4708] sm:$0xff]
        %v2573 = vld [vmem:[%s237 + $0x4710] sm:$0xff]
        %v2574 = vld [vmem:[%s237 + $0x4718] sm:$0xff]
        %v2575 = vld [vmem:[%s237 + $0x4720] sm:$0xff]
        %v2576 = vld [vmem:[%s237 + $0x4728] sm:$0xff]
        %v2577 = vld [vmem:[%s237 + $0x4730] sm:$0xff]
        %v2578 = vld [vmem:[%s237 + $0x4738] sm:$0xff]
        %v2579 = vld [vmem:[%s237 + $0x4740] sm:$0xff]
        %v2580 = vld [vmem:[%s237 + $0x4748] sm:$0xff]
        %v2581 = vld [vmem:[%s237 + $0x4750] sm:$0xff]
        %v2582 = vld [vmem:[%s237 + $0x4758] sm:$0xff]
        %v2583 = vld [vmem:[%s237 + $0x4760] sm:$0xff]
        %v2584 = vld [vmem:[%s237 + $0x4768] sm:$0xff]
        %v2585 = vld [vmem:[%s237 + $0x4770] sm:$0xff]
        %v2586 = vld [vmem:[%s237 + $0x4778] sm:$0xff]
        %v2587 = vld [vmem:[%s237 + $0x4780] sm:$0xff]
        %v2588 = vld [vmem:[%s237 + $0x4788] sm:$0xff]
        %v2589 = vld [vmem:[%s237 + $0x4790] sm:$0xff]
        %v2590 = vld [vmem:[%s237 + $0x4798] sm:$0xff]
        %v2591 = vld [vmem:[%s237 + $0x47a0] sm:$0xff]
        %v2592 = vld [vmem:[%s237 + $0x47a8] sm:$0xff]
        %v2593 = vld [vmem:[%s237 + $0x47b0] sm:$0xff]
        %v2594 = vld [vmem:[%s237 + $0x47b8] sm:$0xff]
        %v2595 = vld [vmem:[%s237 + $0x47c0] sm:$0xff]
        %v2596 = vld [vmem:[%s237 + $0x47c8] sm:$0xff]
        %v2597 = vld [vmem:[%s237 + $0x47d0] sm:$0xff]
        %v2598 = vld [vmem:[%s237 + $0x47d8] sm:$0xff]
        %v2599 = vld [vmem:[%s237 + $0x47e0] sm:$0xff]
        %v2600 = vld [vmem:[%s237 + $0x47e8] sm:$0xff]
        %v2601 = vld [vmem:[%s237 + $0x47f0] sm:$0xff]
        %v2602 = vld [vmem:[%s237 + $0x47f8] sm:$0xff]
        %v2603 = vld [vmem:[%s237 + $0x4800] sm:$0xff]
        %v2604 = vld [vmem:[%s237 + $0x4808] sm:$0xff]
        %v2605 = vld [vmem:[%s237 + $0x4810] sm:$0xff]
        %v2606 = vld [vmem:[%s237 + $0x4818] sm:$0xff]
        %v2607 = vld [vmem:[%s237 + $0x4820] sm:$0xff]
        %v2608 = vld [vmem:[%s237 + $0x4828] sm:$0xff]
        %v2609 = vld [vmem:[%s237 + $0x4830] sm:$0xff]
        %v2610 = vld [vmem:[%s237 + $0x4838] sm:$0xff]
        %v2611 = vld [vmem:[%s237 + $0x4840] sm:$0xff]
        %v2612 = vld [vmem:[%s237 + $0x4848] sm:$0xff]
        %v2613 = vld [vmem:[%s237 + $0x4850] sm:$0xff]
        %v2614 = vld [vmem:[%s237 + $0x4858] sm:$0xff]
        %v2615 = vld [vmem:[%s237 + $0x4860] sm:$0xff]
        %v2616 = vld [vmem:[%s237 + $0x4868] sm:$0xff]
        %v2617 = vld [vmem:[%s237 + $0x4870] sm:$0xff]
        %v2618 = vld [vmem:[%s237 + $0x4878] sm:$0xff]
        %v2619 = vld [vmem:[%s237 + $0x4880] sm:$0xff]
        %v2620 = vld [vmem:[%s237 + $0x4888] sm:$0xff]
        %v2621 = vld [vmem:[%s237 + $0x4890] sm:$0xff]
        %v2622 = vld [vmem:[%s237 + $0x4898] sm:$0xff]
        %v2623 = vld [vmem:[%s237 + $0x48a0] sm:$0xff]
        %v2624 = vld [vmem:[%s237 + $0x48a8] sm:$0xff]
        %v2625 = vld [vmem:[%s237 + $0x48b0] sm:$0xff]
        %v2626 = vld [vmem:[%s237 + $0x48b8] sm:$0xff]
        %v2627 = vld [vmem:[%s237 + $0x48c0] sm:$0xff]
        %v2628 = vld [vmem:[%s237 + $0x48c8] sm:$0xff]
        %v2629 = vld [vmem:[%s237 + $0x48d0] sm:$0xff]
        %v2630 = vld [vmem:[%s237 + $0x48d8] sm:$0xff]
        %v2631 = vld [vmem:[%s237 + $0x48e0] sm:$0xff]
        %v2632 = vld [vmem:[%s237 + $0x48e8] sm:$0xff]
        %v2633 = vld [vmem:[%s237 + $0x48f0] sm:$0xff]
        %v2634 = vld [vmem:[%s237 + $0x48f8] sm:$0xff]
        %v2635 = vld [vmem:[%s237 + $0x4900] sm:$0xff]
        %v2636 = vld [vmem:[%s237 + $0x4908] sm:$0xff]
        %v2637 = vld [vmem:[%s237 + $0x4910] sm:$0xff]
        %v2638 = vld [vmem:[%s237 + $0x4918] sm:$0xff]
        %v2639 = vld [vmem:[%s237 + $0x4920] sm:$0xff]
        %v2640 = vld [vmem:[%s237 + $0x4928] sm:$0xff]
        %v2641 = vld [vmem:[%s237 + $0x4930] sm:$0xff]
        %v2642 = vld [vmem:[%s237 + $0x4938] sm:$0xff]
        %v2643 = vld [vmem:[%s237 + $0x4940] sm:$0xff]
        %v2644 = vld [vmem:[%s237 + $0x4948] sm:$0xff]
        %v2645 = vld [vmem:[%s237 + $0x4950] sm:$0xff]
        %v2646 = vld [vmem:[%s237 + $0x4958] sm:$0xff]
        %v2647 = vld [vmem:[%s237 + $0x4960] sm:$0xff]
        %v2648 = vld [vmem:[%s237 + $0x4968] sm:$0xff]
        %v2649 = vld [vmem:[%s237 + $0x4970] sm:$0xff]
        %v2650 = vld [vmem:[%s237 + $0x4978] sm:$0xff]
        %v2651 = vld [vmem:[%s237 + $0x4980] sm:$0xff]
        %v2652 = vld [vmem:[%s237 + $0x4988] sm:$0xff]
        %v2653 = vld [vmem:[%s237 + $0x4990] sm:$0xff]
        %v2654 = vld [vmem:[%s237 + $0x4998] sm:$0xff]
        %v2655 = vld [vmem:[%s237 + $0x49a0] sm:$0xff]
        %v2656 = vld [vmem:[%s237 + $0x49a8] sm:$0xff]
        %v2657 = vld [vmem:[%s237 + $0x49b0] sm:$0xff]
        %v2658 = vld [vmem:[%s237 + $0x49b8] sm:$0xff]
        %v2659 = vld [vmem:[%s237 + $0x49c0] sm:$0xff]
        %v2660 = vld [vmem:[%s237 + $0x49c8] sm:$0xff]
        %v2661 = vld [vmem:[%s237 + $0x49d0] sm:$0xff]
        %v2662 = vld [vmem:[%s237 + $0x49d8] sm:$0xff]
        %v2663 = vld [vmem:[%s237 + $0x49e0] sm:$0xff]
        %v2664 = vld [vmem:[%s237 + $0x49e8] sm:$0xff]
        %v2665 = vld [vmem:[%s237 + $0x49f0] sm:$0xff]
        %v2666 = vld [vmem:[%s237 + $0x49f8] sm:$0xff]
        %v2667 = vld [vmem:[%s237 + $0x4a00] sm:$0xff]
        %v2668 = vld [vmem:[%s237 + $0x4a08] sm:$0xff]
        %v2669 = vld [vmem:[%s237 + $0x4a10] sm:$0xff]
        %v2670 = vld [vmem:[%s237 + $0x4a18] sm:$0xff]
        %v2671 = vld [vmem:[%s237 + $0x4a20] sm:$0xff]
        %v2672 = vld [vmem:[%s237 + $0x4a28] sm:$0xff]
        %v2673 = vld [vmem:[%s237 + $0x4a30] sm:$0xff]
        %v2674 = vld [vmem:[%s237 + $0x4a38] sm:$0xff]
        %v2675 = vld [vmem:[%s237 + $0x4a40] sm:$0xff]
        %v2676 = vld [vmem:[%s237 + $0x4a48] sm:$0xff]
        %v2677 = vld [vmem:[%s237 + $0x4a50] sm:$0xff]
        %v2678 = vld [vmem:[%s237 + $0x4a58] sm:$0xff]
        %v2679 = vld [vmem:[%s237 + $0x4a60] sm:$0xff]
        %v2680 = vld [vmem:[%s237 + $0x4a68] sm:$0xff]
        %v2681 = vld [vmem:[%s237 + $0x4a70] sm:$0xff]
        %v2682 = vld [vmem:[%s237 + $0x4a78] sm:$0xff]
        %v2683 = vld [vmem:[%s237 + $0x4a80] sm:$0xff]
        %v2684 = vld [vmem:[%s237 + $0x4a88] sm:$0xff]
        %v2685 = vld [vmem:[%s237 + $0x4a90] sm:$0xff]
        %v2686 = vld [vmem:[%s237 + $0x4a98] sm:$0xff]
        %v2687 = vld [vmem:[%s237 + $0x4aa0] sm:$0xff]
        %v2688 = vld [vmem:[%s237 + $0x4aa8] sm:$0xff]
        %v2689 = vld [vmem:[%s237 + $0x4ab0] sm:$0xff]
        %v2690 = vld [vmem:[%s237 + $0x4ab8] sm:$0xff]
        %v2691 = vld [vmem:[%s237 + $0x4ac0] sm:$0xff]
        %v2692 = vld [vmem:[%s237 + $0x4ac8] sm:$0xff]
        %v2693 = vld [vmem:[%s237 + $0x4ad0] sm:$0xff]
        %v2694 = vld [vmem:[%s237 + $0x4ad8] sm:$0xff]
        %v2695 = vld [vmem:[%s237 + $0x4ae0] sm:$0xff]
        %v2696 = vld [vmem:[%s237 + $0x4ae8] sm:$0xff]
        %v2697 = vld [vmem:[%s237 + $0x4af0] sm:$0xff]
        %v2698 = vld [vmem:[%s237 + $0x4af8] sm:$0xff]
        %v2699 = vld [vmem:[%s237 + $0x4b00] sm:$0xff]
        %v2700 = vld [vmem:[%s237 + $0x4b08] sm:$0xff]
        %v2701 = vld [vmem:[%s237 + $0x4b10] sm:$0xff]
        %v2702 = vld [vmem:[%s237 + $0x4b18] sm:$0xff]
        %v2703 = vld [vmem:[%s237 + $0x4b20] sm:$0xff]
        %v2704 = vld [vmem:[%s237 + $0x4b28] sm:$0xff]
        %v2705 = vld [vmem:[%s237 + $0x4b30] sm:$0xff]
        %v2706 = vld [vmem:[%s237 + $0x4b38] sm:$0xff]
        %v2707 = vld [vmem:[%s237 + $0x4b40] sm:$0xff]
        %v2708 = vld [vmem:[%s237 + $0x4b48] sm:$0xff]
        %v2709 = vld [vmem:[%s237 + $0x4b50] sm:$0xff]
        %v2710 = vld [vmem:[%s237 + $0x4b58] sm:$0xff]
        %v2711 = vld [vmem:[%s237 + $0x4b60] sm:$0xff]
        %v2712 = vld [vmem:[%s237 + $0x4b68] sm:$0xff]
        %v2713 = vld [vmem:[%s237 + $0x4b70] sm:$0xff]
        %v2714 = vld [vmem:[%s237 + $0x4b78] sm:$0xff]
        %v2715 = vld [vmem:[%s237 + $0x4b80] sm:$0xff]
        %v2716 = vld [vmem:[%s237 + $0x4b88] sm:$0xff]
        %v2717 = vld [vmem:[%s237 + $0x4b90] sm:$0xff]
        %v2718 = vld [vmem:[%s237 + $0x4b98] sm:$0xff]
        %v2719 = vld [vmem:[%s237 + $0x4ba0] sm:$0xff]
        %v2720 = vld [vmem:[%s237 + $0x4ba8] sm:$0xff]
        %v2721 = vld [vmem:[%s237 + $0x4bb0] sm:$0xff]
        %v2722 = vld [vmem:[%s237 + $0x4bb8] sm:$0xff]
        %v2723 = vld [vmem:[%s237 + $0x4bc0] sm:$0xff]
        %v2724 = vld [vmem:[%s237 + $0x4bc8] sm:$0xff]
        %v2725 = vld [vmem:[%s237 + $0x4bd0] sm:$0xff]
        %v2726 = vld [vmem:[%s237 + $0x4bd8] sm:$0xff]
        %v2727 = vld [vmem:[%s237 + $0x4be0] sm:$0xff]
        %v2728 = vld [vmem:[%s237 + $0x4be8] sm:$0xff]
        %v2729 = vld [vmem:[%s237 + $0x4bf0] sm:$0xff]
        %v2730 = vld [vmem:[%s237 + $0x4bf8] sm:$0xff]
        %v2731 = vld [vmem:[%s237 + $0x4c00] sm:$0xff]
        %v2732 = vld [vmem:[%s237 + $0x4c08] sm:$0xff]
        %v2733 = vld [vmem:[%s237 + $0x4c10] sm:$0xff]
        %v2734 = vld [vmem:[%s237 + $0x4c18] sm:$0xff]
        %v2735 = vld [vmem:[%s237 + $0x4c20] sm:$0xff]
        %v2736 = vld [vmem:[%s237 + $0x4c28] sm:$0xff]
        %v2737 = vld [vmem:[%s237 + $0x4c30] sm:$0xff]
        %v2738 = vld [vmem:[%s237 + $0x4c38] sm:$0xff]
        %v2739 = vld [vmem:[%s237 + $0x4c40] sm:$0xff]
        %v2740 = vld [vmem:[%s237 + $0x4c48] sm:$0xff]
        %v2741 = vld [vmem:[%s237 + $0x4c50] sm:$0xff]
        %v2742 = vld [vmem:[%s237 + $0x4c58] sm:$0xff]
        %v2743 = vld [vmem:[%s237 + $0x4c60] sm:$0xff]
        %v2744 = vld [vmem:[%s237 + $0x4c68] sm:$0xff]
        %v2745 = vld [vmem:[%s237 + $0x4c70] sm:$0xff]
        %v2746 = vld [vmem:[%s237 + $0x4c78] sm:$0xff]
        %v2747 = vld [vmem:[%s237 + $0x4c80] sm:$0xff]
        %v2748 = vld [vmem:[%s237 + $0x4c88] sm:$0xff]
        %v2749 = vld [vmem:[%s237 + $0x4c90] sm:$0xff]
        %v2750 = vld [vmem:[%s237 + $0x4c98] sm:$0xff]
        %v2751 = vld [vmem:[%s237 + $0x4ca0] sm:$0xff]
        %v2752 = vld [vmem:[%s237 + $0x4ca8] sm:$0xff]
        %v2753 = vld [vmem:[%s237 + $0x4cb0] sm:$0xff]
        %v2754 = vld [vmem:[%s237 + $0x4cb8] sm:$0xff]
        %v2755 = vld [vmem:[%s237 + $0x4cc0] sm:$0xff]
        %v2756 = vld [vmem:[%s237 + $0x4cc8] sm:$0xff]
        %v2757 = vld [vmem:[%s237 + $0x4cd0] sm:$0xff]
        %v2758 = vld [vmem:[%s237 + $0x4cd8] sm:$0xff]
        %v2759 = vld [vmem:[%s237 + $0x4ce0] sm:$0xff]
        %v2760 = vld [vmem:[%s237 + $0x4ce8] sm:$0xff]
        %v2761 = vld [vmem:[%s237 + $0x4cf0] sm:$0xff]
        %v2762 = vld [vmem:[%s237 + $0x4cf8] sm:$0xff]
        %v2763 = vld [vmem:[%s237 + $0x4d00] sm:$0xff]
        %v2764 = vld [vmem:[%s237 + $0x4d08] sm:$0xff]
        %v2765 = vld [vmem:[%s237 + $0x4d10] sm:$0xff]
        %v2766 = vld [vmem:[%s237 + $0x4d18] sm:$0xff]
        %v2767 = vld [vmem:[%s237 + $0x4d20] sm:$0xff]
        %v2768 = vld [vmem:[%s237 + $0x4d28] sm:$0xff]
        %v2769 = vld [vmem:[%s237 + $0x4d30] sm:$0xff]
        %v2770 = vld [vmem:[%s237 + $0x4d38] sm:$0xff]
        %v2771 = vld [vmem:[%s237 + $0x4d40] sm:$0xff]
        %v2772 = vld [vmem:[%s237 + $0x4d48] sm:$0xff]
        %v2773 = vld [vmem:[%s237 + $0x4d50] sm:$0xff]
        %v2774 = vld [vmem:[%s237 + $0x4d58] sm:$0xff]
        %v2775 = vld [vmem:[%s237 + $0x4d60] sm:$0xff]
        %v2776 = vld [vmem:[%s237 + $0x4d68] sm:$0xff]
        %v2777 = vld [vmem:[%s237 + $0x4d70] sm:$0xff]
        %v2778 = vld [vmem:[%s237 + $0x4d78] sm:$0xff]
        %v2779 = vld [vmem:[%s237 + $0x4d80] sm:$0xff]
        %v2780 = vld [vmem:[%s237 + $0x4d88] sm:$0xff]
        %v2781 = vld [vmem:[%s237 + $0x4d90] sm:$0xff]
        %v2782 = vld [vmem:[%s237 + $0x4d98] sm:$0xff]
        %v2783 = vld [vmem:[%s237 + $0x4da0] sm:$0xff]
        %v2784 = vld [vmem:[%s237 + $0x4da8] sm:$0xff]
        %v2785 = vld [vmem:[%s237 + $0x4db0] sm:$0xff]
        %v2786 = vld [vmem:[%s237 + $0x4db8] sm:$0xff]
        %v2787 = vld [vmem:[%s237 + $0x4dc0] sm:$0xff]
        %v2788 = vld [vmem:[%s237 + $0x4dc8] sm:$0xff]
        %v2789 = vld [vmem:[%s237 + $0x4dd0] sm:$0xff]
        %v2790 = vld [vmem:[%s237 + $0x4dd8] sm:$0xff]
        %v2791 = vld [vmem:[%s237 + $0x4de0] sm:$0xff]
        %v2792 = vld [vmem:[%s237 + $0x4de8] sm:$0xff]
        %v2793 = vld [vmem:[%s237 + $0x4df0] sm:$0xff]
        %v2794 = vld [vmem:[%s237 + $0x4df8] sm:$0xff]
        %v2795 = vld [vmem:[%s237 + $0x4e00] sm:$0xff]
        %v2796 = vld [vmem:[%s237 + $0x4e08] sm:$0xff]
        %v2797 = vld [vmem:[%s237 + $0x4e10] sm:$0xff]
        %v2798 = vld [vmem:[%s237 + $0x4e18] sm:$0xff]
        %v2799 = vld [vmem:[%s237 + $0x4e20] sm:$0xff]
        %v2800 = vld [vmem:[%s237 + $0x4e28] sm:$0xff]
        %v2801 = vld [vmem:[%s237 + $0x4e30] sm:$0xff]
        %v2802 = vld [vmem:[%s237 + $0x4e38] sm:$0xff]
        %v2803 = vld [vmem:[%s237 + $0x4e40] sm:$0xff]
        %v2804 = vld [vmem:[%s237 + $0x4e48] sm:$0xff]
        %v2805 = vld [vmem:[%s237 + $0x4e50] sm:$0xff]
        %v2806 = vld [vmem:[%s237 + $0x4e58] sm:$0xff]
        %v2807 = vld [vmem:[%s237 + $0x4e60] sm:$0xff]
        %v2808 = vld [vmem:[%s237 + $0x4e68] sm:$0xff]
        %v2809 = vld [vmem:[%s237 + $0x4e70] sm:$0xff]
        %v2810 = vld [vmem:[%s237 + $0x4e78] sm:$0xff]
        %v2811 = vld [vmem:[%s237 + $0x4e80] sm:$0xff]
        %v2812 = vld [vmem:[%s237 + $0x4e88] sm:$0xff]
        %v2813 = vld [vmem:[%s237 + $0x4e90] sm:$0xff]
        %v2814 = vld [vmem:[%s237 + $0x4e98] sm:$0xff]
        %v2815 = vld [vmem:[%s237 + $0x4ea0] sm:$0xff]
        %v2816 = vld [vmem:[%s237 + $0x4ea8] sm:$0xff]
        %v2817 = vld [vmem:[%s237 + $0x4eb0] sm:$0xff]
        %v2818 = vld [vmem:[%s237 + $0x4eb8] sm:$0xff]
        %v2819 = vld [vmem:[%s237 + $0x4ec0] sm:$0xff]
        %v2820 = vld [vmem:[%s237 + $0x4ec8] sm:$0xff]
        %v2821 = vld [vmem:[%s237 + $0x4ed0] sm:$0xff]
        %v2822 = vld [vmem:[%s237 + $0x4ed8] sm:$0xff]
        %v2823 = vld [vmem:[%s237 + $0x4ee0] sm:$0xff]
        %v2824 = vld [vmem:[%s237 + $0x4ee8] sm:$0xff]
        %v2825 = vld [vmem:[%s237 + $0x4ef0] sm:$0xff]
        %v2826 = vld [vmem:[%s237 + $0x4ef8] sm:$0xff]
        %v2827 = vld [vmem:[%s237 + $0x4f00] sm:$0xff]
        %v2828 = vld [vmem:[%s237 + $0x4f08] sm:$0xff]
        %v2829 = vld [vmem:[%s237 + $0x4f10] sm:$0xff]
        %v2830 = vld [vmem:[%s237 + $0x4f18] sm:$0xff]
        %v2831 = vld [vmem:[%s237 + $0x4f20] sm:$0xff]
        %v2832 = vld [vmem:[%s237 + $0x4f28] sm:$0xff]
        %v2833 = vld [vmem:[%s237 + $0x4f30] sm:$0xff]
        %v2834 = vld [vmem:[%s237 + $0x4f38] sm:$0xff]
        %v2835 = vld [vmem:[%s237 + $0x4f40] sm:$0xff]
        %v2836 = vld [vmem:[%s237 + $0x4f48] sm:$0xff]
        %v2837 = vld [vmem:[%s237 + $0x4f50] sm:$0xff]
        %v2838 = vld [vmem:[%s237 + $0x4f58] sm:$0xff]
        %v2839 = vld [vmem:[%s237 + $0x4f60] sm:$0xff]
        %v2840 = vld [vmem:[%s237 + $0x4f68] sm:$0xff]
        %v2841 = vld [vmem:[%s237 + $0x4f70] sm:$0xff]
        %v2842 = vld [vmem:[%s237 + $0x4f78] sm:$0xff]
        %v2843 = vld [vmem:[%s237 + $0x4f80] sm:$0xff]
        %v2844 = vld [vmem:[%s237 + $0x4f88] sm:$0xff]
        %v2845 = vld [vmem:[%s237 + $0x4f90] sm:$0xff]
        %v2846 = vld [vmem:[%s237 + $0x4f98] sm:$0xff]
        %v2847 = vld [vmem:[%s237 + $0x4fa0] sm:$0xff]
        %v2848 = vld [vmem:[%s237 + $0x4fa8] sm:$0xff]
        %v2849 = vld [vmem:[%s237 + $0x4fb0] sm:$0xff]
        %v2850 = vld [vmem:[%s237 + $0x4fb8] sm:$0xff]
        %v2851 = vld [vmem:[%s237 + $0x4fc0] sm:$0xff]
        %v2852 = vld [vmem:[%s237 + $0x4fc8] sm:$0xff]
        %v2853 = vld [vmem:[%s237 + $0x4fd0] sm:$0xff]
        %v2854 = vld [vmem:[%s237 + $0x4fd8] sm:$0xff]
        %v2855 = vld [vmem:[%s237 + $0x4fe0] sm:$0xff]
        %v2856 = vld [vmem:[%s237 + $0x4fe8] sm:$0xff]
        %v2857 = vld [vmem:[%s237 + $0x4ff0] sm:$0xff]
        %v2858 = vld [vmem:[%s237 + $0x4ff8] sm:$0xff]
        %v2859 = vld [vmem:[%s237 + $0x5000] sm:$0xff]
        %v2860 = vld [vmem:[%s237 + $0x5008] sm:$0xff]
        %v2861 = vld [vmem:[%s237 + $0x5010] sm:$0xff]
        %v2862 = vld [vmem:[%s237 + $0x5018] sm:$0xff]
        %v2863 = vld [vmem:[%s237 + $0x5020] sm:$0xff]
        %v2864 = vld [vmem:[%s237 + $0x5028] sm:$0xff]
        %v2865 = vld [vmem:[%s237 + $0x5030] sm:$0xff]
        %v2866 = vld [vmem:[%s237 + $0x5038] sm:$0xff]
        %v2867 = vld [vmem:[%s237 + $0x5040] sm:$0xff]
        %v2868 = vld [vmem:[%s237 + $0x5048] sm:$0xff]
        %v2869 = vld [vmem:[%s237 + $0x5050] sm:$0xff]
        %v2870 = vld [vmem:[%s237 + $0x5058] sm:$0xff]
        %v2871 = vld [vmem:[%s237 + $0x5060] sm:$0xff]
        %v2872 = vld [vmem:[%s237 + $0x5068] sm:$0xff]
        %v2873 = vld [vmem:[%s237 + $0x5070] sm:$0xff]
        %v2874 = vld [vmem:[%s237 + $0x5078] sm:$0xff]
        %v2875 = vld [vmem:[%s237 + $0x5080] sm:$0xff]
        %v2876 = vld [vmem:[%s237 + $0x5088] sm:$0xff]
        %v2877 = vld [vmem:[%s237 + $0x5090] sm:$0xff]
        %v2878 = vld [vmem:[%s237 + $0x5098] sm:$0xff]
        %v2879 = vld [vmem:[%s237 + $0x50a0] sm:$0xff]
        %v2880 = vld [vmem:[%s237 + $0x50a8] sm:$0xff]
        %v2881 = vld [vmem:[%s237 + $0x50b0] sm:$0xff]
        %v2882 = vld [vmem:[%s237 + $0x50b8] sm:$0xff]
        %v2883 = vld [vmem:[%s237 + $0x50c0] sm:$0xff]
        %v2884 = vld [vmem:[%s237 + $0x50c8] sm:$0xff]
        %v2885 = vld [vmem:[%s237 + $0x50d0] sm:$0xff]
        %v2886 = vld [vmem:[%s237 + $0x50d8] sm:$0xff]
        %v2887 = vld [vmem:[%s237 + $0x50e0] sm:$0xff]
        %v2888 = vld [vmem:[%s237 + $0x50e8] sm:$0xff]
        %v2889 = vld [vmem:[%s237 + $0x50f0] sm:$0xff]
        %v2890 = vld [vmem:[%s237 + $0x50f8] sm:$0xff]
        %v2891 = vld [vmem:[%s237 + $0x5100] sm:$0xff]
        %v2892 = vld [vmem:[%s237 + $0x5108] sm:$0xff]
        %v2893 = vld [vmem:[%s237 + $0x5110] sm:$0xff]
        %v2894 = vld [vmem:[%s237 + $0x5118] sm:$0xff]
        %v2895 = vld [vmem:[%s237 + $0x5120] sm:$0xff]
        %v2896 = vld [vmem:[%s237 + $0x5128] sm:$0xff]
        %v2897 = vld [vmem:[%s237 + $0x5130] sm:$0xff]
        %v2898 = vld [vmem:[%s237 + $0x5138] sm:$0xff]
        %v2899 = vld [vmem:[%s237 + $0x5140] sm:$0xff]
        %v2900 = vld [vmem:[%s237 + $0x5148] sm:$0xff]
        %v2901 = vld [vmem:[%s237 + $0x5150] sm:$0xff]
        %v2902 = vld [vmem:[%s237 + $0x5158] sm:$0xff]
        %v2903 = vld [vmem:[%s237 + $0x5160] sm:$0xff]
        %v2904 = vld [vmem:[%s237 + $0x5168] sm:$0xff]
        %v2905 = vld [vmem:[%s237 + $0x5170] sm:$0xff]
        %v2906 = vld [vmem:[%s237 + $0x5178] sm:$0xff]
        %v2907 = vld [vmem:[%s237 + $0x5180] sm:$0xff]
        %v2908 = vld [vmem:[%s237 + $0x5188] sm:$0xff]
        %v2909 = vld [vmem:[%s237 + $0x5190] sm:$0xff]
        %v2910 = vld [vmem:[%s237 + $0x5198] sm:$0xff]
        %v2911 = vld [vmem:[%s237 + $0x51a0] sm:$0xff]
        %v2912 = vld [vmem:[%s237 + $0x51a8] sm:$0xff]
        %v2913 = vld [vmem:[%s237 + $0x51b0] sm:$0xff]
        %v2914 = vld [vmem:[%s237 + $0x51b8] sm:$0xff]
        %v2915 = vld [vmem:[%s237 + $0x51c0] sm:$0xff]
        %v2916 = vld [vmem:[%s237 + $0x51c8] sm:$0xff]
        %v2917 = vld [vmem:[%s237 + $0x51d0] sm:$0xff]
        %v2918 = vld [vmem:[%s237 + $0x51d8] sm:$0xff]
        %v2919 = vld [vmem:[%s237 + $0x51e0] sm:$0xff]
        %v2920 = vld [vmem:[%s237 + $0x51e8] sm:$0xff]
        %v2921 = vld [vmem:[%s237 + $0x51f0] sm:$0xff]
        %v2922 = vld [vmem:[%s237 + $0x51f8] sm:$0xff]
        %v2923 = vld [vmem:[%s237 + $0x5200] sm:$0xff]
        %v2924 = vld [vmem:[%s237 + $0x5208] sm:$0xff]
        %v2925 = vld [vmem:[%s237 + $0x5210] sm:$0xff]
        %v2926 = vld [vmem:[%s237 + $0x5218] sm:$0xff]
        %v2927 = vld [vmem:[%s237 + $0x5220] sm:$0xff]
        %v2928 = vld [vmem:[%s237 + $0x5228] sm:$0xff]
        %v2929 = vld [vmem:[%s237 + $0x5230] sm:$0xff]
        %v2930 = vld [vmem:[%s237 + $0x5238] sm:$0xff]
        %v2931 = vld [vmem:[%s237 + $0x5240] sm:$0xff]
        %v2932 = vld [vmem:[%s237 + $0x5248] sm:$0xff]
        %v2933 = vld [vmem:[%s237 + $0x5250] sm:$0xff]
        %v2934 = vld [vmem:[%s237 + $0x5258] sm:$0xff]
        %v2935 = vld [vmem:[%s237 + $0x5260] sm:$0xff]
        %v2936 = vld [vmem:[%s237 + $0x5268] sm:$0xff]
        %v2937 = vld [vmem:[%s237 + $0x5270] sm:$0xff]
        %v2938 = vld [vmem:[%s237 + $0x5278] sm:$0xff]
        %v2939 = vld [vmem:[%s237 + $0x5280] sm:$0xff]
        %v2940 = vld [vmem:[%s237 + $0x5288] sm:$0xff]
        %v2941 = vld [vmem:[%s237 + $0x5290] sm:$0xff]
        %v2942 = vld [vmem:[%s237 + $0x5298] sm:$0xff]
        %v2943 = vld [vmem:[%s237 + $0x52a0] sm:$0xff]
        %v2944 = vld [vmem:[%s237 + $0x52a8] sm:$0xff]
        %v2945 = vld [vmem:[%s237 + $0x52b0] sm:$0xff]
        %v2946 = vld [vmem:[%s237 + $0x52b8] sm:$0xff]
        %v2947 = vld [vmem:[%s237 + $0x52c0] sm:$0xff]
        %v2948 = vld [vmem:[%s237 + $0x52c8] sm:$0xff]
        %v2949 = vld [vmem:[%s237 + $0x52d0] sm:$0xff]
        %v2950 = vld [vmem:[%s237 + $0x52d8] sm:$0xff]
        %v2951 = vld [vmem:[%s237 + $0x52e0] sm:$0xff]
        %v2952 = vld [vmem:[%s237 + $0x52e8] sm:$0xff]
        %v2953 = vld [vmem:[%s237 + $0x52f0] sm:$0xff]
        %v2954 = vld [vmem:[%s237 + $0x52f8] sm:$0xff]
        %v2955 = vld [vmem:[%s237 + $0x5300] sm:$0xff]
        %v2956 = vld [vmem:[%s237 + $0x5308] sm:$0xff]
        %v2957 = vld [vmem:[%s237 + $0x5310] sm:$0xff]
        %v2958 = vld [vmem:[%s237 + $0x5318] sm:$0xff]
        %v2959 = vld [vmem:[%s237 + $0x5320] sm:$0xff]
        %v2960 = vld [vmem:[%s237 + $0x5328] sm:$0xff]
        %v2961 = vld [vmem:[%s237 + $0x5330] sm:$0xff]
        %v2962 = vld [vmem:[%s237 + $0x5338] sm:$0xff]
        %v2963 = vld [vmem:[%s237 + $0x5340] sm:$0xff]
        %v2964 = vld [vmem:[%s237 + $0x5348] sm:$0xff]
        %v2965 = vld [vmem:[%s237 + $0x5350] sm:$0xff]
        %v2966 = vld [vmem:[%s237 + $0x5358] sm:$0xff]
        %v2967 = vld [vmem:[%s237 + $0x5360] sm:$0xff]
        %v2968 = vld [vmem:[%s237 + $0x5368] sm:$0xff]
        %v2969 = vld [vmem:[%s237 + $0x5370] sm:$0xff]
        %v2970 = vld [vmem:[%s237 + $0x5378] sm:$0xff]
        %v2971 = vld [vmem:[%s237 + $0x5380] sm:$0xff]
        %v2972 = vld [vmem:[%s237 + $0x5388] sm:$0xff]
        %v2973 = vld [vmem:[%s237 + $0x5390] sm:$0xff]
        %v2974 = vld [vmem:[%s237 + $0x5398] sm:$0xff]
        %v2975 = vld [vmem:[%s237 + $0x53a0] sm:$0xff]
        %v2976 = vld [vmem:[%s237 + $0x53a8] sm:$0xff]
        %v2977 = vld [vmem:[%s237 + $0x53b0] sm:$0xff]
        %v2978 = vld [vmem:[%s237 + $0x53b8] sm:$0xff]
        %v2979 = vld [vmem:[%s237 + $0x53c0] sm:$0xff]
        %v2980 = vld [vmem:[%s237 + $0x53c8] sm:$0xff]
        %v2981 = vld [vmem:[%s237 + $0x53d0] sm:$0xff]
        %v2982 = vld [vmem:[%s237 + $0x53d8] sm:$0xff]
        %v2983 = vld [vmem:[%s237 + $0x53e0] sm:$0xff]
        %v2984 = vld [vmem:[%s237 + $0x53e8] sm:$0xff]
        %v2985 = vld [vmem:[%s237 + $0x53f0] sm:$0xff]
        %v2986 = vld [vmem:[%s237 + $0x53f8] sm:$0xff]
        %v2987 = vld [vmem:[%s237 + $0x5400] sm:$0xff]
        %v2988 = vld [vmem:[%s237 + $0x5408] sm:$0xff]
        %v2989 = vld [vmem:[%s237 + $0x5410] sm:$0xff]
        %v2990 = vld [vmem:[%s237 + $0x5418] sm:$0xff]
        %v2991 = vld [vmem:[%s237 + $0x5420] sm:$0xff]
        %v2992 = vld [vmem:[%s237 + $0x5428] sm:$0xff]
        %v2993 = vld [vmem:[%s237 + $0x5430] sm:$0xff]
        %v2994 = vld [vmem:[%s237 + $0x5438] sm:$0xff]
        %v2995 = vld [vmem:[%s237 + $0x5440] sm:$0xff]
        %v2996 = vld [vmem:[%s237 + $0x5448] sm:$0xff]
        %v2997 = vld [vmem:[%s237 + $0x5450] sm:$0xff]
        %v2998 = vld [vmem:[%s237 + $0x5458] sm:$0xff]
        %v2999 = vld [vmem:[%s237 + $0x5460] sm:$0xff]
        %v3000 = vld [vmem:[%s237 + $0x5468] sm:$0xff]
        %v3001 = vld [vmem:[%s237 + $0x5470] sm:$0xff]
        %v3002 = vld [vmem:[%s237 + $0x5478] sm:$0xff]
        %v3003 = vld [vmem:[%s237 + $0x5480] sm:$0xff]
        %v3004 = vld [vmem:[%s237 + $0x5488] sm:$0xff]
        %v3005 = vld [vmem:[%s237 + $0x5490] sm:$0xff]
        %v3006 = vld [vmem:[%s237 + $0x5498] sm:$0xff]
        %v3007 = vld [vmem:[%s237 + $0x54a0] sm:$0xff]
        %v3008 = vld [vmem:[%s237 + $0x54a8] sm:$0xff]
        %v3009 = vld [vmem:[%s237 + $0x54b0] sm:$0xff]
        %v3010 = vld [vmem:[%s237 + $0x54b8] sm:$0xff]
        %v3011 = vld [vmem:[%s237 + $0x54c0] sm:$0xff]
        %v3012 = vld [vmem:[%s237 + $0x54c8] sm:$0xff]
        %v3013 = vld [vmem:[%s237 + $0x54d0] sm:$0xff]
        %v3014 = vld [vmem:[%s237 + $0x54d8] sm:$0xff]
        %v3015 = vld [vmem:[%s237 + $0x54e0] sm:$0xff]
        %v3016 = vld [vmem:[%s237 + $0x54e8] sm:$0xff]
        %v3017 = vld [vmem:[%s237 + $0x54f0] sm:$0xff]
        %v3018 = vld [vmem:[%s237 + $0x54f8] sm:$0xff]
        %v3019 = vld [vmem:[%s237 + $0x5500] sm:$0xff]
        %v3020 = vld [vmem:[%s237 + $0x5508] sm:$0xff]
        %v3021 = vld [vmem:[%s237 + $0x5510] sm:$0xff]
        %v3022 = vld [vmem:[%s237 + $0x5518] sm:$0xff]
        %v3023 = vld [vmem:[%s237 + $0x5520] sm:$0xff]
        %v3024 = vld [vmem:[%s237 + $0x5528] sm:$0xff]
        %v3025 = vld [vmem:[%s237 + $0x5530] sm:$0xff]
        %v3026 = vld [vmem:[%s237 + $0x5538] sm:$0xff]
        %v3027 = vld [vmem:[%s237 + $0x5540] sm:$0xff]
        %v3028 = vld [vmem:[%s237 + $0x5548] sm:$0xff]
        %v3029 = vld [vmem:[%s237 + $0x5550] sm:$0xff]
        %v3030 = vld [vmem:[%s237 + $0x5558] sm:$0xff]
        %v3031 = vld [vmem:[%s237 + $0x5560] sm:$0xff]
        %v3032 = vld [vmem:[%s237 + $0x5568] sm:$0xff]
        %v3033 = vld [vmem:[%s237 + $0x5570] sm:$0xff]
        %v3034 = vld [vmem:[%s237 + $0x5578] sm:$0xff]
        %v3035 = vld [vmem:[%s237 + $0x5580] sm:$0xff]
        %v3036 = vld [vmem:[%s237 + $0x5588] sm:$0xff]
        %v3037 = vld [vmem:[%s237 + $0x5590] sm:$0xff]
        %v3038 = vld [vmem:[%s237 + $0x5598] sm:$0xff]
        %v3039 = vld [vmem:[%s237 + $0x55a0] sm:$0xff]
        %v3040 = vld [vmem:[%s237 + $0x55a8] sm:$0xff]
        %v3041 = vld [vmem:[%s237 + $0x55b0] sm:$0xff]
        %v3042 = vld [vmem:[%s237 + $0x55b8] sm:$0xff]
        %v3043 = vld [vmem:[%s237 + $0x55c0] sm:$0xff]
        %v3044 = vld [vmem:[%s237 + $0x55c8] sm:$0xff]
        %v3045 = vld [vmem:[%s237 + $0x55d0] sm:$0xff]
        %v3046 = vld [vmem:[%s237 + $0x55d8] sm:$0xff]
        %v3047 = vld [vmem:[%s237 + $0x55e0] sm:$0xff]
        %v3048 = vld [vmem:[%s237 + $0x55e8] sm:$0xff]
        %v3049 = vld [vmem:[%s237 + $0x55f0] sm:$0xff]
        %v3050 = vld [vmem:[%s237 + $0x55f8] sm:$0xff]
        %v3051 = vld [vmem:[%s237 + $0x5600] sm:$0xff]
        %v3052 = vld [vmem:[%s237 + $0x5608] sm:$0xff]
        %v3053 = vld [vmem:[%s237 + $0x5610] sm:$0xff]
        %v3054 = vld [vmem:[%s237 + $0x5618] sm:$0xff]
        %v3055 = vld [vmem:[%s237 + $0x5620] sm:$0xff]
        %v3056 = vld [vmem:[%s237 + $0x5628] sm:$0xff]
        %v3057 = vld [vmem:[%s237 + $0x5630] sm:$0xff]
        %v3058 = vld [vmem:[%s237 + $0x5638] sm:$0xff]
        %v3059 = vld [vmem:[%s237 + $0x5640] sm:$0xff]
        %v3060 = vld [vmem:[%s237 + $0x5648] sm:$0xff]
        %v3061 = vld [vmem:[%s237 + $0x5650] sm:$0xff]
        %v3062 = vld [vmem:[%s237 + $0x5658] sm:$0xff]
        %v3063 = vld [vmem:[%s237 + $0x5660] sm:$0xff]
        %v3064 = vld [vmem:[%s237 + $0x5668] sm:$0xff]
        %v3065 = vld [vmem:[%s237 + $0x5670] sm:$0xff]
        %v3066 = vld [vmem:[%s237 + $0x5678] sm:$0xff]
        %v3067 = vld [vmem:[%s237 + $0x5680] sm:$0xff]
        %v3068 = vld [vmem:[%s237 + $0x5688] sm:$0xff]
        %v3069 = vld [vmem:[%s237 + $0x5690] sm:$0xff]
        %v3070 = vld [vmem:[%s237 + $0x5698] sm:$0xff]
        %v3071 = vld [vmem:[%s237 + $0x56a0] sm:$0xff]
        %v3072 = vld [vmem:[%s237 + $0x56a8] sm:$0xff]
        %v3073 = vld [vmem:[%s237 + $0x56b0] sm:$0xff]
        %v3074 = vld [vmem:[%s237 + $0x56b8] sm:$0xff]
        %v3075 = vld [vmem:[%s237 + $0x56c0] sm:$0xff]
        %v3076 = vld [vmem:[%s237 + $0x56c8] sm:$0xff]
        %v3077 = vld [vmem:[%s237 + $0x56d0] sm:$0xff]
        %v3078 = vld [vmem:[%s237 + $0x56d8] sm:$0xff]
        %v3079 = vld [vmem:[%s237 + $0x56e0] sm:$0xff]
        %v3080 = vld [vmem:[%s237 + $0x56e8] sm:$0xff]
        %v3081 = vld [vmem:[%s237 + $0x56f0] sm:$0xff]
        %v3082 = vld [vmem:[%s237 + $0x56f8] sm:$0xff]
        %v3083 = vld [vmem:[%s237 + $0x5700] sm:$0xff]
        %v3084 = vld [vmem:[%s237 + $0x5708] sm:$0xff]
        %v3085 = vld [vmem:[%s237 + $0x5710] sm:$0xff]
        %v3086 = vld [vmem:[%s237 + $0x5718] sm:$0xff]
        %v3087 = vld [vmem:[%s237 + $0x5720] sm:$0xff]
        %v3088 = vld [vmem:[%s237 + $0x5728] sm:$0xff]
        %v3089 = vld [vmem:[%s237 + $0x5730] sm:$0xff]
        %v3090 = vld [vmem:[%s237 + $0x5738] sm:$0xff]
        %v3091 = vld [vmem:[%s237 + $0x5740] sm:$0xff]
        %v3092 = vld [vmem:[%s237 + $0x5748] sm:$0xff]
        %v3093 = vld [vmem:[%s237 + $0x5750] sm:$0xff]
        %v3094 = vld [vmem:[%s237 + $0x5758] sm:$0xff]
        %v3095 = vld [vmem:[%s237 + $0x5760] sm:$0xff]
        %v3096 = vld [vmem:[%s237 + $0x5768] sm:$0xff]
        %v3097 = vld [vmem:[%s237 + $0x5770] sm:$0xff]
        %v3098 = vld [vmem:[%s237 + $0x5778] sm:$0xff]
        %v3099 = vld [vmem:[%s237 + $0x5780] sm:$0xff]
        %v3100 = vld [vmem:[%s237 + $0x5788] sm:$0xff]
        %v3101 = vld [vmem:[%s237 + $0x5790] sm:$0xff]
        %v3102 = vld [vmem:[%s237 + $0x5798] sm:$0xff]
        %v3103 = vld [vmem:[%s237 + $0x57a0] sm:$0xff]
        %v3104 = vld [vmem:[%s237 + $0x57a8] sm:$0xff]
        %v3105 = vld [vmem:[%s237 + $0x57b0] sm:$0xff]
        %v3106 = vld [vmem:[%s237 + $0x57b8] sm:$0xff]
        %v3107 = vld [vmem:[%s237 + $0x57c0] sm:$0xff]
        %v3108 = vld [vmem:[%s237 + $0x57c8] sm:$0xff]
        %v3109 = vld [vmem:[%s237 + $0x57d0] sm:$0xff]
        %v3110 = vld [vmem:[%s237 + $0x57d8] sm:$0xff]
        %v3111 = vld [vmem:[%s237 + $0x57e0] sm:$0xff]
        %v3112 = vld [vmem:[%s237 + $0x57e8] sm:$0xff]
        %v3113 = vld [vmem:[%s237 + $0x57f0] sm:$0xff]
        %v3114 = vld [vmem:[%s237 + $0x57f8] sm:$0xff]
        %v3115 = vld [vmem:[%s237 + $0x5800] sm:$0xff]
        %v3116 = vld [vmem:[%s237 + $0x5808] sm:$0xff]
        %v3117 = vld [vmem:[%s237 + $0x5810] sm:$0xff]
        %v3118 = vld [vmem:[%s237 + $0x5818] sm:$0xff]
        %v3119 = vld [vmem:[%s237 + $0x5820] sm:$0xff]
        %v3120 = vld [vmem:[%s237 + $0x5828] sm:$0xff]
        %v3121 = vld [vmem:[%s237 + $0x5830] sm:$0xff]
        %v3122 = vld [vmem:[%s237 + $0x5838] sm:$0xff]
        %v3123 = vld [vmem:[%s237 + $0x5840] sm:$0xff]
        %v3124 = vld [vmem:[%s237 + $0x5848] sm:$0xff]
        %v3125 = vld [vmem:[%s237 + $0x5850] sm:$0xff]
        %v3126 = vld [vmem:[%s237 + $0x5858] sm:$0xff]
        %v3127 = vld [vmem:[%s237 + $0x5860] sm:$0xff]
        %v3128 = vld [vmem:[%s237 + $0x5868] sm:$0xff]
        %v3129 = vld [vmem:[%s237 + $0x5870] sm:$0xff]
        %v3130 = vld [vmem:[%s237 + $0x5878] sm:$0xff]
        %v3131 = vld [vmem:[%s237 + $0x5880] sm:$0xff]
        %v3132 = vld [vmem:[%s237 + $0x5888] sm:$0xff]
        %v3133 = vld [vmem:[%s237 + $0x5890] sm:$0xff]
        %v3134 = vld [vmem:[%s237 + $0x5898] sm:$0xff]
        %v3135 = vld [vmem:[%s237 + $0x58a0] sm:$0xff]
        %v3136 = vld [vmem:[%s237 + $0x58a8] sm:$0xff]
        %v3137 = vld [vmem:[%s237 + $0x58b0] sm:$0xff]
        %v3138 = vld [vmem:[%s237 + $0x58b8] sm:$0xff]
        %v3139 = vld [vmem:[%s237 + $0x58c0] sm:$0xff]
        %v3140 = vld [vmem:[%s237 + $0x58c8] sm:$0xff]
        %v3141 = vld [vmem:[%s237 + $0x58d0] sm:$0xff]
        %v3142 = vld [vmem:[%s237 + $0x58d8] sm:$0xff]
        %v3143 = vld [vmem:[%s237 + $0x58e0] sm:$0xff]
        %v3144 = vld [vmem:[%s237 + $0x58e8] sm:$0xff]
        %v3145 = vld [vmem:[%s237 + $0x58f0] sm:$0xff]
        %v3146 = vld [vmem:[%s237 + $0x58f8] sm:$0xff]
        %v3147 = vld [vmem:[%s237 + $0x5900] sm:$0xff]
        %v3148 = vld [vmem:[%s237 + $0x5908] sm:$0xff]
        %v3149 = vld [vmem:[%s237 + $0x5910] sm:$0xff]
        %v3150 = vld [vmem:[%s237 + $0x5918] sm:$0xff]
        %v3151 = vld [vmem:[%s237 + $0x5920] sm:$0xff]
        %v3152 = vld [vmem:[%s237 + $0x5928] sm:$0xff]
        %v3153 = vld [vmem:[%s237 + $0x5930] sm:$0xff]
        %v3154 = vld [vmem:[%s237 + $0x5938] sm:$0xff]
        %v3155 = vld [vmem:[%s237 + $0x5940] sm:$0xff]
        %v3156 = vld [vmem:[%s237 + $0x5948] sm:$0xff]
        %v3157 = vld [vmem:[%s237 + $0x5950] sm:$0xff]
        %v3158 = vld [vmem:[%s237 + $0x5958] sm:$0xff]
        %v3159 = vld [vmem:[%s237 + $0x5960] sm:$0xff]
        %v3160 = vld [vmem:[%s237 + $0x5968] sm:$0xff]
        %v3161 = vld [vmem:[%s237 + $0x5970] sm:$0xff]
        %v3162 = vld [vmem:[%s237 + $0x5978] sm:$0xff]
        %v3163 = vld [vmem:[%s237 + $0x5980] sm:$0xff]
        %v3164 = vld [vmem:[%s237 + $0x5988] sm:$0xff]
        %v3165 = vld [vmem:[%s237 + $0x5990] sm:$0xff]
        %v3166 = vld [vmem:[%s237 + $0x5998] sm:$0xff]
        %v3167 = vld [vmem:[%s237 + $0x59a0] sm:$0xff]
        %v3168 = vld [vmem:[%s237 + $0x59a8] sm:$0xff]
        %v3169 = vld [vmem:[%s237 + $0x59b0] sm:$0xff]
        %v3170 = vld [vmem:[%s237 + $0x59b8] sm:$0xff]
        %v3171 = vld [vmem:[%s237 + $0x59c0] sm:$0xff]
        %v3172 = vld [vmem:[%s237 + $0x59c8] sm:$0xff]
        %v3173 = vld [vmem:[%s237 + $0x59d0] sm:$0xff]
        %v3174 = vld [vmem:[%s237 + $0x59d8] sm:$0xff]
        %v3175 = vld [vmem:[%s237 + $0x59e0] sm:$0xff]
        %v3176 = vld [vmem:[%s237 + $0x59e8] sm:$0xff]
        %v3177 = vld [vmem:[%s237 + $0x59f0] sm:$0xff]
        %v3178 = vld [vmem:[%s237 + $0x59f8] sm:$0xff]
        %v3179 = vld [vmem:[%s237 + $0x5a00] sm:$0xff]
        %v3180 = vld [vmem:[%s237 + $0x5a08] sm:$0xff]
        %v3181 = vld [vmem:[%s237 + $0x5a10] sm:$0xff]
        %v3182 = vld [vmem:[%s237 + $0x5a18] sm:$0xff]
        %v3183 = vld [vmem:[%s237 + $0x5a20] sm:$0xff]
        %v3184 = vld [vmem:[%s237 + $0x5a28] sm:$0xff]
        %v3185 = vld [vmem:[%s237 + $0x5a30] sm:$0xff]
        %v3186 = vld [vmem:[%s237 + $0x5a38] sm:$0xff]
        %v3187 = vld [vmem:[%s237 + $0x5a40] sm:$0xff]
        %v3188 = vld [vmem:[%s237 + $0x5a48] sm:$0xff]
        %v3189 = vld [vmem:[%s237 + $0x5a50] sm:$0xff]
        %v3190 = vld [vmem:[%s237 + $0x5a58] sm:$0xff]
        %v3191 = vld [vmem:[%s237 + $0x5a60] sm:$0xff]
        %v3192 = vld [vmem:[%s237 + $0x5a68] sm:$0xff]
        %v3193 = vld [vmem:[%s237 + $0x5a70] sm:$0xff]
        %v3194 = vld [vmem:[%s237 + $0x5a78] sm:$0xff]
        %v3195 = vld [vmem:[%s237 + $0x5a80] sm:$0xff]
        %v3196 = vld [vmem:[%s237 + $0x5a88] sm:$0xff]
        %v3197 = vld [vmem:[%s237 + $0x5a90] sm:$0xff]
        %v3198 = vld [vmem:[%s237 + $0x5a98] sm:$0xff]
        %v3199 = vld [vmem:[%s237 + $0x5aa0] sm:$0xff]
        %v3200 = vld [vmem:[%s237 + $0x5aa8] sm:$0xff]
        %v3201 = vld [vmem:[%s237 + $0x5ab0] sm:$0xff]
        %v3202 = vld [vmem:[%s237 + $0x5ab8] sm:$0xff]
        %v3203 = vld [vmem:[%s237 + $0x5ac0] sm:$0xff]
        %v3204 = vld [vmem:[%s237 + $0x5ac8] sm:$0xff]
        %v3205 = vld [vmem:[%s237 + $0x5ad0] sm:$0xff]
        %v3206 = vld [vmem:[%s237 + $0x5ad8] sm:$0xff]
        %v3207 = vld [vmem:[%s237 + $0x5ae0] sm:$0xff]
        %v3208 = vld [vmem:[%s237 + $0x5ae8] sm:$0xff]
        %v3209 = vld [vmem:[%s237 + $0x5af0] sm:$0xff]
        %v3210 = vld [vmem:[%s237 + $0x5af8] sm:$0xff]
        %v3211 = vld [vmem:[%s237 + $0x5b00] sm:$0xff]
        %v3212 = vld [vmem:[%s237 + $0x5b08] sm:$0xff]
        %v3213 = vld [vmem:[%s237 + $0x5b10] sm:$0xff]
        %v3214 = vld [vmem:[%s237 + $0x5b18] sm:$0xff]
        %v3215 = vld [vmem:[%s237 + $0x5b20] sm:$0xff]
        %v3216 = vld [vmem:[%s237 + $0x5b28] sm:$0xff]
        %v3217 = vld [vmem:[%s237 + $0x5b30] sm:$0xff]
        %v3218 = vld [vmem:[%s237 + $0x5b38] sm:$0xff]
        %v3219 = vld [vmem:[%s237 + $0x5b40] sm:$0xff]
        %v3220 = vld [vmem:[%s237 + $0x5b48] sm:$0xff]
        %v3221 = vld [vmem:[%s237 + $0x5b50] sm:$0xff]
        %v3222 = vld [vmem:[%s237 + $0x5b58] sm:$0xff]
        %v3223 = vld [vmem:[%s237 + $0x5b60] sm:$0xff]
        %v3224 = vld [vmem:[%s237 + $0x5b68] sm:$0xff]
        %v3225 = vld [vmem:[%s237 + $0x5b70] sm:$0xff]
        %v3226 = vld [vmem:[%s237 + $0x5b78] sm:$0xff]
        %v3227 = vld [vmem:[%s237 + $0x5b80] sm:$0xff]
        %v3228 = vld [vmem:[%s237 + $0x5b88] sm:$0xff]
        %v3229 = vld [vmem:[%s237 + $0x5b90] sm:$0xff]
        %v3230 = vld [vmem:[%s237 + $0x5b98] sm:$0xff]
        %v3231 = vld [vmem:[%s237 + $0x5ba0] sm:$0xff]
        %v3232 = vld [vmem:[%s237 + $0x5ba8] sm:$0xff]
        %v3233 = vld [vmem:[%s237 + $0x5bb0] sm:$0xff]
        %v3234 = vld [vmem:[%s237 + $0x5bb8] sm:$0xff]
        %v3235 = vld [vmem:[%s237 + $0x5bc0] sm:$0xff]
        %v3236 = vld [vmem:[%s237 + $0x5bc8] sm:$0xff]
        %v3237 = vld [vmem:[%s237 + $0x5bd0] sm:$0xff]
        %v3238 = vld [vmem:[%s237 + $0x5bd8] sm:$0xff]
        %v3239 = vld [vmem:[%s237 + $0x5be0] sm:$0xff]
        %v3240 = vld [vmem:[%s237 + $0x5be8] sm:$0xff]
        %v3241 = vld [vmem:[%s237 + $0x5bf0] sm:$0xff]
        %v3242 = vld [vmem:[%s237 + $0x5bf8] sm:$0xff]
        %v3243 = vld [vmem:[%s237 + $0x5c00] sm:$0xff]
        %v3244 = vld [vmem:[%s237 + $0x5c08] sm:$0xff]
        %v3245 = vld [vmem:[%s237 + $0x5c10] sm:$0xff]
        %v3246 = vld [vmem:[%s237 + $0x5c18] sm:$0xff]
        %v3247 = vld [vmem:[%s237 + $0x5c20] sm:$0xff]
        %v3248 = vld [vmem:[%s237 + $0x5c28] sm:$0xff]
        %v3249 = vld [vmem:[%s237 + $0x5c30] sm:$0xff]
        %v3250 = vld [vmem:[%s237 + $0x5c38] sm:$0xff]
        %v3251 = vld [vmem:[%s237 + $0x5c40] sm:$0xff]
        %v3252 = vld [vmem:[%s237 + $0x5c48] sm:$0xff]
        %v3253 = vld [vmem:[%s237 + $0x5c50] sm:$0xff]
        %v3254 = vld [vmem:[%s237 + $0x5c58] sm:$0xff]
        %v3255 = vld [vmem:[%s237 + $0x5c60] sm:$0xff]
        %v3256 = vld [vmem:[%s237 + $0x5c68] sm:$0xff]
        %v3257 = vld [vmem:[%s237 + $0x5c70] sm:$0xff]
        %v3258 = vld [vmem:[%s237 + $0x5c78] sm:$0xff]
        %v3259 = vld [vmem:[%s237 + $0x5c80] sm:$0xff]
        %v3260 = vld [vmem:[%s237 + $0x5c88] sm:$0xff]
        %v3261 = vld [vmem:[%s237 + $0x5c90] sm:$0xff]
        %v3262 = vld [vmem:[%s237 + $0x5c98] sm:$0xff]
        %v3263 = vld [vmem:[%s237 + $0x5ca0] sm:$0xff]
        %v3264 = vld [vmem:[%s237 + $0x5ca8] sm:$0xff]
        %v3265 = vld [vmem:[%s237 + $0x5cb0] sm:$0xff]
        %v3266 = vld [vmem:[%s237 + $0x5cb8] sm:$0xff]
        %v3267 = vld [vmem:[%s237 + $0x5cc0] sm:$0xff]
        %v3268 = vld [vmem:[%s237 + $0x5cc8] sm:$0xff]
        %v3269 = vld [vmem:[%s237 + $0x5cd0] sm:$0xff]
        %v3270 = vld [vmem:[%s237 + $0x5cd8] sm:$0xff]
        %v3271 = vld [vmem:[%s237 + $0x5ce0] sm:$0xff]
        %v3272 = vld [vmem:[%s237 + $0x5ce8] sm:$0xff]
        %v3273 = vld [vmem:[%s237 + $0x5cf0] sm:$0xff]
        %v3274 = vld [vmem:[%s237 + $0x5cf8] sm:$0xff]
        %v3275 = vld [vmem:[%s237 + $0x5d00] sm:$0xff]
        %v3276 = vld [vmem:[%s237 + $0x5d08] sm:$0xff]
        %v3277 = vld [vmem:[%s237 + $0x5d10] sm:$0xff]
        %v3278 = vld [vmem:[%s237 + $0x5d18] sm:$0xff]
        %v3279 = vld [vmem:[%s237 + $0x5d20] sm:$0xff]
        %v3280 = vld [vmem:[%s237 + $0x5d28] sm:$0xff]
        %v3281 = vld [vmem:[%s237 + $0x5d30] sm:$0xff]
        %v3282 = vld [vmem:[%s237 + $0x5d38] sm:$0xff]
        %v3283 = vld [vmem:[%s237 + $0x5d40] sm:$0xff]
        %v3284 = vld [vmem:[%s237 + $0x5d48] sm:$0xff]
        %v3285 = vld [vmem:[%s237 + $0x5d50] sm:$0xff]
        %v3286 = vld [vmem:[%s237 + $0x5d58] sm:$0xff]
        %v3287 = vld [vmem:[%s237 + $0x5d60] sm:$0xff]
        %v3288 = vld [vmem:[%s237 + $0x5d68] sm:$0xff]
        %v3289 = vld [vmem:[%s237 + $0x5d70] sm:$0xff]
        %v3290 = vld [vmem:[%s237 + $0x5d78] sm:$0xff]
        %v3291 = vld [vmem:[%s237 + $0x5d80] sm:$0xff]
        %v3292 = vld [vmem:[%s237 + $0x5d88] sm:$0xff]
        %v3293 = vld [vmem:[%s237 + $0x5d90] sm:$0xff]
        %v3294 = vld [vmem:[%s237 + $0x5d98] sm:$0xff]
        %v3295 = vld [vmem:[%s237 + $0x5da0] sm:$0xff]
        %v3296 = vld [vmem:[%s237 + $0x5da8] sm:$0xff]
        %v3297 = vld [vmem:[%s237 + $0x5db0] sm:$0xff]
        %v3298 = vld [vmem:[%s237 + $0x5db8] sm:$0xff]
        %v3299 = vld [vmem:[%s237 + $0x5dc0] sm:$0xff]
        %v3300 = vld [vmem:[%s237 + $0x5dc8] sm:$0xff]
        %v3301 = vld [vmem:[%s237 + $0x5dd0] sm:$0xff]
        %v3302 = vld [vmem:[%s237 + $0x5dd8] sm:$0xff]
        %v3303 = vld [vmem:[%s237 + $0x5de0] sm:$0xff]
        %v3304 = vld [vmem:[%s237 + $0x5de8] sm:$0xff]
        %v3305 = vld [vmem:[%s237 + $0x5df0] sm:$0xff]
        %v3306 = vld [vmem:[%s237 + $0x5df8] sm:$0xff]
        %v3307 = vld [vmem:[%s237 + $0x5e00] sm:$0xff]
        %v3308 = vld [vmem:[%s237 + $0x5e08] sm:$0xff]
        %v3309 = vld [vmem:[%s237 + $0x5e10] sm:$0xff]
        %v3310 = vld [vmem:[%s237 + $0x5e18] sm:$0xff]
        %v3311 = vld [vmem:[%s237 + $0x5e20] sm:$0xff]
        %v3312 = vld [vmem:[%s237 + $0x5e28] sm:$0xff]
        %v3313 = vld [vmem:[%s237 + $0x5e30] sm:$0xff]
        %v3314 = vld [vmem:[%s237 + $0x5e38] sm:$0xff]
        %v3315 = vld [vmem:[%s237 + $0x5e40] sm:$0xff]
        %v3316 = vld [vmem:[%s237 + $0x5e48] sm:$0xff]
        %v3317 = vld [vmem:[%s237 + $0x5e50] sm:$0xff]
        %v3318 = vld [vmem:[%s237 + $0x5e58] sm:$0xff]
        %v3319 = vld [vmem:[%s237 + $0x5e60] sm:$0xff]
        %v3320 = vld [vmem:[%s237 + $0x5e68] sm:$0xff]
        %v3321 = vld [vmem:[%s237 + $0x5e70] sm:$0xff]
        %v3322 = vld [vmem:[%s237 + $0x5e78] sm:$0xff]
        %v3323 = vld [vmem:[%s237 + $0x5e80] sm:$0xff]
        %v3324 = vld [vmem:[%s237 + $0x5e88] sm:$0xff]
        %v3325 = vld [vmem:[%s237 + $0x5e90] sm:$0xff]
        %v3326 = vld [vmem:[%s237 + $0x5e98] sm:$0xff]
        %v3327 = vld [vmem:[%s237 + $0x5ea0] sm:$0xff]
        %v3328 = vld [vmem:[%s237 + $0x5ea8] sm:$0xff]
        %v3329 = vld [vmem:[%s237 + $0x5eb0] sm:$0xff]
        %v3330 = vld [vmem:[%s237 + $0x5eb8] sm:$0xff]
        %v3331 = vld [vmem:[%s237 + $0x5ec0] sm:$0xff]
        %v3332 = vld [vmem:[%s237 + $0x5ec8] sm:$0xff]
        %v3333 = vld [vmem:[%s237 + $0x5ed0] sm:$0xff]
        %v3334 = vld [vmem:[%s237 + $0x5ed8] sm:$0xff]
        %v3335 = vld [vmem:[%s237 + $0x5ee0] sm:$0xff]
        %v3336 = vld [vmem:[%s237 + $0x5ee8] sm:$0xff]
        %v3337 = vld [vmem:[%s237 + $0x5ef0] sm:$0xff]
        %v3338 = vld [vmem:[%s237 + $0x5ef8] sm:$0xff]
        %v3339 = vld [vmem:[%s237 + $0x5f00] sm:$0xff]
        %v3340 = vld [vmem:[%s237 + $0x5f08] sm:$0xff]
        %v3341 = vld [vmem:[%s237 + $0x5f10] sm:$0xff]
        %v3342 = vld [vmem:[%s237 + $0x5f18] sm:$0xff]
        %v3343 = vld [vmem:[%s237 + $0x5f20] sm:$0xff]
        %v3344 = vld [vmem:[%s237 + $0x5f28] sm:$0xff]
        %v3345 = vld [vmem:[%s237 + $0x5f30] sm:$0xff]
        %v3346 = vld [vmem:[%s237 + $0x5f38] sm:$0xff]
        %v3347 = vld [vmem:[%s237 + $0x5f40] sm:$0xff]
        %v3348 = vld [vmem:[%s237 + $0x5f48] sm:$0xff]
        %v3349 = vld [vmem:[%s237 + $0x5f50] sm:$0xff]
        %v3350 = vld [vmem:[%s237 + $0x5f58] sm:$0xff]
        %v3351 = vld [vmem:[%s237 + $0x5f60] sm:$0xff]
        %v3352 = vld [vmem:[%s237 + $0x5f68] sm:$0xff]
        %v3353 = vld [vmem:[%s237 + $0x5f70] sm:$0xff]
        %v3354 = vld [vmem:[%s237 + $0x5f78] sm:$0xff]
        %v3355 = vld [vmem:[%s237 + $0x5f80] sm:$0xff]
        %v3356 = vld [vmem:[%s237 + $0x5f88] sm:$0xff]
        %v3357 = vld [vmem:[%s237 + $0x5f90] sm:$0xff]
        %v3358 = vld [vmem:[%s237 + $0x5f98] sm:$0xff]
        %v3359 = vld [vmem:[%s237 + $0x5fa0] sm:$0xff]
        %v3360 = vld [vmem:[%s237 + $0x5fa8] sm:$0xff]
        %v3361 = vld [vmem:[%s237 + $0x5fb0] sm:$0xff]
        %v3362 = vld [vmem:[%s237 + $0x5fb8] sm:$0xff]
        %v3363 = vld [vmem:[%s237 + $0x5fc0] sm:$0xff]
        %v3364 = vld [vmem:[%s237 + $0x5fc8] sm:$0xff]
        %v3365 = vld [vmem:[%s237 + $0x5fd0] sm:$0xff]
        %v3366 = vld [vmem:[%s237 + $0x5fd8] sm:$0xff]
        %v3367 = vld [vmem:[%s237 + $0x5fe0] sm:$0xff]
        %v3368 = vld [vmem:[%s237 + $0x5fe8] sm:$0xff]
        %v3369 = vld [vmem:[%s237 + $0x5ff0] sm:$0xff]
        %v3370 = vld [vmem:[%s237 + $0x5ff8] sm:$0xff]
        %v3371 = vld [vmem:[%s237 + $0x6000] sm:$0xff]
        %v3372 = vld [vmem:[%s237 + $0x6008] sm:$0xff]
        %v3373 = vld [vmem:[%s237 + $0x6010] sm:$0xff]
        %v3374 = vld [vmem:[%s237 + $0x6018] sm:$0xff]
        %v3375 = vld [vmem:[%s237 + $0x6020] sm:$0xff]
        %v3376 = vld [vmem:[%s237 + $0x6028] sm:$0xff]
        %v3377 = vld [vmem:[%s237 + $0x6030] sm:$0xff]
        %v3378 = vld [vmem:[%s237 + $0x6038] sm:$0xff]
        %v3379 = vld [vmem:[%s237 + $0x6040] sm:$0xff]
        %v3380 = vld [vmem:[%s237 + $0x6048] sm:$0xff]
        %v3381 = vld [vmem:[%s237 + $0x6050] sm:$0xff]
        %v3382 = vld [vmem:[%s237 + $0x6058] sm:$0xff]
        %v3383 = vld [vmem:[%s237 + $0x6060] sm:$0xff]
        %v3384 = vld [vmem:[%s237 + $0x6068] sm:$0xff]
        %v3385 = vld [vmem:[%s237 + $0x6070] sm:$0xff]
        %v3386 = vld [vmem:[%s237 + $0x6078] sm:$0xff]
        %v3387 = vld [vmem:[%s237 + $0x6080] sm:$0xff]
        %v3388 = vld [vmem:[%s237 + $0x6088] sm:$0xff]
        %v3389 = vld [vmem:[%s237 + $0x6090] sm:$0xff]
        %v3390 = vld [vmem:[%s237 + $0x6098] sm:$0xff]
        %v3391 = vld [vmem:[%s237 + $0x60a0] sm:$0xff]
        %v3392 = vld [vmem:[%s237 + $0x60a8] sm:$0xff]
        %v3393 = vld [vmem:[%s237 + $0x60b0] sm:$0xff]
        %v3394 = vld [vmem:[%s237 + $0x60b8] sm:$0xff]
        %v3395 = vld [vmem:[%s237 + $0x60c0] sm:$0xff]
        %v3396 = vld [vmem:[%s237 + $0x60c8] sm:$0xff]
        %v3397 = vld [vmem:[%s237 + $0x60d0] sm:$0xff]
        %v3398 = vld [vmem:[%s237 + $0x60d8] sm:$0xff]
        %v3399 = vld [vmem:[%s237 + $0x60e0] sm:$0xff]
        %v3400 = vld [vmem:[%s237 + $0x60e8] sm:$0xff]
        %v3401 = vld [vmem:[%s237 + $0x60f0] sm:$0xff]
        %v3402 = vld [vmem:[%s237 + $0x60f8] sm:$0xff]
        %v3403 = vld [vmem:[%s237 + $0x6100] sm:$0xff]
        %v3404 = vld [vmem:[%s237 + $0x6108] sm:$0xff]
        %v3405 = vld [vmem:[%s237 + $0x6110] sm:$0xff]
        %v3406 = vld [vmem:[%s237 + $0x6118] sm:$0xff]
        %v3407 = vld [vmem:[%s237 + $0x6120] sm:$0xff]
        %v3408 = vld [vmem:[%s237 + $0x6128] sm:$0xff]
        %v3409 = vld [vmem:[%s237 + $0x6130] sm:$0xff]
        %v3410 = vld [vmem:[%s237 + $0x6138] sm:$0xff]
        %v3411 = vld [vmem:[%s237 + $0x6140] sm:$0xff]
        %v3412 = vld [vmem:[%s237 + $0x6148] sm:$0xff]
        %v3413 = vld [vmem:[%s237 + $0x6150] sm:$0xff]
        %v3414 = vld [vmem:[%s237 + $0x6158] sm:$0xff]
        %v3415 = vld [vmem:[%s237 + $0x6160] sm:$0xff]
        %v3416 = vld [vmem:[%s237 + $0x6168] sm:$0xff]
        %v3417 = vld [vmem:[%s237 + $0x6170] sm:$0xff]
        %v3418 = vld [vmem:[%s237 + $0x6178] sm:$0xff]
        %v3419 = vld [vmem:[%s237 + $0x6180] sm:$0xff]
        %v3420 = vld [vmem:[%s237 + $0x6188] sm:$0xff]
        %v3421 = vld [vmem:[%s237 + $0x6190] sm:$0xff]
        %v3422 = vld [vmem:[%s237 + $0x6198] sm:$0xff]
        %v3423 = vld [vmem:[%s237 + $0x61a0] sm:$0xff]
        %v3424 = vld [vmem:[%s237 + $0x61a8] sm:$0xff]
        %v3425 = vld [vmem:[%s237 + $0x61b0] sm:$0xff]
        %v3426 = vld [vmem:[%s237 + $0x61b8] sm:$0xff]
        %v3427 = vld [vmem:[%s237 + $0x61c0] sm:$0xff]
        %v3428 = vld [vmem:[%s237 + $0x61c8] sm:$0xff]
        %v3429 = vld [vmem:[%s237 + $0x61d0] sm:$0xff]
        %v3430 = vld [vmem:[%s237 + $0x61d8] sm:$0xff]
        %v3431 = vld [vmem:[%s237 + $0x61e0] sm:$0xff]
        %v3432 = vld [vmem:[%s237 + $0x61e8] sm:$0xff]
        %v3433 = vld [vmem:[%s237 + $0x61f0] sm:$0xff]
        %v3434 = vld [vmem:[%s237 + $0x61f8] sm:$0xff]
        %v3435 = vld [vmem:[%s237 + $0x6200] sm:$0xff]
        %v3436 = vld [vmem:[%s237 + $0x6208] sm:$0xff]
        %v3437 = vld [vmem:[%s237 + $0x6210] sm:$0xff]
        %v3438 = vld [vmem:[%s237 + $0x6218] sm:$0xff]
        %v3439 = vld [vmem:[%s237 + $0x6220] sm:$0xff]
        %v3440 = vld [vmem:[%s237 + $0x6228] sm:$0xff]
        %v3441 = vld [vmem:[%s237 + $0x6230] sm:$0xff]
        %v3442 = vld [vmem:[%s237 + $0x6238] sm:$0xff]
        %v3443 = vld [vmem:[%s237 + $0x6240] sm:$0xff]
        %v3444 = vld [vmem:[%s237 + $0x6248] sm:$0xff]
        %v3445 = vld [vmem:[%s237 + $0x6250] sm:$0xff]
        %v3446 = vld [vmem:[%s237 + $0x6258] sm:$0xff]
        %v3447 = vld [vmem:[%s237 + $0x6260] sm:$0xff]
        %v3448 = vld [vmem:[%s237 + $0x6268] sm:$0xff]
        %v3449 = vld [vmem:[%s237 + $0x6270] sm:$0xff]
        %v3450 = vld [vmem:[%s237 + $0x6278] sm:$0xff]
        %v3451 = vld [vmem:[%s237 + $0x6280] sm:$0xff]
        %v3452 = vld [vmem:[%s237 + $0x6288] sm:$0xff]
        %v3453 = vld [vmem:[%s237 + $0x6290] sm:$0xff]
        %v3454 = vld [vmem:[%s237 + $0x6298] sm:$0xff]
        %v3455 = vld [vmem:[%s237 + $0x62a0] sm:$0xff]
        %v3456 = vld [vmem:[%s237 + $0x62a8] sm:$0xff]
        %v3457 = vld [vmem:[%s237 + $0x62b0] sm:$0xff]
        %v3458 = vld [vmem:[%s237 + $0x62b8] sm:$0xff]
        %v3459 = vld [vmem:[%s237 + $0x62c0] sm:$0xff]
        %v3460 = vld [vmem:[%s237 + $0x62c8] sm:$0xff]
        %v3461 = vld [vmem:[%s237 + $0x62d0] sm:$0xff]
        %v3462 = vld [vmem:[%s237 + $0x62d8] sm:$0xff]
        %v3463 = vld [vmem:[%s237 + $0x62e0] sm:$0xff]
        %v3464 = vld [vmem:[%s237 + $0x62e8] sm:$0xff]
        %v3465 = vld [vmem:[%s237 + $0x62f0] sm:$0xff]
        %v3466 = vld [vmem:[%s237 + $0x62f8] sm:$0xff]
        %v3467 = vld [vmem:[%s237 + $0x6300] sm:$0xff]
        %v3468 = vld [vmem:[%s237 + $0x6308] sm:$0xff]
        %v3469 = vld [vmem:[%s237 + $0x6310] sm:$0xff]
        %v3470 = vld [vmem:[%s237 + $0x6318] sm:$0xff]
        %v3471 = vld [vmem:[%s237 + $0x6320] sm:$0xff]
        %v3472 = vld [vmem:[%s237 + $0x6328] sm:$0xff]
        %v3473 = vld [vmem:[%s237 + $0x6330] sm:$0xff]
        %v3474 = vld [vmem:[%s237 + $0x6338] sm:$0xff]
        %v3475 = vld [vmem:[%s237 + $0x6340] sm:$0xff]
        %v3476 = vld [vmem:[%s237 + $0x6348] sm:$0xff]
        %v3477 = vld [vmem:[%s237 + $0x6350] sm:$0xff]
        %v3478 = vld [vmem:[%s237 + $0x6358] sm:$0xff]
        %v3479 = vld [vmem:[%s237 + $0x6360] sm:$0xff]
        %v3480 = vld [vmem:[%s237 + $0x6368] sm:$0xff]
        %v3481 = vld [vmem:[%s237 + $0x6370] sm:$0xff]
        %v3482 = vld [vmem:[%s237 + $0x6378] sm:$0xff]
        %v3483 = vld [vmem:[%s237 + $0x6380] sm:$0xff]
        %v3484 = vld [vmem:[%s237 + $0x6388] sm:$0xff]
        %v3485 = vld [vmem:[%s237 + $0x6390] sm:$0xff]
        %v3486 = vld [vmem:[%s237 + $0x6398] sm:$0xff]
        %v3487 = vld [vmem:[%s237 + $0x63a0] sm:$0xff]
        %v3488 = vld [vmem:[%s237 + $0x63a8] sm:$0xff]
        %v3489 = vld [vmem:[%s237 + $0x63b0] sm:$0xff]
        %v3490 = vld [vmem:[%s237 + $0x63b8] sm:$0xff]
        %v3491 = vld [vmem:[%s237 + $0x63c0] sm:$0xff]
        %v3492 = vld [vmem:[%s237 + $0x63c8] sm:$0xff]
        %v3493 = vld [vmem:[%s237 + $0x63d0] sm:$0xff]
        %v3494 = vld [vmem:[%s237 + $0x63d8] sm:$0xff]
        %v3495 = vld [vmem:[%s237 + $0x63e0] sm:$0xff]
        %v3496 = vld [vmem:[%s237 + $0x63e8] sm:$0xff]
        %v3497 = vld [vmem:[%s237 + $0x63f0] sm:$0xff]
        %v3498 = vld [vmem:[%s237 + $0x63f8] sm:$0xff]
        %v3499 = vld [vmem:[%s237 + $0x6400] sm:$0xff]
        %v3500 = vld [vmem:[%s237 + $0x6408] sm:$0xff]
        %v3501 = vld [vmem:[%s237 + $0x6410] sm:$0xff]
        %v3502 = vld [vmem:[%s237 + $0x6418] sm:$0xff]
        %v3503 = vld [vmem:[%s237 + $0x6420] sm:$0xff]
        %v3504 = vld [vmem:[%s237 + $0x6428] sm:$0xff]
        %v3505 = vld [vmem:[%s237 + $0x6430] sm:$0xff]
        %v3506 = vld [vmem:[%s237 + $0x6438] sm:$0xff]
        %v3507 = vld [vmem:[%s237 + $0x6440] sm:$0xff]
        %v3508 = vld [vmem:[%s237 + $0x6448] sm:$0xff]
        %v3509 = vld [vmem:[%s237 + $0x6450] sm:$0xff]
        %v3510 = vld [vmem:[%s237 + $0x6458] sm:$0xff]
        %v3511 = vld [vmem:[%s237 + $0x6460] sm:$0xff]
        %v3512 = vld [vmem:[%s237 + $0x6468] sm:$0xff]
        %v3513 = vld [vmem:[%s237 + $0x6470] sm:$0xff]
        %v3514 = vld [vmem:[%s237 + $0x6478] sm:$0xff]
        %v3515 = vld [vmem:[%s237 + $0x6480] sm:$0xff]
        %v3516 = vld [vmem:[%s237 + $0x6488] sm:$0xff]
        %v3517 = vld [vmem:[%s237 + $0x6490] sm:$0xff]
        %v3518 = vld [vmem:[%s237 + $0x6498] sm:$0xff]
        %v3519 = vld [vmem:[%s237 + $0x64a0] sm:$0xff]
        %v3520 = vld [vmem:[%s237 + $0x64a8] sm:$0xff]
        %v3521 = vld [vmem:[%s237 + $0x64b0] sm:$0xff]
        %v3522 = vld [vmem:[%s237 + $0x64b8] sm:$0xff]
        %v3523 = vld [vmem:[%s237 + $0x64c0] sm:$0xff]
        %v3524 = vld [vmem:[%s237 + $0x64c8] sm:$0xff]
        %v3525 = vld [vmem:[%s237 + $0x64d0] sm:$0xff]
        %v3526 = vld [vmem:[%s237 + $0x64d8] sm:$0xff]
        %v3527 = vld [vmem:[%s237 + $0x64e0] sm:$0xff]
        %v3528 = vld [vmem:[%s237 + $0x64e8] sm:$0xff]
        %v3529 = vld [vmem:[%s237 + $0x64f0] sm:$0xff]
        %v3530 = vld [vmem:[%s237 + $0x64f8] sm:$0xff]
        %v3531 = vld [vmem:[%s237 + $0x6500] sm:$0xff]
        %v3532 = vld [vmem:[%s237 + $0x6508] sm:$0xff]
        %v3533 = vld [vmem:[%s237 + $0x6510] sm:$0xff]
        %v3534 = vld [vmem:[%s237 + $0x6518] sm:$0xff]
        %v3535 = vld [vmem:[%s237 + $0x6520] sm:$0xff]
        %v3536 = vld [vmem:[%s237 + $0x6528] sm:$0xff]
        %v3537 = vld [vmem:[%s237 + $0x6530] sm:$0xff]
        %v3538 = vld [vmem:[%s237 + $0x6538] sm:$0xff]
        %v3539 = vld [vmem:[%s237 + $0x6540] sm:$0xff]
        %v3540 = vld [vmem:[%s237 + $0x6548] sm:$0xff]
        %v3541 = vld [vmem:[%s237 + $0x6550] sm:$0xff]
        %v3542 = vld [vmem:[%s237 + $0x6558] sm:$0xff]
        %v3543 = vld [vmem:[%s237 + $0x6560] sm:$0xff]
        %v3544 = vld [vmem:[%s237 + $0x6568] sm:$0xff]
        %v3545 = vld [vmem:[%s237 + $0x6570] sm:$0xff]
        %v3546 = vld [vmem:[%s237 + $0x6578] sm:$0xff]
        %v3547 = vld [vmem:[%s237 + $0x6580] sm:$0xff]
        %v3548 = vld [vmem:[%s237 + $0x6588] sm:$0xff]
        %v3549 = vld [vmem:[%s237 + $0x6590] sm:$0xff]
        %v3550 = vld [vmem:[%s237 + $0x6598] sm:$0xff]
        %v3551 = vld [vmem:[%s237 + $0x65a0] sm:$0xff]
        %v3552 = vld [vmem:[%s237 + $0x65a8] sm:$0xff]
        %v3553 = vld [vmem:[%s237 + $0x65b0] sm:$0xff]
        %v3554 = vld [vmem:[%s237 + $0x65b8] sm:$0xff]
        %v3555 = vld [vmem:[%s237 + $0x65c0] sm:$0xff]
        %v3556 = vld [vmem:[%s237 + $0x65c8] sm:$0xff]
        %v3557 = vld [vmem:[%s237 + $0x65d0] sm:$0xff]
        %v3558 = vld [vmem:[%s237 + $0x65d8] sm:$0xff]
        %v3559 = vld [vmem:[%s237 + $0x65e0] sm:$0xff]
        %v3560 = vld [vmem:[%s237 + $0x65e8] sm:$0xff]
        %v3561 = vld [vmem:[%s237 + $0x65f0] sm:$0xff]
        %v3562 = vld [vmem:[%s237 + $0x65f8] sm:$0xff]
        %v3563 = vld [vmem:[%s237 + $0x6600] sm:$0xff]
        %v3564 = vld [vmem:[%s237 + $0x6608] sm:$0xff]
        %v3565 = vld [vmem:[%s237 + $0x6610] sm:$0xff]
        %v3566 = vld [vmem:[%s237 + $0x6618] sm:$0xff]
        %v3567 = vld [vmem:[%s237 + $0x6620] sm:$0xff]
        %v3568 = vld [vmem:[%s237 + $0x6628] sm:$0xff]
        %v3569 = vld [vmem:[%s237 + $0x6630] sm:$0xff]
        %v3570 = vld [vmem:[%s237 + $0x6638] sm:$0xff]
        %v3571 = vld [vmem:[%s237 + $0x6640] sm:$0xff]
        %v3572 = vld [vmem:[%s237 + $0x6648] sm:$0xff]
        %v3573 = vld [vmem:[%s237 + $0x6650] sm:$0xff]
        %v3574 = vld [vmem:[%s237 + $0x6658] sm:$0xff]
        %v3575 = vld [vmem:[%s237 + $0x6660] sm:$0xff]
        %v3576 = vld [vmem:[%s237 + $0x6668] sm:$0xff]
        %v3577 = vld [vmem:[%s237 + $0x6670] sm:$0xff]
        %v3578 = vld [vmem:[%s237 + $0x6678] sm:$0xff]
        %v3579 = vld [vmem:[%s237 + $0x6680] sm:$0xff]
        %v3580 = vld [vmem:[%s237 + $0x6688] sm:$0xff]
        %v3581 = vld [vmem:[%s237 + $0x6690] sm:$0xff]
        %v3582 = vld [vmem:[%s237 + $0x6698] sm:$0xff]
        %v3583 = vld [vmem:[%s237 + $0x66a0] sm:$0xff]
        %v3584 = vld [vmem:[%s237 + $0x66a8] sm:$0xff]
        %v3585 = vld [vmem:[%s237 + $0x66b0] sm:$0xff]
        %v3586 = vld [vmem:[%s237 + $0x66b8] sm:$0xff]
        %v3587 = vld [vmem:[%s237 + $0x66c0] sm:$0xff]
        %v3588 = vld [vmem:[%s237 + $0x66c8] sm:$0xff]
        %v3589 = vld [vmem:[%s237 + $0x66d0] sm:$0xff]
        %v3590 = vld [vmem:[%s237 + $0x66d8] sm:$0xff]
        %v3591 = vld [vmem:[%s237 + $0x66e0] sm:$0xff]
        %v3592 = vld [vmem:[%s237 + $0x66e8] sm:$0xff]
        %v3593 = vld [vmem:[%s237 + $0x66f0] sm:$0xff]
        %v3594 = vld [vmem:[%s237 + $0x66f8] sm:$0xff]
        %v3595 = vld [vmem:[%s237 + $0x6700] sm:$0xff]
        %v3596 = vld [vmem:[%s237 + $0x6708] sm:$0xff]
        %v3597 = vld [vmem:[%s237 + $0x6710] sm:$0xff]
        %v3598 = vld [vmem:[%s237 + $0x6718] sm:$0xff]
        %v3599 = vld [vmem:[%s237 + $0x6720] sm:$0xff]
        %v3600 = vld [vmem:[%s237 + $0x6728] sm:$0xff]
        %v3601 = vld [vmem:[%s237 + $0x6730] sm:$0xff]
        %v3602 = vld [vmem:[%s237 + $0x6738] sm:$0xff]
        %v3603 = vld [vmem:[%s237 + $0x6740] sm:$0xff]
        %v3604 = vld [vmem:[%s237 + $0x6748] sm:$0xff]
        %v3605 = vld [vmem:[%s237 + $0x6750] sm:$0xff]
        %v3606 = vld [vmem:[%s237 + $0x6758] sm:$0xff]
        %v3607 = vld [vmem:[%s237 + $0x6760] sm:$0xff]
        %v3608 = vld [vmem:[%s237 + $0x6768] sm:$0xff]
        %v3609 = vld [vmem:[%s237 + $0x6770] sm:$0xff]
        %v3610 = vld [vmem:[%s237 + $0x6778] sm:$0xff]
        %v3611 = vld [vmem:[%s237 + $0x6780] sm:$0xff]
        %v3612 = vld [vmem:[%s237 + $0x6788] sm:$0xff]
        %v3613 = vld [vmem:[%s237 + $0x6790] sm:$0xff]
        %v3614 = vld [vmem:[%s237 + $0x6798] sm:$0xff]
        %v3615 = vld [vmem:[%s237 + $0x67a0] sm:$0xff]
        %v3616 = vld [vmem:[%s237 + $0x67a8] sm:$0xff]
        %v3617 = vld [vmem:[%s237 + $0x67b0] sm:$0xff]
        %v3618 = vld [vmem:[%s237 + $0x67b8] sm:$0xff]
        %v3619 = vld [vmem:[%s237 + $0x67c0] sm:$0xff]
        %v3620 = vld [vmem:[%s237 + $0x67c8] sm:$0xff]
        %v3621 = vld [vmem:[%s237 + $0x67d0] sm:$0xff]
        %v3622 = vld [vmem:[%s237 + $0x67d8] sm:$0xff]
        %v3623 = vld [vmem:[%s237 + $0x67e0] sm:$0xff]
        %v3624 = vld [vmem:[%s237 + $0x67e8] sm:$0xff]
        %v3625 = vld [vmem:[%s237 + $0x67f0] sm:$0xff]
        %v3626 = vld [vmem:[%s237 + $0x67f8] sm:$0xff]
        %v3627 = vld [vmem:[%s237 + $0x6800] sm:$0xff]
        %v3628 = vld [vmem:[%s237 + $0x6808] sm:$0xff]
        %v3629 = vld [vmem:[%s237 + $0x6810] sm:$0xff]
        %v3630 = vld [vmem:[%s237 + $0x6818] sm:$0xff]
        %v3631 = vld [vmem:[%s237 + $0x6820] sm:$0xff]
        %v3632 = vld [vmem:[%s237 + $0x6828] sm:$0xff]
        %v3633 = vld [vmem:[%s237 + $0x6830] sm:$0xff]
        %v3634 = vld [vmem:[%s237 + $0x6838] sm:$0xff]
        %v3635 = vld [vmem:[%s237 + $0x6840] sm:$0xff]
        %v3636 = vld [vmem:[%s237 + $0x6848] sm:$0xff]
        %v3637 = vld [vmem:[%s237 + $0x6850] sm:$0xff]
        %v3638 = vld [vmem:[%s237 + $0x6858] sm:$0xff]
        %v3639 = vld [vmem:[%s237 + $0x6860] sm:$0xff]
        %v3640 = vld [vmem:[%s237 + $0x6868] sm:$0xff]
        %v3641 = vld [vmem:[%s237 + $0x6870] sm:$0xff]
        %v3642 = vld [vmem:[%s237 + $0x6878] sm:$0xff]
        %v3643 = vld [vmem:[%s237 + $0x6880] sm:$0xff]
        %v3644 = vld [vmem:[%s237 + $0x6888] sm:$0xff]
        %v3645 = vld [vmem:[%s237 + $0x6890] sm:$0xff]
        %v3646 = vld [vmem:[%s237 + $0x6898] sm:$0xff]
        %v3647 = vld [vmem:[%s237 + $0x68a0] sm:$0xff]
        %v3648 = vld [vmem:[%s237 + $0x68a8] sm:$0xff]
        %v3649 = vld [vmem:[%s237 + $0x68b0] sm:$0xff]
        %v3650 = vld [vmem:[%s237 + $0x68b8] sm:$0xff]
        %v3651 = vld [vmem:[%s237 + $0x68c0] sm:$0xff]
        %v3652 = vld [vmem:[%s237 + $0x68c8] sm:$0xff]
        %v3653 = vld [vmem:[%s237 + $0x68d0] sm:$0xff]
        %v3654 = vld [vmem:[%s237 + $0x68d8] sm:$0xff]
        %v3655 = vld [vmem:[%s237 + $0x68e0] sm:$0xff]
        %v3656 = vld [vmem:[%s237 + $0x68e8] sm:$0xff]
        %v3657 = vld [vmem:[%s237 + $0x68f0] sm:$0xff]
        %v3658 = vld [vmem:[%s237 + $0x68f8] sm:$0xff]
        %v3659 = vld [vmem:[%s237 + $0x6900] sm:$0xff]
        %v3660 = vld [vmem:[%s237 + $0x6908] sm:$0xff]
        %v3661 = vld [vmem:[%s237 + $0x6910] sm:$0xff]
        %v3662 = vld [vmem:[%s237 + $0x6918] sm:$0xff]
        %v3663 = vld [vmem:[%s237 + $0x6920] sm:$0xff]
        %v3664 = vld [vmem:[%s237 + $0x6928] sm:$0xff]
        %v3665 = vld [vmem:[%s237 + $0x6930] sm:$0xff]
        %v3666 = vld [vmem:[%s237 + $0x6938] sm:$0xff]
        %v3667 = vld [vmem:[%s237 + $0x6940] sm:$0xff]
        %v3668 = vld [vmem:[%s237 + $0x6948] sm:$0xff]
        %v3669 = vld [vmem:[%s237 + $0x6950] sm:$0xff]
        %v3670 = vld [vmem:[%s237 + $0x6958] sm:$0xff]
        %v3671 = vld [vmem:[%s237 + $0x6960] sm:$0xff]
        %v3672 = vld [vmem:[%s237 + $0x6968] sm:$0xff]
        %v3673 = vld [vmem:[%s237 + $0x6970] sm:$0xff]
        %v3674 = vld [vmem:[%s237 + $0x6978] sm:$0xff]
        %v3675 = vld [vmem:[%s237 + $0x6980] sm:$0xff]
        %v3676 = vld [vmem:[%s237 + $0x6988] sm:$0xff]
        %v3677 = vld [vmem:[%s237 + $0x6990] sm:$0xff]
        %v3678 = vld [vmem:[%s237 + $0x6998] sm:$0xff]
        %v3679 = vld [vmem:[%s237 + $0x69a0] sm:$0xff]
        %v3680 = vld [vmem:[%s237 + $0x69a8] sm:$0xff]
        %v3681 = vld [vmem:[%s237 + $0x69b0] sm:$0xff]
        %v3682 = vld [vmem:[%s237 + $0x69b8] sm:$0xff]
        %v3683 = vld [vmem:[%s237 + $0x69c0] sm:$0xff]
        %v3684 = vld [vmem:[%s237 + $0x69c8] sm:$0xff]
        %v3685 = vld [vmem:[%s237 + $0x69d0] sm:$0xff]
        %v3686 = vld [vmem:[%s237 + $0x69d8] sm:$0xff]
        %v3687 = vld [vmem:[%s237 + $0x69e0] sm:$0xff]
        %v3688 = vld [vmem:[%s237 + $0x69e8] sm:$0xff]
        %v3689 = vld [vmem:[%s237 + $0x69f0] sm:$0xff]
        %v3690 = vld [vmem:[%s237 + $0x69f8] sm:$0xff]
        %v3691 = vld [vmem:[%s237 + $0x6a00] sm:$0xff]
        %v3692 = vld [vmem:[%s237 + $0x6a08] sm:$0xff]
        %v3693 = vld [vmem:[%s237 + $0x6a10] sm:$0xff]
        %v3694 = vld [vmem:[%s237 + $0x6a18] sm:$0xff]
        %v3695 = vld [vmem:[%s237 + $0x6a20] sm:$0xff]
        %v3696 = vld [vmem:[%s237 + $0x6a28] sm:$0xff]
        %v3697 = vld [vmem:[%s237 + $0x6a30] sm:$0xff]
        %v3698 = vld [vmem:[%s237 + $0x6a38] sm:$0xff]
        %v3699 = vld [vmem:[%s237 + $0x6a40] sm:$0xff]
        %v3700 = vld [vmem:[%s237 + $0x6a48] sm:$0xff]
        %v3701 = vld [vmem:[%s237 + $0x6a50] sm:$0xff]
        %v3702 = vld [vmem:[%s237 + $0x6a58] sm:$0xff]
        %v3703 = vld [vmem:[%s237 + $0x6a60] sm:$0xff]
        %v3704 = vld [vmem:[%s237 + $0x6a68] sm:$0xff]
        %v3705 = vld [vmem:[%s237 + $0x6a70] sm:$0xff]
        %v3706 = vld [vmem:[%s237 + $0x6a78] sm:$0xff]
        %v3707 = vld [vmem:[%s237 + $0x6a80] sm:$0xff]
        %v3708 = vld [vmem:[%s237 + $0x6a88] sm:$0xff]
        %v3709 = vld [vmem:[%s237 + $0x6a90] sm:$0xff]
        %v3710 = vld [vmem:[%s237 + $0x6a98] sm:$0xff]
        %v3711 = vld [vmem:[%s237 + $0x6aa0] sm:$0xff]
        %v3712 = vld [vmem:[%s237 + $0x6aa8] sm:$0xff]
        %v3713 = vld [vmem:[%s237 + $0x6ab0] sm:$0xff]
        %v3714 = vld [vmem:[%s237 + $0x6ab8] sm:$0xff]
        %v3715 = vld [vmem:[%s237 + $0x6ac0] sm:$0xff]
        %v3716 = vld [vmem:[%s237 + $0x6ac8] sm:$0xff]
        %v3717 = vld [vmem:[%s237 + $0x6ad0] sm:$0xff]
        %v3718 = vld [vmem:[%s237 + $0x6ad8] sm:$0xff]
        %v3719 = vld [vmem:[%s237 + $0x6ae0] sm:$0xff]
        %v3720 = vld [vmem:[%s237 + $0x6ae8] sm:$0xff]
        %v3721 = vld [vmem:[%s237 + $0x6af0] sm:$0xff]
        %v3722 = vld [vmem:[%s237 + $0x6af8] sm:$0xff]
        %v3723 = vld [vmem:[%s237 + $0x6b00] sm:$0xff]
        %v3724 = vld [vmem:[%s237 + $0x6b08] sm:$0xff]
        %v3725 = vld [vmem:[%s237 + $0x6b10] sm:$0xff]
        %v3726 = vld [vmem:[%s237 + $0x6b18] sm:$0xff]
        %v3727 = vld [vmem:[%s237 + $0x6b20] sm:$0xff]
        %v3728 = vld [vmem:[%s237 + $0x6b28] sm:$0xff]
        %v3729 = vld [vmem:[%s237 + $0x6b30] sm:$0xff]
        %v3730 = vld [vmem:[%s237 + $0x6b38] sm:$0xff]
        %v3731 = vld [vmem:[%s237 + $0x6b40] sm:$0xff]
        %v3732 = vld [vmem:[%s237 + $0x6b48] sm:$0xff]
        %v3733 = vld [vmem:[%s237 + $0x6b50] sm:$0xff]
        %v3734 = vld [vmem:[%s237 + $0x6b58] sm:$0xff]
        %v3735 = vld [vmem:[%s237 + $0x6b60] sm:$0xff]
        %v3736 = vld [vmem:[%s237 + $0x6b68] sm:$0xff]
        %v3737 = vld [vmem:[%s237 + $0x6b70] sm:$0xff]
        %v3738 = vld [vmem:[%s237 + $0x6b78] sm:$0xff]
        %v3739 = vld [vmem:[%s237 + $0x6b80] sm:$0xff]
        %v3740 = vld [vmem:[%s237 + $0x6b88] sm:$0xff]
        %v3741 = vld [vmem:[%s237 + $0x6b90] sm:$0xff]
        %v3742 = vld [vmem:[%s237 + $0x6b98] sm:$0xff]
        %v3743 = vld [vmem:[%s237 + $0x6ba0] sm:$0xff]
        %v3744 = vld [vmem:[%s237 + $0x6ba8] sm:$0xff]
        %v3745 = vld [vmem:[%s237 + $0x6bb0] sm:$0xff]
        %v3746 = vld [vmem:[%s237 + $0x6bb8] sm:$0xff]
        %v3747 = vld [vmem:[%s237 + $0x6bc0] sm:$0xff]
        %v3748 = vld [vmem:[%s237 + $0x6bc8] sm:$0xff]
        %v3749 = vld [vmem:[%s237 + $0x6bd0] sm:$0xff]
        %v3750 = vld [vmem:[%s237 + $0x6bd8] sm:$0xff]
        %v3751 = vld [vmem:[%s237 + $0x6be0] sm:$0xff]
        %v3752 = vld [vmem:[%s237 + $0x6be8] sm:$0xff]
        %v3753 = vld [vmem:[%s237 + $0x6bf0] sm:$0xff]
        %v3754 = vld [vmem:[%s237 + $0x6bf8] sm:$0xff]
        %v3755 = vld [vmem:[%s237 + $0x6c00] sm:$0xff]
        %v3756 = vld [vmem:[%s237 + $0x6c08] sm:$0xff]
        %v3757 = vld [vmem:[%s237 + $0x6c10] sm:$0xff]
        %v3758 = vld [vmem:[%s237 + $0x6c18] sm:$0xff]
        %v3759 = vld [vmem:[%s237 + $0x6c20] sm:$0xff]
        %v3760 = vld [vmem:[%s237 + $0x6c28] sm:$0xff]
        %v3761 = vld [vmem:[%s237 + $0x6c30] sm:$0xff]
        %v3762 = vld [vmem:[%s237 + $0x6c38] sm:$0xff]
        %v3763 = vld [vmem:[%s237 + $0x6c40] sm:$0xff]
        %v3764 = vld [vmem:[%s237 + $0x6c48] sm:$0xff]
        %v3765 = vld [vmem:[%s237 + $0x6c50] sm:$0xff]
        %v3766 = vld [vmem:[%s237 + $0x6c58] sm:$0xff]
        %v3767 = vld [vmem:[%s237 + $0x6c60] sm:$0xff]
        %v3768 = vld [vmem:[%s237 + $0x6c68] sm:$0xff]
        %v3769 = vld [vmem:[%s237 + $0x6c70] sm:$0xff]
        %v3770 = vld [vmem:[%s237 + $0x6c78] sm:$0xff]
        %v3771 = vld [vmem:[%s237 + $0x6c80] sm:$0xff]
        %v3772 = vld [vmem:[%s237 + $0x6c88] sm:$0xff]
        %v3773 = vld [vmem:[%s237 + $0x6c90] sm:$0xff]
        %v3774 = vld [vmem:[%s237 + $0x6c98] sm:$0xff]
        %v3775 = vld [vmem:[%s237 + $0x6ca0] sm:$0xff]
        %v3776 = vld [vmem:[%s237 + $0x6ca8] sm:$0xff]
        %v3777 = vld [vmem:[%s237 + $0x6cb0] sm:$0xff]
        %v3778 = vld [vmem:[%s237 + $0x6cb8] sm:$0xff]
        %v3779 = vld [vmem:[%s237 + $0x6cc0] sm:$0xff]
        %v3780 = vld [vmem:[%s237 + $0x6cc8] sm:$0xff]
        %v3781 = vld [vmem:[%s237 + $0x6cd0] sm:$0xff]
        %v3782 = vld [vmem:[%s237 + $0x6cd8] sm:$0xff]
        %v3783 = vld [vmem:[%s237 + $0x6ce0] sm:$0xff]
        %v3784 = vld [vmem:[%s237 + $0x6ce8] sm:$0xff]
        %v3785 = vld [vmem:[%s237 + $0x6cf0] sm:$0xff]
        %v3786 = vld [vmem:[%s237 + $0x6cf8] sm:$0xff]
        %v3787 = vld [vmem:[%s237 + $0x6d00] sm:$0xff]
        %v3788 = vld [vmem:[%s237 + $0x6d08] sm:$0xff]
        %v3789 = vld [vmem:[%s237 + $0x6d10] sm:$0xff]
        %v3790 = vld [vmem:[%s237 + $0x6d18] sm:$0xff]
        %v3791 = vld [vmem:[%s237 + $0x6d20] sm:$0xff]
        %v3792 = vld [vmem:[%s237 + $0x6d28] sm:$0xff]
        %v3793 = vld [vmem:[%s237 + $0x6d30] sm:$0xff]
        %v3794 = vld [vmem:[%s237 + $0x6d38] sm:$0xff]
        %v3795 = vld [vmem:[%s237 + $0x6d40] sm:$0xff]
        %v3796 = vld [vmem:[%s237 + $0x6d48] sm:$0xff]
        %v3797 = vld [vmem:[%s237 + $0x6d50] sm:$0xff]
        %v3798 = vld [vmem:[%s237 + $0x6d58] sm:$0xff]
        %v3799 = vld [vmem:[%s237 + $0x6d60] sm:$0xff]
        %v3800 = vld [vmem:[%s237 + $0x6d68] sm:$0xff]
        %v3801 = vld [vmem:[%s237 + $0x6d70] sm:$0xff]
        %v3802 = vld [vmem:[%s237 + $0x6d78] sm:$0xff]
        %v3803 = vld [vmem:[%s237 + $0x6d80] sm:$0xff]
        %v3804 = vld [vmem:[%s237 + $0x6d88] sm:$0xff]
        %v3805 = vld [vmem:[%s237 + $0x6d90] sm:$0xff]
        %v3806 = vld [vmem:[%s237 + $0x6d98] sm:$0xff]
        %v3807 = vld [vmem:[%s237 + $0x6da0] sm:$0xff]
        %v3808 = vld [vmem:[%s237 + $0x6da8] sm:$0xff]
        %v3809 = vld [vmem:[%s237 + $0x6db0] sm:$0xff]
        %v3810 = vld [vmem:[%s237 + $0x6db8] sm:$0xff]
        %v3811 = vld [vmem:[%s237 + $0x6dc0] sm:$0xff]
        %v3812 = vld [vmem:[%s237 + $0x6dc8] sm:$0xff]
        %v3813 = vld [vmem:[%s237 + $0x6dd0] sm:$0xff]
        %v3814 = vld [vmem:[%s237 + $0x6dd8] sm:$0xff]
        %v3815 = vld [vmem:[%s237 + $0x6de0] sm:$0xff]
        %v3816 = vld [vmem:[%s237 + $0x6de8] sm:$0xff]
        %v3817 = vld [vmem:[%s237 + $0x6df0] sm:$0xff]
        %v3818 = vld [vmem:[%s237 + $0x6df8] sm:$0xff]
        %v3819 = vld [vmem:[%s237 + $0x6e00] sm:$0xff]
        %v3820 = vld [vmem:[%s237 + $0x6e08] sm:$0xff]
        %v3821 = vld [vmem:[%s237 + $0x6e10] sm:$0xff]
        %v3822 = vld [vmem:[%s237 + $0x6e18] sm:$0xff]
        %v3823 = vld [vmem:[%s237 + $0x6e20] sm:$0xff]
        %v3824 = vld [vmem:[%s237 + $0x6e28] sm:$0xff]
        %v3825 = vld [vmem:[%s237 + $0x6e30] sm:$0xff]
        %v3826 = vld [vmem:[%s237 + $0x6e38] sm:$0xff]
        %v3827 = vld [vmem:[%s237 + $0x6e40] sm:$0xff]
        %v3828 = vld [vmem:[%s237 + $0x6e48] sm:$0xff]
        %v3829 = vld [vmem:[%s237 + $0x6e50] sm:$0xff]
        %v3830 = vld [vmem:[%s237 + $0x6e58] sm:$0xff]
        %v3831 = vld [vmem:[%s237 + $0x6e60] sm:$0xff]
        %v3832 = vld [vmem:[%s237 + $0x6e68] sm:$0xff]
        %v3833 = vld [vmem:[%s237 + $0x6e70] sm:$0xff]
        %v3834 = vld [vmem:[%s237 + $0x6e78] sm:$0xff]
        %v3835 = vld [vmem:[%s237 + $0x6e80] sm:$0xff]
        %v3836 = vld [vmem:[%s237 + $0x6e88] sm:$0xff]
        %v3837 = vld [vmem:[%s237 + $0x6e90] sm:$0xff]
        %v3838 = vld [vmem:[%s237 + $0x6e98] sm:$0xff]
        %v3839 = vld [vmem:[%s237 + $0x6ea0] sm:$0xff]
        %v3840 = vld [vmem:[%s237 + $0x6ea8] sm:$0xff]
        %v3841 = vld [vmem:[%s237 + $0x6eb0] sm:$0xff]
        %v3842 = vld [vmem:[%s237 + $0x6eb8] sm:$0xff]
        %v3843 = vld [vmem:[%s237 + $0x6ec0] sm:$0xff]
        %v3844 = vld [vmem:[%s237 + $0x6ec8] sm:$0xff]
        %v3845 = vld [vmem:[%s237 + $0x6ed0] sm:$0xff]
        %v3846 = vld [vmem:[%s237 + $0x6ed8] sm:$0xff]
        %v3847 = vld [vmem:[%s237 + $0x6ee0] sm:$0xff]
        %v3848 = vld [vmem:[%s237 + $0x6ee8] sm:$0xff]
        %v3849 = vld [vmem:[%s237 + $0x6ef0] sm:$0xff]
        %v3850 = vld [vmem:[%s237 + $0x6ef8] sm:$0xff]
        %v3851 = vld [vmem:[%s237 + $0x6f00] sm:$0xff]
        %v3852 = vld [vmem:[%s237 + $0x6f08] sm:$0xff]
        %v3853 = vld [vmem:[%s237 + $0x6f10] sm:$0xff]
        %v3854 = vld [vmem:[%s237 + $0x6f18] sm:$0xff]
        %v3855 = vld [vmem:[%s237 + $0x6f20] sm:$0xff]
        %v3856 = vld [vmem:[%s237 + $0x6f28] sm:$0xff]
        %v3857 = vld [vmem:[%s237 + $0x6f30] sm:$0xff]
        %v3858 = vld [vmem:[%s237 + $0x6f38] sm:$0xff]
        %v3859 = vld [vmem:[%s237 + $0x6f40] sm:$0xff]
        %v3860 = vld [vmem:[%s237 + $0x6f48] sm:$0xff]
        %v3861 = vld [vmem:[%s237 + $0x6f50] sm:$0xff]
        %v3862 = vld [vmem:[%s237 + $0x6f58] sm:$0xff]
        %v3863 = vld [vmem:[%s237 + $0x6f60] sm:$0xff]
        %v3864 = vld [vmem:[%s237 + $0x6f68] sm:$0xff]
        %v3865 = vld [vmem:[%s237 + $0x6f70] sm:$0xff]
        %v3866 = vld [vmem:[%s237 + $0x6f78] sm:$0xff]
        %v3867 = vld [vmem:[%s237 + $0x6f80] sm:$0xff]
        %v3868 = vld [vmem:[%s237 + $0x6f88] sm:$0xff]
        %v3869 = vld [vmem:[%s237 + $0x6f90] sm:$0xff]
        %v3870 = vld [vmem:[%s237 + $0x6f98] sm:$0xff]
        %v3871 = vld [vmem:[%s237 + $0x6fa0] sm:$0xff]
        %v3872 = vld [vmem:[%s237 + $0x6fa8] sm:$0xff]
        %v3873 = vld [vmem:[%s237 + $0x6fb0] sm:$0xff]
        %v3874 = vld [vmem:[%s237 + $0x6fb8] sm:$0xff]
        %v3875 = vld [vmem:[%s237 + $0x6fc0] sm:$0xff]
        %v3876 = vld [vmem:[%s237 + $0x6fc8] sm:$0xff]
        %v3877 = vld [vmem:[%s237 + $0x6fd0] sm:$0xff]
        %v3878 = vld [vmem:[%s237 + $0x6fd8] sm:$0xff]
        %v3879 = vld [vmem:[%s237 + $0x6fe0] sm:$0xff]
        %v3880 = vld [vmem:[%s237 + $0x6fe8] sm:$0xff]
        %v3881 = vld [vmem:[%s237 + $0x6ff0] sm:$0xff]
        %v3882 = vld [vmem:[%s237 + $0x6ff8] sm:$0xff]
        %v3890 = vcombine.high %v292, %v292
        %v3892 = vunpack.c.l.s4 1983009808
        %v3893 = vunpack.c.0.s8 %v3892
        %v3894 = vlaneseq
        %v3895 = vshrl.u32 %v3894, 7
        %v3896 = vsub.s32 %v3893, %v3895
        %v3897 = vrot.slane %v292, %v3896
        %v3899 = vunpack.c.l.s4 1983009808
        %v3900 = vunpack.c.0.s8 %v3899
        %v3901 = vlaneseq
        %v3902 = vshrl.u32 %v3901, 7
        %v3903 = vsub.s32 %v3900, %v3902
        %v3904 = vrot.slane %v3890, %v3903
        %v3905 = vcombine.high %v3897, %v3897
        %v3906 = vcombine.high %v3904, %v3904
        %v3907 = vcombine.high %v293, %v293
        %v3909 = vunpack.c.l.s4 1983009808
        %v3910 = vunpack.c.0.s8 %v3909
        %v3911 = vlaneseq
        %v3912 = vshrl.u32 %v3911, 7
        %v3913 = vsub.s32 %v3910, %v3912
        %v3914 = vrot.slane %v293, %v3913
        %v3916 = vunpack.c.l.s4 1983009808
        %v3917 = vunpack.c.0.s8 %v3916
        %v3918 = vlaneseq
        %v3919 = vshrl.u32 %v3918, 7
        %v3920 = vsub.s32 %v3917, %v3919
        %v3921 = vrot.slane %v3907, %v3920
        %v3922 = vcombine.high %v3914, %v3914
        %v3923 = vcombine.high %v3921, %v3921
        %v3924 = vcombine.high %v294, %v294
        %v3926 = vunpack.c.l.s4 1983009808
        %v3927 = vunpack.c.0.s8 %v3926
        %v3928 = vlaneseq
        %v3929 = vshrl.u32 %v3928, 7
        %v3930 = vsub.s32 %v3927, %v3929
        %v3931 = vrot.slane %v294, %v3930
        %v3933 = vunpack.c.l.s4 1983009808
        %v3934 = vunpack.c.0.s8 %v3933
        %v3935 = vlaneseq
        %v3936 = vshrl.u32 %v3935, 7
        %v3937 = vsub.s32 %v3934, %v3936
        %v3938 = vrot.slane %v3924, %v3937
        %v3939 = vcombine.high %v3931, %v3931
        %v3940 = vcombine.high %v3938, %v3938
        %v3941 = vcombine.high %v295, %v295
        %v3943 = vunpack.c.l.s4 1983009808
        %v3944 = vunpack.c.0.s8 %v3943
        %v3945 = vlaneseq
        %v3946 = vshrl.u32 %v3945, 7
        %v3947 = vsub.s32 %v3944, %v3946
        %v3948 = vrot.slane %v295, %v3947
        %v3950 = vunpack.c.l.s4 1983009808
        %v3951 = vunpack.c.0.s8 %v3950
        %v3952 = vlaneseq
        %v3953 = vshrl.u32 %v3952, 7
        %v3954 = vsub.s32 %v3951, %v3953
        %v3955 = vrot.slane %v3941, %v3954
        %v3956 = vcombine.high %v3948, %v3948
        %v3957 = vcombine.high %v3955, %v3955
        %v3958 = vcombine.high %v296, %v296
        %v3960 = vunpack.c.l.s4 1983009808
        %v3961 = vunpack.c.0.s8 %v3960
        %v3962 = vlaneseq
        %v3963 = vshrl.u32 %v3962, 7
        %v3964 = vsub.s32 %v3961, %v3963
        %v3965 = vrot.slane %v296, %v3964
        %v3967 = vunpack.c.l.s4 1983009808
        %v3968 = vunpack.c.0.s8 %v3967
        %v3969 = vlaneseq
        %v3970 = vshrl.u32 %v3969, 7
        %v3971 = vsub.s32 %v3968, %v3970
        %v3972 = vrot.slane %v3958, %v3971
        %v3973 = vcombine.high %v3965, %v3965
        %v3974 = vcombine.high %v3972, %v3972
        %v3975 = vcombine.high %v297, %v297
        %v3977 = vunpack.c.l.s4 1983009808
        %v3978 = vunpack.c.0.s8 %v3977
        %v3979 = vlaneseq
        %v3980 = vshrl.u32 %v3979, 7
        %v3981 = vsub.s32 %v3978, %v3980
        %v3982 = vrot.slane %v297, %v3981
        %v3984 = vunpack.c.l.s4 1983009808
        %v3985 = vunpack.c.0.s8 %v3984
        %v3986 = vlaneseq
        %v3987 = vshrl.u32 %v3986, 7
        %v3988 = vsub.s32 %v3985, %v3987
        %v3989 = vrot.slane %v3975, %v3988
        %v3990 = vcombine.high %v3982, %v3982
        %v3991 = vcombine.high %v3989, %v3989
        %v3992 = vcombine.high %v298, %v298
        %v3994 = vunpack.c.l.s4 1983009808
        %v3995 = vunpack.c.0.s8 %v3994
        %v3996 = vlaneseq
        %v3997 = vshrl.u32 %v3996, 7
        %v3998 = vsub.s32 %v3995, %v3997
        %v3999 = vrot.slane %v298, %v3998
        %v4001 = vunpack.c.l.s4 1983009808
        %v4002 = vunpack.c.0.s8 %v4001
        %v4003 = vlaneseq
        %v4004 = vshrl.u32 %v4003, 7
        %v4005 = vsub.s32 %v4002, %v4004
        %v4006 = vrot.slane %v3992, %v4005
        %v4007 = vcombine.high %v3999, %v3999
        %v4008 = vcombine.high %v4006, %v4006
        %4037 = vmatprep.subr.mxu0 %v300
        %4038 = vmatpush1.msra.mxu0 %v299
        %4039 = vmatprep.subr.mxu0 %v308
        %4040 = vmatpush1.msra.mxu0 %v307
        %4041 = vmatprep.subr.mxu0 %v316
        %4042 = vmatpush1.msra.mxu0 %v315
        %4043 = vmatprep.subr.mxu0 %v324
        %4044 = vmatpush1.msra.mxu0 %v323
        %4045 = vmatprep.subr.mxu0 %v332
        %4046 = vmatpush1.msra.mxu0 %v331
        %4047 = vmatprep.subr.mxu0 %v340
        %4048 = vmatpush1.msra.mxu0 %v339
        %4049 = vmatprep.subr.mxu0 %v348
        %4050 = vmatpush1.msra.mxu0 %v347
        %4051 = vmatprep.subr.mxu0 %v356
        %4052 = vmatpush1.msra.mxu0 %v355
        %4053 = vmatprep.subr.mxu0 %v364
        %4054 = vmatpush1.msra.mxu0 %v363
        %4055 = vmatprep.subr.mxu0 %v372
        %4056 = vmatpush1.msra.mxu0 %v371
        %4057 = vmatprep.subr.mxu0 %v380
        %4058 = vmatpush1.msra.mxu0 %v379
        %4059 = vmatprep.subr.mxu0 %v388
        %4060 = vmatpush1.msra.mxu0 %v387
        %4061 = vmatprep.subr.mxu0 %v396
        %4062 = vmatpush1.msra.mxu0 %v395
        %4063 = vmatprep.subr.mxu0 %v404
        %4064 = vmatpush1.msra.mxu0 %v403
        %4065 = vmatprep.subr.mxu0 %v412
        %4066 = vmatpush1.msra.mxu0 %v411
        %4067 = vmatprep.subr.mxu0 %v420
        %4068 = vmatpush1.msra.mxu0 %v419
        %4069 = vmatprep.subr.mxu0 %v428
        %4070 = vmatpush1.msra.mxu0 %v427
        %4071 = vmatprep.subr.mxu0 %v436
        %4072 = vmatpush1.msra.mxu0 %v435
        %4073 = vmatprep.subr.mxu0 %v444
        %4074 = vmatpush1.msra.mxu0 %v443
        %4075 = vmatprep.subr.mxu0 %v452
        %4076 = vmatpush1.msra.mxu0 %v451
        %4077 = vmatprep.subr.mxu0 %v460
        %4078 = vmatpush1.msra.mxu0 %v459
        %4079 = vmatprep.subr.mxu0 %v468
        %4080 = vmatpush1.msra.mxu0 %v467
        %4081 = vmatprep.subr.mxu0 %v476
        %4082 = vmatpush1.msra.mxu0 %v475
        %4083 = vmatprep.subr.mxu0 %v484
        %4084 = vmatpush1.msra.mxu0 %v483
        %4085 = vmatprep.subr.mxu0 %v492
        %4086 = vmatpush1.msra.mxu0 %v491
        %4087 = vmatprep.subr.mxu0 %v500
        %4088 = vmatpush1.msra.mxu0 %v499
        %4089 = vmatprep.subr.mxu0 %v508
        %4090 = vmatpush1.msra.mxu0 %v507
        %4091 = vmatprep.subr.mxu0 %v516
        %4092 = vmatpush1.msra.mxu0 %v515
        %4093 = vmatprep.subr.mxu0 %v524
        %4094 = vmatpush1.msra.mxu0 %v523
        %4095 = vmatprep.subr.mxu0 %v532
        %4096 = vmatpush1.msra.mxu0 %v531
        %4097 = vmatprep.subr.mxu0 %v540
        %4098 = vmatpush1.msra.mxu0 %v539
        %4099 = vmatprep.subr.mxu0 %v548
        %4100 = vmatpush1.msra.mxu0 %v547
        %4101 = vmatprep.mubr.f32.mxu0 %v3905
        %4102 = vmatmul.mubr.f32.gmra.mrb[0].mxu0 %v3897
        %v4103 = vpop.f32.mrb[0].mxu0
        %v4104 = vadd.f32 0.0, %v4103
        %v4105 = vpop.f32.mrb[0].mxu0
        %v4106 = vadd.f32 0.0, %v4105
        %4107 = vdwg.mxu0
        %4108 = vmatprep.subr.mxu0 %v556
        %4109 = vmatpush1.msra.mxu0 %v555
        %4110 = vmatprep.subr.mxu0 %v564
        %4111 = vmatpush1.msra.mxu0 %v563
        %4112 = vmatprep.subr.mxu0 %v572
        %4113 = vmatpush1.msra.mxu0 %v571
        %4114 = vmatprep.subr.mxu0 %v580
        %4115 = vmatpush1.msra.mxu0 %v579
        %4116 = vmatprep.subr.mxu0 %v588
        %4117 = vmatpush1.msra.mxu0 %v587
        %4118 = vmatprep.subr.mxu0 %v596
        %4119 = vmatpush1.msra.mxu0 %v595
        %4120 = vmatprep.subr.mxu0 %v604
        %4121 = vmatpush1.msra.mxu0 %v603
        %4122 = vmatprep.subr.mxu0 %v612
        %4123 = vmatpush1.msra.mxu0 %v611
        %4124 = vmatprep.subr.mxu0 %v620
        %4125 = vmatpush1.msra.mxu0 %v619
        %4126 = vmatprep.subr.mxu0 %v628
        %4127 = vmatpush1.msra.mxu0 %v627
        %4128 = vmatprep.subr.mxu0 %v636
        %4129 = vmatpush1.msra.mxu0 %v635
        %4130 = vmatprep.subr.mxu0 %v644
        %4131 = vmatpush1.msra.mxu0 %v643
        %4132 = vmatprep.subr.mxu0 %v652
        %4133 = vmatpush1.msra.mxu0 %v651
        %4134 = vmatprep.subr.mxu0 %v660
        %4135 = vmatpush1.msra.mxu0 %v659
        %4136 = vmatprep.subr.mxu0 %v668
        %4137 = vmatpush1.msra.mxu0 %v667
        %4138 = vmatprep.subr.mxu0 %v676
        %4139 = vmatpush1.msra.mxu0 %v675
        %4140 = vmatprep.subr.mxu0 %v684
        %4141 = vmatpush1.msra.mxu0 %v683
        %4142 = vmatprep.subr.mxu0 %v692
        %4143 = vmatpush1.msra.mxu0 %v691
        %4144 = vmatprep.subr.mxu0 %v700
        %4145 = vmatpush1.msra.mxu0 %v699
        %4146 = vmatprep.subr.mxu0 %v708
        %4147 = vmatpush1.msra.mxu0 %v707
        %4148 = vmatprep.subr.mxu0 %v716
        %4149 = vmatpush1.msra.mxu0 %v715
        %4150 = vmatprep.subr.mxu0 %v724
        %4151 = vmatpush1.msra.mxu0 %v723
        %4152 = vmatprep.subr.mxu0 %v732
        %4153 = vmatpush1.msra.mxu0 %v731
        %4154 = vmatprep.subr.mxu0 %v740
        %4155 = vmatpush1.msra.mxu0 %v739
        %4156 = vmatprep.subr.mxu0 %v748
        %4157 = vmatpush1.msra.mxu0 %v747
        %4158 = vmatprep.subr.mxu0 %v756
        %4159 = vmatpush1.msra.mxu0 %v755
        %4160 = vmatprep.subr.mxu0 %v764
        %4161 = vmatpush1.msra.mxu0 %v763
        %4162 = vmatprep.subr.mxu0 %v772
        %4163 = vmatpush1.msra.mxu0 %v771
        %4164 = vmatprep.subr.mxu0 %v780
        %4165 = vmatpush1.msra.mxu0 %v779
        %4166 = vmatprep.subr.mxu0 %v788
        %4167 = vmatpush1.msra.mxu0 %v787
        %4168 = vmatprep.subr.mxu0 %v796
        %4169 = vmatpush1.msra.mxu0 %v795
        %4170 = vmatprep.subr.mxu0 %v804
        %4171 = vmatpush1.msra.mxu0 %v803
        %4172 = vmatprep.mubr.f32.mxu0 %v3906
        %4173 = vmatmul.mubr.f32.gmra.mrb[0].mxu0 %v3904
        %v4174 = vpop.f32.mrb[0].mxu0
        %v4175 = vadd.f32 %v4104, %v4174
        %v4176 = vpop.f32.mrb[0].mxu0
        %v4177 = vadd.f32 %v4106, %v4176
        %4178 = vdwg.mxu0
        %4179 = vmatprep.subr.mxu0 %v812
        %4180 = vmatpush1.msra.mxu0 %v811
        %4181 = vmatprep.subr.mxu0 %v820
        %4182 = vmatpush1.msra.mxu0 %v819
        %4183 = vmatprep.subr.mxu0 %v828
        %4184 = vmatpush1.msra.mxu0 %v827
        %4185 = vmatprep.subr.mxu0 %v836
        %4186 = vmatpush1.msra.mxu0 %v835
        %4187 = vmatprep.subr.mxu0 %v844
        %4188 = vmatpush1.msra.mxu0 %v843
        %4189 = vmatprep.subr.mxu0 %v852
        %4190 = vmatpush1.msra.mxu0 %v851
        %4191 = vmatprep.subr.mxu0 %v860
        %4192 = vmatpush1.msra.mxu0 %v859
        %4193 = vmatprep.subr.mxu0 %v868
        %4194 = vmatpush1.msra.mxu0 %v867
        %4195 = vmatprep.subr.mxu0 %v876
        %4196 = vmatpush1.msra.mxu0 %v875
        %4197 = vmatprep.subr.mxu0 %v884
        %4198 = vmatpush1.msra.mxu0 %v883
        %4199 = vmatprep.subr.mxu0 %v892
        %4200 = vmatpush1.msra.mxu0 %v891
        %4201 = vmatprep.subr.mxu0 %v900
        %4202 = vmatpush1.msra.mxu0 %v899
        %4203 = vmatprep.subr.mxu0 %v908
        %4204 = vmatpush1.msra.mxu0 %v907
        %4205 = vmatprep.subr.mxu0 %v916
        %4206 = vmatpush1.msra.mxu0 %v915
        %4207 = vmatprep.subr.mxu0 %v924
        %4208 = vmatpush1.msra.mxu0 %v923
        %4209 = vmatprep.subr.mxu0 %v932
        %4210 = vmatpush1.msra.mxu0 %v931
        %4211 = vmatprep.subr.mxu0 %v940
        %4212 = vmatpush1.msra.mxu0 %v939
        %4213 = vmatprep.subr.mxu0 %v948
        %4214 = vmatpush1.msra.mxu0 %v947
        %4215 = vmatprep.subr.mxu0 %v956
        %4216 = vmatpush1.msra.mxu0 %v955
        %4217 = vmatprep.subr.mxu0 %v964
        %4218 = vmatpush1.msra.mxu0 %v963
        %4219 = vmatprep.subr.mxu0 %v972
        %4220 = vmatpush1.msra.mxu0 %v971
        %4221 = vmatprep.subr.mxu0 %v980
        %4222 = vmatpush1.msra.mxu0 %v979
        %4223 = vmatprep.subr.mxu0 %v988
        %4224 = vmatpush1.msra.mxu0 %v987
        %4225 = vmatprep.subr.mxu0 %v996
        %4226 = vmatpush1.msra.mxu0 %v995
        %4227 = vmatprep.subr.mxu0 %v1004
        %4228 = vmatpush1.msra.mxu0 %v1003
        %4229 = vmatprep.subr.mxu0 %v1012
        %4230 = vmatpush1.msra.mxu0 %v1011
        %4231 = vmatprep.subr.mxu0 %v1020
        %4232 = vmatpush1.msra.mxu0 %v1019
        %4233 = vmatprep.subr.mxu0 %v1028
        %4234 = vmatpush1.msra.mxu0 %v1027
        %4235 = vmatprep.subr.mxu0 %v1036
        %4236 = vmatpush1.msra.mxu0 %v1035
        %4237 = vmatprep.subr.mxu0 %v1044
        %4238 = vmatpush1.msra.mxu0 %v1043
        %4239 = vmatprep.subr.mxu0 %v1052
        %4240 = vmatpush1.msra.mxu0 %v1051
        %4241 = vmatprep.subr.mxu0 %v1060
        %4242 = vmatpush1.msra.mxu0 %v1059
        %4243 = vmatprep.mubr.f32.mxu0 %v3922
        %4244 = vmatmul.mubr.f32.gmra.mrb[0].mxu0 %v3914
        %v4245 = vpop.f32.mrb[0].mxu0
        %v4246 = vadd.f32 %v4175, %v4245
        %v4247 = vpop.f32.mrb[0].mxu0
        %v4248 = vadd.f32 %v4177, %v4247
        %4249 = vdwg.mxu0
        %4250 = vmatprep.subr.mxu0 %v1068
        %4251 = vmatpush1.msra.mxu0 %v1067
        %4252 = vmatprep.subr.mxu0 %v1076
        %4253 = vmatpush1.msra.mxu0 %v1075
        %4254 = vmatprep.subr.mxu0 %v1084
        %4255 = vmatpush1.msra.mxu0 %v1083
        %4256 = vmatprep.subr.mxu0 %v1092
        %4257 = vmatpush1.msra.mxu0 %v1091
        %4258 = vmatprep.subr.mxu0 %v1100
        %4259 = vmatpush1.msra.mxu0 %v1099
        %4260 = vmatprep.subr.mxu0 %v1108
        %4261 = vmatpush1.msra.mxu0 %v1107
        %4262 = vmatprep.subr.mxu0 %v1116
        %4263 = vmatpush1.msra.mxu0 %v1115
        %4264 = vmatprep.subr.mxu0 %v1124
        %4265 = vmatpush1.msra.mxu0 %v1123
        %4266 = vmatprep.subr.mxu0 %v1132
        %4267 = vmatpush1.msra.mxu0 %v1131
        %4268 = vmatprep.subr.mxu0 %v1140
        %4269 = vmatpush1.msra.mxu0 %v1139
        %4270 = vmatprep.subr.mxu0 %v1148
        %4271 = vmatpush1.msra.mxu0 %v1147
        %4272 = vmatprep.subr.mxu0 %v1156
        %4273 = vmatpush1.msra.mxu0 %v1155
        %4274 = vmatprep.subr.mxu0 %v1164
        %4275 = vmatpush1.msra.mxu0 %v1163
        %4276 = vmatprep.subr.mxu0 %v1172
        %4277 = vmatpush1.msra.mxu0 %v1171
        %4278 = vmatprep.subr.mxu0 %v1180
        %4279 = vmatpush1.msra.mxu0 %v1179
        %4280 = vmatprep.subr.mxu0 %v1188
        %4281 = vmatpush1.msra.mxu0 %v1187
        %4282 = vmatprep.subr.mxu0 %v1196
        %4283 = vmatpush1.msra.mxu0 %v1195
        %4284 = vmatprep.subr.mxu0 %v1204
        %4285 = vmatpush1.msra.mxu0 %v1203
        %4286 = vmatprep.subr.mxu0 %v1212
        %4287 = vmatpush1.msra.mxu0 %v1211
        %4288 = vmatprep.subr.mxu0 %v1220
        %4289 = vmatpush1.msra.mxu0 %v1219
        %4290 = vmatprep.subr.mxu0 %v1228
        %4291 = vmatpush1.msra.mxu0 %v1227
        %4292 = vmatprep.subr.mxu0 %v1236
        %4293 = vmatpush1.msra.mxu0 %v1235
        %4294 = vmatprep.subr.mxu0 %v1244
        %4295 = vmatpush1.msra.mxu0 %v1243
        %4296 = vmatprep.subr.mxu0 %v1252
        %4297 = vmatpush1.msra.mxu0 %v1251
        %4298 = vmatprep.subr.mxu0 %v1260
        %4299 = vmatpush1.msra.mxu0 %v1259
        %4300 = vmatprep.subr.mxu0 %v1268
        %4301 = vmatpush1.msra.mxu0 %v1267
        %4302 = vmatprep.subr.mxu0 %v1276
        %4303 = vmatpush1.msra.mxu0 %v1275
        %4304 = vmatprep.subr.mxu0 %v1284
        %4305 = vmatpush1.msra.mxu0 %v1283
        %4306 = vmatprep.subr.mxu0 %v1292
        %4307 = vmatpush1.msra.mxu0 %v1291
        %4308 = vmatprep.subr.mxu0 %v1300
        %4309 = vmatpush1.msra.mxu0 %v1299
        %4310 = vmatprep.subr.mxu0 %v1308
        %4311 = vmatpush1.msra.mxu0 %v1307
        %4312 = vmatprep.subr.mxu0 %v1316
        %4313 = vmatpush1.msra.mxu0 %v1315
        %4314 = vmatprep.mubr.f32.mxu0 %v3923
        %4315 = vmatmul.mubr.f32.gmra.mrb[0].mxu0 %v3921
        %v4316 = vpop.f32.mrb[0].mxu0
        %v4317 = vadd.f32 %v4246, %v4316
        %v4318 = vpop.f32.mrb[0].mxu0
        %v4319 = vadd.f32 %v4248, %v4318
        %4320 = vdwg.mxu0
        %4321 = vmatprep.subr.mxu0 %v1324
        %4322 = vmatpush1.msra.mxu0 %v1323
        %4323 = vmatprep.subr.mxu0 %v1332
        %4324 = vmatpush1.msra.mxu0 %v1331
        %4325 = vmatprep.subr.mxu0 %v1340
        %4326 = vmatpush1.msra.mxu0 %v1339
        %4327 = vmatprep.subr.mxu0 %v1348
        %4328 = vmatpush1.msra.mxu0 %v1347
        %4329 = vmatprep.subr.mxu0 %v1356
        %4330 = vmatpush1.msra.mxu0 %v1355
        %4331 = vmatprep.subr.mxu0 %v1364
        %4332 = vmatpush1.msra.mxu0 %v1363
        %4333 = vmatprep.subr.mxu0 %v1372
        %4334 = vmatpush1.msra.mxu0 %v1371
        %4335 = vmatprep.subr.mxu0 %v1380
        %4336 = vmatpush1.msra.mxu0 %v1379
        %4337 = vmatprep.subr.mxu0 %v1388
        %4338 = vmatpush1.msra.mxu0 %v1387
        %4339 = vmatprep.subr.mxu0 %v1396
        %4340 = vmatpush1.msra.mxu0 %v1395
        %4341 = vmatprep.subr.mxu0 %v1404
        %4342 = vmatpush1.msra.mxu0 %v1403
        %4343 = vmatprep.subr.mxu0 %v1412
        %4344 = vmatpush1.msra.mxu0 %v1411
        %4345 = vmatprep.subr.mxu0 %v1420
        %4346 = vmatpush1.msra.mxu0 %v1419
        %4347 = vmatprep.subr.mxu0 %v1428
        %4348 = vmatpush1.msra.mxu0 %v1427
        %4349 = vmatprep.subr.mxu0 %v1436
        %4350 = vmatpush1.msra.mxu0 %v1435
        %4351 = vmatprep.subr.mxu0 %v1444
        %4352 = vmatpush1.msra.mxu0 %v1443
        %4353 = vmatprep.subr.mxu0 %v1452
        %4354 = vmatpush1.msra.mxu0 %v1451
        %4355 = vmatprep.subr.mxu0 %v1460
        %4356 = vmatpush1.msra.mxu0 %v1459
        %4357 = vmatprep.subr.mxu0 %v1468
        %4358 = vmatpush1.msra.mxu0 %v1467
        %4359 = vmatprep.subr.mxu0 %v1476
        %4360 = vmatpush1.msra.mxu0 %v1475
        %4361 = vmatprep.subr.mxu0 %v1484
        %4362 = vmatpush1.msra.mxu0 %v1483
        %4363 = vmatprep.subr.mxu0 %v1492
        %4364 = vmatpush1.msra.mxu0 %v1491
        %4365 = vmatprep.subr.mxu0 %v1500
        %4366 = vmatpush1.msra.mxu0 %v1499
        %4367 = vmatprep.subr.mxu0 %v1508
        %4368 = vmatpush1.msra.mxu0 %v1507
        %4369 = vmatprep.subr.mxu0 %v1516
        %4370 = vmatpush1.msra.mxu0 %v1515
        %4371 = vmatprep.subr.mxu0 %v1524
        %4372 = vmatpush1.msra.mxu0 %v1523
        %4373 = vmatprep.subr.mxu0 %v1532
        %4374 = vmatpush1.msra.mxu0 %v1531
        %4375 = vmatprep.subr.mxu0 %v1540
        %4376 = vmatpush1.msra.mxu0 %v1539
        %4377 = vmatprep.subr.mxu0 %v1548
        %4378 = vmatpush1.msra.mxu0 %v1547
        %4379 = vmatprep.subr.mxu0 %v1556
        %4380 = vmatpush1.msra.mxu0 %v1555
        %4381 = vmatprep.subr.mxu0 %v1564
        %4382 = vmatpush1.msra.mxu0 %v1563
        %4383 = vmatprep.subr.mxu0 %v1572
        %4384 = vmatpush1.msra.mxu0 %v1571
        %4385 = vmatprep.mubr.f32.mxu0 %v3939
        %4386 = vmatmul.mubr.f32.gmra.mrb[0].mxu0 %v3931
        %v4387 = vpop.f32.mrb[0].mxu0
        %v4388 = vadd.f32 %v4317, %v4387
        %v4389 = vpop.f32.mrb[0].mxu0
        %v4390 = vadd.f32 %v4319, %v4389
        %4391 = vdwg.mxu0
        %4392 = vmatprep.subr.mxu0 %v1580
        %4393 = vmatpush1.msra.mxu0 %v1579
        %4394 = vmatprep.subr.mxu0 %v1588
        %4395 = vmatpush1.msra.mxu0 %v1587
        %4396 = vmatprep.subr.mxu0 %v1596
        %4397 = vmatpush1.msra.mxu0 %v1595
        %4398 = vmatprep.subr.mxu0 %v1604
        %4399 = vmatpush1.msra.mxu0 %v1603
        %4400 = vmatprep.subr.mxu0 %v1612
        %4401 = vmatpush1.msra.mxu0 %v1611
        %4402 = vmatprep.subr.mxu0 %v1620
        %4403 = vmatpush1.msra.mxu0 %v1619
        %4404 = vmatprep.subr.mxu0 %v1628
        %4405 = vmatpush1.msra.mxu0 %v1627
        %4406 = vmatprep.subr.mxu0 %v1636
        %4407 = vmatpush1.msra.mxu0 %v1635
        %4408 = vmatprep.subr.mxu0 %v1644
        %4409 = vmatpush1.msra.mxu0 %v1643
        %4410 = vmatprep.subr.mxu0 %v1652
        %4411 = vmatpush1.msra.mxu0 %v1651
        %4412 = vmatprep.subr.mxu0 %v1660
        %4413 = vmatpush1.msra.mxu0 %v1659
        %4414 = vmatprep.subr.mxu0 %v1668
        %4415 = vmatpush1.msra.mxu0 %v1667
        %4416 = vmatprep.subr.mxu0 %v1676
        %4417 = vmatpush1.msra.mxu0 %v1675
        %4418 = vmatprep.subr.mxu0 %v1684
        %4419 = vmatpush1.msra.mxu0 %v1683
        %4420 = vmatprep.subr.mxu0 %v1692
        %4421 = vmatpush1.msra.mxu0 %v1691
        %4422 = vmatprep.subr.mxu0 %v1700
        %4423 = vmatpush1.msra.mxu0 %v1699
        %4424 = vmatprep.subr.mxu0 %v1708
        %4425 = vmatpush1.msra.mxu0 %v1707
        %4426 = vmatprep.subr.mxu0 %v1716
        %4427 = vmatpush1.msra.mxu0 %v1715
        %4428 = vmatprep.subr.mxu0 %v1724
        %4429 = vmatpush1.msra.mxu0 %v1723
        %4430 = vmatprep.subr.mxu0 %v1732
        %4431 = vmatpush1.msra.mxu0 %v1731
        %4432 = vmatprep.subr.mxu0 %v1740
        %4433 = vmatpush1.msra.mxu0 %v1739
        %4434 = vmatprep.subr.mxu0 %v1748
        %4435 = vmatpush1.msra.mxu0 %v1747
        %4436 = vmatprep.subr.mxu0 %v1756
        %4437 = vmatpush1.msra.mxu0 %v1755
        %4438 = vmatprep.subr.mxu0 %v1764
        %4439 = vmatpush1.msra.mxu0 %v1763
        %4440 = vmatprep.subr.mxu0 %v1772
        %4441 = vmatpush1.msra.mxu0 %v1771
        %4442 = vmatprep.subr.mxu0 %v1780
        %4443 = vmatpush1.msra.mxu0 %v1779
        %4444 = vmatprep.subr.mxu0 %v1788
        %4445 = vmatpush1.msra.mxu0 %v1787
        %4446 = vmatprep.subr.mxu0 %v1796
        %4447 = vmatpush1.msra.mxu0 %v1795
        %4448 = vmatprep.subr.mxu0 %v1804
        %4449 = vmatpush1.msra.mxu0 %v1803
        %4450 = vmatprep.subr.mxu0 %v1812
        %4451 = vmatpush1.msra.mxu0 %v1811
        %4452 = vmatprep.subr.mxu0 %v1820
        %4453 = vmatpush1.msra.mxu0 %v1819
        %4454 = vmatprep.subr.mxu0 %v1828
        %4455 = vmatpush1.msra.mxu0 %v1827
        %4456 = vmatprep.mubr.f32.mxu0 %v3940
        %4457 = vmatmul.mubr.f32.gmra.mrb[0].mxu0 %v3938
        %v4458 = vpop.f32.mrb[0].mxu0
        %v4459 = vadd.f32 %v4388, %v4458
        %v4460 = vpop.f32.mrb[0].mxu0
        %v4461 = vadd.f32 %v4390, %v4460
        %4462 = vdwg.mxu0
        %4463 = vmatprep.subr.mxu0 %v1836
        %4464 = vmatpush1.msra.mxu0 %v1835
        %4465 = vmatprep.subr.mxu0 %v1844
        %4466 = vmatpush1.msra.mxu0 %v1843
        %4467 = vmatprep.subr.mxu0 %v1852
        %4468 = vmatpush1.msra.mxu0 %v1851
        %4469 = vmatprep.subr.mxu0 %v1860
        %4470 = vmatpush1.msra.mxu0 %v1859
        %4471 = vmatprep.subr.mxu0 %v1868
        %4472 = vmatpush1.msra.mxu0 %v1867
        %4473 = vmatprep.subr.mxu0 %v1876
        %4474 = vmatpush1.msra.mxu0 %v1875
        %4475 = vmatprep.subr.mxu0 %v1884
        %4476 = vmatpush1.msra.mxu0 %v1883
        %4477 = vmatprep.subr.mxu0 %v1892
        %4478 = vmatpush1.msra.mxu0 %v1891
        %4479 = vmatprep.subr.mxu0 %v1900
        %4480 = vmatpush1.msra.mxu0 %v1899
        %4481 = vmatprep.subr.mxu0 %v1908
        %4482 = vmatpush1.msra.mxu0 %v1907
        %4483 = vmatprep.subr.mxu0 %v1916
        %4484 = vmatpush1.msra.mxu0 %v1915
        %4485 = vmatprep.subr.mxu0 %v1924
        %4486 = vmatpush1.msra.mxu0 %v1923
        %4487 = vmatprep.subr.mxu0 %v1932
        %4488 = vmatpush1.msra.mxu0 %v1931
        %4489 = vmatprep.subr.mxu0 %v1940
        %4490 = vmatpush1.msra.mxu0 %v1939
        %4491 = vmatprep.subr.mxu0 %v1948
        %4492 = vmatpush1.msra.mxu0 %v1947
        %4493 = vmatprep.subr.mxu0 %v1956
        %4494 = vmatpush1.msra.mxu0 %v1955
        %4495 = vmatprep.subr.mxu0 %v1964
        %4496 = vmatpush1.msra.mxu0 %v1963
        %4497 = vmatprep.subr.mxu0 %v1972
        %4498 = vmatpush1.msra.mxu0 %v1971
        %4499 = vmatprep.subr.mxu0 %v1980
        %4500 = vmatpush1.msra.mxu0 %v1979
        %4501 = vmatprep.subr.mxu0 %v1988
        %4502 = vmatpush1.msra.mxu0 %v1987
        %4503 = vmatprep.subr.mxu0 %v1996
        %4504 = vmatpush1.msra.mxu0 %v1995
        %4505 = vmatprep.subr.mxu0 %v2004
        %4506 = vmatpush1.msra.mxu0 %v2003
        %4507 = vmatprep.subr.mxu0 %v2012
        %4508 = vmatpush1.msra.mxu0 %v2011
        %4509 = vmatprep.subr.mxu0 %v2020
        %4510 = vmatpush1.msra.mxu0 %v2019
        %4511 = vmatprep.subr.mxu0 %v2028
        %4512 = vmatpush1.msra.mxu0 %v2027
        %4513 = vmatprep.subr.mxu0 %v2036
        %4514 = vmatpush1.msra.mxu0 %v2035
        %4515 = vmatprep.subr.mxu0 %v2044
        %4516 = vmatpush1.msra.mxu0 %v2043
        %4517 = vmatprep.subr.mxu0 %v2052
        %4518 = vmatpush1.msra.mxu0 %v2051
        %4519 = vmatprep.subr.mxu0 %v2060
        %4520 = vmatpush1.msra.mxu0 %v2059
        %4521 = vmatprep.subr.mxu0 %v2068
        %4522 = vmatpush1.msra.mxu0 %v2067
        %4523 = vmatprep.subr.mxu0 %v2076
        %4524 = vmatpush1.msra.mxu0 %v2075
        %4525 = vmatprep.subr.mxu0 %v2084
        %4526 = vmatpush1.msra.mxu0 %v2083
        %4527 = vmatprep.mubr.f32.mxu0 %v3956
        %4528 = vmatmul.mubr.f32.gmra.mrb[0].mxu0 %v3948
        %v4529 = vpop.f32.mrb[0].mxu0
        %v4530 = vadd.f32 %v4459, %v4529
        %v4531 = vpop.f32.mrb[0].mxu0
        %v4532 = vadd.f32 %v4461, %v4531
        %4533 = vdwg.mxu0
        %4534 = vmatprep.subr.mxu0 %v2092
        %4535 = vmatpush1.msra.mxu0 %v2091
        %4536 = vmatprep.subr.mxu0 %v2100
        %4537 = vmatpush1.msra.mxu0 %v2099
        %4538 = vmatprep.subr.mxu0 %v2108
        %4539 = vmatpush1.msra.mxu0 %v2107
        %4540 = vmatprep.subr.mxu0 %v2116
        %4541 = vmatpush1.msra.mxu0 %v2115
        %4542 = vmatprep.subr.mxu0 %v2124
        %4543 = vmatpush1.msra.mxu0 %v2123
        %4544 = vmatprep.subr.mxu0 %v2132
        %4545 = vmatpush1.msra.mxu0 %v2131
        %4546 = vmatprep.subr.mxu0 %v2140
        %4547 = vmatpush1.msra.mxu0 %v2139
        %4548 = vmatprep.subr.mxu0 %v2148
        %4549 = vmatpush1.msra.mxu0 %v2147
        %4550 = vmatprep.subr.mxu0 %v2156
        %4551 = vmatpush1.msra.mxu0 %v2155
        %4552 = vmatprep.subr.mxu0 %v2164
        %4553 = vmatpush1.msra.mxu0 %v2163
        %4554 = vmatprep.subr.mxu0 %v2172
        %4555 = vmatpush1.msra.mxu0 %v2171
        %4556 = vmatprep.subr.mxu0 %v2180
        %4557 = vmatpush1.msra.mxu0 %v2179
        %4558 = vmatprep.subr.mxu0 %v2188
        %4559 = vmatpush1.msra.mxu0 %v2187
        %4560 = vmatprep.subr.mxu0 %v2196
        %4561 = vmatpush1.msra.mxu0 %v2195
        %4562 = vmatprep.subr.mxu0 %v2204
        %4563 = vmatpush1.msra.mxu0 %v2203
        %4564 = vmatprep.subr.mxu0 %v2212
        %4565 = vmatpush1.msra.mxu0 %v2211
        %4566 = vmatprep.subr.mxu0 %v2220
        %4567 = vmatpush1.msra.mxu0 %v2219
        %4568 = vmatprep.subr.mxu0 %v2228
        %4569 = vmatpush1.msra.mxu0 %v2227
        %4570 = vmatprep.subr.mxu0 %v2236
        %4571 = vmatpush1.msra.mxu0 %v2235
        %4572 = vmatprep.subr.mxu0 %v2244
        %4573 = vmatpush1.msra.mxu0 %v2243
        %4574 = vmatprep.subr.mxu0 %v2252
        %4575 = vmatpush1.msra.mxu0 %v2251
        %4576 = vmatprep.subr.mxu0 %v2260
        %4577 = vmatpush1.msra.mxu0 %v2259
        %4578 = vmatprep.subr.mxu0 %v2268
        %4579 = vmatpush1.msra.mxu0 %v2267
        %4580 = vmatprep.subr.mxu0 %v2276
        %4581 = vmatpush1.msra.mxu0 %v2275
        %4582 = vmatprep.subr.mxu0 %v2284
        %4583 = vmatpush1.msra.mxu0 %v2283
        %4584 = vmatprep.subr.mxu0 %v2292
        %4585 = vmatpush1.msra.mxu0 %v2291
        %4586 = vmatprep.subr.mxu0 %v2300
        %4587 = vmatpush1.msra.mxu0 %v2299
        %4588 = vmatprep.subr.mxu0 %v2308
        %4589 = vmatpush1.msra.mxu0 %v2307
        %4590 = vmatprep.subr.mxu0 %v2316
        %4591 = vmatpush1.msra.mxu0 %v2315
        %4592 = vmatprep.subr.mxu0 %v2324
        %4593 = vmatpush1.msra.mxu0 %v2323
        %4594 = vmatprep.subr.mxu0 %v2332
        %4595 = vmatpush1.msra.mxu0 %v2331
        %4596 = vmatprep.subr.mxu0 %v2340
        %4597 = vmatpush1.msra.mxu0 %v2339
        %4598 = vmatprep.mubr.f32.mxu0 %v3957
        %4599 = vmatmul.mubr.f32.gmra.mrb[0].mxu0 %v3955
        %v4600 = vpop.f32.mrb[0].mxu0
        %v4601 = vadd.f32 %v4530, %v4600
        %v4602 = vpop.f32.mrb[0].mxu0
        %v4603 = vadd.f32 %v4532, %v4602
        %4604 = vdwg.mxu0
        %4605 = vmatprep.subr.mxu0 %v2348
        %4606 = vmatpush1.msra.mxu0 %v2347
        %4607 = vmatprep.subr.mxu0 %v2356
        %4608 = vmatpush1.msra.mxu0 %v2355
        %4609 = vmatprep.subr.mxu0 %v2364
        %4610 = vmatpush1.msra.mxu0 %v2363
        %4611 = vmatprep.subr.mxu0 %v2372
        %4612 = vmatpush1.msra.mxu0 %v2371
        %4613 = vmatprep.subr.mxu0 %v2380
        %4614 = vmatpush1.msra.mxu0 %v2379
        %4615 = vmatprep.subr.mxu0 %v2388
        %4616 = vmatpush1.msra.mxu0 %v2387
        %4617 = vmatprep.subr.mxu0 %v2396
        %4618 = vmatpush1.msra.mxu0 %v2395
        %4619 = vmatprep.subr.mxu0 %v2404
        %4620 = vmatpush1.msra.mxu0 %v2403
        %4621 = vmatprep.subr.mxu0 %v2412
        %4622 = vmatpush1.msra.mxu0 %v2411
        %4623 = vmatprep.subr.mxu0 %v2420
        %4624 = vmatpush1.msra.mxu0 %v2419
        %4625 = vmatprep.subr.mxu0 %v2428
        %4626 = vmatpush1.msra.mxu0 %v2427
        %4627 = vmatprep.subr.mxu0 %v2436
        %4628 = vmatpush1.msra.mxu0 %v2435
        %4629 = vmatprep.subr.mxu0 %v2444
        %4630 = vmatpush1.msra.mxu0 %v2443
        %4631 = vmatprep.subr.mxu0 %v2452
        %4632 = vmatpush1.msra.mxu0 %v2451
        %4633 = vmatprep.subr.mxu0 %v2460
        %4634 = vmatpush1.msra.mxu0 %v2459
        %4635 = vmatprep.subr.mxu0 %v2468
        %4636 = vmatpush1.msra.mxu0 %v2467
        %4637 = vmatprep.subr.mxu0 %v2476
        %4638 = vmatpush1.msra.mxu0 %v2475
        %4639 = vmatprep.subr.mxu0 %v2484
        %4640 = vmatpush1.msra.mxu0 %v2483
        %4641 = vmatprep.subr.mxu0 %v2492
        %4642 = vmatpush1.msra.mxu0 %v2491
        %4643 = vmatprep.subr.mxu0 %v2500
        %4644 = vmatpush1.msra.mxu0 %v2499
        %4645 = vmatprep.subr.mxu0 %v2508
        %4646 = vmatpush1.msra.mxu0 %v2507
        %4647 = vmatprep.subr.mxu0 %v2516
        %4648 = vmatpush1.msra.mxu0 %v2515
        %4649 = vmatprep.subr.mxu0 %v2524
        %4650 = vmatpush1.msra.mxu0 %v2523
        %4651 = vmatprep.subr.mxu0 %v2532
        %4652 = vmatpush1.msra.mxu0 %v2531
        %4653 = vmatprep.subr.mxu0 %v2540
        %4654 = vmatpush1.msra.mxu0 %v2539
        %4655 = vmatprep.subr.mxu0 %v2548
        %4656 = vmatpush1.msra.mxu0 %v2547
        %4657 = vmatprep.subr.mxu0 %v2556
        %4658 = vmatpush1.msra.mxu0 %v2555
        %4659 = vmatprep.subr.mxu0 %v2564
        %4660 = vmatpush1.msra.mxu0 %v2563
        %4661 = vmatprep.subr.mxu0 %v2572
        %4662 = vmatpush1.msra.mxu0 %v2571
        %4663 = vmatprep.subr.mxu0 %v2580
        %4664 = vmatpush1.msra.mxu0 %v2579
        %4665 = vmatprep.subr.mxu0 %v2588
        %4666 = vmatpush1.msra.mxu0 %v2587
        %4667 = vmatprep.subr.mxu0 %v2596
        %4668 = vmatpush1.msra.mxu0 %v2595
        %4669 = vmatprep.mubr.f32.mxu0 %v3973
        %4670 = vmatmul.mubr.f32.gmra.mrb[0].mxu0 %v3965
        %v4671 = vpop.f32.mrb[0].mxu0
        %v4672 = vadd.f32 %v4601, %v4671
        %v4673 = vpop.f32.mrb[0].mxu0
        %v4674 = vadd.f32 %v4603, %v4673
        %4675 = vdwg.mxu0
        %4676 = vmatprep.subr.mxu0 %v2604
        %4677 = vmatpush1.msra.mxu0 %v2603
        %4678 = vmatprep.subr.mxu0 %v2612
        %4679 = vmatpush1.msra.mxu0 %v2611
        %4680 = vmatprep.subr.mxu0 %v2620
        %4681 = vmatpush1.msra.mxu0 %v2619
        %4682 = vmatprep.subr.mxu0 %v2628
        %4683 = vmatpush1.msra.mxu0 %v2627
        %4684 = vmatprep.subr.mxu0 %v2636
        %4685 = vmatpush1.msra.mxu0 %v2635
        %4686 = vmatprep.subr.mxu0 %v2644
        %4687 = vmatpush1.msra.mxu0 %v2643
        %4688 = vmatprep.subr.mxu0 %v2652
        %4689 = vmatpush1.msra.mxu0 %v2651
        %4690 = vmatprep.subr.mxu0 %v2660
        %4691 = vmatpush1.msra.mxu0 %v2659
        %4692 = vmatprep.subr.mxu0 %v2668
        %4693 = vmatpush1.msra.mxu0 %v2667
        %4694 = vmatprep.subr.mxu0 %v2676
        %4695 = vmatpush1.msra.mxu0 %v2675
        %4696 = vmatprep.subr.mxu0 %v2684
        %4697 = vmatpush1.msra.mxu0 %v2683
        %4698 = vmatprep.subr.mxu0 %v2692
        %4699 = vmatpush1.msra.mxu0 %v2691
        %4700 = vmatprep.subr.mxu0 %v2700
        %4701 = vmatpush1.msra.mxu0 %v2699
        %4702 = vmatprep.subr.mxu0 %v2708
        %4703 = vmatpush1.msra.mxu0 %v2707
        %4704 = vmatprep.subr.mxu0 %v2716
        %4705 = vmatpush1.msra.mxu0 %v2715
        %4706 = vmatprep.subr.mxu0 %v2724
        %4707 = vmatpush1.msra.mxu0 %v2723
        %4708 = vmatprep.subr.mxu0 %v2732
        %4709 = vmatpush1.msra.mxu0 %v2731
        %4710 = vmatprep.subr.mxu0 %v2740
        %4711 = vmatpush1.msra.mxu0 %v2739
        %4712 = vmatprep.subr.mxu0 %v2748
        %4713 = vmatpush1.msra.mxu0 %v2747
        %4714 = vmatprep.subr.mxu0 %v2756
        %4715 = vmatpush1.msra.mxu0 %v2755
        %4716 = vmatprep.subr.mxu0 %v2764
        %4717 = vmatpush1.msra.mxu0 %v2763
        %4718 = vmatprep.subr.mxu0 %v2772
        %4719 = vmatpush1.msra.mxu0 %v2771
        %4720 = vmatprep.subr.mxu0 %v2780
        %4721 = vmatpush1.msra.mxu0 %v2779
        %4722 = vmatprep.subr.mxu0 %v2788
        %4723 = vmatpush1.msra.mxu0 %v2787
        %4724 = vmatprep.subr.mxu0 %v2796
        %4725 = vmatpush1.msra.mxu0 %v2795
        %4726 = vmatprep.subr.mxu0 %v2804
        %4727 = vmatpush1.msra.mxu0 %v2803
        %4728 = vmatprep.subr.mxu0 %v2812
        %4729 = vmatpush1.msra.mxu0 %v2811
        %4730 = vmatprep.subr.mxu0 %v2820
        %4731 = vmatpush1.msra.mxu0 %v2819
        %4732 = vmatprep.subr.mxu0 %v2828
        %4733 = vmatpush1.msra.mxu0 %v2827
        %4734 = vmatprep.subr.mxu0 %v2836
        %4735 = vmatpush1.msra.mxu0 %v2835
        %4736 = vmatprep.subr.mxu0 %v2844
        %4737 = vmatpush1.msra.mxu0 %v2843
        %4738 = vmatprep.subr.mxu0 %v2852
        %4739 = vmatpush1.msra.mxu0 %v2851
        %4740 = vmatprep.mubr.f32.mxu0 %v3974
        %4741 = vmatmul.mubr.f32.gmra.mrb[0].mxu0 %v3972
        %v4742 = vpop.f32.mrb[0].mxu0
        %v4743 = vadd.f32 %v4672, %v4742
        %v4744 = vpop.f32.mrb[0].mxu0
        %v4745 = vadd.f32 %v4674, %v4744
        %4746 = vdwg.mxu0
        %4747 = vmatprep.subr.mxu0 %v2860
        %4748 = vmatpush1.msra.mxu0 %v2859
        %4749 = vmatprep.subr.mxu0 %v2868
        %4750 = vmatpush1.msra.mxu0 %v2867
        %4751 = vmatprep.subr.mxu0 %v2876
        %4752 = vmatpush1.msra.mxu0 %v2875
        %4753 = vmatprep.subr.mxu0 %v2884
        %4754 = vmatpush1.msra.mxu0 %v2883
        %4755 = vmatprep.subr.mxu0 %v2892
        %4756 = vmatpush1.msra.mxu0 %v2891
        %4757 = vmatprep.subr.mxu0 %v2900
        %4758 = vmatpush1.msra.mxu0 %v2899
        %4759 = vmatprep.subr.mxu0 %v2908
        %4760 = vmatpush1.msra.mxu0 %v2907
        %4761 = vmatprep.subr.mxu0 %v2916
        %4762 = vmatpush1.msra.mxu0 %v2915
        %4763 = vmatprep.subr.mxu0 %v2924
        %4764 = vmatpush1.msra.mxu0 %v2923
        %4765 = vmatprep.subr.mxu0 %v2932
        %4766 = vmatpush1.msra.mxu0 %v2931
        %4767 = vmatprep.subr.mxu0 %v2940
        %4768 = vmatpush1.msra.mxu0 %v2939
        %4769 = vmatprep.subr.mxu0 %v2948
        %4770 = vmatpush1.msra.mxu0 %v2947
        %4771 = vmatprep.subr.mxu0 %v2956
        %4772 = vmatpush1.msra.mxu0 %v2955
        %4773 = vmatprep.subr.mxu0 %v2964
        %4774 = vmatpush1.msra.mxu0 %v2963
        %4775 = vmatprep.subr.mxu0 %v2972
        %4776 = vmatpush1.msra.mxu0 %v2971
        %4777 = vmatprep.subr.mxu0 %v2980
        %4778 = vmatpush1.msra.mxu0 %v2979
        %4779 = vmatprep.subr.mxu0 %v2988
        %4780 = vmatpush1.msra.mxu0 %v2987
        %4781 = vmatprep.subr.mxu0 %v2996
        %4782 = vmatpush1.msra.mxu0 %v2995
        %4783 = vmatprep.subr.mxu0 %v3004
        %4784 = vmatpush1.msra.mxu0 %v3003
        %4785 = vmatprep.subr.mxu0 %v3012
        %4786 = vmatpush1.msra.mxu0 %v3011
        %4787 = vmatprep.subr.mxu0 %v3020
        %4788 = vmatpush1.msra.mxu0 %v3019
        %4789 = vmatprep.subr.mxu0 %v3028
        %4790 = vmatpush1.msra.mxu0 %v3027
        %4791 = vmatprep.subr.mxu0 %v3036
        %4792 = vmatpush1.msra.mxu0 %v3035
        %4793 = vmatprep.subr.mxu0 %v3044
        %4794 = vmatpush1.msra.mxu0 %v3043
        %4795 = vmatprep.subr.mxu0 %v3052
        %4796 = vmatpush1.msra.mxu0 %v3051
        %4797 = vmatprep.subr.mxu0 %v3060
        %4798 = vmatpush1.msra.mxu0 %v3059
        %4799 = vmatprep.subr.mxu0 %v3068
        %4800 = vmatpush1.msra.mxu0 %v3067
        %4801 = vmatprep.subr.mxu0 %v3076
        %4802 = vmatpush1.msra.mxu0 %v3075
        %4803 = vmatprep.subr.mxu0 %v3084
        %4804 = vmatpush1.msra.mxu0 %v3083
        %4805 = vmatprep.subr.mxu0 %v3092
        %4806 = vmatpush1.msra.mxu0 %v3091
        %4807 = vmatprep.subr.mxu0 %v3100
        %4808 = vmatpush1.msra.mxu0 %v3099
        %4809 = vmatprep.subr.mxu0 %v3108
        %4810 = vmatpush1.msra.mxu0 %v3107
        %4811 = vmatprep.mubr.f32.mxu0 %v3990
        %4812 = vmatmul.mubr.f32.gmra.mrb[0].mxu0 %v3982
        %v4813 = vpop.f32.mrb[0].mxu0
        %v4814 = vadd.f32 %v4743, %v4813
        %v4815 = vpop.f32.mrb[0].mxu0
        %v4816 = vadd.f32 %v4745, %v4815
        %4817 = vdwg.mxu0
        %4818 = vmatprep.subr.mxu0 %v3116
        %4819 = vmatpush1.msra.mxu0 %v3115
        %4820 = vmatprep.subr.mxu0 %v3124
        %4821 = vmatpush1.msra.mxu0 %v3123
        %4822 = vmatprep.subr.mxu0 %v3132
        %4823 = vmatpush1.msra.mxu0 %v3131
        %4824 = vmatprep.subr.mxu0 %v3140
        %4825 = vmatpush1.msra.mxu0 %v3139
        %4826 = vmatprep.subr.mxu0 %v3148
        %4827 = vmatpush1.msra.mxu0 %v3147
        %4828 = vmatprep.subr.mxu0 %v3156
        %4829 = vmatpush1.msra.mxu0 %v3155
        %4830 = vmatprep.subr.mxu0 %v3164
        %4831 = vmatpush1.msra.mxu0 %v3163
        %4832 = vmatprep.subr.mxu0 %v3172
        %4833 = vmatpush1.msra.mxu0 %v3171
        %4834 = vmatprep.subr.mxu0 %v3180
        %4835 = vmatpush1.msra.mxu0 %v3179
        %4836 = vmatprep.subr.mxu0 %v3188
        %4837 = vmatpush1.msra.mxu0 %v3187
        %4838 = vmatprep.subr.mxu0 %v3196
        %4839 = vmatpush1.msra.mxu0 %v3195
        %4840 = vmatprep.subr.mxu0 %v3204
        %4841 = vmatpush1.msra.mxu0 %v3203
        %4842 = vmatprep.subr.mxu0 %v3212
        %4843 = vmatpush1.msra.mxu0 %v3211
        %4844 = vmatprep.subr.mxu0 %v3220
        %4845 = vmatpush1.msra.mxu0 %v3219
        %4846 = vmatprep.subr.mxu0 %v3228
        %4847 = vmatpush1.msra.mxu0 %v3227
        %4848 = vmatprep.subr.mxu0 %v3236
        %4849 = vmatpush1.msra.mxu0 %v3235
        %4850 = vmatprep.subr.mxu0 %v3244
        %4851 = vmatpush1.msra.mxu0 %v3243
        %4852 = vmatprep.subr.mxu0 %v3252
        %4853 = vmatpush1.msra.mxu0 %v3251
        %4854 = vmatprep.subr.mxu0 %v3260
        %4855 = vmatpush1.msra.mxu0 %v3259
        %4856 = vmatprep.subr.mxu0 %v3268
        %4857 = vmatpush1.msra.mxu0 %v3267
        %4858 = vmatprep.subr.mxu0 %v3276
        %4859 = vmatpush1.msra.mxu0 %v3275
        %4860 = vmatprep.subr.mxu0 %v3284
        %4861 = vmatpush1.msra.mxu0 %v3283
        %4862 = vmatprep.subr.mxu0 %v3292
        %4863 = vmatpush1.msra.mxu0 %v3291
        %4864 = vmatprep.subr.mxu0 %v3300
        %4865 = vmatpush1.msra.mxu0 %v3299
        %4866 = vmatprep.subr.mxu0 %v3308
        %4867 = vmatpush1.msra.mxu0 %v3307
        %4868 = vmatprep.subr.mxu0 %v3316
        %4869 = vmatpush1.msra.mxu0 %v3315
        %4870 = vmatprep.subr.mxu0 %v3324
        %4871 = vmatpush1.msra.mxu0 %v3323
        %4872 = vmatprep.subr.mxu0 %v3332
        %4873 = vmatpush1.msra.mxu0 %v3331
        %4874 = vmatprep.subr.mxu0 %v3340
        %4875 = vmatpush1.msra.mxu0 %v3339
        %4876 = vmatprep.subr.mxu0 %v3348
        %4877 = vmatpush1.msra.mxu0 %v3347
        %4878 = vmatprep.subr.mxu0 %v3356
        %4879 = vmatpush1.msra.mxu0 %v3355
        %4880 = vmatprep.subr.mxu0 %v3364
        %4881 = vmatpush1.msra.mxu0 %v3363
        %4882 = vmatprep.mubr.f32.mxu0 %v3991
        %4883 = vmatmul.mubr.f32.gmra.mrb[0].mxu0 %v3989
        %v4884 = vpop.f32.mrb[0].mxu0
        %v4885 = vadd.f32 %v4814, %v4884
        %v4886 = vpop.f32.mrb[0].mxu0
        %v4887 = vadd.f32 %v4816, %v4886
        %4888 = vdwg.mxu0
        %4889 = vmatprep.subr.mxu0 %v3372
        %4890 = vmatpush1.msra.mxu0 %v3371
        %4891 = vmatprep.subr.mxu0 %v3380
        %4892 = vmatpush1.msra.mxu0 %v3379
        %4893 = vmatprep.subr.mxu0 %v3388
        %4894 = vmatpush1.msra.mxu0 %v3387
        %4895 = vmatprep.subr.mxu0 %v3396
        %4896 = vmatpush1.msra.mxu0 %v3395
        %4897 = vmatprep.subr.mxu0 %v3404
        %4898 = vmatpush1.msra.mxu0 %v3403
        %4899 = vmatprep.subr.mxu0 %v3412
        %4900 = vmatpush1.msra.mxu0 %v3411
        %4901 = vmatprep.subr.mxu0 %v3420
        %4902 = vmatpush1.msra.mxu0 %v3419
        %4903 = vmatprep.subr.mxu0 %v3428
        %4904 = vmatpush1.msra.mxu0 %v3427
        %4905 = vmatprep.subr.mxu0 %v3436
        %4906 = vmatpush1.msra.mxu0 %v3435
        %4907 = vmatprep.subr.mxu0 %v3444
        %4908 = vmatpush1.msra.mxu0 %v3443
        %4909 = vmatprep.subr.mxu0 %v3452
        %4910 = vmatpush1.msra.mxu0 %v3451
        %4911 = vmatprep.subr.mxu0 %v3460
        %4912 = vmatpush1.msra.mxu0 %v3459
        %4913 = vmatprep.subr.mxu0 %v3468
        %4914 = vmatpush1.msra.mxu0 %v3467
        %4915 = vmatprep.subr.mxu0 %v3476
        %4916 = vmatpush1.msra.mxu0 %v3475
        %4917 = vmatprep.subr.mxu0 %v3484
        %4918 = vmatpush1.msra.mxu0 %v3483
        %4919 = vmatprep.subr.mxu0 %v3492
        %4920 = vmatpush1.msra.mxu0 %v3491
        %4921 = vmatprep.subr.mxu0 %v3500
        %4922 = vmatpush1.msra.mxu0 %v3499
        %4923 = vmatprep.subr.mxu0 %v3508
        %4924 = vmatpush1.msra.mxu0 %v3507
        %4925 = vmatprep.subr.mxu0 %v3516
        %4926 = vmatpush1.msra.mxu0 %v3515
        %4927 = vmatprep.subr.mxu0 %v3524
        %4928 = vmatpush1.msra.mxu0 %v3523
        %4929 = vmatprep.subr.mxu0 %v3532
        %4930 = vmatpush1.msra.mxu0 %v3531
        %4931 = vmatprep.subr.mxu0 %v3540
        %4932 = vmatpush1.msra.mxu0 %v3539
        %4933 = vmatprep.subr.mxu0 %v3548
        %4934 = vmatpush1.msra.mxu0 %v3547
        %4935 = vmatprep.subr.mxu0 %v3556
        %4936 = vmatpush1.msra.mxu0 %v3555
        %4937 = vmatprep.subr.mxu0 %v3564
        %4938 = vmatpush1.msra.mxu0 %v3563
        %4939 = vmatprep.subr.mxu0 %v3572
        %4940 = vmatpush1.msra.mxu0 %v3571
        %4941 = vmatprep.subr.mxu0 %v3580
        %4942 = vmatpush1.msra.mxu0 %v3579
        %4943 = vmatprep.subr.mxu0 %v3588
        %4944 = vmatpush1.msra.mxu0 %v3587
        %4945 = vmatprep.subr.mxu0 %v3596
        %4946 = vmatpush1.msra.mxu0 %v3595
        %4947 = vmatprep.subr.mxu0 %v3604
        %4948 = vmatpush1.msra.mxu0 %v3603
        %4949 = vmatprep.subr.mxu0 %v3612
        %4950 = vmatpush1.msra.mxu0 %v3611
        %4951 = vmatprep.subr.mxu0 %v3620
        %4952 = vmatpush1.msra.mxu0 %v3619
        %4953 = vmatprep.mubr.f32.mxu0 %v4007
        %4954 = vmatmul.mubr.f32.gmra.mrb[0].mxu0 %v3999
        %v4955 = vpop.f32.mrb[0].mxu0
        %v4956 = vadd.f32 %v4885, %v4955
        %v4957 = vpop.f32.mrb[0].mxu0
        %v4958 = vadd.f32 %v4887, %v4957
        %4959 = vdwg.mxu0
        %4960 = vmatprep.subr.mxu0 %v3628
        %4961 = vmatpush1.msra.mxu0 %v3627
        %4962 = vmatprep.subr.mxu0 %v3636
        %4963 = vmatpush1.msra.mxu0 %v3635
        %4964 = vmatprep.subr.mxu0 %v3644
        %4965 = vmatpush1.msra.mxu0 %v3643
        %4966 = vmatprep.subr.mxu0 %v3652
        %4967 = vmatpush1.msra.mxu0 %v3651
        %4968 = vmatprep.subr.mxu0 %v3660
        %4969 = vmatpush1.msra.mxu0 %v3659
        %4970 = vmatprep.subr.mxu0 %v3668
        %4971 = vmatpush1.msra.mxu0 %v3667
        %4972 = vmatprep.subr.mxu0 %v3676
        %4973 = vmatpush1.msra.mxu0 %v3675
        %4974 = vmatprep.subr.mxu0 %v3684
        %4975 = vmatpush1.msra.mxu0 %v3683
        %4976 = vmatprep.subr.mxu0 %v3692
        %4977 = vmatpush1.msra.mxu0 %v3691
        %4978 = vmatprep.subr.mxu0 %v3700
        %4979 = vmatpush1.msra.mxu0 %v3699
        %4980 = vmatprep.subr.mxu0 %v3708
        %4981 = vmatpush1.msra.mxu0 %v3707
        %4982 = vmatprep.subr.mxu0 %v3716
        %4983 = vmatpush1.msra.mxu0 %v3715
        %4984 = vmatprep.subr.mxu0 %v3724
        %4985 = vmatpush1.msra.mxu0 %v3723
        %4986 = vmatprep.subr.mxu0 %v3732
        %4987 = vmatpush1.msra.mxu0 %v3731
        %4988 = vmatprep.subr.mxu0 %v3740
        %4989 = vmatpush1.msra.mxu0 %v3739
        %4990 = vmatprep.subr.mxu0 %v3748
        %4991 = vmatpush1.msra.mxu0 %v3747
        %4992 = vmatprep.subr.mxu0 %v3756
        %4993 = vmatpush1.msra.mxu0 %v3755
        %4994 = vmatprep.subr.mxu0 %v3764
        %4995 = vmatpush1.msra.mxu0 %v3763
        %4996 = vmatprep.subr.mxu0 %v3772
        %4997 = vmatpush1.msra.mxu0 %v3771
        %4998 = vmatprep.subr.mxu0 %v3780
        %4999 = vmatpush1.msra.mxu0 %v3779
        %5000 = vmatprep.subr.mxu0 %v3788
        %5001 = vmatpush1.msra.mxu0 %v3787
        %5002 = vmatprep.subr.mxu0 %v3796
        %5003 = vmatpush1.msra.mxu0 %v3795
        %5004 = vmatprep.subr.mxu0 %v3804
        %5005 = vmatpush1.msra.mxu0 %v3803
        %5006 = vmatprep.subr.mxu0 %v3812
        %5007 = vmatpush1.msra.mxu0 %v3811
        %5008 = vmatprep.subr.mxu0 %v3820
        %5009 = vmatpush1.msra.mxu0 %v3819
        %5010 = vmatprep.subr.mxu0 %v3828
        %5011 = vmatpush1.msra.mxu0 %v3827
        %5012 = vmatprep.subr.mxu0 %v3836
        %5013 = vmatpush1.msra.mxu0 %v3835
        %5014 = vmatprep.subr.mxu0 %v3844
        %5015 = vmatpush1.msra.mxu0 %v3843
        %5016 = vmatprep.subr.mxu0 %v3852
        %5017 = vmatpush1.msra.mxu0 %v3851
        %5018 = vmatprep.subr.mxu0 %v3860
        %5019 = vmatpush1.msra.mxu0 %v3859
        %5020 = vmatprep.subr.mxu0 %v3868
        %5021 = vmatpush1.msra.mxu0 %v3867
        %5022 = vmatprep.subr.mxu0 %v3876
        %5023 = vmatpush1.msra.mxu0 %v3875
        %5024 = vmatprep.mubr.f32.mxu0 %v4008
        %5025 = vmatmul.mubr.f32.gmra.mrb[0].mxu0 %v4006
        %v5026 = vpop.f32.mrb[0].mxu0
        %v5027 = vadd.f32 %v4956, %v5026
        %v5028 = vpop.f32.mrb[0].mxu0
        %v5029 = vadd.f32 %v4958, %v5028
        %5030 = vdwg.mxu0
        %5031 = vmatprep.subr.mxu0 %v302
        %5032 = vmatpush1.msra.mxu0 %v301
        %5033 = vmatprep.subr.mxu0 %v310
        %5034 = vmatpush1.msra.mxu0 %v309
        %5035 = vmatprep.subr.mxu0 %v318
        %5036 = vmatpush1.msra.mxu0 %v317
        %5037 = vmatprep.subr.mxu0 %v326
        %5038 = vmatpush1.msra.mxu0 %v325
        %5039 = vmatprep.subr.mxu0 %v334
        %5040 = vmatpush1.msra.mxu0 %v333
        %5041 = vmatprep.subr.mxu0 %v342
        %5042 = vmatpush1.msra.mxu0 %v341
        %5043 = vmatprep.subr.mxu0 %v350
        %5044 = vmatpush1.msra.mxu0 %v349
        %5045 = vmatprep.subr.mxu0 %v358
        %5046 = vmatpush1.msra.mxu0 %v357
        %5047 = vmatprep.subr.mxu0 %v366
        %5048 = vmatpush1.msra.mxu0 %v365
        %5049 = vmatprep.subr.mxu0 %v374
        %5050 = vmatpush1.msra.mxu0 %v373
        %5051 = vmatprep.subr.mxu0 %v382
        %5052 = vmatpush1.msra.mxu0 %v381
        %5053 = vmatprep.subr.mxu0 %v390
        %5054 = vmatpush1.msra.mxu0 %v389
        %5055 = vmatprep.subr.mxu0 %v398
        %5056 = vmatpush1.msra.mxu0 %v397
        %5057 = vmatprep.subr.mxu0 %v406
        %5058 = vmatpush1.msra.mxu0 %v405
        %5059 = vmatprep.subr.mxu0 %v414
        %5060 = vmatpush1.msra.mxu0 %v413
        %5061 = vmatprep.subr.mxu0 %v422
        %5062 = vmatpush1.msra.mxu0 %v421
        %5063 = vmatprep.subr.mxu0 %v430
        %5064 = vmatpush1.msra.mxu0 %v429
        %5065 = vmatprep.subr.mxu0 %v438
        %5066 = vmatpush1.msra.mxu0 %v437
        %5067 = vmatprep.subr.mxu0 %v446
        %5068 = vmatpush1.msra.mxu0 %v445
        %5069 = vmatprep.subr.mxu0 %v454
        %5070 = vmatpush1.msra.mxu0 %v453
        %5071 = vmatprep.subr.mxu0 %v462
        %5072 = vmatpush1.msra.mxu0 %v461
        %5073 = vmatprep.subr.mxu0 %v470
        %5074 = vmatpush1.msra.mxu0 %v469
        %5075 = vmatprep.subr.mxu0 %v478
        %5076 = vmatpush1.msra.mxu0 %v477
        %5077 = vmatprep.subr.mxu0 %v486
        %5078 = vmatpush1.msra.mxu0 %v485
        %5079 = vmatprep.subr.mxu0 %v494
        %5080 = vmatpush1.msra.mxu0 %v493
        %5081 = vmatprep.subr.mxu0 %v502
        %5082 = vmatpush1.msra.mxu0 %v501
        %5083 = vmatprep.subr.mxu0 %v510
        %5084 = vmatpush1.msra.mxu0 %v509
        %5085 = vmatprep.subr.mxu0 %v518
        %5086 = vmatpush1.msra.mxu0 %v517
        %5087 = vmatprep.subr.mxu0 %v526
        %5088 = vmatpush1.msra.mxu0 %v525
        %5089 = vmatprep.subr.mxu0 %v534
        %5090 = vmatpush1.msra.mxu0 %v533
        %5091 = vmatprep.subr.mxu0 %v542
        %5092 = vmatpush1.msra.mxu0 %v541
        %5093 = vmatprep.subr.mxu0 %v550
        %5094 = vmatpush1.msra.mxu0 %v549
        %5095 = vmatprep.mubr.f32.mxu0 %v3905
        %5096 = vmatmul.mubr.f32.gmra.mrb[0].mxu0 %v3897
        %v5097 = vpop.f32.mrb[0].mxu0
        %v5098 = vadd.f32 0.0, %v5097
        %v5099 = vpop.f32.mrb[0].mxu0
        %v5100 = vadd.f32 0.0, %v5099
        %5101 = vdwg.mxu0
        %5102 = vmatprep.subr.mxu0 %v558
        %5103 = vmatpush1.msra.mxu0 %v557
        %5104 = vmatprep.subr.mxu0 %v566
        %5105 = vmatpush1.msra.mxu0 %v565
        %5106 = vmatprep.subr.mxu0 %v574
        %5107 = vmatpush1.msra.mxu0 %v573
        %5108 = vmatprep.subr.mxu0 %v582
        %5109 = vmatpush1.msra.mxu0 %v581
        %5110 = vmatprep.subr.mxu0 %v590
        %5111 = vmatpush1.msra.mxu0 %v589
        %5112 = vmatprep.subr.mxu0 %v598
        %5113 = vmatpush1.msra.mxu0 %v597
        %5114 = vmatprep.subr.mxu0 %v606
        %5115 = vmatpush1.msra.mxu0 %v605
        %5116 = vmatprep.subr.mxu0 %v614
        %5117 = vmatpush1.msra.mxu0 %v613
        %5118 = vmatprep.subr.mxu0 %v622
        %5119 = vmatpush1.msra.mxu0 %v621
        %5120 = vmatprep.subr.mxu0 %v630
        %5121 = vmatpush1.msra.mxu0 %v629
        %5122 = vmatprep.subr.mxu0 %v638
        %5123 = vmatpush1.msra.mxu0 %v637
        %5124 = vmatprep.subr.mxu0 %v646
        %5125 = vmatpush1.msra.mxu0 %v645
        %5126 = vmatprep.subr.mxu0 %v654
        %5127 = vmatpush1.msra.mxu0 %v653
        %5128 = vmatprep.subr.mxu0 %v662
        %5129 = vmatpush1.msra.mxu0 %v661
        %5130 = vmatprep.subr.mxu0 %v670
        %5131 = vmatpush1.msra.mxu0 %v669
        %5132 = vmatprep.subr.mxu0 %v678
        %5133 = vmatpush1.msra.mxu0 %v677
        %5134 = vmatprep.subr.mxu0 %v686
        %5135 = vmatpush1.msra.mxu0 %v685
        %5136 = vmatprep.subr.mxu0 %v694
        %5137 = vmatpush1.msra.mxu0 %v693
        %5138 = vmatprep.subr.mxu0 %v702
        %5139 = vmatpush1.msra.mxu0 %v701
        %5140 = vmatprep.subr.mxu0 %v710
        %5141 = vmatpush1.msra.mxu0 %v709
        %5142 = vmatprep.subr.mxu0 %v718
        %5143 = vmatpush1.msra.mxu0 %v717
        %5144 = vmatprep.subr.mxu0 %v726
        %5145 = vmatpush1.msra.mxu0 %v725
        %5146 = vmatprep.subr.mxu0 %v734
        %5147 = vmatpush1.msra.mxu0 %v733
        %5148 = vmatprep.subr.mxu0 %v742
        %5149 = vmatpush1.msra.mxu0 %v741
        %5150 = vmatprep.subr.mxu0 %v750
        %5151 = vmatpush1.msra.mxu0 %v749
        %5152 = vmatprep.subr.mxu0 %v758
        %5153 = vmatpush1.msra.mxu0 %v757
        %5154 = vmatprep.subr.mxu0 %v766
        %5155 = vmatpush1.msra.mxu0 %v765
        %5156 = vmatprep.subr.mxu0 %v774
        %5157 = vmatpush1.msra.mxu0 %v773
        %5158 = vmatprep.subr.mxu0 %v782
        %5159 = vmatpush1.msra.mxu0 %v781
        %5160 = vmatprep.subr.mxu0 %v790
        %5161 = vmatpush1.msra.mxu0 %v789
        %5162 = vmatprep.subr.mxu0 %v798
        %5163 = vmatpush1.msra.mxu0 %v797
        %5164 = vmatprep.subr.mxu0 %v806
        %5165 = vmatpush1.msra.mxu0 %v805
        %5166 = vmatprep.mubr.f32.mxu0 %v3906
        %5167 = vmatmul.mubr.f32.gmra.mrb[0].mxu0 %v3904
        %v5168 = vpop.f32.mrb[0].mxu0
        %v5169 = vadd.f32 %v5098, %v5168
        %v5170 = vpop.f32.mrb[0].mxu0
        %v5171 = vadd.f32 %v5100, %v5170
        %5172 = vdwg.mxu0
        %5173 = vmatprep.subr.mxu0 %v814
        %5174 = vmatpush1.msra.mxu0 %v813
        %5175 = vmatprep.subr.mxu0 %v822
        %5176 = vmatpush1.msra.mxu0 %v821
        %5177 = vmatprep.subr.mxu0 %v830
        %5178 = vmatpush1.msra.mxu0 %v829
        %5179 = vmatprep.subr.mxu0 %v838
        %5180 = vmatpush1.msra.mxu0 %v837
        %5181 = vmatprep.subr.mxu0 %v846
        %5182 = vmatpush1.msra.mxu0 %v845
        %5183 = vmatprep.subr.mxu0 %v854
        %5184 = vmatpush1.msra.mxu0 %v853
        %5185 = vmatprep.subr.mxu0 %v862
        %5186 = vmatpush1.msra.mxu0 %v861
        %5187 = vmatprep.subr.mxu0 %v870
        %5188 = vmatpush1.msra.mxu0 %v869
        %5189 = vmatprep.subr.mxu0 %v878
        %5190 = vmatpush1.msra.mxu0 %v877
        %5191 = vmatprep.subr.mxu0 %v886
        %5192 = vmatpush1.msra.mxu0 %v885
        %5193 = vmatprep.subr.mxu0 %v894
        %5194 = vmatpush1.msra.mxu0 %v893
        %5195 = vmatprep.subr.mxu0 %v902
        %5196 = vmatpush1.msra.mxu0 %v901
        %5197 = vmatprep.subr.mxu0 %v910
        %5198 = vmatpush1.msra.mxu0 %v909
        %5199 = vmatprep.subr.mxu0 %v918
        %5200 = vmatpush1.msra.mxu0 %v917
        %5201 = vmatprep.subr.mxu0 %v926
        %5202 = vmatpush1.msra.mxu0 %v925
        %5203 = vmatprep.subr.mxu0 %v934
        %5204 = vmatpush1.msra.mxu0 %v933
        %5205 = vmatprep.subr.mxu0 %v942
        %5206 = vmatpush1.msra.mxu0 %v941
        %5207 = vmatprep.subr.mxu0 %v950
        %5208 = vmatpush1.msra.mxu0 %v949
        %5209 = vmatprep.subr.mxu0 %v958
        %5210 = vmatpush1.msra.mxu0 %v957
        %5211 = vmatprep.subr.mxu0 %v966
        %5212 = vmatpush1.msra.mxu0 %v965
        %5213 = vmatprep.subr.mxu0 %v974
        %5214 = vmatpush1.msra.mxu0 %v973
        %5215 = vmatprep.subr.mxu0 %v982
        %5216 = vmatpush1.msra.mxu0 %v981
        %5217 = vmatprep.subr.mxu0 %v990
        %5218 = vmatpush1.msra.mxu0 %v989
        %5219 = vmatprep.subr.mxu0 %v998
        %5220 = vmatpush1.msra.mxu0 %v997
        %5221 = vmatprep.subr.mxu0 %v1006
        %5222 = vmatpush1.msra.mxu0 %v1005
        %5223 = vmatprep.subr.mxu0 %v1014
        %5224 = vmatpush1.msra.mxu0 %v1013
        %5225 = vmatprep.subr.mxu0 %v1022
        %5226 = vmatpush1.msra.mxu0 %v1021
        %5227 = vmatprep.subr.mxu0 %v1030
        %5228 = vmatpush1.msra.mxu0 %v1029
        %5229 = vmatprep.subr.mxu0 %v1038
        %5230 = vmatpush1.msra.mxu0 %v1037
        %5231 = vmatprep.subr.mxu0 %v1046
        %5232 = vmatpush1.msra.mxu0 %v1045
        %5233 = vmatprep.subr.mxu0 %v1054
        %5234 = vmatpush1.msra.mxu0 %v1053
        %5235 = vmatprep.subr.mxu0 %v1062
        %5236 = vmatpush1.msra.mxu0 %v1061
        %5237 = vmatprep.mubr.f32.mxu0 %v3922
        %5238 = vmatmul.mubr.f32.gmra.mrb[0].mxu0 %v3914
        %v5239 = vpop.f32.mrb[0].mxu0
        %v5240 = vadd.f32 %v5169, %v5239
        %v5241 = vpop.f32.mrb[0].mxu0
        %v5242 = vadd.f32 %v5171, %v5241
        %5243 = vdwg.mxu0
        %5244 = vmatprep.subr.mxu0 %v1070
        %5245 = vmatpush1.msra.mxu0 %v1069
        %5246 = vmatprep.subr.mxu0 %v1078
        %5247 = vmatpush1.msra.mxu0 %v1077
        %5248 = vmatprep.subr.mxu0 %v1086
        %5249 = vmatpush1.msra.mxu0 %v1085
        %5250 = vmatprep.subr.mxu0 %v1094
        %5251 = vmatpush1.msra.mxu0 %v1093
        %5252 = vmatprep.subr.mxu0 %v1102
        %5253 = vmatpush1.msra.mxu0 %v1101
        %5254 = vmatprep.subr.mxu0 %v1110
        %5255 = vmatpush1.msra.mxu0 %v1109
        %5256 = vmatprep.subr.mxu0 %v1118
        %5257 = vmatpush1.msra.mxu0 %v1117
        %5258 = vmatprep.subr.mxu0 %v1126
        %5259 = vmatpush1.msra.mxu0 %v1125
        %5260 = vmatprep.subr.mxu0 %v1134
        %5261 = vmatpush1.msra.mxu0 %v1133
        %5262 = vmatprep.subr.mxu0 %v1142
        %5263 = vmatpush1.msra.mxu0 %v1141
        %5264 = vmatprep.subr.mxu0 %v1150
        %5265 = vmatpush1.msra.mxu0 %v1149
        %5266 = vmatprep.subr.mxu0 %v1158
        %5267 = vmatpush1.msra.mxu0 %v1157
        %5268 = vmatprep.subr.mxu0 %v1166
        %5269 = vmatpush1.msra.mxu0 %v1165
        %5270 = vmatprep.subr.mxu0 %v1174
        %5271 = vmatpush1.msra.mxu0 %v1173
        %5272 = vmatprep.subr.mxu0 %v1182
        %5273 = vmatpush1.msra.mxu0 %v1181
        %5274 = vmatprep.subr.mxu0 %v1190
        %5275 = vmatpush1.msra.mxu0 %v1189
        %5276 = vmatprep.subr.mxu0 %v1198
        %5277 = vmatpush1.msra.mxu0 %v1197
        %5278 = vmatprep.subr.mxu0 %v1206
        %5279 = vmatpush1.msra.mxu0 %v1205
        %5280 = vmatprep.subr.mxu0 %v1214
        %5281 = vmatpush1.msra.mxu0 %v1213
        %5282 = vmatprep.subr.mxu0 %v1222
        %5283 = vmatpush1.msra.mxu0 %v1221
        %5284 = vmatprep.subr.mxu0 %v1230
        %5285 = vmatpush1.msra.mxu0 %v1229
        %5286 = vmatprep.subr.mxu0 %v1238
        %5287 = vmatpush1.msra.mxu0 %v1237
        %5288 = vmatprep.subr.mxu0 %v1246
        %5289 = vmatpush1.msra.mxu0 %v1245
        %5290 = vmatprep.subr.mxu0 %v1254
        %5291 = vmatpush1.msra.mxu0 %v1253
        %5292 = vmatprep.subr.mxu0 %v1262
        %5293 = vmatpush1.msra.mxu0 %v1261
        %5294 = vmatprep.subr.mxu0 %v1270
        %5295 = vmatpush1.msra.mxu0 %v1269
        %5296 = vmatprep.subr.mxu0 %v1278
        %5297 = vmatpush1.msra.mxu0 %v1277
        %5298 = vmatprep.subr.mxu0 %v1286
        %5299 = vmatpush1.msra.mxu0 %v1285
        %5300 = vmatprep.subr.mxu0 %v1294
        %5301 = vmatpush1.msra.mxu0 %v1293
        %5302 = vmatprep.subr.mxu0 %v1302
        %5303 = vmatpush1.msra.mxu0 %v1301
        %5304 = vmatprep.subr.mxu0 %v1310
        %5305 = vmatpush1.msra.mxu0 %v1309
        %5306 = vmatprep.subr.mxu0 %v1318
        %5307 = vmatpush1.msra.mxu0 %v1317
        %5308 = vmatprep.mubr.f32.mxu0 %v3923
        %5309 = vmatmul.mubr.f32.gmra.mrb[0].mxu0 %v3921
        %v5310 = vpop.f32.mrb[0].mxu0
        %v5311 = vadd.f32 %v5240, %v5310
        %v5312 = vpop.f32.mrb[0].mxu0
        %v5313 = vadd.f32 %v5242, %v5312
        %5314 = vdwg.mxu0
        %5315 = vmatprep.subr.mxu0 %v1326
        %5316 = vmatpush1.msra.mxu0 %v1325
        %5317 = vmatprep.subr.mxu0 %v1334
        %5318 = vmatpush1.msra.mxu0 %v1333
        %5319 = vmatprep.subr.mxu0 %v1342
        %5320 = vmatpush1.msra.mxu0 %v1341
        %5321 = vmatprep.subr.mxu0 %v1350
        %5322 = vmatpush1.msra.mxu0 %v1349
        %5323 = vmatprep.subr.mxu0 %v1358
        %5324 = vmatpush1.msra.mxu0 %v1357
        %5325 = vmatprep.subr.mxu0 %v1366
        %5326 = vmatpush1.msra.mxu0 %v1365
        %5327 = vmatprep.subr.mxu0 %v1374
        %5328 = vmatpush1.msra.mxu0 %v1373
        %5329 = vmatprep.subr.mxu0 %v1382
        %5330 = vmatpush1.msra.mxu0 %v1381
        %5331 = vmatprep.subr.mxu0 %v1390
        %5332 = vmatpush1.msra.mxu0 %v1389
        %5333 = vmatprep.subr.mxu0 %v1398
        %5334 = vmatpush1.msra.mxu0 %v1397
        %5335 = vmatprep.subr.mxu0 %v1406
        %5336 = vmatpush1.msra.mxu0 %v1405
        %5337 = vmatprep.subr.mxu0 %v1414
        %5338 = vmatpush1.msra.mxu0 %v1413
        %5339 = vmatprep.subr.mxu0 %v1422
        %5340 = vmatpush1.msra.mxu0 %v1421
        %5341 = vmatprep.subr.mxu0 %v1430
        %5342 = vmatpush1.msra.mxu0 %v1429
        %5343 = vmatprep.subr.mxu0 %v1438
        %5344 = vmatpush1.msra.mxu0 %v1437
        %5345 = vmatprep.subr.mxu0 %v1446
        %5346 = vmatpush1.msra.mxu0 %v1445
        %5347 = vmatprep.subr.mxu0 %v1454
        %5348 = vmatpush1.msra.mxu0 %v1453
        %5349 = vmatprep.subr.mxu0 %v1462
        %5350 = vmatpush1.msra.mxu0 %v1461
        %5351 = vmatprep.subr.mxu0 %v1470
        %5352 = vmatpush1.msra.mxu0 %v1469
        %5353 = vmatprep.subr.mxu0 %v1478
        %5354 = vmatpush1.msra.mxu0 %v1477
        %5355 = vmatprep.subr.mxu0 %v1486
        %5356 = vmatpush1.msra.mxu0 %v1485
        %5357 = vmatprep.subr.mxu0 %v1494
        %5358 = vmatpush1.msra.mxu0 %v1493
        %5359 = vmatprep.subr.mxu0 %v1502
        %5360 = vmatpush1.msra.mxu0 %v1501
        %5361 = vmatprep.subr.mxu0 %v1510
        %5362 = vmatpush1.msra.mxu0 %v1509
        %5363 = vmatprep.subr.mxu0 %v1518
        %5364 = vmatpush1.msra.mxu0 %v1517
        %5365 = vmatprep.subr.mxu0 %v1526
        %5366 = vmatpush1.msra.mxu0 %v1525
        %5367 = vmatprep.subr.mxu0 %v1534
        %5368 = vmatpush1.msra.mxu0 %v1533
        %5369 = vmatprep.subr.mxu0 %v1542
        %5370 = vmatpush1.msra.mxu0 %v1541
        %5371 = vmatprep.subr.mxu0 %v1550
        %5372 = vmatpush1.msra.mxu0 %v1549
        %5373 = vmatprep.subr.mxu0 %v1558
        %5374 = vmatpush1.msra.mxu0 %v1557
        %5375 = vmatprep.subr.mxu0 %v1566
        %5376 = vmatpush1.msra.mxu0 %v1565
        %5377 = vmatprep.subr.mxu0 %v1574
        %5378 = vmatpush1.msra.mxu0 %v1573
        %5379 = vmatprep.mubr.f32.mxu0 %v3939
        %5380 = vmatmul.mubr.f32.gmra.mrb[0].mxu0 %v3931
        %v5381 = vpop.f32.mrb[0].mxu0
        %v5382 = vadd.f32 %v5311, %v5381
        %v5383 = vpop.f32.mrb[0].mxu0
        %v5384 = vadd.f32 %v5313, %v5383
        %5385 = vdwg.mxu0
        %5386 = vmatprep.subr.mxu0 %v1582
        %5387 = vmatpush1.msra.mxu0 %v1581
        %5388 = vmatprep.subr.mxu0 %v1590
        %5389 = vmatpush1.msra.mxu0 %v1589
        %5390 = vmatprep.subr.mxu0 %v1598
        %5391 = vmatpush1.msra.mxu0 %v1597
        %5392 = vmatprep.subr.mxu0 %v1606
        %5393 = vmatpush1.msra.mxu0 %v1605
        %5394 = vmatprep.subr.mxu0 %v1614
        %5395 = vmatpush1.msra.mxu0 %v1613
        %5396 = vmatprep.subr.mxu0 %v1622
        %5397 = vmatpush1.msra.mxu0 %v1621
        %5398 = vmatprep.subr.mxu0 %v1630
        %5399 = vmatpush1.msra.mxu0 %v1629
        %5400 = vmatprep.subr.mxu0 %v1638
        %5401 = vmatpush1.msra.mxu0 %v1637
        %5402 = vmatprep.subr.mxu0 %v1646
        %5403 = vmatpush1.msra.mxu0 %v1645
        %5404 = vmatprep.subr.mxu0 %v1654
        %5405 = vmatpush1.msra.mxu0 %v1653
        %5406 = vmatprep.subr.mxu0 %v1662
        %5407 = vmatpush1.msra.mxu0 %v1661
        %5408 = vmatprep.subr.mxu0 %v1670
        %5409 = vmatpush1.msra.mxu0 %v1669
        %5410 = vmatprep.subr.mxu0 %v1678
        %5411 = vmatpush1.msra.mxu0 %v1677
        %5412 = vmatprep.subr.mxu0 %v1686
        %5413 = vmatpush1.msra.mxu0 %v1685
        %5414 = vmatprep.subr.mxu0 %v1694
        %5415 = vmatpush1.msra.mxu0 %v1693
        %5416 = vmatprep.subr.mxu0 %v1702
        %5417 = vmatpush1.msra.mxu0 %v1701
        %5418 = vmatprep.subr.mxu0 %v1710
        %5419 = vmatpush1.msra.mxu0 %v1709
        %5420 = vmatprep.subr.mxu0 %v1718
        %5421 = vmatpush1.msra.mxu0 %v1717
        %5422 = vmatprep.subr.mxu0 %v1726
        %5423 = vmatpush1.msra.mxu0 %v1725
        %5424 = vmatprep.subr.mxu0 %v1734
        %5425 = vmatpush1.msra.mxu0 %v1733
        %5426 = vmatprep.subr.mxu0 %v1742
        %5427 = vmatpush1.msra.mxu0 %v1741
        %5428 = vmatprep.subr.mxu0 %v1750
        %5429 = vmatpush1.msra.mxu0 %v1749
        %5430 = vmatprep.subr.mxu0 %v1758
        %5431 = vmatpush1.msra.mxu0 %v1757
        %5432 = vmatprep.subr.mxu0 %v1766
        %5433 = vmatpush1.msra.mxu0 %v1765
        %5434 = vmatprep.subr.mxu0 %v1774
        %5435 = vmatpush1.msra.mxu0 %v1773
        %5436 = vmatprep.subr.mxu0 %v1782
        %5437 = vmatpush1.msra.mxu0 %v1781
        %5438 = vmatprep.subr.mxu0 %v1790
        %5439 = vmatpush1.msra.mxu0 %v1789
        %5440 = vmatprep.subr.mxu0 %v1798
        %5441 = vmatpush1.msra.mxu0 %v1797
        %5442 = vmatprep.subr.mxu0 %v1806
        %5443 = vmatpush1.msra.mxu0 %v1805
        %5444 = vmatprep.subr.mxu0 %v1814
        %5445 = vmatpush1.msra.mxu0 %v1813
        %5446 = vmatprep.subr.mxu0 %v1822
        %5447 = vmatpush1.msra.mxu0 %v1821
        %5448 = vmatprep.subr.mxu0 %v1830
        %5449 = vmatpush1.msra.mxu0 %v1829
        %5450 = vmatprep.mubr.f32.mxu0 %v3940
        %5451 = vmatmul.mubr.f32.gmra.mrb[0].mxu0 %v3938
        %v5452 = vpop.f32.mrb[0].mxu0
        %v5453 = vadd.f32 %v5382, %v5452
        %v5454 = vpop.f32.mrb[0].mxu0
        %v5455 = vadd.f32 %v5384, %v5454
        %5456 = vdwg.mxu0
        %5457 = vmatprep.subr.mxu0 %v1838
        %5458 = vmatpush1.msra.mxu0 %v1837
        %5459 = vmatprep.subr.mxu0 %v1846
        %5460 = vmatpush1.msra.mxu0 %v1845
        %5461 = vmatprep.subr.mxu0 %v1854
        %5462 = vmatpush1.msra.mxu0 %v1853
        %5463 = vmatprep.subr.mxu0 %v1862
        %5464 = vmatpush1.msra.mxu0 %v1861
        %5465 = vmatprep.subr.mxu0 %v1870
        %5466 = vmatpush1.msra.mxu0 %v1869
        %5467 = vmatprep.subr.mxu0 %v1878
        %5468 = vmatpush1.msra.mxu0 %v1877
        %5469 = vmatprep.subr.mxu0 %v1886
        %5470 = vmatpush1.msra.mxu0 %v1885
        %5471 = vmatprep.subr.mxu0 %v1894
        %5472 = vmatpush1.msra.mxu0 %v1893
        %5473 = vmatprep.subr.mxu0 %v1902
        %5474 = vmatpush1.msra.mxu0 %v1901
        %5475 = vmatprep.subr.mxu0 %v1910
        %5476 = vmatpush1.msra.mxu0 %v1909
        %5477 = vmatprep.subr.mxu0 %v1918
        %5478 = vmatpush1.msra.mxu0 %v1917
        %5479 = vmatprep.subr.mxu0 %v1926
        %5480 = vmatpush1.msra.mxu0 %v1925
        %5481 = vmatprep.subr.mxu0 %v1934
        %5482 = vmatpush1.msra.mxu0 %v1933
        %5483 = vmatprep.subr.mxu0 %v1942
        %5484 = vmatpush1.msra.mxu0 %v1941
        %5485 = vmatprep.subr.mxu0 %v1950
        %5486 = vmatpush1.msra.mxu0 %v1949
        %5487 = vmatprep.subr.mxu0 %v1958
        %5488 = vmatpush1.msra.mxu0 %v1957
        %5489 = vmatprep.subr.mxu0 %v1966
        %5490 = vmatpush1.msra.mxu0 %v1965
        %5491 = vmatprep.subr.mxu0 %v1974
        %5492 = vmatpush1.msra.mxu0 %v1973
        %5493 = vmatprep.subr.mxu0 %v1982
        %5494 = vmatpush1.msra.mxu0 %v1981
        %5495 = vmatprep.subr.mxu0 %v1990
        %5496 = vmatpush1.msra.mxu0 %v1989
        %5497 = vmatprep.subr.mxu0 %v1998
        %5498 = vmatpush1.msra.mxu0 %v1997
        %5499 = vmatprep.subr.mxu0 %v2006
        %5500 = vmatpush1.msra.mxu0 %v2005
        %5501 = vmatprep.subr.mxu0 %v2014
        %5502 = vmatpush1.msra.mxu0 %v2013
        %5503 = vmatprep.subr.mxu0 %v2022
        %5504 = vmatpush1.msra.mxu0 %v2021
        %5505 = vmatprep.subr.mxu0 %v2030
        %5506 = vmatpush1.msra.mxu0 %v2029
        %5507 = vmatprep.subr.mxu0 %v2038
        %5508 = vmatpush1.msra.mxu0 %v2037
        %5509 = vmatprep.subr.mxu0 %v2046
        %5510 = vmatpush1.msra.mxu0 %v2045
        %5511 = vmatprep.subr.mxu0 %v2054
        %5512 = vmatpush1.msra.mxu0 %v2053
        %5513 = vmatprep.subr.mxu0 %v2062
        %5514 = vmatpush1.msra.mxu0 %v2061
        %5515 = vmatprep.subr.mxu0 %v2070
        %5516 = vmatpush1.msra.mxu0 %v2069
        %5517 = vmatprep.subr.mxu0 %v2078
        %5518 = vmatpush1.msra.mxu0 %v2077
        %5519 = vmatprep.subr.mxu0 %v2086
        %5520 = vmatpush1.msra.mxu0 %v2085
        %5521 = vmatprep.mubr.f32.mxu0 %v3956
        %5522 = vmatmul.mubr.f32.gmra.mrb[0].mxu0 %v3948
        %v5523 = vpop.f32.mrb[0].mxu0
        %v5524 = vadd.f32 %v5453, %v5523
        %v5525 = vpop.f32.mrb[0].mxu0
        %v5526 = vadd.f32 %v5455, %v5525
        %5527 = vdwg.mxu0
        %5528 = vmatprep.subr.mxu0 %v2094
        %5529 = vmatpush1.msra.mxu0 %v2093
        %5530 = vmatprep.subr.mxu0 %v2102
        %5531 = vmatpush1.msra.mxu0 %v2101
        %5532 = vmatprep.subr.mxu0 %v2110
        %5533 = vmatpush1.msra.mxu0 %v2109
        %5534 = vmatprep.subr.mxu0 %v2118
        %5535 = vmatpush1.msra.mxu0 %v2117
        %5536 = vmatprep.subr.mxu0 %v2126
        %5537 = vmatpush1.msra.mxu0 %v2125
        %5538 = vmatprep.subr.mxu0 %v2134
        %5539 = vmatpush1.msra.mxu0 %v2133
        %5540 = vmatprep.subr.mxu0 %v2142
        %5541 = vmatpush1.msra.mxu0 %v2141
        %5542 = vmatprep.subr.mxu0 %v2150
        %5543 = vmatpush1.msra.mxu0 %v2149
        %5544 = vmatprep.subr.mxu0 %v2158
        %5545 = vmatpush1.msra.mxu0 %v2157
        %5546 = vmatprep.subr.mxu0 %v2166
        %5547 = vmatpush1.msra.mxu0 %v2165
        %5548 = vmatprep.subr.mxu0 %v2174
        %5549 = vmatpush1.msra.mxu0 %v2173
        %5550 = vmatprep.subr.mxu0 %v2182
        %5551 = vmatpush1.msra.mxu0 %v2181
        %5552 = vmatprep.subr.mxu0 %v2190
        %5553 = vmatpush1.msra.mxu0 %v2189
        %5554 = vmatprep.subr.mxu0 %v2198
        %5555 = vmatpush1.msra.mxu0 %v2197
        %5556 = vmatprep.subr.mxu0 %v2206
        %5557 = vmatpush1.msra.mxu0 %v2205
        %5558 = vmatprep.subr.mxu0 %v2214
        %5559 = vmatpush1.msra.mxu0 %v2213
        %5560 = vmatprep.subr.mxu0 %v2222
        %5561 = vmatpush1.msra.mxu0 %v2221
        %5562 = vmatprep.subr.mxu0 %v2230
        %5563 = vmatpush1.msra.mxu0 %v2229
        %5564 = vmatprep.subr.mxu0 %v2238
        %5565 = vmatpush1.msra.mxu0 %v2237
        %5566 = vmatprep.subr.mxu0 %v2246
        %5567 = vmatpush1.msra.mxu0 %v2245
        %5568 = vmatprep.subr.mxu0 %v2254
        %5569 = vmatpush1.msra.mxu0 %v2253
        %5570 = vmatprep.subr.mxu0 %v2262
        %5571 = vmatpush1.msra.mxu0 %v2261
        %5572 = vmatprep.subr.mxu0 %v2270
        %5573 = vmatpush1.msra.mxu0 %v2269
        %5574 = vmatprep.subr.mxu0 %v2278
        %5575 = vmatpush1.msra.mxu0 %v2277
        %5576 = vmatprep.subr.mxu0 %v2286
        %5577 = vmatpush1.msra.mxu0 %v2285
        %5578 = vmatprep.subr.mxu0 %v2294
        %5579 = vmatpush1.msra.mxu0 %v2293
        %5580 = vmatprep.subr.mxu0 %v2302
        %5581 = vmatpush1.msra.mxu0 %v2301
        %5582 = vmatprep.subr.mxu0 %v2310
        %5583 = vmatpush1.msra.mxu0 %v2309
        %5584 = vmatprep.subr.mxu0 %v2318
        %5585 = vmatpush1.msra.mxu0 %v2317
        %5586 = vmatprep.subr.mxu0 %v2326
        %5587 = vmatpush1.msra.mxu0 %v2325
        %5588 = vmatprep.subr.mxu0 %v2334
        %5589 = vmatpush1.msra.mxu0 %v2333
        %5590 = vmatprep.subr.mxu0 %v2342
        %5591 = vmatpush1.msra.mxu0 %v2341
        %5592 = vmatprep.mubr.f32.mxu0 %v3957
        %5593 = vmatmul.mubr.f32.gmra.mrb[0].mxu0 %v3955
        %v5594 = vpop.f32.mrb[0].mxu0
        %v5595 = vadd.f32 %v5524, %v5594
        %v5596 = vpop.f32.mrb[0].mxu0
        %v5597 = vadd.f32 %v5526, %v5596
        %5598 = vdwg.mxu0
        %5599 = vmatprep.subr.mxu0 %v2350
        %5600 = vmatpush1.msra.mxu0 %v2349
        %5601 = vmatprep.subr.mxu0 %v2358
        %5602 = vmatpush1.msra.mxu0 %v2357
        %5603 = vmatprep.subr.mxu0 %v2366
        %5604 = vmatpush1.msra.mxu0 %v2365
        %5605 = vmatprep.subr.mxu0 %v2374
        %5606 = vmatpush1.msra.mxu0 %v2373
        %5607 = vmatprep.subr.mxu0 %v2382
        %5608 = vmatpush1.msra.mxu0 %v2381
        %5609 = vmatprep.subr.mxu0 %v2390
        %5610 = vmatpush1.msra.mxu0 %v2389
        %5611 = vmatprep.subr.mxu0 %v2398
        %5612 = vmatpush1.msra.mxu0 %v2397
        %5613 = vmatprep.subr.mxu0 %v2406
        %5614 = vmatpush1.msra.mxu0 %v2405
        %5615 = vmatprep.subr.mxu0 %v2414
        %5616 = vmatpush1.msra.mxu0 %v2413
        %5617 = vmatprep.subr.mxu0 %v2422
        %5618 = vmatpush1.msra.mxu0 %v2421
        %5619 = vmatprep.subr.mxu0 %v2430
        %5620 = vmatpush1.msra.mxu0 %v2429
        %5621 = vmatprep.subr.mxu0 %v2438
        %5622 = vmatpush1.msra.mxu0 %v2437
        %5623 = vmatprep.subr.mxu0 %v2446
        %5624 = vmatpush1.msra.mxu0 %v2445
        %5625 = vmatprep.subr.mxu0 %v2454
        %5626 = vmatpush1.msra.mxu0 %v2453
        %5627 = vmatprep.subr.mxu0 %v2462
        %5628 = vmatpush1.msra.mxu0 %v2461
        %5629 = vmatprep.subr.mxu0 %v2470
        %5630 = vmatpush1.msra.mxu0 %v2469
        %5631 = vmatprep.subr.mxu0 %v2478
        %5632 = vmatpush1.msra.mxu0 %v2477
        %5633 = vmatprep.subr.mxu0 %v2486
        %5634 = vmatpush1.msra.mxu0 %v2485
        %5635 = vmatprep.subr.mxu0 %v2494
        %5636 = vmatpush1.msra.mxu0 %v2493
        %5637 = vmatprep.subr.mxu0 %v2502
        %5638 = vmatpush1.msra.mxu0 %v2501
        %5639 = vmatprep.subr.mxu0 %v2510
        %5640 = vmatpush1.msra.mxu0 %v2509
        %5641 = vmatprep.subr.mxu0 %v2518
        %5642 = vmatpush1.msra.mxu0 %v2517
        %5643 = vmatprep.subr.mxu0 %v2526
        %5644 = vmatpush1.msra.mxu0 %v2525
        %5645 = vmatprep.subr.mxu0 %v2534
        %5646 = vmatpush1.msra.mxu0 %v2533
        %5647 = vmatprep.subr.mxu0 %v2542
        %5648 = vmatpush1.msra.mxu0 %v2541
        %5649 = vmatprep.subr.mxu0 %v2550
        %5650 = vmatpush1.msra.mxu0 %v2549
        %5651 = vmatprep.subr.mxu0 %v2558
        %5652 = vmatpush1.msra.mxu0 %v2557
        %5653 = vmatprep.subr.mxu0 %v2566
        %5654 = vmatpush1.msra.mxu0 %v2565
        %5655 = vmatprep.subr.mxu0 %v2574
        %5656 = vmatpush1.msra.mxu0 %v2573
        %5657 = vmatprep.subr.mxu0 %v2582
        %5658 = vmatpush1.msra.mxu0 %v2581
        %5659 = vmatprep.subr.mxu0 %v2590
        %5660 = vmatpush1.msra.mxu0 %v2589
        %5661 = vmatprep.subr.mxu0 %v2598
        %5662 = vmatpush1.msra.mxu0 %v2597
        %5663 = vmatprep.mubr.f32.mxu0 %v3973
        %5664 = vmatmul.mubr.f32.gmra.mrb[0].mxu0 %v3965
        %v5665 = vpop.f32.mrb[0].mxu0
        %v5666 = vadd.f32 %v5595, %v5665
        %v5667 = vpop.f32.mrb[0].mxu0
        %v5668 = vadd.f32 %v5597, %v5667
        %5669 = vdwg.mxu0
        %5670 = vmatprep.subr.mxu0 %v2606
        %5671 = vmatpush1.msra.mxu0 %v2605
        %5672 = vmatprep.subr.mxu0 %v2614
        %5673 = vmatpush1.msra.mxu0 %v2613
        %5674 = vmatprep.subr.mxu0 %v2622
        %5675 = vmatpush1.msra.mxu0 %v2621
        %5676 = vmatprep.subr.mxu0 %v2630
        %5677 = vmatpush1.msra.mxu0 %v2629
        %5678 = vmatprep.subr.mxu0 %v2638
        %5679 = vmatpush1.msra.mxu0 %v2637
        %5680 = vmatprep.subr.mxu0 %v2646
        %5681 = vmatpush1.msra.mxu0 %v2645
        %5682 = vmatprep.subr.mxu0 %v2654
        %5683 = vmatpush1.msra.mxu0 %v2653
        %5684 = vmatprep.subr.mxu0 %v2662
        %5685 = vmatpush1.msra.mxu0 %v2661
        %5686 = vmatprep.subr.mxu0 %v2670
        %5687 = vmatpush1.msra.mxu0 %v2669
        %5688 = vmatprep.subr.mxu0 %v2678
        %5689 = vmatpush1.msra.mxu0 %v2677
        %5690 = vmatprep.subr.mxu0 %v2686
        %5691 = vmatpush1.msra.mxu0 %v2685
        %5692 = vmatprep.subr.mxu0 %v2694
        %5693 = vmatpush1.msra.mxu0 %v2693
        %5694 = vmatprep.subr.mxu0 %v2702
        %5695 = vmatpush1.msra.mxu0 %v2701
        %5696 = vmatprep.subr.mxu0 %v2710
        %5697 = vmatpush1.msra.mxu0 %v2709
        %5698 = vmatprep.subr.mxu0 %v2718
        %5699 = vmatpush1.msra.mxu0 %v2717
        %5700 = vmatprep.subr.mxu0 %v2726
        %5701 = vmatpush1.msra.mxu0 %v2725
        %5702 = vmatprep.subr.mxu0 %v2734
        %5703 = vmatpush1.msra.mxu0 %v2733
        %5704 = vmatprep.subr.mxu0 %v2742
        %5705 = vmatpush1.msra.mxu0 %v2741
        %5706 = vmatprep.subr.mxu0 %v2750
        %5707 = vmatpush1.msra.mxu0 %v2749
        %5708 = vmatprep.subr.mxu0 %v2758
        %5709 = vmatpush1.msra.mxu0 %v2757
        %5710 = vmatprep.subr.mxu0 %v2766
        %5711 = vmatpush1.msra.mxu0 %v2765
        %5712 = vmatprep.subr.mxu0 %v2774
        %5713 = vmatpush1.msra.mxu0 %v2773
        %5714 = vmatprep.subr.mxu0 %v2782
        %5715 = vmatpush1.msra.mxu0 %v2781
        %5716 = vmatprep.subr.mxu0 %v2790
        %5717 = vmatpush1.msra.mxu0 %v2789
        %5718 = vmatprep.subr.mxu0 %v2798
        %5719 = vmatpush1.msra.mxu0 %v2797
        %5720 = vmatprep.subr.mxu0 %v2806
        %5721 = vmatpush1.msra.mxu0 %v2805
        %5722 = vmatprep.subr.mxu0 %v2814
        %5723 = vmatpush1.msra.mxu0 %v2813
        %5724 = vmatprep.subr.mxu0 %v2822
        %5725 = vmatpush1.msra.mxu0 %v2821
        %5726 = vmatprep.subr.mxu0 %v2830
        %5727 = vmatpush1.msra.mxu0 %v2829
        %5728 = vmatprep.subr.mxu0 %v2838
        %5729 = vmatpush1.msra.mxu0 %v2837
        %5730 = vmatprep.subr.mxu0 %v2846
        %5731 = vmatpush1.msra.mxu0 %v2845
        %5732 = vmatprep.subr.mxu0 %v2854
        %5733 = vmatpush1.msra.mxu0 %v2853
        %5734 = vmatprep.mubr.f32.mxu0 %v3974
        %5735 = vmatmul.mubr.f32.gmra.mrb[0].mxu0 %v3972
        %v5736 = vpop.f32.mrb[0].mxu0
        %v5737 = vadd.f32 %v5666, %v5736
        %v5738 = vpop.f32.mrb[0].mxu0
        %v5739 = vadd.f32 %v5668, %v5738
        %5740 = vdwg.mxu0
        %5741 = vmatprep.subr.mxu0 %v2862
        %5742 = vmatpush1.msra.mxu0 %v2861
        %5743 = vmatprep.subr.mxu0 %v2870
        %5744 = vmatpush1.msra.mxu0 %v2869
        %5745 = vmatprep.subr.mxu0 %v2878
        %5746 = vmatpush1.msra.mxu0 %v2877
        %5747 = vmatprep.subr.mxu0 %v2886
        %5748 = vmatpush1.msra.mxu0 %v2885
        %5749 = vmatprep.subr.mxu0 %v2894
        %5750 = vmatpush1.msra.mxu0 %v2893
        %5751 = vmatprep.subr.mxu0 %v2902
        %5752 = vmatpush1.msra.mxu0 %v2901
        %5753 = vmatprep.subr.mxu0 %v2910
        %5754 = vmatpush1.msra.mxu0 %v2909
        %5755 = vmatprep.subr.mxu0 %v2918
        %5756 = vmatpush1.msra.mxu0 %v2917
        %5757 = vmatprep.subr.mxu0 %v2926
        %5758 = vmatpush1.msra.mxu0 %v2925
        %5759 = vmatprep.subr.mxu0 %v2934
        %5760 = vmatpush1.msra.mxu0 %v2933
        %5761 = vmatprep.subr.mxu0 %v2942
        %5762 = vmatpush1.msra.mxu0 %v2941
        %5763 = vmatprep.subr.mxu0 %v2950
        %5764 = vmatpush1.msra.mxu0 %v2949
        %5765 = vmatprep.subr.mxu0 %v2958
        %5766 = vmatpush1.msra.mxu0 %v2957
        %5767 = vmatprep.subr.mxu0 %v2966
        %5768 = vmatpush1.msra.mxu0 %v2965
        %5769 = vmatprep.subr.mxu0 %v2974
        %5770 = vmatpush1.msra.mxu0 %v2973
        %5771 = vmatprep.subr.mxu0 %v2982
        %5772 = vmatpush1.msra.mxu0 %v2981
        %5773 = vmatprep.subr.mxu0 %v2990
        %5774 = vmatpush1.msra.mxu0 %v2989
        %5775 = vmatprep.subr.mxu0 %v2998
        %5776 = vmatpush1.msra.mxu0 %v2997
        %5777 = vmatprep.subr.mxu0 %v3006
        %5778 = vmatpush1.msra.mxu0 %v3005
        %5779 = vmatprep.subr.mxu0 %v3014
        %5780 = vmatpush1.msra.mxu0 %v3013
        %5781 = vmatprep.subr.mxu0 %v3022
        %5782 = vmatpush1.msra.mxu0 %v3021
        %5783 = vmatprep.subr.mxu0 %v3030
        %5784 = vmatpush1.msra.mxu0 %v3029
        %5785 = vmatprep.subr.mxu0 %v3038
        %5786 = vmatpush1.msra.mxu0 %v3037
        %5787 = vmatprep.subr.mxu0 %v3046
        %5788 = vmatpush1.msra.mxu0 %v3045
        %5789 = vmatprep.subr.mxu0 %v3054
        %5790 = vmatpush1.msra.mxu0 %v3053
        %5791 = vmatprep.subr.mxu0 %v3062
        %5792 = vmatpush1.msra.mxu0 %v3061
        %5793 = vmatprep.subr.mxu0 %v3070
        %5794 = vmatpush1.msra.mxu0 %v3069
        %5795 = vmatprep.subr.mxu0 %v3078
        %5796 = vmatpush1.msra.mxu0 %v3077
        %5797 = vmatprep.subr.mxu0 %v3086
        %5798 = vmatpush1.msra.mxu0 %v3085
        %5799 = vmatprep.subr.mxu0 %v3094
        %5800 = vmatpush1.msra.mxu0 %v3093
        %5801 = vmatprep.subr.mxu0 %v3102
        %5802 = vmatpush1.msra.mxu0 %v3101
        %5803 = vmatprep.subr.mxu0 %v3110
        %5804 = vmatpush1.msra.mxu0 %v3109
        %5805 = vmatprep.mubr.f32.mxu0 %v3990
        %5806 = vmatmul.mubr.f32.gmra.mrb[0].mxu0 %v3982
        %v5807 = vpop.f32.mrb[0].mxu0
        %v5808 = vadd.f32 %v5737, %v5807
        %v5809 = vpop.f32.mrb[0].mxu0
        %v5810 = vadd.f32 %v5739, %v5809
        %5811 = vdwg.mxu0
        %5812 = vmatprep.subr.mxu0 %v3118
        %5813 = vmatpush1.msra.mxu0 %v3117
        %5814 = vmatprep.subr.mxu0 %v3126
        %5815 = vmatpush1.msra.mxu0 %v3125
        %5816 = vmatprep.subr.mxu0 %v3134
        %5817 = vmatpush1.msra.mxu0 %v3133
        %5818 = vmatprep.subr.mxu0 %v3142
        %5819 = vmatpush1.msra.mxu0 %v3141
        %5820 = vmatprep.subr.mxu0 %v3150
        %5821 = vmatpush1.msra.mxu0 %v3149
        %5822 = vmatprep.subr.mxu0 %v3158
        %5823 = vmatpush1.msra.mxu0 %v3157
        %5824 = vmatprep.subr.mxu0 %v3166
        %5825 = vmatpush1.msra.mxu0 %v3165
        %5826 = vmatprep.subr.mxu0 %v3174
        %5827 = vmatpush1.msra.mxu0 %v3173
        %5828 = vmatprep.subr.mxu0 %v3182
        %5829 = vmatpush1.msra.mxu0 %v3181
        %5830 = vmatprep.subr.mxu0 %v3190
        %5831 = vmatpush1.msra.mxu0 %v3189
        %5832 = vmatprep.subr.mxu0 %v3198
        %5833 = vmatpush1.msra.mxu0 %v3197
        %5834 = vmatprep.subr.mxu0 %v3206
        %5835 = vmatpush1.msra.mxu0 %v3205
        %5836 = vmatprep.subr.mxu0 %v3214
        %5837 = vmatpush1.msra.mxu0 %v3213
        %5838 = vmatprep.subr.mxu0 %v3222
        %5839 = vmatpush1.msra.mxu0 %v3221
        %5840 = vmatprep.subr.mxu0 %v3230
        %5841 = vmatpush1.msra.mxu0 %v3229
        %5842 = vmatprep.subr.mxu0 %v3238
        %5843 = vmatpush1.msra.mxu0 %v3237
        %5844 = vmatprep.subr.mxu0 %v3246
        %5845 = vmatpush1.msra.mxu0 %v3245
        %5846 = vmatprep.subr.mxu0 %v3254
        %5847 = vmatpush1.msra.mxu0 %v3253
        %5848 = vmatprep.subr.mxu0 %v3262
        %5849 = vmatpush1.msra.mxu0 %v3261
        %5850 = vmatprep.subr.mxu0 %v3270
        %5851 = vmatpush1.msra.mxu0 %v3269
        %5852 = vmatprep.subr.mxu0 %v3278
        %5853 = vmatpush1.msra.mxu0 %v3277
        %5854 = vmatprep.subr.mxu0 %v3286
        %5855 = vmatpush1.msra.mxu0 %v3285
        %5856 = vmatprep.subr.mxu0 %v3294
        %5857 = vmatpush1.msra.mxu0 %v3293
        %5858 = vmatprep.subr.mxu0 %v3302
        %5859 = vmatpush1.msra.mxu0 %v3301
        %5860 = vmatprep.subr.mxu0 %v3310
        %5861 = vmatpush1.msra.mxu0 %v3309
        %5862 = vmatprep.subr.mxu0 %v3318
        %5863 = vmatpush1.msra.mxu0 %v3317
        %5864 = vmatprep.subr.mxu0 %v3326
        %5865 = vmatpush1.msra.mxu0 %v3325
        %5866 = vmatprep.subr.mxu0 %v3334
        %5867 = vmatpush1.msra.mxu0 %v3333
        %5868 = vmatprep.subr.mxu0 %v3342
        %5869 = vmatpush1.msra.mxu0 %v3341
        %5870 = vmatprep.subr.mxu0 %v3350
        %5871 = vmatpush1.msra.mxu0 %v3349
        %5872 = vmatprep.subr.mxu0 %v3358
        %5873 = vmatpush1.msra.mxu0 %v3357
        %5874 = vmatprep.subr.mxu0 %v3366
        %5875 = vmatpush1.msra.mxu0 %v3365
        %5876 = vmatprep.mubr.f32.mxu0 %v3991
        %5877 = vmatmul.mubr.f32.gmra.mrb[0].mxu0 %v3989
        %v5878 = vpop.f32.mrb[0].mxu0
        %v5879 = vadd.f32 %v5808, %v5878
        %v5880 = vpop.f32.mrb[0].mxu0
        %v5881 = vadd.f32 %v5810, %v5880
        %5882 = vdwg.mxu0
        %5883 = vmatprep.subr.mxu0 %v3374
        %5884 = vmatpush1.msra.mxu0 %v3373
        %5885 = vmatprep.subr.mxu0 %v3382
        %5886 = vmatpush1.msra.mxu0 %v3381
        %5887 = vmatprep.subr.mxu0 %v3390
        %5888 = vmatpush1.msra.mxu0 %v3389
        %5889 = vmatprep.subr.mxu0 %v3398
        %5890 = vmatpush1.msra.mxu0 %v3397
        %5891 = vmatprep.subr.mxu0 %v3406
        %5892 = vmatpush1.msra.mxu0 %v3405
        %5893 = vmatprep.subr.mxu0 %v3414
        %5894 = vmatpush1.msra.mxu0 %v3413
        %5895 = vmatprep.subr.mxu0 %v3422
        %5896 = vmatpush1.msra.mxu0 %v3421
        %5897 = vmatprep.subr.mxu0 %v3430
        %5898 = vmatpush1.msra.mxu0 %v3429
        %5899 = vmatprep.subr.mxu0 %v3438
        %5900 = vmatpush1.msra.mxu0 %v3437
        %5901 = vmatprep.subr.mxu0 %v3446
        %5902 = vmatpush1.msra.mxu0 %v3445
        %5903 = vmatprep.subr.mxu0 %v3454
        %5904 = vmatpush1.msra.mxu0 %v3453
        %5905 = vmatprep.subr.mxu0 %v3462
        %5906 = vmatpush1.msra.mxu0 %v3461
        %5907 = vmatprep.subr.mxu0 %v3470
        %5908 = vmatpush1.msra.mxu0 %v3469
        %5909 = vmatprep.subr.mxu0 %v3478
        %5910 = vmatpush1.msra.mxu0 %v3477
        %5911 = vmatprep.subr.mxu0 %v3486
        %5912 = vmatpush1.msra.mxu0 %v3485
        %5913 = vmatprep.subr.mxu0 %v3494
        %5914 = vmatpush1.msra.mxu0 %v3493
        %5915 = vmatprep.subr.mxu0 %v3502
        %5916 = vmatpush1.msra.mxu0 %v3501
        %5917 = vmatprep.subr.mxu0 %v3510
        %5918 = vmatpush1.msra.mxu0 %v3509
        %5919 = vmatprep.subr.mxu0 %v3518
        %5920 = vmatpush1.msra.mxu0 %v3517
        %5921 = vmatprep.subr.mxu0 %v3526
        %5922 = vmatpush1.msra.mxu0 %v3525
        %5923 = vmatprep.subr.mxu0 %v3534
        %5924 = vmatpush1.msra.mxu0 %v3533
        %5925 = vmatprep.subr.mxu0 %v3542
        %5926 = vmatpush1.msra.mxu0 %v3541
        %5927 = vmatprep.subr.mxu0 %v3550
        %5928 = vmatpush1.msra.mxu0 %v3549
        %5929 = vmatprep.subr.mxu0 %v3558
        %5930 = vmatpush1.msra.mxu0 %v3557
        %5931 = vmatprep.subr.mxu0 %v3566
        %5932 = vmatpush1.msra.mxu0 %v3565
        %5933 = vmatprep.subr.mxu0 %v3574
        %5934 = vmatpush1.msra.mxu0 %v3573
        %5935 = vmatprep.subr.mxu0 %v3582
        %5936 = vmatpush1.msra.mxu0 %v3581
        %5937 = vmatprep.subr.mxu0 %v3590
        %5938 = vmatpush1.msra.mxu0 %v3589
        %5939 = vmatprep.subr.mxu0 %v3598
        %5940 = vmatpush1.msra.mxu0 %v3597
        %5941 = vmatprep.subr.mxu0 %v3606
        %5942 = vmatpush1.msra.mxu0 %v3605
        %5943 = vmatprep.subr.mxu0 %v3614
        %5944 = vmatpush1.msra.mxu0 %v3613
        %5945 = vmatprep.subr.mxu0 %v3622
        %5946 = vmatpush1.msra.mxu0 %v3621
        %5947 = vmatprep.mubr.f32.mxu0 %v4007
        %5948 = vmatmul.mubr.f32.gmra.mrb[0].mxu0 %v3999
        %v5949 = vpop.f32.mrb[0].mxu0
        %v5950 = vadd.f32 %v5879, %v5949
        %v5951 = vpop.f32.mrb[0].mxu0
        %v5952 = vadd.f32 %v5881, %v5951
        %5953 = vdwg.mxu0
        %5954 = vmatprep.subr.mxu0 %v3630
        %5955 = vmatpush1.msra.mxu0 %v3629
        %5956 = vmatprep.subr.mxu0 %v3638
        %5957 = vmatpush1.msra.mxu0 %v3637
        %5958 = vmatprep.subr.mxu0 %v3646
        %5959 = vmatpush1.msra.mxu0 %v3645
        %5960 = vmatprep.subr.mxu0 %v3654
        %5961 = vmatpush1.msra.mxu0 %v3653
        %5962 = vmatprep.subr.mxu0 %v3662
        %5963 = vmatpush1.msra.mxu0 %v3661
        %5964 = vmatprep.subr.mxu0 %v3670
        %5965 = vmatpush1.msra.mxu0 %v3669
        %5966 = vmatprep.subr.mxu0 %v3678
        %5967 = vmatpush1.msra.mxu0 %v3677
        %5968 = vmatprep.subr.mxu0 %v3686
        %5969 = vmatpush1.msra.mxu0 %v3685
        %5970 = vmatprep.subr.mxu0 %v3694
        %5971 = vmatpush1.msra.mxu0 %v3693
        %5972 = vmatprep.subr.mxu0 %v3702
        %5973 = vmatpush1.msra.mxu0 %v3701
        %5974 = vmatprep.subr.mxu0 %v3710
        %5975 = vmatpush1.msra.mxu0 %v3709
        %5976 = vmatprep.subr.mxu0 %v3718
        %5977 = vmatpush1.msra.mxu0 %v3717
        %5978 = vmatprep.subr.mxu0 %v3726
        %5979 = vmatpush1.msra.mxu0 %v3725
        %5980 = vmatprep.subr.mxu0 %v3734
        %5981 = vmatpush1.msra.mxu0 %v3733
        %5982 = vmatprep.subr.mxu0 %v3742
        %5983 = vmatpush1.msra.mxu0 %v3741
        %5984 = vmatprep.subr.mxu0 %v3750
        %5985 = vmatpush1.msra.mxu0 %v3749
        %5986 = vmatprep.subr.mxu0 %v3758
        %5987 = vmatpush1.msra.mxu0 %v3757
        %5988 = vmatprep.subr.mxu0 %v3766
        %5989 = vmatpush1.msra.mxu0 %v3765
        %5990 = vmatprep.subr.mxu0 %v3774
        %5991 = vmatpush1.msra.mxu0 %v3773
        %5992 = vmatprep.subr.mxu0 %v3782
        %5993 = vmatpush1.msra.mxu0 %v3781
        %5994 = vmatprep.subr.mxu0 %v3790
        %5995 = vmatpush1.msra.mxu0 %v3789
        %5996 = vmatprep.subr.mxu0 %v3798
        %5997 = vmatpush1.msra.mxu0 %v3797
        %5998 = vmatprep.subr.mxu0 %v3806
        %5999 = vmatpush1.msra.mxu0 %v3805
        %6000 = vmatprep.subr.mxu0 %v3814
        %6001 = vmatpush1.msra.mxu0 %v3813
        %6002 = vmatprep.subr.mxu0 %v3822
        %6003 = vmatpush1.msra.mxu0 %v3821
        %6004 = vmatprep.subr.mxu0 %v3830
        %6005 = vmatpush1.msra.mxu0 %v3829
        %6006 = vmatprep.subr.mxu0 %v3838
        %6007 = vmatpush1.msra.mxu0 %v3837
        %6008 = vmatprep.subr.mxu0 %v3846
        %6009 = vmatpush1.msra.mxu0 %v3845
        %6010 = vmatprep.subr.mxu0 %v3854
        %6011 = vmatpush1.msra.mxu0 %v3853
        %6012 = vmatprep.subr.mxu0 %v3862
        %6013 = vmatpush1.msra.mxu0 %v3861
        %6014 = vmatprep.subr.mxu0 %v3870
        %6015 = vmatpush1.msra.mxu0 %v3869
        %6016 = vmatprep.subr.mxu0 %v3878
        %6017 = vmatpush1.msra.mxu0 %v3877
        %6018 = vmatprep.mubr.f32.mxu0 %v4008
        %6019 = vmatmul.mubr.f32.gmra.mrb[0].mxu0 %v4006
        %v6020 = vpop.f32.mrb[0].mxu0
        %v6021 = vadd.f32 %v5950, %v6020
        %v6022 = vpop.f32.mrb[0].mxu0
        %v6023 = vadd.f32 %v5952, %v6022
        %6024 = vdwg.mxu0
        %6025 = vmatprep.subr.mxu0 %v304
        %6026 = vmatpush1.msra.mxu0 %v303
        %6027 = vmatprep.subr.mxu0 %v312
        %6028 = vmatpush1.msra.mxu0 %v311
        %6029 = vmatprep.subr.mxu0 %v320
        %6030 = vmatpush1.msra.mxu0 %v319
        %6031 = vmatprep.subr.mxu0 %v328
        %6032 = vmatpush1.msra.mxu0 %v327
        %6033 = vmatprep.subr.mxu0 %v336
        %6034 = vmatpush1.msra.mxu0 %v335
        %6035 = vmatprep.subr.mxu0 %v344
        %6036 = vmatpush1.msra.mxu0 %v343
        %6037 = vmatprep.subr.mxu0 %v352
        %6038 = vmatpush1.msra.mxu0 %v351
        %6039 = vmatprep.subr.mxu0 %v360
        %6040 = vmatpush1.msra.mxu0 %v359
        %6041 = vmatprep.subr.mxu0 %v368
        %6042 = vmatpush1.msra.mxu0 %v367
        %6043 = vmatprep.subr.mxu0 %v376
        %6044 = vmatpush1.msra.mxu0 %v375
        %6045 = vmatprep.subr.mxu0 %v384
        %6046 = vmatpush1.msra.mxu0 %v383
        %6047 = vmatprep.subr.mxu0 %v392
        %6048 = vmatpush1.msra.mxu0 %v391
        %6049 = vmatprep.subr.mxu0 %v400
        %6050 = vmatpush1.msra.mxu0 %v399
        %6051 = vmatprep.subr.mxu0 %v408
        %6052 = vmatpush1.msra.mxu0 %v407
        %6053 = vmatprep.subr.mxu0 %v416
        %6054 = vmatpush1.msra.mxu0 %v415
        %6055 = vmatprep.subr.mxu0 %v424
        %6056 = vmatpush1.msra.mxu0 %v423
        %6057 = vmatprep.subr.mxu0 %v432
        %6058 = vmatpush1.msra.mxu0 %v431
        %6059 = vmatprep.subr.mxu0 %v440
        %6060 = vmatpush1.msra.mxu0 %v439
        %6061 = vmatprep.subr.mxu0 %v448
        %6062 = vmatpush1.msra.mxu0 %v447
        %6063 = vmatprep.subr.mxu0 %v456
        %6064 = vmatpush1.msra.mxu0 %v455
        %6065 = vmatprep.subr.mxu0 %v464
        %6066 = vmatpush1.msra.mxu0 %v463
        %6067 = vmatprep.subr.mxu0 %v472
        %6068 = vmatpush1.msra.mxu0 %v471
        %6069 = vmatprep.subr.mxu0 %v480
        %6070 = vmatpush1.msra.mxu0 %v479
        %6071 = vmatprep.subr.mxu0 %v488
        %6072 = vmatpush1.msra.mxu0 %v487
        %6073 = vmatprep.subr.mxu0 %v496
        %6074 = vmatpush1.msra.mxu0 %v495
        %6075 = vmatprep.subr.mxu0 %v504
        %6076 = vmatpush1.msra.mxu0 %v503
        %6077 = vmatprep.subr.mxu0 %v512
        %6078 = vmatpush1.msra.mxu0 %v511
        %6079 = vmatprep.subr.mxu0 %v520
        %6080 = vmatpush1.msra.mxu0 %v519
        %6081 = vmatprep.subr.mxu0 %v528
        %6082 = vmatpush1.msra.mxu0 %v527
        %6083 = vmatprep.subr.mxu0 %v536
        %6084 = vmatpush1.msra.mxu0 %v535
        %6085 = vmatprep.subr.mxu0 %v544
        %6086 = vmatpush1.msra.mxu0 %v543
        %6087 = vmatprep.subr.mxu0 %v552
        %6088 = vmatpush1.msra.mxu0 %v551
        %6089 = vmatprep.mubr.f32.mxu0 %v3905
        %6090 = vmatmul.mubr.f32.gmra.mrb[0].mxu0 %v3897
        %v6091 = vpop.f32.mrb[0].mxu0
        %v6092 = vadd.f32 0.0, %v6091
        %v6093 = vpop.f32.mrb[0].mxu0
        %v6094 = vadd.f32 0.0, %v6093
        %6095 = vdwg.mxu0
        %6096 = vmatprep.subr.mxu0 %v560
        %6097 = vmatpush1.msra.mxu0 %v559
        %6098 = vmatprep.subr.mxu0 %v568
        %6099 = vmatpush1.msra.mxu0 %v567
        %6100 = vmatprep.subr.mxu0 %v576
        %6101 = vmatpush1.msra.mxu0 %v575
        %6102 = vmatprep.subr.mxu0 %v584
        %6103 = vmatpush1.msra.mxu0 %v583
        %6104 = vmatprep.subr.mxu0 %v592
        %6105 = vmatpush1.msra.mxu0 %v591
        %6106 = vmatprep.subr.mxu0 %v600
        %6107 = vmatpush1.msra.mxu0 %v599
        %6108 = vmatprep.subr.mxu0 %v608
        %6109 = vmatpush1.msra.mxu0 %v607
        %6110 = vmatprep.subr.mxu0 %v616
        %6111 = vmatpush1.msra.mxu0 %v615
        %6112 = vmatprep.subr.mxu0 %v624
        %6113 = vmatpush1.msra.mxu0 %v623
        %6114 = vmatprep.subr.mxu0 %v632
        %6115 = vmatpush1.msra.mxu0 %v631
        %6116 = vmatprep.subr.mxu0 %v640
        %6117 = vmatpush1.msra.mxu0 %v639
        %6118 = vmatprep.subr.mxu0 %v648
        %6119 = vmatpush1.msra.mxu0 %v647
        %6120 = vmatprep.subr.mxu0 %v656
        %6121 = vmatpush1.msra.mxu0 %v655
        %6122 = vmatprep.subr.mxu0 %v664
        %6123 = vmatpush1.msra.mxu0 %v663
        %6124 = vmatprep.subr.mxu0 %v672
        %6125 = vmatpush1.msra.mxu0 %v671
        %6126 = vmatprep.subr.mxu0 %v680
        %6127 = vmatpush1.msra.mxu0 %v679
        %6128 = vmatprep.subr.mxu0 %v688
        %6129 = vmatpush1.msra.mxu0 %v687
        %6130 = vmatprep.subr.mxu0 %v696
        %6131 = vmatpush1.msra.mxu0 %v695
        %6132 = vmatprep.subr.mxu0 %v704
        %6133 = vmatpush1.msra.mxu0 %v703
        %6134 = vmatprep.subr.mxu0 %v712
        %6135 = vmatpush1.msra.mxu0 %v711
        %6136 = vmatprep.subr.mxu0 %v720
        %6137 = vmatpush1.msra.mxu0 %v719
        %6138 = vmatprep.subr.mxu0 %v728
        %6139 = vmatpush1.msra.mxu0 %v727
        %6140 = vmatprep.subr.mxu0 %v736
        %6141 = vmatpush1.msra.mxu0 %v735
        %6142 = vmatprep.subr.mxu0 %v744
        %6143 = vmatpush1.msra.mxu0 %v743
        %6144 = vmatprep.subr.mxu0 %v752
        %6145 = vmatpush1.msra.mxu0 %v751
        %6146 = vmatprep.subr.mxu0 %v760
        %6147 = vmatpush1.msra.mxu0 %v759
        %6148 = vmatprep.subr.mxu0 %v768
        %6149 = vmatpush1.msra.mxu0 %v767
        %6150 = vmatprep.subr.mxu0 %v776
        %6151 = vmatpush1.msra.mxu0 %v775
        %6152 = vmatprep.subr.mxu0 %v784
        %6153 = vmatpush1.msra.mxu0 %v783
        %6154 = vmatprep.subr.mxu0 %v792
        %6155 = vmatpush1.msra.mxu0 %v791
        %6156 = vmatprep.subr.mxu0 %v800
        %6157 = vmatpush1.msra.mxu0 %v799
        %6158 = vmatprep.subr.mxu0 %v808
        %6159 = vmatpush1.msra.mxu0 %v807
        %6160 = vmatprep.mubr.f32.mxu0 %v3906
        %6161 = vmatmul.mubr.f32.gmra.mrb[0].mxu0 %v3904
        %v6162 = vpop.f32.mrb[0].mxu0
        %v6163 = vadd.f32 %v6092, %v6162
        %v6164 = vpop.f32.mrb[0].mxu0
        %v6165 = vadd.f32 %v6094, %v6164
        %6166 = vdwg.mxu0
        %6167 = vmatprep.subr.mxu0 %v816
        %6168 = vmatpush1.msra.mxu0 %v815
        %6169 = vmatprep.subr.mxu0 %v824
        %6170 = vmatpush1.msra.mxu0 %v823
        %6171 = vmatprep.subr.mxu0 %v832
        %6172 = vmatpush1.msra.mxu0 %v831
        %6173 = vmatprep.subr.mxu0 %v840
        %6174 = vmatpush1.msra.mxu0 %v839
        %6175 = vmatprep.subr.mxu0 %v848
        %6176 = vmatpush1.msra.mxu0 %v847
        %6177 = vmatprep.subr.mxu0 %v856
        %6178 = vmatpush1.msra.mxu0 %v855
        %6179 = vmatprep.subr.mxu0 %v864
        %6180 = vmatpush1.msra.mxu0 %v863
        %6181 = vmatprep.subr.mxu0 %v872
        %6182 = vmatpush1.msra.mxu0 %v871
        %6183 = vmatprep.subr.mxu0 %v880
        %6184 = vmatpush1.msra.mxu0 %v879
        %6185 = vmatprep.subr.mxu0 %v888
        %6186 = vmatpush1.msra.mxu0 %v887
        %6187 = vmatprep.subr.mxu0 %v896
        %6188 = vmatpush1.msra.mxu0 %v895
        %6189 = vmatprep.subr.mxu0 %v904
        %6190 = vmatpush1.msra.mxu0 %v903
        %6191 = vmatprep.subr.mxu0 %v912
        %6192 = vmatpush1.msra.mxu0 %v911
        %6193 = vmatprep.subr.mxu0 %v920
        %6194 = vmatpush1.msra.mxu0 %v919
        %6195 = vmatprep.subr.mxu0 %v928
        %6196 = vmatpush1.msra.mxu0 %v927
        %6197 = vmatprep.subr.mxu0 %v936
        %6198 = vmatpush1.msra.mxu0 %v935
        %6199 = vmatprep.subr.mxu0 %v944
        %6200 = vmatpush1.msra.mxu0 %v943
        %6201 = vmatprep.subr.mxu0 %v952
        %6202 = vmatpush1.msra.mxu0 %v951
        %6203 = vmatprep.subr.mxu0 %v960
        %6204 = vmatpush1.msra.mxu0 %v959
        %6205 = vmatprep.subr.mxu0 %v968
        %6206 = vmatpush1.msra.mxu0 %v967
        %6207 = vmatprep.subr.mxu0 %v976
        %6208 = vmatpush1.msra.mxu0 %v975
        %6209 = vmatprep.subr.mxu0 %v984
        %6210 = vmatpush1.msra.mxu0 %v983
        %6211 = vmatprep.subr.mxu0 %v992
        %6212 = vmatpush1.msra.mxu0 %v991
        %6213 = vmatprep.subr.mxu0 %v1000
        %6214 = vmatpush1.msra.mxu0 %v999
        %6215 = vmatprep.subr.mxu0 %v1008
        %6216 = vmatpush1.msra.mxu0 %v1007
        %6217 = vmatprep.subr.mxu0 %v1016
        %6218 = vmatpush1.msra.mxu0 %v1015
        %6219 = vmatprep.subr.mxu0 %v1024
        %6220 = vmatpush1.msra.mxu0 %v1023
        %6221 = vmatprep.subr.mxu0 %v1032
        %6222 = vmatpush1.msra.mxu0 %v1031
        %6223 = vmatprep.subr.mxu0 %v1040
        %6224 = vmatpush1.msra.mxu0 %v1039
        %6225 = vmatprep.subr.mxu0 %v1048
        %6226 = vmatpush1.msra.mxu0 %v1047
        %6227 = vmatprep.subr.mxu0 %v1056
        %6228 = vmatpush1.msra.mxu0 %v1055
        %6229 = vmatprep.subr.mxu0 %v1064
        %6230 = vmatpush1.msra.mxu0 %v1063
        %6231 = vmatprep.mubr.f32.mxu0 %v3922
        %6232 = vmatmul.mubr.f32.gmra.mrb[0].mxu0 %v3914
        %v6233 = vpop.f32.mrb[0].mxu0
        %v6234 = vadd.f32 %v6163, %v6233
        %v6235 = vpop.f32.mrb[0].mxu0
        %v6236 = vadd.f32 %v6165, %v6235
        %6237 = vdwg.mxu0
        %6238 = vmatprep.subr.mxu0 %v1072
        %6239 = vmatpush1.msra.mxu0 %v1071
        %6240 = vmatprep.subr.mxu0 %v1080
        %6241 = vmatpush1.msra.mxu0 %v1079
        %6242 = vmatprep.subr.mxu0 %v1088
        %6243 = vmatpush1.msra.mxu0 %v1087
        %6244 = vmatprep.subr.mxu0 %v1096
        %6245 = vmatpush1.msra.mxu0 %v1095
        %6246 = vmatprep.subr.mxu0 %v1104
        %6247 = vmatpush1.msra.mxu0 %v1103
        %6248 = vmatprep.subr.mxu0 %v1112
        %6249 = vmatpush1.msra.mxu0 %v1111
        %6250 = vmatprep.subr.mxu0 %v1120
        %6251 = vmatpush1.msra.mxu0 %v1119
        %6252 = vmatprep.subr.mxu0 %v1128
        %6253 = vmatpush1.msra.mxu0 %v1127
        %6254 = vmatprep.subr.mxu0 %v1136
        %6255 = vmatpush1.msra.mxu0 %v1135
        %6256 = vmatprep.subr.mxu0 %v1144
        %6257 = vmatpush1.msra.mxu0 %v1143
        %6258 = vmatprep.subr.mxu0 %v1152
        %6259 = vmatpush1.msra.mxu0 %v1151
        %6260 = vmatprep.subr.mxu0 %v1160
        %6261 = vmatpush1.msra.mxu0 %v1159
        %6262 = vmatprep.subr.mxu0 %v1168
        %6263 = vmatpush1.msra.mxu0 %v1167
        %6264 = vmatprep.subr.mxu0 %v1176
        %6265 = vmatpush1.msra.mxu0 %v1175
        %6266 = vmatprep.subr.mxu0 %v1184
        %6267 = vmatpush1.msra.mxu0 %v1183
        %6268 = vmatprep.subr.mxu0 %v1192
        %6269 = vmatpush1.msra.mxu0 %v1191
        %6270 = vmatprep.subr.mxu0 %v1200
        %6271 = vmatpush1.msra.mxu0 %v1199
        %6272 = vmatprep.subr.mxu0 %v1208
        %6273 = vmatpush1.msra.mxu0 %v1207
        %6274 = vmatprep.subr.mxu0 %v1216
        %6275 = vmatpush1.msra.mxu0 %v1215
        %6276 = vmatprep.subr.mxu0 %v1224
        %6277 = vmatpush1.msra.mxu0 %v1223
        %6278 = vmatprep.subr.mxu0 %v1232
        %6279 = vmatpush1.msra.mxu0 %v1231
        %6280 = vmatprep.subr.mxu0 %v1240
        %6281 = vmatpush1.msra.mxu0 %v1239
        %6282 = vmatprep.subr.mxu0 %v1248
        %6283 = vmatpush1.msra.mxu0 %v1247
        %6284 = vmatprep.subr.mxu0 %v1256
        %6285 = vmatpush1.msra.mxu0 %v1255
        %6286 = vmatprep.subr.mxu0 %v1264
        %6287 = vmatpush1.msra.mxu0 %v1263
        %6288 = vmatprep.subr.mxu0 %v1272
        %6289 = vmatpush1.msra.mxu0 %v1271
        %6290 = vmatprep.subr.mxu0 %v1280
        %6291 = vmatpush1.msra.mxu0 %v1279
        %6292 = vmatprep.subr.mxu0 %v1288
        %6293 = vmatpush1.msra.mxu0 %v1287
        %6294 = vmatprep.subr.mxu0 %v1296
        %6295 = vmatpush1.msra.mxu0 %v1295
        %6296 = vmatprep.subr.mxu0 %v1304
        %6297 = vmatpush1.msra.mxu0 %v1303
        %6298 = vmatprep.subr.mxu0 %v1312
        %6299 = vmatpush1.msra.mxu0 %v1311
        %6300 = vmatprep.subr.mxu0 %v1320
        %6301 = vmatpush1.msra.mxu0 %v1319
        %6302 = vmatprep.mubr.f32.mxu0 %v3923
        %6303 = vmatmul.mubr.f32.gmra.mrb[0].mxu0 %v3921
        %v6304 = vpop.f32.mrb[0].mxu0
        %v6305 = vadd.f32 %v6234, %v6304
        %v6306 = vpop.f32.mrb[0].mxu0
        %v6307 = vadd.f32 %v6236, %v6306
        %6308 = vdwg.mxu0
        %6309 = vmatprep.subr.mxu0 %v1328
        %6310 = vmatpush1.msra.mxu0 %v1327
        %6311 = vmatprep.subr.mxu0 %v1336
        %6312 = vmatpush1.msra.mxu0 %v1335
        %6313 = vmatprep.subr.mxu0 %v1344
        %6314 = vmatpush1.msra.mxu0 %v1343
        %6315 = vmatprep.subr.mxu0 %v1352
        %6316 = vmatpush1.msra.mxu0 %v1351
        %6317 = vmatprep.subr.mxu0 %v1360
        %6318 = vmatpush1.msra.mxu0 %v1359
        %6319 = vmatprep.subr.mxu0 %v1368
        %6320 = vmatpush1.msra.mxu0 %v1367
        %6321 = vmatprep.subr.mxu0 %v1376
        %6322 = vmatpush1.msra.mxu0 %v1375
        %6323 = vmatprep.subr.mxu0 %v1384
        %6324 = vmatpush1.msra.mxu0 %v1383
        %6325 = vmatprep.subr.mxu0 %v1392
        %6326 = vmatpush1.msra.mxu0 %v1391
        %6327 = vmatprep.subr.mxu0 %v1400
        %6328 = vmatpush1.msra.mxu0 %v1399
        %6329 = vmatprep.subr.mxu0 %v1408
        %6330 = vmatpush1.msra.mxu0 %v1407
        %6331 = vmatprep.subr.mxu0 %v1416
        %6332 = vmatpush1.msra.mxu0 %v1415
        %6333 = vmatprep.subr.mxu0 %v1424
        %6334 = vmatpush1.msra.mxu0 %v1423
        %6335 = vmatprep.subr.mxu0 %v1432
        %6336 = vmatpush1.msra.mxu0 %v1431
        %6337 = vmatprep.subr.mxu0 %v1440
        %6338 = vmatpush1.msra.mxu0 %v1439
        %6339 = vmatprep.subr.mxu0 %v1448
        %6340 = vmatpush1.msra.mxu0 %v1447
        %6341 = vmatprep.subr.mxu0 %v1456
        %6342 = vmatpush1.msra.mxu0 %v1455
        %6343 = vmatprep.subr.mxu0 %v1464
        %6344 = vmatpush1.msra.mxu0 %v1463
        %6345 = vmatprep.subr.mxu0 %v1472
        %6346 = vmatpush1.msra.mxu0 %v1471
        %6347 = vmatprep.subr.mxu0 %v1480
        %6348 = vmatpush1.msra.mxu0 %v1479
        %6349 = vmatprep.subr.mxu0 %v1488
        %6350 = vmatpush1.msra.mxu0 %v1487
        %6351 = vmatprep.subr.mxu0 %v1496
        %6352 = vmatpush1.msra.mxu0 %v1495
        %6353 = vmatprep.subr.mxu0 %v1504
        %6354 = vmatpush1.msra.mxu0 %v1503
        %6355 = vmatprep.subr.mxu0 %v1512
        %6356 = vmatpush1.msra.mxu0 %v1511
        %6357 = vmatprep.subr.mxu0 %v1520
        %6358 = vmatpush1.msra.mxu0 %v1519
        %6359 = vmatprep.subr.mxu0 %v1528
        %6360 = vmatpush1.msra.mxu0 %v1527
        %6361 = vmatprep.subr.mxu0 %v1536
        %6362 = vmatpush1.msra.mxu0 %v1535
        %6363 = vmatprep.subr.mxu0 %v1544
        %6364 = vmatpush1.msra.mxu0 %v1543
        %6365 = vmatprep.subr.mxu0 %v1552
        %6366 = vmatpush1.msra.mxu0 %v1551
        %6367 = vmatprep.subr.mxu0 %v1560
        %6368 = vmatpush1.msra.mxu0 %v1559
        %6369 = vmatprep.subr.mxu0 %v1568
        %6370 = vmatpush1.msra.mxu0 %v1567
        %6371 = vmatprep.subr.mxu0 %v1576
        %6372 = vmatpush1.msra.mxu0 %v1575
        %6373 = vmatprep.mubr.f32.mxu0 %v3939
        %6374 = vmatmul.mubr.f32.gmra.mrb[0].mxu0 %v3931
        %v6375 = vpop.f32.mrb[0].mxu0
        %v6376 = vadd.f32 %v6305, %v6375
        %v6377 = vpop.f32.mrb[0].mxu0
        %v6378 = vadd.f32 %v6307, %v6377
        %6379 = vdwg.mxu0
        %6380 = vmatprep.subr.mxu0 %v1584
        %6381 = vmatpush1.msra.mxu0 %v1583
        %6382 = vmatprep.subr.mxu0 %v1592
        %6383 = vmatpush1.msra.mxu0 %v1591
        %6384 = vmatprep.subr.mxu0 %v1600
        %6385 = vmatpush1.msra.mxu0 %v1599
        %6386 = vmatprep.subr.mxu0 %v1608
        %6387 = vmatpush1.msra.mxu0 %v1607
        %6388 = vmatprep.subr.mxu0 %v1616
        %6389 = vmatpush1.msra.mxu0 %v1615
        %6390 = vmatprep.subr.mxu0 %v1624
        %6391 = vmatpush1.msra.mxu0 %v1623
        %6392 = vmatprep.subr.mxu0 %v1632
        %6393 = vmatpush1.msra.mxu0 %v1631
        %6394 = vmatprep.subr.mxu0 %v1640
        %6395 = vmatpush1.msra.mxu0 %v1639
        %6396 = vmatprep.subr.mxu0 %v1648
        %6397 = vmatpush1.msra.mxu0 %v1647
        %6398 = vmatprep.subr.mxu0 %v1656
        %6399 = vmatpush1.msra.mxu0 %v1655
        %6400 = vmatprep.subr.mxu0 %v1664
        %6401 = vmatpush1.msra.mxu0 %v1663
        %6402 = vmatprep.subr.mxu0 %v1672
        %6403 = vmatpush1.msra.mxu0 %v1671
        %6404 = vmatprep.subr.mxu0 %v1680
        %6405 = vmatpush1.msra.mxu0 %v1679
        %6406 = vmatprep.subr.mxu0 %v1688
        %6407 = vmatpush1.msra.mxu0 %v1687
        %6408 = vmatprep.subr.mxu0 %v1696
        %6409 = vmatpush1.msra.mxu0 %v1695
        %6410 = vmatprep.subr.mxu0 %v1704
        %6411 = vmatpush1.msra.mxu0 %v1703
        %6412 = vmatprep.subr.mxu0 %v1712
        %6413 = vmatpush1.msra.mxu0 %v1711
        %6414 = vmatprep.subr.mxu0 %v1720
        %6415 = vmatpush1.msra.mxu0 %v1719
        %6416 = vmatprep.subr.mxu0 %v1728
        %6417 = vmatpush1.msra.mxu0 %v1727
        %6418 = vmatprep.subr.mxu0 %v1736
        %6419 = vmatpush1.msra.mxu0 %v1735
        %6420 = vmatprep.subr.mxu0 %v1744
        %6421 = vmatpush1.msra.mxu0 %v1743
        %6422 = vmatprep.subr.mxu0 %v1752
        %6423 = vmatpush1.msra.mxu0 %v1751
        %6424 = vmatprep.subr.mxu0 %v1760
        %6425 = vmatpush1.msra.mxu0 %v1759
        %6426 = vmatprep.subr.mxu0 %v1768
        %6427 = vmatpush1.msra.mxu0 %v1767
        %6428 = vmatprep.subr.mxu0 %v1776
        %6429 = vmatpush1.msra.mxu0 %v1775
        %6430 = vmatprep.subr.mxu0 %v1784
        %6431 = vmatpush1.msra.mxu0 %v1783
        %6432 = vmatprep.subr.mxu0 %v1792
        %6433 = vmatpush1.msra.mxu0 %v1791
        %6434 = vmatprep.subr.mxu0 %v1800
        %6435 = vmatpush1.msra.mxu0 %v1799
        %6436 = vmatprep.subr.mxu0 %v1808
        %6437 = vmatpush1.msra.mxu0 %v1807
        %6438 = vmatprep.subr.mxu0 %v1816
        %6439 = vmatpush1.msra.mxu0 %v1815
        %6440 = vmatprep.subr.mxu0 %v1824
        %6441 = vmatpush1.msra.mxu0 %v1823
        %6442 = vmatprep.subr.mxu0 %v1832
        %6443 = vmatpush1.msra.mxu0 %v1831
        %6444 = vmatprep.mubr.f32.mxu0 %v3940
        %6445 = vmatmul.mubr.f32.gmra.mrb[0].mxu0 %v3938
        %v6446 = vpop.f32.mrb[0].mxu0
        %v6447 = vadd.f32 %v6376, %v6446
        %v6448 = vpop.f32.mrb[0].mxu0
        %v6449 = vadd.f32 %v6378, %v6448
        %6450 = vdwg.mxu0
        %6451 = vmatprep.subr.mxu0 %v1840
        %6452 = vmatpush1.msra.mxu0 %v1839
        %6453 = vmatprep.subr.mxu0 %v1848
        %6454 = vmatpush1.msra.mxu0 %v1847
        %6455 = vmatprep.subr.mxu0 %v1856
        %6456 = vmatpush1.msra.mxu0 %v1855
        %6457 = vmatprep.subr.mxu0 %v1864
        %6458 = vmatpush1.msra.mxu0 %v1863
        %6459 = vmatprep.subr.mxu0 %v1872
        %6460 = vmatpush1.msra.mxu0 %v1871
        %6461 = vmatprep.subr.mxu0 %v1880
        %6462 = vmatpush1.msra.mxu0 %v1879
        %6463 = vmatprep.subr.mxu0 %v1888
        %6464 = vmatpush1.msra.mxu0 %v1887
        %6465 = vmatprep.subr.mxu0 %v1896
        %6466 = vmatpush1.msra.mxu0 %v1895
        %6467 = vmatprep.subr.mxu0 %v1904
        %6468 = vmatpush1.msra.mxu0 %v1903
        %6469 = vmatprep.subr.mxu0 %v1912
        %6470 = vmatpush1.msra.mxu0 %v1911
        %6471 = vmatprep.subr.mxu0 %v1920
        %6472 = vmatpush1.msra.mxu0 %v1919
        %6473 = vmatprep.subr.mxu0 %v1928
        %6474 = vmatpush1.msra.mxu0 %v1927
        %6475 = vmatprep.subr.mxu0 %v1936
        %6476 = vmatpush1.msra.mxu0 %v1935
        %6477 = vmatprep.subr.mxu0 %v1944
        %6478 = vmatpush1.msra.mxu0 %v1943
        %6479 = vmatprep.subr.mxu0 %v1952
        %6480 = vmatpush1.msra.mxu0 %v1951
        %6481 = vmatprep.subr.mxu0 %v1960
        %6482 = vmatpush1.msra.mxu0 %v1959
        %6483 = vmatprep.subr.mxu0 %v1968
        %6484 = vmatpush1.msra.mxu0 %v1967
        %6485 = vmatprep.subr.mxu0 %v1976
        %6486 = vmatpush1.msra.mxu0 %v1975
        %6487 = vmatprep.subr.mxu0 %v1984
        %6488 = vmatpush1.msra.mxu0 %v1983
        %6489 = vmatprep.subr.mxu0 %v1992
        %6490 = vmatpush1.msra.mxu0 %v1991
        %6491 = vmatprep.subr.mxu0 %v2000
        %6492 = vmatpush1.msra.mxu0 %v1999
        %6493 = vmatprep.subr.mxu0 %v2008
        %6494 = vmatpush1.msra.mxu0 %v2007
        %6495 = vmatprep.subr.mxu0 %v2016
        %6496 = vmatpush1.msra.mxu0 %v2015
        %6497 = vmatprep.subr.mxu0 %v2024
        %6498 = vmatpush1.msra.mxu0 %v2023
        %6499 = vmatprep.subr.mxu0 %v2032
        %6500 = vmatpush1.msra.mxu0 %v2031
        %6501 = vmatprep.subr.mxu0 %v2040
        %6502 = vmatpush1.msra.mxu0 %v2039
        %6503 = vmatprep.subr.mxu0 %v2048
        %6504 = vmatpush1.msra.mxu0 %v2047
        %6505 = vmatprep.subr.mxu0 %v2056
        %6506 = vmatpush1.msra.mxu0 %v2055
        %6507 = vmatprep.subr.mxu0 %v2064
        %6508 = vmatpush1.msra.mxu0 %v2063
        %6509 = vmatprep.subr.mxu0 %v2072
        %6510 = vmatpush1.msra.mxu0 %v2071
        %6511 = vmatprep.subr.mxu0 %v2080
        %6512 = vmatpush1.msra.mxu0 %v2079
        %6513 = vmatprep.subr.mxu0 %v2088
        %6514 = vmatpush1.msra.mxu0 %v2087
        %6515 = vmatprep.mubr.f32.mxu0 %v3956
        %6516 = vmatmul.mubr.f32.gmra.mrb[0].mxu0 %v3948
        %v6517 = vpop.f32.mrb[0].mxu0
        %v6518 = vadd.f32 %v6447, %v6517
        %v6519 = vpop.f32.mrb[0].mxu0
        %v6520 = vadd.f32 %v6449, %v6519
        %6521 = vdwg.mxu0
        %6522 = vmatprep.subr.mxu0 %v2096
        %6523 = vmatpush1.msra.mxu0 %v2095
        %6524 = vmatprep.subr.mxu0 %v2104
        %6525 = vmatpush1.msra.mxu0 %v2103
        %6526 = vmatprep.subr.mxu0 %v2112
        %6527 = vmatpush1.msra.mxu0 %v2111
        %6528 = vmatprep.subr.mxu0 %v2120
        %6529 = vmatpush1.msra.mxu0 %v2119
        %6530 = vmatprep.subr.mxu0 %v2128
        %6531 = vmatpush1.msra.mxu0 %v2127
        %6532 = vmatprep.subr.mxu0 %v2136
        %6533 = vmatpush1.msra.mxu0 %v2135
        %6534 = vmatprep.subr.mxu0 %v2144
        %6535 = vmatpush1.msra.mxu0 %v2143
        %6536 = vmatprep.subr.mxu0 %v2152
        %6537 = vmatpush1.msra.mxu0 %v2151
        %6538 = vmatprep.subr.mxu0 %v2160
        %6539 = vmatpush1.msra.mxu0 %v2159
        %6540 = vmatprep.subr.mxu0 %v2168
        %6541 = vmatpush1.msra.mxu0 %v2167
        %6542 = vmatprep.subr.mxu0 %v2176
        %6543 = vmatpush1.msra.mxu0 %v2175
        %6544 = vmatprep.subr.mxu0 %v2184
        %6545 = vmatpush1.msra.mxu0 %v2183
        %6546 = vmatprep.subr.mxu0 %v2192
        %6547 = vmatpush1.msra.mxu0 %v2191
        %6548 = vmatprep.subr.mxu0 %v2200
        %6549 = vmatpush1.msra.mxu0 %v2199
        %6550 = vmatprep.subr.mxu0 %v2208
        %6551 = vmatpush1.msra.mxu0 %v2207
        %6552 = vmatprep.subr.mxu0 %v2216
        %6553 = vmatpush1.msra.mxu0 %v2215
        %6554 = vmatprep.subr.mxu0 %v2224
        %6555 = vmatpush1.msra.mxu0 %v2223
        %6556 = vmatprep.subr.mxu0 %v2232
        %6557 = vmatpush1.msra.mxu0 %v2231
        %6558 = vmatprep.subr.mxu0 %v2240
        %6559 = vmatpush1.msra.mxu0 %v2239
        %6560 = vmatprep.subr.mxu0 %v2248
        %6561 = vmatpush1.msra.mxu0 %v2247
        %6562 = vmatprep.subr.mxu0 %v2256
        %6563 = vmatpush1.msra.mxu0 %v2255
        %6564 = vmatprep.subr.mxu0 %v2264
        %6565 = vmatpush1.msra.mxu0 %v2263
        %6566 = vmatprep.subr.mxu0 %v2272
        %6567 = vmatpush1.msra.mxu0 %v2271
        %6568 = vmatprep.subr.mxu0 %v2280
        %6569 = vmatpush1.msra.mxu0 %v2279
        %6570 = vmatprep.subr.mxu0 %v2288
        %6571 = vmatpush1.msra.mxu0 %v2287
        %6572 = vmatprep.subr.mxu0 %v2296
        %6573 = vmatpush1.msra.mxu0 %v2295
        %6574 = vmatprep.subr.mxu0 %v2304
        %6575 = vmatpush1.msra.mxu0 %v2303
        %6576 = vmatprep.subr.mxu0 %v2312
        %6577 = vmatpush1.msra.mxu0 %v2311
        %6578 = vmatprep.subr.mxu0 %v2320
        %6579 = vmatpush1.msra.mxu0 %v2319
        %6580 = vmatprep.subr.mxu0 %v2328
        %6581 = vmatpush1.msra.mxu0 %v2327
        %6582 = vmatprep.subr.mxu0 %v2336
        %6583 = vmatpush1.msra.mxu0 %v2335
        %6584 = vmatprep.subr.mxu0 %v2344
        %6585 = vmatpush1.msra.mxu0 %v2343
        %6586 = vmatprep.mubr.f32.mxu0 %v3957
        %6587 = vmatmul.mubr.f32.gmra.mrb[0].mxu0 %v3955
        %v6588 = vpop.f32.mrb[0].mxu0
        %v6589 = vadd.f32 %v6518, %v6588
        %v6590 = vpop.f32.mrb[0].mxu0
        %v6591 = vadd.f32 %v6520, %v6590
        %6592 = vdwg.mxu0
        %6593 = vmatprep.subr.mxu0 %v2352
        %6594 = vmatpush1.msra.mxu0 %v2351
        %6595 = vmatprep.subr.mxu0 %v2360
        %6596 = vmatpush1.msra.mxu0 %v2359
        %6597 = vmatprep.subr.mxu0 %v2368
        %6598 = vmatpush1.msra.mxu0 %v2367
        %6599 = vmatprep.subr.mxu0 %v2376
        %6600 = vmatpush1.msra.mxu0 %v2375
        %6601 = vmatprep.subr.mxu0 %v2384
        %6602 = vmatpush1.msra.mxu0 %v2383
        %6603 = vmatprep.subr.mxu0 %v2392
        %6604 = vmatpush1.msra.mxu0 %v2391
        %6605 = vmatprep.subr.mxu0 %v2400
        %6606 = vmatpush1.msra.mxu0 %v2399
        %6607 = vmatprep.subr.mxu0 %v2408
        %6608 = vmatpush1.msra.mxu0 %v2407
        %6609 = vmatprep.subr.mxu0 %v2416
        %6610 = vmatpush1.msra.mxu0 %v2415
        %6611 = vmatprep.subr.mxu0 %v2424
        %6612 = vmatpush1.msra.mxu0 %v2423
        %6613 = vmatprep.subr.mxu0 %v2432
        %6614 = vmatpush1.msra.mxu0 %v2431
        %6615 = vmatprep.subr.mxu0 %v2440
        %6616 = vmatpush1.msra.mxu0 %v2439
        %6617 = vmatprep.subr.mxu0 %v2448
        %6618 = vmatpush1.msra.mxu0 %v2447
        %6619 = vmatprep.subr.mxu0 %v2456
        %6620 = vmatpush1.msra.mxu0 %v2455
        %6621 = vmatprep.subr.mxu0 %v2464
        %6622 = vmatpush1.msra.mxu0 %v2463
        %6623 = vmatprep.subr.mxu0 %v2472
        %6624 = vmatpush1.msra.mxu0 %v2471
        %6625 = vmatprep.subr.mxu0 %v2480
        %6626 = vmatpush1.msra.mxu0 %v2479
        %6627 = vmatprep.subr.mxu0 %v2488
        %6628 = vmatpush1.msra.mxu0 %v2487
        %6629 = vmatprep.subr.mxu0 %v2496
        %6630 = vmatpush1.msra.mxu0 %v2495
        %6631 = vmatprep.subr.mxu0 %v2504
        %6632 = vmatpush1.msra.mxu0 %v2503
        %6633 = vmatprep.subr.mxu0 %v2512
        %6634 = vmatpush1.msra.mxu0 %v2511
        %6635 = vmatprep.subr.mxu0 %v2520
        %6636 = vmatpush1.msra.mxu0 %v2519
        %6637 = vmatprep.subr.mxu0 %v2528
        %6638 = vmatpush1.msra.mxu0 %v2527
        %6639 = vmatprep.subr.mxu0 %v2536
        %6640 = vmatpush1.msra.mxu0 %v2535
        %6641 = vmatprep.subr.mxu0 %v2544
        %6642 = vmatpush1.msra.mxu0 %v2543
        %6643 = vmatprep.subr.mxu0 %v2552
        %6644 = vmatpush1.msra.mxu0 %v2551
        %6645 = vmatprep.subr.mxu0 %v2560
        %6646 = vmatpush1.msra.mxu0 %v2559
        %6647 = vmatprep.subr.mxu0 %v2568
        %6648 = vmatpush1.msra.mxu0 %v2567
        %6649 = vmatprep.subr.mxu0 %v2576
        %6650 = vmatpush1.msra.mxu0 %v2575
        %6651 = vmatprep.subr.mxu0 %v2584
        %6652 = vmatpush1.msra.mxu0 %v2583
        %6653 = vmatprep.subr.mxu0 %v2592
        %6654 = vmatpush1.msra.mxu0 %v2591
        %6655 = vmatprep.subr.mxu0 %v2600
        %6656 = vmatpush1.msra.mxu0 %v2599
        %6657 = vmatprep.mubr.f32.mxu0 %v3973
        %6658 = vmatmul.mubr.f32.gmra.mrb[0].mxu0 %v3965
        %v6659 = vpop.f32.mrb[0].mxu0
        %v6660 = vadd.f32 %v6589, %v6659
        %v6661 = vpop.f32.mrb[0].mxu0
        %v6662 = vadd.f32 %v6591, %v6661
        %6663 = vdwg.mxu0
        %6664 = vmatprep.subr.mxu0 %v2608
        %6665 = vmatpush1.msra.mxu0 %v2607
        %6666 = vmatprep.subr.mxu0 %v2616
        %6667 = vmatpush1.msra.mxu0 %v2615
        %6668 = vmatprep.subr.mxu0 %v2624
        %6669 = vmatpush1.msra.mxu0 %v2623
        %6670 = vmatprep.subr.mxu0 %v2632
        %6671 = vmatpush1.msra.mxu0 %v2631
        %6672 = vmatprep.subr.mxu0 %v2640
        %6673 = vmatpush1.msra.mxu0 %v2639
        %6674 = vmatprep.subr.mxu0 %v2648
        %6675 = vmatpush1.msra.mxu0 %v2647
        %6676 = vmatprep.subr.mxu0 %v2656
        %6677 = vmatpush1.msra.mxu0 %v2655
        %6678 = vmatprep.subr.mxu0 %v2664
        %6679 = vmatpush1.msra.mxu0 %v2663
        %6680 = vmatprep.subr.mxu0 %v2672
        %6681 = vmatpush1.msra.mxu0 %v2671
        %6682 = vmatprep.subr.mxu0 %v2680
        %6683 = vmatpush1.msra.mxu0 %v2679
        %6684 = vmatprep.subr.mxu0 %v2688
        %6685 = vmatpush1.msra.mxu0 %v2687
        %6686 = vmatprep.subr.mxu0 %v2696
        %6687 = vmatpush1.msra.mxu0 %v2695
        %6688 = vmatprep.subr.mxu0 %v2704
        %6689 = vmatpush1.msra.mxu0 %v2703
        %6690 = vmatprep.subr.mxu0 %v2712
        %6691 = vmatpush1.msra.mxu0 %v2711
        %6692 = vmatprep.subr.mxu0 %v2720
        %6693 = vmatpush1.msra.mxu0 %v2719
        %6694 = vmatprep.subr.mxu0 %v2728
        %6695 = vmatpush1.msra.mxu0 %v2727
        %6696 = vmatprep.subr.mxu0 %v2736
        %6697 = vmatpush1.msra.mxu0 %v2735
        %6698 = vmatprep.subr.mxu0 %v2744
        %6699 = vmatpush1.msra.mxu0 %v2743
        %6700 = vmatprep.subr.mxu0 %v2752
        %6701 = vmatpush1.msra.mxu0 %v2751
        %6702 = vmatprep.subr.mxu0 %v2760
        %6703 = vmatpush1.msra.mxu0 %v2759
        %6704 = vmatprep.subr.mxu0 %v2768
        %6705 = vmatpush1.msra.mxu0 %v2767
        %6706 = vmatprep.subr.mxu0 %v2776
        %6707 = vmatpush1.msra.mxu0 %v2775
        %6708 = vmatprep.subr.mxu0 %v2784
        %6709 = vmatpush1.msra.mxu0 %v2783
        %6710 = vmatprep.subr.mxu0 %v2792
        %6711 = vmatpush1.msra.mxu0 %v2791
        %6712 = vmatprep.subr.mxu0 %v2800
        %6713 = vmatpush1.msra.mxu0 %v2799
        %6714 = vmatprep.subr.mxu0 %v2808
        %6715 = vmatpush1.msra.mxu0 %v2807
        %6716 = vmatprep.subr.mxu0 %v2816
        %6717 = vmatpush1.msra.mxu0 %v2815
        %6718 = vmatprep.subr.mxu0 %v2824
        %6719 = vmatpush1.msra.mxu0 %v2823
        %6720 = vmatprep.subr.mxu0 %v2832
        %6721 = vmatpush1.msra.mxu0 %v2831
        %6722 = vmatprep.subr.mxu0 %v2840
        %6723 = vmatpush1.msra.mxu0 %v2839
        %6724 = vmatprep.subr.mxu0 %v2848
        %6725 = vmatpush1.msra.mxu0 %v2847
        %6726 = vmatprep.subr.mxu0 %v2856
        %6727 = vmatpush1.msra.mxu0 %v2855
        %6728 = vmatprep.mubr.f32.mxu0 %v3974
        %6729 = vmatmul.mubr.f32.gmra.mrb[0].mxu0 %v3972
        %v6730 = vpop.f32.mrb[0].mxu0
        %v6731 = vadd.f32 %v6660, %v6730
        %v6732 = vpop.f32.mrb[0].mxu0
        %v6733 = vadd.f32 %v6662, %v6732
        %6734 = vdwg.mxu0
        %6735 = vmatprep.subr.mxu0 %v2864
        %6736 = vmatpush1.msra.mxu0 %v2863
        %6737 = vmatprep.subr.mxu0 %v2872
        %6738 = vmatpush1.msra.mxu0 %v2871
        %6739 = vmatprep.subr.mxu0 %v2880
        %6740 = vmatpush1.msra.mxu0 %v2879
        %6741 = vmatprep.subr.mxu0 %v2888
        %6742 = vmatpush1.msra.mxu0 %v2887
        %6743 = vmatprep.subr.mxu0 %v2896
        %6744 = vmatpush1.msra.mxu0 %v2895
        %6745 = vmatprep.subr.mxu0 %v2904
        %6746 = vmatpush1.msra.mxu0 %v2903
        %6747 = vmatprep.subr.mxu0 %v2912
        %6748 = vmatpush1.msra.mxu0 %v2911
        %6749 = vmatprep.subr.mxu0 %v2920
        %6750 = vmatpush1.msra.mxu0 %v2919
        %6751 = vmatprep.subr.mxu0 %v2928
        %6752 = vmatpush1.msra.mxu0 %v2927
        %6753 = vmatprep.subr.mxu0 %v2936
        %6754 = vmatpush1.msra.mxu0 %v2935
        %6755 = vmatprep.subr.mxu0 %v2944
        %6756 = vmatpush1.msra.mxu0 %v2943
        %6757 = vmatprep.subr.mxu0 %v2952
        %6758 = vmatpush1.msra.mxu0 %v2951
        %6759 = vmatprep.subr.mxu0 %v2960
        %6760 = vmatpush1.msra.mxu0 %v2959
        %6761 = vmatprep.subr.mxu0 %v2968
        %6762 = vmatpush1.msra.mxu0 %v2967
        %6763 = vmatprep.subr.mxu0 %v2976
        %6764 = vmatpush1.msra.mxu0 %v2975
        %6765 = vmatprep.subr.mxu0 %v2984
        %6766 = vmatpush1.msra.mxu0 %v2983
        %6767 = vmatprep.subr.mxu0 %v2992
        %6768 = vmatpush1.msra.mxu0 %v2991
        %6769 = vmatprep.subr.mxu0 %v3000
        %6770 = vmatpush1.msra.mxu0 %v2999
        %6771 = vmatprep.subr.mxu0 %v3008
        %6772 = vmatpush1.msra.mxu0 %v3007
        %6773 = vmatprep.subr.mxu0 %v3016
        %6774 = vmatpush1.msra.mxu0 %v3015
        %6775 = vmatprep.subr.mxu0 %v3024
        %6776 = vmatpush1.msra.mxu0 %v3023
        %6777 = vmatprep.subr.mxu0 %v3032
        %6778 = vmatpush1.msra.mxu0 %v3031
        %6779 = vmatprep.subr.mxu0 %v3040
        %6780 = vmatpush1.msra.mxu0 %v3039
        %6781 = vmatprep.subr.mxu0 %v3048
        %6782 = vmatpush1.msra.mxu0 %v3047
        %6783 = vmatprep.subr.mxu0 %v3056
        %6784 = vmatpush1.msra.mxu0 %v3055
        %6785 = vmatprep.subr.mxu0 %v3064
        %6786 = vmatpush1.msra.mxu0 %v3063
        %6787 = vmatprep.subr.mxu0 %v3072
        %6788 = vmatpush1.msra.mxu0 %v3071
        %6789 = vmatprep.subr.mxu0 %v3080
        %6790 = vmatpush1.msra.mxu0 %v3079
        %6791 = vmatprep.subr.mxu0 %v3088
        %6792 = vmatpush1.msra.mxu0 %v3087
        %6793 = vmatprep.subr.mxu0 %v3096
        %6794 = vmatpush1.msra.mxu0 %v3095
        %6795 = vmatprep.subr.mxu0 %v3104
        %6796 = vmatpush1.msra.mxu0 %v3103
        %6797 = vmatprep.subr.mxu0 %v3112
        %6798 = vmatpush1.msra.mxu0 %v3111
        %6799 = vmatprep.mubr.f32.mxu0 %v3990
        %6800 = vmatmul.mubr.f32.gmra.mrb[0].mxu0 %v3982
        %v6801 = vpop.f32.mrb[0].mxu0
        %v6802 = vadd.f32 %v6731, %v6801
        %v6803 = vpop.f32.mrb[0].mxu0
        %v6804 = vadd.f32 %v6733, %v6803
        %6805 = vdwg.mxu0
        %6806 = vmatprep.subr.mxu0 %v3120
        %6807 = vmatpush1.msra.mxu0 %v3119
        %6808 = vmatprep.subr.mxu0 %v3128
        %6809 = vmatpush1.msra.mxu0 %v3127
        %6810 = vmatprep.subr.mxu0 %v3136
        %6811 = vmatpush1.msra.mxu0 %v3135
        %6812 = vmatprep.subr.mxu0 %v3144
        %6813 = vmatpush1.msra.mxu0 %v3143
        %6814 = vmatprep.subr.mxu0 %v3152
        %6815 = vmatpush1.msra.mxu0 %v3151
        %6816 = vmatprep.subr.mxu0 %v3160
        %6817 = vmatpush1.msra.mxu0 %v3159
        %6818 = vmatprep.subr.mxu0 %v3168
        %6819 = vmatpush1.msra.mxu0 %v3167
        %6820 = vmatprep.subr.mxu0 %v3176
        %6821 = vmatpush1.msra.mxu0 %v3175
        %6822 = vmatprep.subr.mxu0 %v3184
        %6823 = vmatpush1.msra.mxu0 %v3183
        %6824 = vmatprep.subr.mxu0 %v3192
        %6825 = vmatpush1.msra.mxu0 %v3191
        %6826 = vmatprep.subr.mxu0 %v3200
        %6827 = vmatpush1.msra.mxu0 %v3199
        %6828 = vmatprep.subr.mxu0 %v3208
        %6829 = vmatpush1.msra.mxu0 %v3207
        %6830 = vmatprep.subr.mxu0 %v3216
        %6831 = vmatpush1.msra.mxu0 %v3215
        %6832 = vmatprep.subr.mxu0 %v3224
        %6833 = vmatpush1.msra.mxu0 %v3223
        %6834 = vmatprep.subr.mxu0 %v3232
        %6835 = vmatpush1.msra.mxu0 %v3231
        %6836 = vmatprep.subr.mxu0 %v3240
        %6837 = vmatpush1.msra.mxu0 %v3239
        %6838 = vmatprep.subr.mxu0 %v3248
        %6839 = vmatpush1.msra.mxu0 %v3247
        %6840 = vmatprep.subr.mxu0 %v3256
        %6841 = vmatpush1.msra.mxu0 %v3255
        %6842 = vmatprep.subr.mxu0 %v3264
        %6843 = vmatpush1.msra.mxu0 %v3263
        %6844 = vmatprep.subr.mxu0 %v3272
        %6845 = vmatpush1.msra.mxu0 %v3271
        %6846 = vmatprep.subr.mxu0 %v3280
        %6847 = vmatpush1.msra.mxu0 %v3279
        %6848 = vmatprep.subr.mxu0 %v3288
        %6849 = vmatpush1.msra.mxu0 %v3287
        %6850 = vmatprep.subr.mxu0 %v3296
        %6851 = vmatpush1.msra.mxu0 %v3295
        %6852 = vmatprep.subr.mxu0 %v3304
        %6853 = vmatpush1.msra.mxu0 %v3303
        %6854 = vmatprep.subr.mxu0 %v3312
        %6855 = vmatpush1.msra.mxu0 %v3311
        %6856 = vmatprep.subr.mxu0 %v3320
        %6857 = vmatpush1.msra.mxu0 %v3319
        %6858 = vmatprep.subr.mxu0 %v3328
        %6859 = vmatpush1.msra.mxu0 %v3327
        %6860 = vmatprep.subr.mxu0 %v3336
        %6861 = vmatpush1.msra.mxu0 %v3335
        %6862 = vmatprep.subr.mxu0 %v3344
        %6863 = vmatpush1.msra.mxu0 %v3343
        %6864 = vmatprep.subr.mxu0 %v3352
        %6865 = vmatpush1.msra.mxu0 %v3351
        %6866 = vmatprep.subr.mxu0 %v3360
        %6867 = vmatpush1.msra.mxu0 %v3359
        %6868 = vmatprep.subr.mxu0 %v3368
        %6869 = vmatpush1.msra.mxu0 %v3367
        %6870 = vmatprep.mubr.f32.mxu0 %v3991
        %6871 = vmatmul.mubr.f32.gmra.mrb[0].mxu0 %v3989
        %v6872 = vpop.f32.mrb[0].mxu0
        %v6873 = vadd.f32 %v6802, %v6872
        %v6874 = vpop.f32.mrb[0].mxu0
        %v6875 = vadd.f32 %v6804, %v6874
        %6876 = vdwg.mxu0
        %6877 = vmatprep.subr.mxu0 %v3376
        %6878 = vmatpush1.msra.mxu0 %v3375
        %6879 = vmatprep.subr.mxu0 %v3384
        %6880 = vmatpush1.msra.mxu0 %v3383
        %6881 = vmatprep.subr.mxu0 %v3392
        %6882 = vmatpush1.msra.mxu0 %v3391
        %6883 = vmatprep.subr.mxu0 %v3400
        %6884 = vmatpush1.msra.mxu0 %v3399
        %6885 = vmatprep.subr.mxu0 %v3408
        %6886 = vmatpush1.msra.mxu0 %v3407
        %6887 = vmatprep.subr.mxu0 %v3416
        %6888 = vmatpush1.msra.mxu0 %v3415
        %6889 = vmatprep.subr.mxu0 %v3424
        %6890 = vmatpush1.msra.mxu0 %v3423
        %6891 = vmatprep.subr.mxu0 %v3432
        %6892 = vmatpush1.msra.mxu0 %v3431
        %6893 = vmatprep.subr.mxu0 %v3440
        %6894 = vmatpush1.msra.mxu0 %v3439
        %6895 = vmatprep.subr.mxu0 %v3448
        %6896 = vmatpush1.msra.mxu0 %v3447
        %6897 = vmatprep.subr.mxu0 %v3456
        %6898 = vmatpush1.msra.mxu0 %v3455
        %6899 = vmatprep.subr.mxu0 %v3464
        %6900 = vmatpush1.msra.mxu0 %v3463
        %6901 = vmatprep.subr.mxu0 %v3472
        %6902 = vmatpush1.msra.mxu0 %v3471
        %6903 = vmatprep.subr.mxu0 %v3480
        %6904 = vmatpush1.msra.mxu0 %v3479
        %6905 = vmatprep.subr.mxu0 %v3488
        %6906 = vmatpush1.msra.mxu0 %v3487
        %6907 = vmatprep.subr.mxu0 %v3496
        %6908 = vmatpush1.msra.mxu0 %v3495
        %6909 = vmatprep.subr.mxu0 %v3504
        %6910 = vmatpush1.msra.mxu0 %v3503
        %6911 = vmatprep.subr.mxu0 %v3512
        %6912 = vmatpush1.msra.mxu0 %v3511
        %6913 = vmatprep.subr.mxu0 %v3520
        %6914 = vmatpush1.msra.mxu0 %v3519
        %6915 = vmatprep.subr.mxu0 %v3528
        %6916 = vmatpush1.msra.mxu0 %v3527
        %6917 = vmatprep.subr.mxu0 %v3536
        %6918 = vmatpush1.msra.mxu0 %v3535
        %6919 = vmatprep.subr.mxu0 %v3544
        %6920 = vmatpush1.msra.mxu0 %v3543
        %6921 = vmatprep.subr.mxu0 %v3552
        %6922 = vmatpush1.msra.mxu0 %v3551
        %6923 = vmatprep.subr.mxu0 %v3560
        %6924 = vmatpush1.msra.mxu0 %v3559
        %6925 = vmatprep.subr.mxu0 %v3568
        %6926 = vmatpush1.msra.mxu0 %v3567
        %6927 = vmatprep.subr.mxu0 %v3576
        %6928 = vmatpush1.msra.mxu0 %v3575
        %6929 = vmatprep.subr.mxu0 %v3584
        %6930 = vmatpush1.msra.mxu0 %v3583
        %6931 = vmatprep.subr.mxu0 %v3592
        %6932 = vmatpush1.msra.mxu0 %v3591
        %6933 = vmatprep.subr.mxu0 %v3600
        %6934 = vmatpush1.msra.mxu0 %v3599
        %6935 = vmatprep.subr.mxu0 %v3608
        %6936 = vmatpush1.msra.mxu0 %v3607
        %6937 = vmatprep.subr.mxu0 %v3616
        %6938 = vmatpush1.msra.mxu0 %v3615
        %6939 = vmatprep.subr.mxu0 %v3624
        %6940 = vmatpush1.msra.mxu0 %v3623
        %6941 = vmatprep.mubr.f32.mxu0 %v4007
        %6942 = vmatmul.mubr.f32.gmra.mrb[0].mxu0 %v3999
        %v6943 = vpop.f32.mrb[0].mxu0
        %v6944 = vadd.f32 %v6873, %v6943
        %v6945 = vpop.f32.mrb[0].mxu0
        %v6946 = vadd.f32 %v6875, %v6945
        %6947 = vdwg.mxu0
        %6948 = vmatprep.subr.mxu0 %v3632
        %6949 = vmatpush1.msra.mxu0 %v3631
        %6950 = vmatprep.subr.mxu0 %v3640
        %6951 = vmatpush1.msra.mxu0 %v3639
        %6952 = vmatprep.subr.mxu0 %v3648
        %6953 = vmatpush1.msra.mxu0 %v3647
        %6954 = vmatprep.subr.mxu0 %v3656
        %6955 = vmatpush1.msra.mxu0 %v3655
        %6956 = vmatprep.subr.mxu0 %v3664
        %6957 = vmatpush1.msra.mxu0 %v3663
        %6958 = vmatprep.subr.mxu0 %v3672
        %6959 = vmatpush1.msra.mxu0 %v3671
        %6960 = vmatprep.subr.mxu0 %v3680
        %6961 = vmatpush1.msra.mxu0 %v3679
        %6962 = vmatprep.subr.mxu0 %v3688
        %6963 = vmatpush1.msra.mxu0 %v3687
        %6964 = vmatprep.subr.mxu0 %v3696
        %6965 = vmatpush1.msra.mxu0 %v3695
        %6966 = vmatprep.subr.mxu0 %v3704
        %6967 = vmatpush1.msra.mxu0 %v3703
        %6968 = vmatprep.subr.mxu0 %v3712
        %6969 = vmatpush1.msra.mxu0 %v3711
        %6970 = vmatprep.subr.mxu0 %v3720
        %6971 = vmatpush1.msra.mxu0 %v3719
        %6972 = vmatprep.subr.mxu0 %v3728
        %6973 = vmatpush1.msra.mxu0 %v3727
        %6974 = vmatprep.subr.mxu0 %v3736
        %6975 = vmatpush1.msra.mxu0 %v3735
        %6976 = vmatprep.subr.mxu0 %v3744
        %6977 = vmatpush1.msra.mxu0 %v3743
        %6978 = vmatprep.subr.mxu0 %v3752
        %6979 = vmatpush1.msra.mxu0 %v3751
        %6980 = vmatprep.subr.mxu0 %v3760
        %6981 = vmatpush1.msra.mxu0 %v3759
        %6982 = vmatprep.subr.mxu0 %v3768
        %6983 = vmatpush1.msra.mxu0 %v3767
        %6984 = vmatprep.subr.mxu0 %v3776
        %6985 = vmatpush1.msra.mxu0 %v3775
        %6986 = vmatprep.subr.mxu0 %v3784
        %6987 = vmatpush1.msra.mxu0 %v3783
        %6988 = vmatprep.subr.mxu0 %v3792
        %6989 = vmatpush1.msra.mxu0 %v3791
        %6990 = vmatprep.subr.mxu0 %v3800
        %6991 = vmatpush1.msra.mxu0 %v3799
        %6992 = vmatprep.subr.mxu0 %v3808
        %6993 = vmatpush1.msra.mxu0 %v3807
        %6994 = vmatprep.subr.mxu0 %v3816
        %6995 = vmatpush1.msra.mxu0 %v3815
        %6996 = vmatprep.subr.mxu0 %v3824
        %6997 = vmatpush1.msra.mxu0 %v3823
        %6998 = vmatprep.subr.mxu0 %v3832
        %6999 = vmatpush1.msra.mxu0 %v3831
        %7000 = vmatprep.subr.mxu0 %v3840
        %7001 = vmatpush1.msra.mxu0 %v3839
        %7002 = vmatprep.subr.mxu0 %v3848
        %7003 = vmatpush1.msra.mxu0 %v3847
        %7004 = vmatprep.subr.mxu0 %v3856
        %7005 = vmatpush1.msra.mxu0 %v3855
        %7006 = vmatprep.subr.mxu0 %v3864
        %7007 = vmatpush1.msra.mxu0 %v3863
        %7008 = vmatprep.subr.mxu0 %v3872
        %7009 = vmatpush1.msra.mxu0 %v3871
        %7010 = vmatprep.subr.mxu0 %v3880
        %7011 = vmatpush1.msra.mxu0 %v3879
        %7012 = vmatprep.mubr.f32.mxu0 %v4008
        %7013 = vmatmul.mubr.f32.gmra.mrb[0].mxu0 %v4006
        %v7014 = vpop.f32.mrb[0].mxu0
        %v7015 = vadd.f32 %v6944, %v7014
        %v7016 = vpop.f32.mrb[0].mxu0
        %v7017 = vadd.f32 %v6946, %v7016
        %7018 = vdwg.mxu0
        %7019 = vmatprep.subr.mxu0 %v306
        %7020 = vmatpush1.msra.mxu0 %v305
        %7021 = vmatprep.subr.mxu0 %v314
        %7022 = vmatpush1.msra.mxu0 %v313
        %7023 = vmatprep.subr.mxu0 %v322
        %7024 = vmatpush1.msra.mxu0 %v321
        %7025 = vmatprep.subr.mxu0 %v330
        %7026 = vmatpush1.msra.mxu0 %v329
        %7027 = vmatprep.subr.mxu0 %v338
        %7028 = vmatpush1.msra.mxu0 %v337
        %7029 = vmatprep.subr.mxu0 %v346
        %7030 = vmatpush1.msra.mxu0 %v345
        %7031 = vmatprep.subr.mxu0 %v354
        %7032 = vmatpush1.msra.mxu0 %v353
        %7033 = vmatprep.subr.mxu0 %v362
        %7034 = vmatpush1.msra.mxu0 %v361
        %7035 = vmatprep.subr.mxu0 %v370
        %7036 = vmatpush1.msra.mxu0 %v369
        %7037 = vmatprep.subr.mxu0 %v378
        %7038 = vmatpush1.msra.mxu0 %v377
        %7039 = vmatprep.subr.mxu0 %v386
        %7040 = vmatpush1.msra.mxu0 %v385
        %7041 = vmatprep.subr.mxu0 %v394
        %7042 = vmatpush1.msra.mxu0 %v393
        %7043 = vmatprep.subr.mxu0 %v402
        %7044 = vmatpush1.msra.mxu0 %v401
        %7045 = vmatprep.subr.mxu0 %v410
        %7046 = vmatpush1.msra.mxu0 %v409
        %7047 = vmatprep.subr.mxu0 %v418
        %7048 = vmatpush1.msra.mxu0 %v417
        %7049 = vmatprep.subr.mxu0 %v426
        %7050 = vmatpush1.msra.mxu0 %v425
        %7051 = vmatprep.subr.mxu0 %v434
        %7052 = vmatpush1.msra.mxu0 %v433
        %7053 = vmatprep.subr.mxu0 %v442
        %7054 = vmatpush1.msra.mxu0 %v441
        %7055 = vmatprep.subr.mxu0 %v450
        %7056 = vmatpush1.msra.mxu0 %v449
        %7057 = vmatprep.subr.mxu0 %v458
        %7058 = vmatpush1.msra.mxu0 %v457
        %7059 = vmatprep.subr.mxu0 %v466
        %7060 = vmatpush1.msra.mxu0 %v465
        %7061 = vmatprep.subr.mxu0 %v474
        %7062 = vmatpush1.msra.mxu0 %v473
        %7063 = vmatprep.subr.mxu0 %v482
        %7064 = vmatpush1.msra.mxu0 %v481
        %7065 = vmatprep.subr.mxu0 %v490
        %7066 = vmatpush1.msra.mxu0 %v489
        %7067 = vmatprep.subr.mxu0 %v498
        %7068 = vmatpush1.msra.mxu0 %v497
        %7069 = vmatprep.subr.mxu0 %v506
        %7070 = vmatpush1.msra.mxu0 %v505
        %7071 = vmatprep.subr.mxu0 %v514
        %7072 = vmatpush1.msra.mxu0 %v513
        %7073 = vmatprep.subr.mxu0 %v522
        %7074 = vmatpush1.msra.mxu0 %v521
        %7075 = vmatprep.subr.mxu0 %v530
        %7076 = vmatpush1.msra.mxu0 %v529
        %7077 = vmatprep.subr.mxu0 %v538
        %7078 = vmatpush1.msra.mxu0 %v537
        %7079 = vmatprep.subr.mxu0 %v546
        %7080 = vmatpush1.msra.mxu0 %v545
        %7081 = vmatprep.subr.mxu0 %v554
        %7082 = vmatpush1.msra.mxu0 %v553
        %7083 = vmatprep.mubr.f32.mxu0 %v3905
        %7084 = vmatmul.mubr.f32.gmra.mrb[0].mxu0 %v3897
        %v7085 = vpop.f32.mrb[0].mxu0
        %v7086 = vadd.f32 0.0, %v7085
        %v7087 = vpop.f32.mrb[0].mxu0
        %v7088 = vadd.f32 0.0, %v7087
        %7089 = vdwg.mxu0
        %7090 = vmatprep.subr.mxu0 %v562
        %7091 = vmatpush1.msra.mxu0 %v561
        %7092 = vmatprep.subr.mxu0 %v570
        %7093 = vmatpush1.msra.mxu0 %v569
        %7094 = vmatprep.subr.mxu0 %v578
        %7095 = vmatpush1.msra.mxu0 %v577
        %7096 = vmatprep.subr.mxu0 %v586
        %7097 = vmatpush1.msra.mxu0 %v585
        %7098 = vmatprep.subr.mxu0 %v594
        %7099 = vmatpush1.msra.mxu0 %v593
        %7100 = vmatprep.subr.mxu0 %v602
        %7101 = vmatpush1.msra.mxu0 %v601
        %7102 = vmatprep.subr.mxu0 %v610
        %7103 = vmatpush1.msra.mxu0 %v609
        %7104 = vmatprep.subr.mxu0 %v618
        %7105 = vmatpush1.msra.mxu0 %v617
        %7106 = vmatprep.subr.mxu0 %v626
        %7107 = vmatpush1.msra.mxu0 %v625
        %7108 = vmatprep.subr.mxu0 %v634
        %7109 = vmatpush1.msra.mxu0 %v633
        %7110 = vmatprep.subr.mxu0 %v642
        %7111 = vmatpush1.msra.mxu0 %v641
        %7112 = vmatprep.subr.mxu0 %v650
        %7113 = vmatpush1.msra.mxu0 %v649
        %7114 = vmatprep.subr.mxu0 %v658
        %7115 = vmatpush1.msra.mxu0 %v657
        %7116 = vmatprep.subr.mxu0 %v666
        %7117 = vmatpush1.msra.mxu0 %v665
        %7118 = vmatprep.subr.mxu0 %v674
        %7119 = vmatpush1.msra.mxu0 %v673
        %7120 = vmatprep.subr.mxu0 %v682
        %7121 = vmatpush1.msra.mxu0 %v681
        %7122 = vmatprep.subr.mxu0 %v690
        %7123 = vmatpush1.msra.mxu0 %v689
        %7124 = vmatprep.subr.mxu0 %v698
        %7125 = vmatpush1.msra.mxu0 %v697
        %7126 = vmatprep.subr.mxu0 %v706
        %7127 = vmatpush1.msra.mxu0 %v705
        %7128 = vmatprep.subr.mxu0 %v714
        %7129 = vmatpush1.msra.mxu0 %v713
        %7130 = vmatprep.subr.mxu0 %v722
        %7131 = vmatpush1.msra.mxu0 %v721
        %7132 = vmatprep.subr.mxu0 %v730
        %7133 = vmatpush1.msra.mxu0 %v729
        %7134 = vmatprep.subr.mxu0 %v738
        %7135 = vmatpush1.msra.mxu0 %v737
        %7136 = vmatprep.subr.mxu0 %v746
        %7137 = vmatpush1.msra.mxu0 %v745
        %7138 = vmatprep.subr.mxu0 %v754
        %7139 = vmatpush1.msra.mxu0 %v753
        %7140 = vmatprep.subr.mxu0 %v762
        %7141 = vmatpush1.msra.mxu0 %v761
        %7142 = vmatprep.subr.mxu0 %v770
        %7143 = vmatpush1.msra.mxu0 %v769
        %7144 = vmatprep.subr.mxu0 %v778
        %7145 = vmatpush1.msra.mxu0 %v777
        %7146 = vmatprep.subr.mxu0 %v786
        %7147 = vmatpush1.msra.mxu0 %v785
        %7148 = vmatprep.subr.mxu0 %v794
        %7149 = vmatpush1.msra.mxu0 %v793
        %7150 = vmatprep.subr.mxu0 %v802
        %7151 = vmatpush1.msra.mxu0 %v801
        %7152 = vmatprep.subr.mxu0 %v810
        %7153 = vmatpush1.msra.mxu0 %v809
        %7154 = vmatprep.mubr.f32.mxu0 %v3906
        %7155 = vmatmul.mubr.f32.gmra.mrb[0].mxu0 %v3904
        %v7156 = vpop.f32.mrb[0].mxu0
        %v7157 = vadd.f32 %v7086, %v7156
        %v7158 = vpop.f32.mrb[0].mxu0
        %v7159 = vadd.f32 %v7088, %v7158
        %7160 = vdwg.mxu0
        %7161 = vmatprep.subr.mxu0 %v818
        %7162 = vmatpush1.msra.mxu0 %v817
        %7163 = vmatprep.subr.mxu0 %v826
        %7164 = vmatpush1.msra.mxu0 %v825
        %7165 = vmatprep.subr.mxu0 %v834
        %7166 = vmatpush1.msra.mxu0 %v833
        %7167 = vmatprep.subr.mxu0 %v842
        %7168 = vmatpush1.msra.mxu0 %v841
        %7169 = vmatprep.subr.mxu0 %v850
        %7170 = vmatpush1.msra.mxu0 %v849
        %7171 = vmatprep.subr.mxu0 %v858
        %7172 = vmatpush1.msra.mxu0 %v857
        %7173 = vmatprep.subr.mxu0 %v866
        %7174 = vmatpush1.msra.mxu0 %v865
        %7175 = vmatprep.subr.mxu0 %v874
        %7176 = vmatpush1.msra.mxu0 %v873
        %7177 = vmatprep.subr.mxu0 %v882
        %7178 = vmatpush1.msra.mxu0 %v881
        %7179 = vmatprep.subr.mxu0 %v890
        %7180 = vmatpush1.msra.mxu0 %v889
        %7181 = vmatprep.subr.mxu0 %v898
        %7182 = vmatpush1.msra.mxu0 %v897
        %7183 = vmatprep.subr.mxu0 %v906
        %7184 = vmatpush1.msra.mxu0 %v905
        %7185 = vmatprep.subr.mxu0 %v914
        %7186 = vmatpush1.msra.mxu0 %v913
        %7187 = vmatprep.subr.mxu0 %v922
        %7188 = vmatpush1.msra.mxu0 %v921
        %7189 = vmatprep.subr.mxu0 %v930
        %7190 = vmatpush1.msra.mxu0 %v929
        %7191 = vmatprep.subr.mxu0 %v938
        %7192 = vmatpush1.msra.mxu0 %v937
        %7193 = vmatprep.subr.mxu0 %v946
        %7194 = vmatpush1.msra.mxu0 %v945
        %7195 = vmatprep.subr.mxu0 %v954
        %7196 = vmatpush1.msra.mxu0 %v953
        %7197 = vmatprep.subr.mxu0 %v962
        %7198 = vmatpush1.msra.mxu0 %v961
        %7199 = vmatprep.subr.mxu0 %v970
        %7200 = vmatpush1.msra.mxu0 %v969
        %7201 = vmatprep.subr.mxu0 %v978
        %7202 = vmatpush1.msra.mxu0 %v977
        %7203 = vmatprep.subr.mxu0 %v986
        %7204 = vmatpush1.msra.mxu0 %v985
        %7205 = vmatprep.subr.mxu0 %v994
        %7206 = vmatpush1.msra.mxu0 %v993
        %7207 = vmatprep.subr.mxu0 %v1002
        %7208 = vmatpush1.msra.mxu0 %v1001
        %7209 = vmatprep.subr.mxu0 %v1010
        %7210 = vmatpush1.msra.mxu0 %v1009
        %7211 = vmatprep.subr.mxu0 %v1018
        %7212 = vmatpush1.msra.mxu0 %v1017
        %7213 = vmatprep.subr.mxu0 %v1026
        %7214 = vmatpush1.msra.mxu0 %v1025
        %7215 = vmatprep.subr.mxu0 %v1034
        %7216 = vmatpush1.msra.mxu0 %v1033
        %7217 = vmatprep.subr.mxu0 %v1042
        %7218 = vmatpush1.msra.mxu0 %v1041
        %7219 = vmatprep.subr.mxu0 %v1050
        %7220 = vmatpush1.msra.mxu0 %v1049
        %7221 = vmatprep.subr.mxu0 %v1058
        %7222 = vmatpush1.msra.mxu0 %v1057
        %7223 = vmatprep.subr.mxu0 %v1066
        %7224 = vmatpush1.msra.mxu0 %v1065
        %7225 = vmatprep.mubr.f32.mxu0 %v3922
        %7226 = vmatmul.mubr.f32.gmra.mrb[0].mxu0 %v3914
        %v7227 = vpop.f32.mrb[0].mxu0
        %v7228 = vadd.f32 %v7157, %v7227
        %v7229 = vpop.f32.mrb[0].mxu0
        %v7230 = vadd.f32 %v7159, %v7229
        %7231 = vdwg.mxu0
        %7232 = vmatprep.subr.mxu0 %v1074
        %7233 = vmatpush1.msra.mxu0 %v1073
        %7234 = vmatprep.subr.mxu0 %v1082
        %7235 = vmatpush1.msra.mxu0 %v1081
        %7236 = vmatprep.subr.mxu0 %v1090
        %7237 = vmatpush1.msra.mxu0 %v1089
        %7238 = vmatprep.subr.mxu0 %v1098
        %7239 = vmatpush1.msra.mxu0 %v1097
        %7240 = vmatprep.subr.mxu0 %v1106
        %7241 = vmatpush1.msra.mxu0 %v1105
        %7242 = vmatprep.subr.mxu0 %v1114
        %7243 = vmatpush1.msra.mxu0 %v1113
        %7244 = vmatprep.subr.mxu0 %v1122
        %7245 = vmatpush1.msra.mxu0 %v1121
        %7246 = vmatprep.subr.mxu0 %v1130
        %7247 = vmatpush1.msra.mxu0 %v1129
        %7248 = vmatprep.subr.mxu0 %v1138
        %7249 = vmatpush1.msra.mxu0 %v1137
        %7250 = vmatprep.subr.mxu0 %v1146
        %7251 = vmatpush1.msra.mxu0 %v1145
        %7252 = vmatprep.subr.mxu0 %v1154
        %7253 = vmatpush1.msra.mxu0 %v1153
        %7254 = vmatprep.subr.mxu0 %v1162
        %7255 = vmatpush1.msra.mxu0 %v1161
        %7256 = vmatprep.subr.mxu0 %v1170
        %7257 = vmatpush1.msra.mxu0 %v1169
        %7258 = vmatprep.subr.mxu0 %v1178
        %7259 = vmatpush1.msra.mxu0 %v1177
        %7260 = vmatprep.subr.mxu0 %v1186
        %7261 = vmatpush1.msra.mxu0 %v1185
        %7262 = vmatprep.subr.mxu0 %v1194
        %7263 = vmatpush1.msra.mxu0 %v1193
        %7264 = vmatprep.subr.mxu0 %v1202
        %7265 = vmatpush1.msra.mxu0 %v1201
        %7266 = vmatprep.subr.mxu0 %v1210
        %7267 = vmatpush1.msra.mxu0 %v1209
        %7268 = vmatprep.subr.mxu0 %v1218
        %7269 = vmatpush1.msra.mxu0 %v1217
        %7270 = vmatprep.subr.mxu0 %v1226
        %7271 = vmatpush1.msra.mxu0 %v1225
        %7272 = vmatprep.subr.mxu0 %v1234
        %7273 = vmatpush1.msra.mxu0 %v1233
        %7274 = vmatprep.subr.mxu0 %v1242
        %7275 = vmatpush1.msra.mxu0 %v1241
        %7276 = vmatprep.subr.mxu0 %v1250
        %7277 = vmatpush1.msra.mxu0 %v1249
        %7278 = vmatprep.subr.mxu0 %v1258
        %7279 = vmatpush1.msra.mxu0 %v1257
        %7280 = vmatprep.subr.mxu0 %v1266
        %7281 = vmatpush1.msra.mxu0 %v1265
        %7282 = vmatprep.subr.mxu0 %v1274
        %7283 = vmatpush1.msra.mxu0 %v1273
        %7284 = vmatprep.subr.mxu0 %v1282
        %7285 = vmatpush1.msra.mxu0 %v1281
        %7286 = vmatprep.subr.mxu0 %v1290
        %7287 = vmatpush1.msra.mxu0 %v1289
        %7288 = vmatprep.subr.mxu0 %v1298
        %7289 = vmatpush1.msra.mxu0 %v1297
        %7290 = vmatprep.subr.mxu0 %v1306
        %7291 = vmatpush1.msra.mxu0 %v1305
        %7292 = vmatprep.subr.mxu0 %v1314
        %7293 = vmatpush1.msra.mxu0 %v1313
        %7294 = vmatprep.subr.mxu0 %v1322
        %7295 = vmatpush1.msra.mxu0 %v1321
        %7296 = vmatprep.mubr.f32.mxu0 %v3923
        %7297 = vmatmul.mubr.f32.gmra.mrb[0].mxu0 %v3921
        %v7298 = vpop.f32.mrb[0].mxu0
        %v7299 = vadd.f32 %v7228, %v7298
        %v7300 = vpop.f32.mrb[0].mxu0
        %v7301 = vadd.f32 %v7230, %v7300
        %7302 = vdwg.mxu0
        %7303 = vmatprep.subr.mxu0 %v1330
        %7304 = vmatpush1.msra.mxu0 %v1329
        %7305 = vmatprep.subr.mxu0 %v1338
        %7306 = vmatpush1.msra.mxu0 %v1337
        %7307 = vmatprep.subr.mxu0 %v1346
        %7308 = vmatpush1.msra.mxu0 %v1345
        %7309 = vmatprep.subr.mxu0 %v1354
        %7310 = vmatpush1.msra.mxu0 %v1353
        %7311 = vmatprep.subr.mxu0 %v1362
        %7312 = vmatpush1.msra.mxu0 %v1361
        %7313 = vmatprep.subr.mxu0 %v1370
        %7314 = vmatpush1.msra.mxu0 %v1369
        %7315 = vmatprep.subr.mxu0 %v1378
        %7316 = vmatpush1.msra.mxu0 %v1377
        %7317 = vmatprep.subr.mxu0 %v1386
        %7318 = vmatpush1.msra.mxu0 %v1385
        %7319 = vmatprep.subr.mxu0 %v1394
        %7320 = vmatpush1.msra.mxu0 %v1393
        %7321 = vmatprep.subr.mxu0 %v1402
        %7322 = vmatpush1.msra.mxu0 %v1401
        %7323 = vmatprep.subr.mxu0 %v1410
        %7324 = vmatpush1.msra.mxu0 %v1409
        %7325 = vmatprep.subr.mxu0 %v1418
        %7326 = vmatpush1.msra.mxu0 %v1417
        %7327 = vmatprep.subr.mxu0 %v1426
        %7328 = vmatpush1.msra.mxu0 %v1425
        %7329 = vmatprep.subr.mxu0 %v1434
        %7330 = vmatpush1.msra.mxu0 %v1433
        %7331 = vmatprep.subr.mxu0 %v1442
        %7332 = vmatpush1.msra.mxu0 %v1441
        %7333 = vmatprep.subr.mxu0 %v1450
        %7334 = vmatpush1.msra.mxu0 %v1449
        %7335 = vmatprep.subr.mxu0 %v1458
        %7336 = vmatpush1.msra.mxu0 %v1457
        %7337 = vmatprep.subr.mxu0 %v1466
        %7338 = vmatpush1.msra.mxu0 %v1465
        %7339 = vmatprep.subr.mxu0 %v1474
        %7340 = vmatpush1.msra.mxu0 %v1473
        %7341 = vmatprep.subr.mxu0 %v1482
        %7342 = vmatpush1.msra.mxu0 %v1481
        %7343 = vmatprep.subr.mxu0 %v1490
        %7344 = vmatpush1.msra.mxu0 %v1489
        %7345 = vmatprep.subr.mxu0 %v1498
        %7346 = vmatpush1.msra.mxu0 %v1497
        %7347 = vmatprep.subr.mxu0 %v1506
        %7348 = vmatpush1.msra.mxu0 %v1505
        %7349 = vmatprep.subr.mxu0 %v1514
        %7350 = vmatpush1.msra.mxu0 %v1513
        %7351 = vmatprep.subr.mxu0 %v1522
        %7352 = vmatpush1.msra.mxu0 %v1521
        %7353 = vmatprep.subr.mxu0 %v1530
        %7354 = vmatpush1.msra.mxu0 %v1529
        %7355 = vmatprep.subr.mxu0 %v1538
        %7356 = vmatpush1.msra.mxu0 %v1537
        %7357 = vmatprep.subr.mxu0 %v1546
        %7358 = vmatpush1.msra.mxu0 %v1545
        %7359 = vmatprep.subr.mxu0 %v1554
        %7360 = vmatpush1.msra.mxu0 %v1553
        %7361 = vmatprep.subr.mxu0 %v1562
        %7362 = vmatpush1.msra.mxu0 %v1561
        %7363 = vmatprep.subr.mxu0 %v1570
        %7364 = vmatpush1.msra.mxu0 %v1569
        %7365 = vmatprep.subr.mxu0 %v1578
        %7366 = vmatpush1.msra.mxu0 %v1577
        %7367 = vmatprep.mubr.f32.mxu0 %v3939
        %7368 = vmatmul.mubr.f32.gmra.mrb[0].mxu0 %v3931
        %v7369 = vpop.f32.mrb[0].mxu0
        %v7370 = vadd.f32 %v7299, %v7369
        %v7371 = vpop.f32.mrb[0].mxu0
        %v7372 = vadd.f32 %v7301, %v7371
        %7373 = vdwg.mxu0
        %7374 = vmatprep.subr.mxu0 %v1586
        %7375 = vmatpush1.msra.mxu0 %v1585
        %7376 = vmatprep.subr.mxu0 %v1594
        %7377 = vmatpush1.msra.mxu0 %v1593
        %7378 = vmatprep.subr.mxu0 %v1602
        %7379 = vmatpush1.msra.mxu0 %v1601
        %7380 = vmatprep.subr.mxu0 %v1610
        %7381 = vmatpush1.msra.mxu0 %v1609
        %7382 = vmatprep.subr.mxu0 %v1618
        %7383 = vmatpush1.msra.mxu0 %v1617
        %7384 = vmatprep.subr.mxu0 %v1626
        %7385 = vmatpush1.msra.mxu0 %v1625
        %7386 = vmatprep.subr.mxu0 %v1634
        %7387 = vmatpush1.msra.mxu0 %v1633
        %7388 = vmatprep.subr.mxu0 %v1642
        %7389 = vmatpush1.msra.mxu0 %v1641
        %7390 = vmatprep.subr.mxu0 %v1650
        %7391 = vmatpush1.msra.mxu0 %v1649
        %7392 = vmatprep.subr.mxu0 %v1658
        %7393 = vmatpush1.msra.mxu0 %v1657
        %7394 = vmatprep.subr.mxu0 %v1666
        %7395 = vmatpush1.msra.mxu0 %v1665
        %7396 = vmatprep.subr.mxu0 %v1674
        %7397 = vmatpush1.msra.mxu0 %v1673
        %7398 = vmatprep.subr.mxu0 %v1682
        %7399 = vmatpush1.msra.mxu0 %v1681
        %7400 = vmatprep.subr.mxu0 %v1690
        %7401 = vmatpush1.msra.mxu0 %v1689
        %7402 = vmatprep.subr.mxu0 %v1698
        %7403 = vmatpush1.msra.mxu0 %v1697
        %7404 = vmatprep.subr.mxu0 %v1706
        %7405 = vmatpush1.msra.mxu0 %v1705
        %7406 = vmatprep.subr.mxu0 %v1714
        %7407 = vmatpush1.msra.mxu0 %v1713
        %7408 = vmatprep.subr.mxu0 %v1722
        %7409 = vmatpush1.msra.mxu0 %v1721
        %7410 = vmatprep.subr.mxu0 %v1730
        %7411 = vmatpush1.msra.mxu0 %v1729
        %7412 = vmatprep.subr.mxu0 %v1738
        %7413 = vmatpush1.msra.mxu0 %v1737
        %7414 = vmatprep.subr.mxu0 %v1746
        %7415 = vmatpush1.msra.mxu0 %v1745
        %7416 = vmatprep.subr.mxu0 %v1754
        %7417 = vmatpush1.msra.mxu0 %v1753
        %7418 = vmatprep.subr.mxu0 %v1762
        %7419 = vmatpush1.msra.mxu0 %v1761
        %7420 = vmatprep.subr.mxu0 %v1770
        %7421 = vmatpush1.msra.mxu0 %v1769
        %7422 = vmatprep.subr.mxu0 %v1778
        %7423 = vmatpush1.msra.mxu0 %v1777
        %7424 = vmatprep.subr.mxu0 %v1786
        %7425 = vmatpush1.msra.mxu0 %v1785
        %7426 = vmatprep.subr.mxu0 %v1794
        %7427 = vmatpush1.msra.mxu0 %v1793
        %7428 = vmatprep.subr.mxu0 %v1802
        %7429 = vmatpush1.msra.mxu0 %v1801
        %7430 = vmatprep.subr.mxu0 %v1810
        %7431 = vmatpush1.msra.mxu0 %v1809
        %7432 = vmatprep.subr.mxu0 %v1818
        %7433 = vmatpush1.msra.mxu0 %v1817
        %7434 = vmatprep.subr.mxu0 %v1826
        %7435 = vmatpush1.msra.mxu0 %v1825
        %7436 = vmatprep.subr.mxu0 %v1834
        %7437 = vmatpush1.msra.mxu0 %v1833
        %7438 = vmatprep.mubr.f32.mxu0 %v3940
        %7439 = vmatmul.mubr.f32.gmra.mrb[0].mxu0 %v3938
        %v7440 = vpop.f32.mrb[0].mxu0
        %v7441 = vadd.f32 %v7370, %v7440
        %v7442 = vpop.f32.mrb[0].mxu0
        %v7443 = vadd.f32 %v7372, %v7442
        %7444 = vdwg.mxu0
        %7445 = vmatprep.subr.mxu0 %v1842
        %7446 = vmatpush1.msra.mxu0 %v1841
        %7447 = vmatprep.subr.mxu0 %v1850
        %7448 = vmatpush1.msra.mxu0 %v1849
        %7449 = vmatprep.subr.mxu0 %v1858
        %7450 = vmatpush1.msra.mxu0 %v1857
        %7451 = vmatprep.subr.mxu0 %v1866
        %7452 = vmatpush1.msra.mxu0 %v1865
        %7453 = vmatprep.subr.mxu0 %v1874
        %7454 = vmatpush1.msra.mxu0 %v1873
        %7455 = vmatprep.subr.mxu0 %v1882
        %7456 = vmatpush1.msra.mxu0 %v1881
        %7457 = vmatprep.subr.mxu0 %v1890
        %7458 = vmatpush1.msra.mxu0 %v1889
        %7459 = vmatprep.subr.mxu0 %v1898
        %7460 = vmatpush1.msra.mxu0 %v1897
        %7461 = vmatprep.subr.mxu0 %v1906
        %7462 = vmatpush1.msra.mxu0 %v1905
        %7463 = vmatprep.subr.mxu0 %v1914
        %7464 = vmatpush1.msra.mxu0 %v1913
        %7465 = vmatprep.subr.mxu0 %v1922
        %7466 = vmatpush1.msra.mxu0 %v1921
        %7467 = vmatprep.subr.mxu0 %v1930
        %7468 = vmatpush1.msra.mxu0 %v1929
        %7469 = vmatprep.subr.mxu0 %v1938
        %7470 = vmatpush1.msra.mxu0 %v1937
        %7471 = vmatprep.subr.mxu0 %v1946
        %7472 = vmatpush1.msra.mxu0 %v1945
        %7473 = vmatprep.subr.mxu0 %v1954
        %7474 = vmatpush1.msra.mxu0 %v1953
        %7475 = vmatprep.subr.mxu0 %v1962
        %7476 = vmatpush1.msra.mxu0 %v1961
        %7477 = vmatprep.subr.mxu0 %v1970
        %7478 = vmatpush1.msra.mxu0 %v1969
        %7479 = vmatprep.subr.mxu0 %v1978
        %7480 = vmatpush1.msra.mxu0 %v1977
        %7481 = vmatprep.subr.mxu0 %v1986
        %7482 = vmatpush1.msra.mxu0 %v1985
        %7483 = vmatprep.subr.mxu0 %v1994
        %7484 = vmatpush1.msra.mxu0 %v1993
        %7485 = vmatprep.subr.mxu0 %v2002
        %7486 = vmatpush1.msra.mxu0 %v2001
        %7487 = vmatprep.subr.mxu0 %v2010
        %7488 = vmatpush1.msra.mxu0 %v2009
        %7489 = vmatprep.subr.mxu0 %v2018
        %7490 = vmatpush1.msra.mxu0 %v2017
        %7491 = vmatprep.subr.mxu0 %v2026
        %7492 = vmatpush1.msra.mxu0 %v2025
        %7493 = vmatprep.subr.mxu0 %v2034
        %7494 = vmatpush1.msra.mxu0 %v2033
        %7495 = vmatprep.subr.mxu0 %v2042
        %7496 = vmatpush1.msra.mxu0 %v2041
        %7497 = vmatprep.subr.mxu0 %v2050
        %7498 = vmatpush1.msra.mxu0 %v2049
        %7499 = vmatprep.subr.mxu0 %v2058
        %7500 = vmatpush1.msra.mxu0 %v2057
        %7501 = vmatprep.subr.mxu0 %v2066
        %7502 = vmatpush1.msra.mxu0 %v2065
        %7503 = vmatprep.subr.mxu0 %v2074
        %7504 = vmatpush1.msra.mxu0 %v2073
        %7505 = vmatprep.subr.mxu0 %v2082
        %7506 = vmatpush1.msra.mxu0 %v2081
        %7507 = vmatprep.subr.mxu0 %v2090
        %7508 = vmatpush1.msra.mxu0 %v2089
        %7509 = vmatprep.mubr.f32.mxu0 %v3956
        %7510 = vmatmul.mubr.f32.gmra.mrb[0].mxu0 %v3948
        %v7511 = vpop.f32.mrb[0].mxu0
        %v7512 = vadd.f32 %v7441, %v7511
        %v7513 = vpop.f32.mrb[0].mxu0
        %v7514 = vadd.f32 %v7443, %v7513
        %7515 = vdwg.mxu0
        %7516 = vmatprep.subr.mxu0 %v2098
        %7517 = vmatpush1.msra.mxu0 %v2097
        %7518 = vmatprep.subr.mxu0 %v2106
        %7519 = vmatpush1.msra.mxu0 %v2105
        %7520 = vmatprep.subr.mxu0 %v2114
        %7521 = vmatpush1.msra.mxu0 %v2113
        %7522 = vmatprep.subr.mxu0 %v2122
        %7523 = vmatpush1.msra.mxu0 %v2121
        %7524 = vmatprep.subr.mxu0 %v2130
        %7525 = vmatpush1.msra.mxu0 %v2129
        %7526 = vmatprep.subr.mxu0 %v2138
        %7527 = vmatpush1.msra.mxu0 %v2137
        %7528 = vmatprep.subr.mxu0 %v2146
        %7529 = vmatpush1.msra.mxu0 %v2145
        %7530 = vmatprep.subr.mxu0 %v2154
        %7531 = vmatpush1.msra.mxu0 %v2153
        %7532 = vmatprep.subr.mxu0 %v2162
        %7533 = vmatpush1.msra.mxu0 %v2161
        %7534 = vmatprep.subr.mxu0 %v2170
        %7535 = vmatpush1.msra.mxu0 %v2169
        %7536 = vmatprep.subr.mxu0 %v2178
        %7537 = vmatpush1.msra.mxu0 %v2177
        %7538 = vmatprep.subr.mxu0 %v2186
        %7539 = vmatpush1.msra.mxu0 %v2185
        %7540 = vmatprep.subr.mxu0 %v2194
        %7541 = vmatpush1.msra.mxu0 %v2193
        %7542 = vmatprep.subr.mxu0 %v2202
        %7543 = vmatpush1.msra.mxu0 %v2201
        %7544 = vmatprep.subr.mxu0 %v2210
        %7545 = vmatpush1.msra.mxu0 %v2209
        %7546 = vmatprep.subr.mxu0 %v2218
        %7547 = vmatpush1.msra.mxu0 %v2217
        %7548 = vmatprep.subr.mxu0 %v2226
        %7549 = vmatpush1.msra.mxu0 %v2225
        %7550 = vmatprep.subr.mxu0 %v2234
        %7551 = vmatpush1.msra.mxu0 %v2233
        %7552 = vmatprep.subr.mxu0 %v2242
        %7553 = vmatpush1.msra.mxu0 %v2241
        %7554 = vmatprep.subr.mxu0 %v2250
        %7555 = vmatpush1.msra.mxu0 %v2249
        %7556 = vmatprep.subr.mxu0 %v2258
        %7557 = vmatpush1.msra.mxu0 %v2257
        %7558 = vmatprep.subr.mxu0 %v2266
        %7559 = vmatpush1.msra.mxu0 %v2265
        %7560 = vmatprep.subr.mxu0 %v2274
        %7561 = vmatpush1.msra.mxu0 %v2273
        %7562 = vmatprep.subr.mxu0 %v2282
        %7563 = vmatpush1.msra.mxu0 %v2281
        %7564 = vmatprep.subr.mxu0 %v2290
        %7565 = vmatpush1.msra.mxu0 %v2289
        %7566 = vmatprep.subr.mxu0 %v2298
        %7567 = vmatpush1.msra.mxu0 %v2297
        %7568 = vmatprep.subr.mxu0 %v2306
        %7569 = vmatpush1.msra.mxu0 %v2305
        %7570 = vmatprep.subr.mxu0 %v2314
        %7571 = vmatpush1.msra.mxu0 %v2313
        %7572 = vmatprep.subr.mxu0 %v2322
        %7573 = vmatpush1.msra.mxu0 %v2321
        %7574 = vmatprep.subr.mxu0 %v2330
        %7575 = vmatpush1.msra.mxu0 %v2329
        %7576 = vmatprep.subr.mxu0 %v2338
        %7577 = vmatpush1.msra.mxu0 %v2337
        %7578 = vmatprep.subr.mxu0 %v2346
        %7579 = vmatpush1.msra.mxu0 %v2345
        %7580 = vmatprep.mubr.f32.mxu0 %v3957
        %7581 = vmatmul.mubr.f32.gmra.mrb[0].mxu0 %v3955
        %v7582 = vpop.f32.mrb[0].mxu0
        %v7583 = vadd.f32 %v7512, %v7582
        %v7584 = vpop.f32.mrb[0].mxu0
        %v7585 = vadd.f32 %v7514, %v7584
        %7586 = vdwg.mxu0
        %7587 = vmatprep.subr.mxu0 %v2354
        %7588 = vmatpush1.msra.mxu0 %v2353
        %7589 = vmatprep.subr.mxu0 %v2362
        %7590 = vmatpush1.msra.mxu0 %v2361
        %7591 = vmatprep.subr.mxu0 %v2370
        %7592 = vmatpush1.msra.mxu0 %v2369
        %7593 = vmatprep.subr.mxu0 %v2378
        %7594 = vmatpush1.msra.mxu0 %v2377
        %7595 = vmatprep.subr.mxu0 %v2386
        %7596 = vmatpush1.msra.mxu0 %v2385
        %7597 = vmatprep.subr.mxu0 %v2394
        %7598 = vmatpush1.msra.mxu0 %v2393
        %7599 = vmatprep.subr.mxu0 %v2402
        %7600 = vmatpush1.msra.mxu0 %v2401
        %7601 = vmatprep.subr.mxu0 %v2410
        %7602 = vmatpush1.msra.mxu0 %v2409
        %7603 = vmatprep.subr.mxu0 %v2418
        %7604 = vmatpush1.msra.mxu0 %v2417
        %7605 = vmatprep.subr.mxu0 %v2426
        %7606 = vmatpush1.msra.mxu0 %v2425
        %7607 = vmatprep.subr.mxu0 %v2434
        %7608 = vmatpush1.msra.mxu0 %v2433
        %7609 = vmatprep.subr.mxu0 %v2442
        %7610 = vmatpush1.msra.mxu0 %v2441
        %7611 = vmatprep.subr.mxu0 %v2450
        %7612 = vmatpush1.msra.mxu0 %v2449
        %7613 = vmatprep.subr.mxu0 %v2458
        %7614 = vmatpush1.msra.mxu0 %v2457
        %7615 = vmatprep.subr.mxu0 %v2466
        %7616 = vmatpush1.msra.mxu0 %v2465
        %7617 = vmatprep.subr.mxu0 %v2474
        %7618 = vmatpush1.msra.mxu0 %v2473
        %7619 = vmatprep.subr.mxu0 %v2482
        %7620 = vmatpush1.msra.mxu0 %v2481
        %7621 = vmatprep.subr.mxu0 %v2490
        %7622 = vmatpush1.msra.mxu0 %v2489
        %7623 = vmatprep.subr.mxu0 %v2498
        %7624 = vmatpush1.msra.mxu0 %v2497
        %7625 = vmatprep.subr.mxu0 %v2506
        %7626 = vmatpush1.msra.mxu0 %v2505
        %7627 = vmatprep.subr.mxu0 %v2514
        %7628 = vmatpush1.msra.mxu0 %v2513
        %7629 = vmatprep.subr.mxu0 %v2522
        %7630 = vmatpush1.msra.mxu0 %v2521
        %7631 = vmatprep.subr.mxu0 %v2530
        %7632 = vmatpush1.msra.mxu0 %v2529
        %7633 = vmatprep.subr.mxu0 %v2538
        %7634 = vmatpush1.msra.mxu0 %v2537
        %7635 = vmatprep.subr.mxu0 %v2546
        %7636 = vmatpush1.msra.mxu0 %v2545
        %7637 = vmatprep.subr.mxu0 %v2554
        %7638 = vmatpush1.msra.mxu0 %v2553
        %7639 = vmatprep.subr.mxu0 %v2562
        %7640 = vmatpush1.msra.mxu0 %v2561
        %7641 = vmatprep.subr.mxu0 %v2570
        %7642 = vmatpush1.msra.mxu0 %v2569
        %7643 = vmatprep.subr.mxu0 %v2578
        %7644 = vmatpush1.msra.mxu0 %v2577
        %7645 = vmatprep.subr.mxu0 %v2586
        %7646 = vmatpush1.msra.mxu0 %v2585
        %7647 = vmatprep.subr.mxu0 %v2594
        %7648 = vmatpush1.msra.mxu0 %v2593
        %7649 = vmatprep.subr.mxu0 %v2602
        %7650 = vmatpush1.msra.mxu0 %v2601
        %7651 = vmatprep.mubr.f32.mxu0 %v3973
        %7652 = vmatmul.mubr.f32.gmra.mrb[0].mxu0 %v3965
        %v7653 = vpop.f32.mrb[0].mxu0
        %v7654 = vadd.f32 %v7583, %v7653
        %v7655 = vpop.f32.mrb[0].mxu0
        %v7656 = vadd.f32 %v7585, %v7655
        %7657 = vdwg.mxu0
        %7658 = vmatprep.subr.mxu0 %v2610
        %7659 = vmatpush1.msra.mxu0 %v2609
        %7660 = vmatprep.subr.mxu0 %v2618
        %7661 = vmatpush1.msra.mxu0 %v2617
        %7662 = vmatprep.subr.mxu0 %v2626
        %7663 = vmatpush1.msra.mxu0 %v2625
        %7664 = vmatprep.subr.mxu0 %v2634
        %7665 = vmatpush1.msra.mxu0 %v2633
        %7666 = vmatprep.subr.mxu0 %v2642
        %7667 = vmatpush1.msra.mxu0 %v2641
        %7668 = vmatprep.subr.mxu0 %v2650
        %7669 = vmatpush1.msra.mxu0 %v2649
        %7670 = vmatprep.subr.mxu0 %v2658
        %7671 = vmatpush1.msra.mxu0 %v2657
        %7672 = vmatprep.subr.mxu0 %v2666
        %7673 = vmatpush1.msra.mxu0 %v2665
        %7674 = vmatprep.subr.mxu0 %v2674
        %7675 = vmatpush1.msra.mxu0 %v2673
        %7676 = vmatprep.subr.mxu0 %v2682
        %7677 = vmatpush1.msra.mxu0 %v2681
        %7678 = vmatprep.subr.mxu0 %v2690
        %7679 = vmatpush1.msra.mxu0 %v2689
        %7680 = vmatprep.subr.mxu0 %v2698
        %7681 = vmatpush1.msra.mxu0 %v2697
        %7682 = vmatprep.subr.mxu0 %v2706
        %7683 = vmatpush1.msra.mxu0 %v2705
        %7684 = vmatprep.subr.mxu0 %v2714
        %7685 = vmatpush1.msra.mxu0 %v2713
        %7686 = vmatprep.subr.mxu0 %v2722
        %7687 = vmatpush1.msra.mxu0 %v2721
        %7688 = vmatprep.subr.mxu0 %v2730
        %7689 = vmatpush1.msra.mxu0 %v2729
        %7690 = vmatprep.subr.mxu0 %v2738
        %7691 = vmatpush1.msra.mxu0 %v2737
        %7692 = vmatprep.subr.mxu0 %v2746
        %7693 = vmatpush1.msra.mxu0 %v2745
        %7694 = vmatprep.subr.mxu0 %v2754
        %7695 = vmatpush1.msra.mxu0 %v2753
        %7696 = vmatprep.subr.mxu0 %v2762
        %7697 = vmatpush1.msra.mxu0 %v2761
        %7698 = vmatprep.subr.mxu0 %v2770
        %7699 = vmatpush1.msra.mxu0 %v2769
        %7700 = vmatprep.subr.mxu0 %v2778
        %7701 = vmatpush1.msra.mxu0 %v2777
        %7702 = vmatprep.subr.mxu0 %v2786
        %7703 = vmatpush1.msra.mxu0 %v2785
        %7704 = vmatprep.subr.mxu0 %v2794
        %7705 = vmatpush1.msra.mxu0 %v2793
        %7706 = vmatprep.subr.mxu0 %v2802
        %7707 = vmatpush1.msra.mxu0 %v2801
        %7708 = vmatprep.subr.mxu0 %v2810
        %7709 = vmatpush1.msra.mxu0 %v2809
        %7710 = vmatprep.subr.mxu0 %v2818
        %7711 = vmatpush1.msra.mxu0 %v2817
        %7712 = vmatprep.subr.mxu0 %v2826
        %7713 = vmatpush1.msra.mxu0 %v2825
        %7714 = vmatprep.subr.mxu0 %v2834
        %7715 = vmatpush1.msra.mxu0 %v2833
        %7716 = vmatprep.subr.mxu0 %v2842
        %7717 = vmatpush1.msra.mxu0 %v2841
        %7718 = vmatprep.subr.mxu0 %v2850
        %7719 = vmatpush1.msra.mxu0 %v2849
        %7720 = vmatprep.subr.mxu0 %v2858
        %7721 = vmatpush1.msra.mxu0 %v2857
        %7722 = vmatprep.mubr.f32.mxu0 %v3974
        %7723 = vmatmul.mubr.f32.gmra.mrb[0].mxu0 %v3972
        %v7724 = vpop.f32.mrb[0].mxu0
        %v7725 = vadd.f32 %v7654, %v7724
        %v7726 = vpop.f32.mrb[0].mxu0
        %v7727 = vadd.f32 %v7656, %v7726
        %7728 = vdwg.mxu0
        %7729 = vmatprep.subr.mxu0 %v2866
        %7730 = vmatpush1.msra.mxu0 %v2865
        %7731 = vmatprep.subr.mxu0 %v2874
        %7732 = vmatpush1.msra.mxu0 %v2873
        %7733 = vmatprep.subr.mxu0 %v2882
        %7734 = vmatpush1.msra.mxu0 %v2881
        %7735 = vmatprep.subr.mxu0 %v2890
        %7736 = vmatpush1.msra.mxu0 %v2889
        %7737 = vmatprep.subr.mxu0 %v2898
        %7738 = vmatpush1.msra.mxu0 %v2897
        %7739 = vmatprep.subr.mxu0 %v2906
        %7740 = vmatpush1.msra.mxu0 %v2905
        %7741 = vmatprep.subr.mxu0 %v2914
        %7742 = vmatpush1.msra.mxu0 %v2913
        %7743 = vmatprep.subr.mxu0 %v2922
        %7744 = vmatpush1.msra.mxu0 %v2921
        %7745 = vmatprep.subr.mxu0 %v2930
        %7746 = vmatpush1.msra.mxu0 %v2929
        %7747 = vmatprep.subr.mxu0 %v2938
        %7748 = vmatpush1.msra.mxu0 %v2937
        %7749 = vmatprep.subr.mxu0 %v2946
        %7750 = vmatpush1.msra.mxu0 %v2945
        %7751 = vmatprep.subr.mxu0 %v2954
        %7752 = vmatpush1.msra.mxu0 %v2953
        %7753 = vmatprep.subr.mxu0 %v2962
        %7754 = vmatpush1.msra.mxu0 %v2961
        %7755 = vmatprep.subr.mxu0 %v2970
        %7756 = vmatpush1.msra.mxu0 %v2969
        %7757 = vmatprep.subr.mxu0 %v2978
        %7758 = vmatpush1.msra.mxu0 %v2977
        %7759 = vmatprep.subr.mxu0 %v2986
        %7760 = vmatpush1.msra.mxu0 %v2985
        %7761 = vmatprep.subr.mxu0 %v2994
        %7762 = vmatpush1.msra.mxu0 %v2993
        %7763 = vmatprep.subr.mxu0 %v3002
        %7764 = vmatpush1.msra.mxu0 %v3001
        %7765 = vmatprep.subr.mxu0 %v3010
        %7766 = vmatpush1.msra.mxu0 %v3009
        %7767 = vmatprep.subr.mxu0 %v3018
        %7768 = vmatpush1.msra.mxu0 %v3017
        %7769 = vmatprep.subr.mxu0 %v3026
        %7770 = vmatpush1.msra.mxu0 %v3025
        %7771 = vmatprep.subr.mxu0 %v3034
        %7772 = vmatpush1.msra.mxu0 %v3033
        %7773 = vmatprep.subr.mxu0 %v3042
        %7774 = vmatpush1.msra.mxu0 %v3041
        %7775 = vmatprep.subr.mxu0 %v3050
        %7776 = vmatpush1.msra.mxu0 %v3049
        %7777 = vmatprep.subr.mxu0 %v3058
        %7778 = vmatpush1.msra.mxu0 %v3057
        %7779 = vmatprep.subr.mxu0 %v3066
        %7780 = vmatpush1.msra.mxu0 %v3065
        %7781 = vmatprep.subr.mxu0 %v3074
        %7782 = vmatpush1.msra.mxu0 %v3073
        %7783 = vmatprep.subr.mxu0 %v3082
        %7784 = vmatpush1.msra.mxu0 %v3081
        %7785 = vmatprep.subr.mxu0 %v3090
        %7786 = vmatpush1.msra.mxu0 %v3089
        %7787 = vmatprep.subr.mxu0 %v3098
        %7788 = vmatpush1.msra.mxu0 %v3097
        %7789 = vmatprep.subr.mxu0 %v3106
        %7790 = vmatpush1.msra.mxu0 %v3105
        %7791 = vmatprep.subr.mxu0 %v3114
        %7792 = vmatpush1.msra.mxu0 %v3113
        %7793 = vmatprep.mubr.f32.mxu0 %v3990
        %7794 = vmatmul.mubr.f32.gmra.mrb[0].mxu0 %v3982
        %v7795 = vpop.f32.mrb[0].mxu0
        %v7796 = vadd.f32 %v7725, %v7795
        %v7797 = vpop.f32.mrb[0].mxu0
        %v7798 = vadd.f32 %v7727, %v7797
        %7799 = vdwg.mxu0
        %7800 = vmatprep.subr.mxu0 %v3122
        %7801 = vmatpush1.msra.mxu0 %v3121
        %7802 = vmatprep.subr.mxu0 %v3130
        %7803 = vmatpush1.msra.mxu0 %v3129
        %7804 = vmatprep.subr.mxu0 %v3138
        %7805 = vmatpush1.msra.mxu0 %v3137
        %7806 = vmatprep.subr.mxu0 %v3146
        %7807 = vmatpush1.msra.mxu0 %v3145
        %7808 = vmatprep.subr.mxu0 %v3154
        %7809 = vmatpush1.msra.mxu0 %v3153
        %7810 = vmatprep.subr.mxu0 %v3162
        %7811 = vmatpush1.msra.mxu0 %v3161
        %7812 = vmatprep.subr.mxu0 %v3170
        %7813 = vmatpush1.msra.mxu0 %v3169
        %7814 = vmatprep.subr.mxu0 %v3178
        %7815 = vmatpush1.msra.mxu0 %v3177
        %7816 = vmatprep.subr.mxu0 %v3186
        %7817 = vmatpush1.msra.mxu0 %v3185
        %7818 = vmatprep.subr.mxu0 %v3194
        %7819 = vmatpush1.msra.mxu0 %v3193
        %7820 = vmatprep.subr.mxu0 %v3202
        %7821 = vmatpush1.msra.mxu0 %v3201
        %7822 = vmatprep.subr.mxu0 %v3210
        %7823 = vmatpush1.msra.mxu0 %v3209
        %7824 = vmatprep.subr.mxu0 %v3218
        %7825 = vmatpush1.msra.mxu0 %v3217
        %7826 = vmatprep.subr.mxu0 %v3226
        %7827 = vmatpush1.msra.mxu0 %v3225
        %7828 = vmatprep.subr.mxu0 %v3234
        %7829 = vmatpush1.msra.mxu0 %v3233
        %7830 = vmatprep.subr.mxu0 %v3242
        %7831 = vmatpush1.msra.mxu0 %v3241
        %7832 = vmatprep.subr.mxu0 %v3250
        %7833 = vmatpush1.msra.mxu0 %v3249
        %7834 = vmatprep.subr.mxu0 %v3258
        %7835 = vmatpush1.msra.mxu0 %v3257
        %7836 = vmatprep.subr.mxu0 %v3266
        %7837 = vmatpush1.msra.mxu0 %v3265
        %7838 = vmatprep.subr.mxu0 %v3274
        %7839 = vmatpush1.msra.mxu0 %v3273
        %7840 = vmatprep.subr.mxu0 %v3282
        %7841 = vmatpush1.msra.mxu0 %v3281
        %7842 = vmatprep.subr.mxu0 %v3290
        %7843 = vmatpush1.msra.mxu0 %v3289
        %7844 = vmatprep.subr.mxu0 %v3298
        %7845 = vmatpush1.msra.mxu0 %v3297
        %7846 = vmatprep.subr.mxu0 %v3306
        %7847 = vmatpush1.msra.mxu0 %v3305
        %7848 = vmatprep.subr.mxu0 %v3314
        %7849 = vmatpush1.msra.mxu0 %v3313
        %7850 = vmatprep.subr.mxu0 %v3322
        %7851 = vmatpush1.msra.mxu0 %v3321
        %7852 = vmatprep.subr.mxu0 %v3330
        %7853 = vmatpush1.msra.mxu0 %v3329
        %7854 = vmatprep.subr.mxu0 %v3338
        %7855 = vmatpush1.msra.mxu0 %v3337
        %7856 = vmatprep.subr.mxu0 %v3346
        %7857 = vmatpush1.msra.mxu0 %v3345
        %7858 = vmatprep.subr.mxu0 %v3354
        %7859 = vmatpush1.msra.mxu0 %v3353
        %7860 = vmatprep.subr.mxu0 %v3362
        %7861 = vmatpush1.msra.mxu0 %v3361
        %7862 = vmatprep.subr.mxu0 %v3370
        %7863 = vmatpush1.msra.mxu0 %v3369
        %7864 = vmatprep.mubr.f32.mxu0 %v3991
        %7865 = vmatmul.mubr.f32.gmra.mrb[0].mxu0 %v3989
        %v7866 = vpop.f32.mrb[0].mxu0
        %v7867 = vadd.f32 %v7796, %v7866
        %v7868 = vpop.f32.mrb[0].mxu0
        %v7869 = vadd.f32 %v7798, %v7868
        %7870 = vdwg.mxu0
        %7871 = vmatprep.subr.mxu0 %v3378
        %7872 = vmatpush1.msra.mxu0 %v3377
        %7873 = vmatprep.subr.mxu0 %v3386
        %7874 = vmatpush1.msra.mxu0 %v3385
        %7875 = vmatprep.subr.mxu0 %v3394
        %7876 = vmatpush1.msra.mxu0 %v3393
        %7877 = vmatprep.subr.mxu0 %v3402
        %7878 = vmatpush1.msra.mxu0 %v3401
        %7879 = vmatprep.subr.mxu0 %v3410
        %7880 = vmatpush1.msra.mxu0 %v3409
        %7881 = vmatprep.subr.mxu0 %v3418
        %7882 = vmatpush1.msra.mxu0 %v3417
        %7883 = vmatprep.subr.mxu0 %v3426
        %7884 = vmatpush1.msra.mxu0 %v3425
        %7885 = vmatprep.subr.mxu0 %v3434
        %7886 = vmatpush1.msra.mxu0 %v3433
        %7887 = vmatprep.subr.mxu0 %v3442
        %7888 = vmatpush1.msra.mxu0 %v3441
        %7889 = vmatprep.subr.mxu0 %v3450
        %7890 = vmatpush1.msra.mxu0 %v3449
        %7891 = vmatprep.subr.mxu0 %v3458
        %7892 = vmatpush1.msra.mxu0 %v3457
        %7893 = vmatprep.subr.mxu0 %v3466
        %7894 = vmatpush1.msra.mxu0 %v3465
        %7895 = vmatprep.subr.mxu0 %v3474
        %7896 = vmatpush1.msra.mxu0 %v3473
        %7897 = vmatprep.subr.mxu0 %v3482
        %7898 = vmatpush1.msra.mxu0 %v3481
        %7899 = vmatprep.subr.mxu0 %v3490
        %7900 = vmatpush1.msra.mxu0 %v3489
        %7901 = vmatprep.subr.mxu0 %v3498
        %7902 = vmatpush1.msra.mxu0 %v3497
        %7903 = vmatprep.subr.mxu0 %v3506
        %7904 = vmatpush1.msra.mxu0 %v3505
        %7905 = vmatprep.subr.mxu0 %v3514
        %7906 = vmatpush1.msra.mxu0 %v3513
        %7907 = vmatprep.subr.mxu0 %v3522
        %7908 = vmatpush1.msra.mxu0 %v3521
        %7909 = vmatprep.subr.mxu0 %v3530
        %7910 = vmatpush1.msra.mxu0 %v3529
        %7911 = vmatprep.subr.mxu0 %v3538
        %7912 = vmatpush1.msra.mxu0 %v3537
        %7913 = vmatprep.subr.mxu0 %v3546
        %7914 = vmatpush1.msra.mxu0 %v3545
        %7915 = vmatprep.subr.mxu0 %v3554
        %7916 = vmatpush1.msra.mxu0 %v3553
        %7917 = vmatprep.subr.mxu0 %v3562
        %7918 = vmatpush1.msra.mxu0 %v3561
        %7919 = vmatprep.subr.mxu0 %v3570
        %7920 = vmatpush1.msra.mxu0 %v3569
        %7921 = vmatprep.subr.mxu0 %v3578
        %7922 = vmatpush1.msra.mxu0 %v3577
        %7923 = vmatprep.subr.mxu0 %v3586
        %7924 = vmatpush1.msra.mxu0 %v3585
        %7925 = vmatprep.subr.mxu0 %v3594
        %7926 = vmatpush1.msra.mxu0 %v3593
        %7927 = vmatprep.subr.mxu0 %v3602
        %7928 = vmatpush1.msra.mxu0 %v3601
        %7929 = vmatprep.subr.mxu0 %v3610
        %7930 = vmatpush1.msra.mxu0 %v3609
        %7931 = vmatprep.subr.mxu0 %v3618
        %7932 = vmatpush1.msra.mxu0 %v3617
        %7933 = vmatprep.subr.mxu0 %v3626
        %7934 = vmatpush1.msra.mxu0 %v3625
        %7935 = vmatprep.mubr.f32.mxu0 %v4007
        %7936 = vmatmul.mubr.f32.gmra.mrb[0].mxu0 %v3999
        %v7937 = vpop.f32.mrb[0].mxu0
        %v7938 = vadd.f32 %v7867, %v7937
        %v7939 = vpop.f32.mrb[0].mxu0
        %v7940 = vadd.f32 %v7869, %v7939
        %7941 = vdwg.mxu0
        %7942 = vmatprep.subr.mxu0 %v3634
        %7943 = vmatpush1.msra.mxu0 %v3633
        %7944 = vmatprep.subr.mxu0 %v3642
        %7945 = vmatpush1.msra.mxu0 %v3641
        %7946 = vmatprep.subr.mxu0 %v3650
        %7947 = vmatpush1.msra.mxu0 %v3649
        %7948 = vmatprep.subr.mxu0 %v3658
        %7949 = vmatpush1.msra.mxu0 %v3657
        %7950 = vmatprep.subr.mxu0 %v3666
        %7951 = vmatpush1.msra.mxu0 %v3665
        %7952 = vmatprep.subr.mxu0 %v3674
        %7953 = vmatpush1.msra.mxu0 %v3673
        %7954 = vmatprep.subr.mxu0 %v3682
        %7955 = vmatpush1.msra.mxu0 %v3681
        %7956 = vmatprep.subr.mxu0 %v3690
        %7957 = vmatpush1.msra.mxu0 %v3689
        %7958 = vmatprep.subr.mxu0 %v3698
        %7959 = vmatpush1.msra.mxu0 %v3697
        %7960 = vmatprep.subr.mxu0 %v3706
        %7961 = vmatpush1.msra.mxu0 %v3705
        %7962 = vmatprep.subr.mxu0 %v3714
        %7963 = vmatpush1.msra.mxu0 %v3713
        %7964 = vmatprep.subr.mxu0 %v3722
        %7965 = vmatpush1.msra.mxu0 %v3721
        %7966 = vmatprep.subr.mxu0 %v3730
        %7967 = vmatpush1.msra.mxu0 %v3729
        %7968 = vmatprep.subr.mxu0 %v3738
        %7969 = vmatpush1.msra.mxu0 %v3737
        %7970 = vmatprep.subr.mxu0 %v3746
        %7971 = vmatpush1.msra.mxu0 %v3745
        %7972 = vmatprep.subr.mxu0 %v3754
        %7973 = vmatpush1.msra.mxu0 %v3753
        %7974 = vmatprep.subr.mxu0 %v3762
        %7975 = vmatpush1.msra.mxu0 %v3761
        %7976 = vmatprep.subr.mxu0 %v3770
        %7977 = vmatpush1.msra.mxu0 %v3769
        %7978 = vmatprep.subr.mxu0 %v3778
        %7979 = vmatpush1.msra.mxu0 %v3777
        %7980 = vmatprep.subr.mxu0 %v3786
        %7981 = vmatpush1.msra.mxu0 %v3785
        %7982 = vmatprep.subr.mxu0 %v3794
        %7983 = vmatpush1.msra.mxu0 %v3793
        %7984 = vmatprep.subr.mxu0 %v3802
        %7985 = vmatpush1.msra.mxu0 %v3801
        %7986 = vmatprep.subr.mxu0 %v3810
        %7987 = vmatpush1.msra.mxu0 %v3809
        %7988 = vmatprep.subr.mxu0 %v3818
        %7989 = vmatpush1.msra.mxu0 %v3817
        %7990 = vmatprep.subr.mxu0 %v3826
        %7991 = vmatpush1.msra.mxu0 %v3825
        %7992 = vmatprep.subr.mxu0 %v3834
        %7993 = vmatpush1.msra.mxu0 %v3833
        %7994 = vmatprep.subr.mxu0 %v3842
        %7995 = vmatpush1.msra.mxu0 %v3841
        %7996 = vmatprep.subr.mxu0 %v3850
        %7997 = vmatpush1.msra.mxu0 %v3849
        %7998 = vmatprep.subr.mxu0 %v3858
        %7999 = vmatpush1.msra.mxu0 %v3857
        %8000 = vmatprep.subr.mxu0 %v3866
        %8001 = vmatpush1.msra.mxu0 %v3865
        %8002 = vmatprep.subr.mxu0 %v3874
        %8003 = vmatpush1.msra.mxu0 %v3873
        %8004 = vmatprep.subr.mxu0 %v3882
        %8005 = vmatpush1.msra.mxu0 %v3881
        %8006 = vmatprep.mubr.f32.mxu0 %v4008
        %8007 = vmatmul.mubr.f32.gmra.mrb[0].mxu0 %v4006
        %v8008 = vpop.f32.mrb[0].mxu0
        %v8009 = vadd.f32 %v7938, %v8008
        %v8010 = vpop.f32.mrb[0].mxu0
        %v8011 = vadd.f32 %v7940, %v8010
        %8012 = vdwg.mxu0
        %v8021 = vcombine.low %v5027, %v5029
        %v8022 = vcombine.low %v6021, %v6023
        %v8024 = vunpack.c.l.s4 1983009808
        %v8025 = vunpack.c.0.s8 %v8024
        %v8026 = vlaneseq
        %v8027 = vshrl.u32 %v8026, 7
        %v8028 = vsub.s32 %v8025, %v8027
        %v8029 = vrot.slane %v8021, %v8028
        %v8031 = vunpack.c.l.s4 1983009808
        %v8032 = vunpack.c.0.s8 %v8031
        %v8033 = vlaneseq
        %v8034 = vshrl.u32 %v8033, 7
        %v8035 = vsub.s32 %v8032, %v8034
        %v8036 = vrot.slane %v8022, %v8035
        %v8037 = vcombine.low %v8029, %v8036
        %v8038 = vcombine.low %v7015, %v7017
        %v8039 = vcombine.low %v8009, %v8011
        %v8041 = vunpack.c.l.s4 1983009808
        %v8042 = vunpack.c.0.s8 %v8041
        %v8043 = vlaneseq
        %v8044 = vshrl.u32 %v8043, 7
        %v8045 = vsub.s32 %v8042, %v8044
        %v8046 = vrot.slane %v8038, %v8045
        %v8048 = vunpack.c.l.s4 1983009808
        %v8049 = vunpack.c.0.s8 %v8048
        %v8050 = vlaneseq
        %v8051 = vshrl.u32 %v8050, 7
        %v8052 = vsub.s32 %v8049, %v8051
        %v8053 = vrot.slane %v8039, %v8052
        %v8054 = vcombine.low %v8046, %v8053
        %v8057 = vadd.f32 %v290, %v8037
        %v8058 = vadd.f32 %v291, %v8054
        %8059 = vst [vmem:[%s278] sm:$0xff] %v8057
        %8060 = vst [vmem:[%s278 + $0x8] sm:$0xff] %v8058
        %p8061 = scmp.eq.s32.totalorder %s28, 6
        // Predicated region
        $region49: #{tpu_custom_call.1} parent=31 // pred_check
          %p8062 = pneg %p8061
        $region50: #{tpu_custom_call.1} parent=31 // pred_check_branch
          %8064 = sbr.rel (%p8062) target = $region52
        $region51: #{tpu_custom_call.1} parent=31 // pred_region
          %v8065 = vld [vmem:[%s278] sm:$0xff]
          %v8066 = vld [vmem:[%s278 + $0x8] sm:$0xff]
          %v8067 = vld [vmem:[%s246] sm:$0xff]
          %v8069 = vlaneseq
          %v8070 = vshrl.u32 %v8069, 7
          %v8071 = vsub.s32 0, %v8070
          %v8072 = vrot.slane %v8067, %v8071
          %v8073 = vlaneseq
          %v8074 = vshrl.u32 %v8073, 7
          %v8075 = vsub.s32 1, %v8074
          %v8076 = vrot.slane %v8067, %v8075
          %v8077 = vlaneseq
          %v8078 = vshrl.u32 %v8077, 7
          %v8079 = vsub.s32 2, %v8078
          %v8080 = vrot.slane %v8067, %v8079
          %v8081 = vlaneseq
          %v8082 = vshrl.u32 %v8081, 7
          %v8083 = vsub.s32 3, %v8082
          %v8084 = vrot.slane %v8067, %v8083
          %v8085 = vlaneseq
          %v8086 = vshrl.u32 %v8085, 7
          %v8087 = vsub.s32 4, %v8086
          %v8088 = vrot.slane %v8067, %v8087
          %v8089 = vlaneseq
          %v8090 = vshrl.u32 %v8089, 7
          %v8091 = vsub.s32 5, %v8090
          %v8092 = vrot.slane %v8067, %v8091
          %v8093 = vlaneseq
          %v8094 = vshrl.u32 %v8093, 7
          %v8095 = vsub.s32 6, %v8094
          %v8096 = vrot.slane %v8067, %v8095
          %v8097 = vlaneseq
          %v8098 = vshrl.u32 %v8097, 7
          %v8099 = vsub.s32 7, %v8098
          %v8100 = vrot.slane %v8067, %v8099
          %v8101 = vcombine.low %v8072, %v8076
          %v8102 = vcombine.low %v8080, %v8084
          %v8104 = vunpack.c.l.s4 1983009808
          %v8105 = vunpack.c.0.s8 %v8104
          %v8106 = vlaneseq
          %v8107 = vshrl.u32 %v8106, 7
          %v8108 = vsub.s32 %v8105, %v8107
          %v8109 = vrot.slane %v8101, %v8108
          %v8111 = vunpack.c.l.s4 1983009808
          %v8112 = vunpack.c.0.s8 %v8111
          %v8113 = vlaneseq
          %v8114 = vshrl.u32 %v8113, 7
          %v8115 = vsub.s32 %v8112, %v8114
          %v8116 = vrot.slane %v8102, %v8115
          %v8117 = vcombine.low %v8109, %v8116
          %v8118 = vcombine.low %v8088, %v8092
          %v8119 = vcombine.low %v8096, %v8100
          %v8121 = vunpack.c.l.s4 1983009808
          %v8122 = vunpack.c.0.s8 %v8121
          %v8123 = vlaneseq
          %v8124 = vshrl.u32 %v8123, 7
          %v8125 = vsub.s32 %v8122, %v8124
          %v8126 = vrot.slane %v8118, %v8125
          %v8128 = vunpack.c.l.s4 1983009808
          %v8129 = vunpack.c.0.s8 %v8128
          %v8130 = vlaneseq
          %v8131 = vshrl.u32 %v8130, 7
          %v8132 = vsub.s32 %v8129, %v8131
          %v8133 = vrot.slane %v8119, %v8132
          %v8134 = vcombine.low %v8126, %v8133
          %v8137 = vadd.f32 %v8065, %v8117
          %v8138 = vadd.f32 %v8066, %v8134
          %v8139 = vmax.f32 %v8137, 0.0
          %v8140 = vmax.f32 %v8138, 0.0
          %8141 = vst [vmem:[%s278] sm:$0xff] %v8139
          %8142 = vst [vmem:[%s278 + $0x8] sm:$0xff] %v8140
        $region52: #{tpu_custom_call.1} parent=31 // pred_fallthru
          _
        %s8143 = sand.u32 %s123, 1
        %s8144 = scalar_lea.sflag [#allocation4], %s8143
        %s8145 = sand.u32 %s123, 1
        %s8146 = smul.addr %s8145, 16
        %s8147 = scalar_lea.vmem [#allocation8], %s8146
        // Predicated region
        $region53: #{tpu_custom_call.1} parent=31 // pred_check
          %p8148 = pneg %p133
        $region54: #{tpu_custom_call.1} parent=31 // pred_check_branch
          %8150 = sbr.rel (%p8148) target = $region56
        $region55: #{tpu_custom_call.1} parent=31 // pred_region
          %s8151 = smul.u32 8, %s27
          %s8153 = ssub.s32 256, 256
          %8154 = vsyncadd %s8144, %s8153
          %s8155 = smul.addr %s8151, 32
          %s8156 = scalar_lea.hbm %s3, %s8155
          %s8158 = sshll.u32 %s8147, 4
          %s8159 = int_to_ptr.vmem [resolvable:$true] %s8158
          %8161 = dma.vmem_to_hbm [thread:$0]  %s8159, 256, %s8156, %s8144
        $region56: #{tpu_custom_call.1} parent=31 // pred_fallthru
          _
      $region32: #{tpu_custom_call.1} parent=5 // pred_fallthru
        _
      %p8162 = scmp.le.s32.totalorder 2, %s18
      // Predicated region
      $region57: #{tpu_custom_call.1} parent=5 // pred_check
        %p8163 = pneg %p8162
      $region58: #{tpu_custom_call.1} parent=5 // pred_check_branch
        %8165 = sbr.rel (%p8163) target = $region60
      $region59: #{tpu_custom_call.1} parent=5 // pred_region
        %s8166 = ssub.s32 %s18, 2
        // Predicated region
        $region61: #{tpu_custom_call.1} parent=59 // pred_check
          %p8167 = pneg %p139
        $region62: #{tpu_custom_call.1} parent=59 // pred_check_branch
          %8169 = sbr.rel (%p8167) target = $region64
        $region63: #{tpu_custom_call.1} parent=59 // pred_region
          %s8170 = sand.u32 %s124, 1
          %s8171 = scalar_lea.sflag [#allocation4], %s8170
          %s8172 = sand.u32 %s124, 1
          %s8173 = smul.addr %s8172, 16
          %s8174 = scalar_lea.vmem [#allocation8], %s8173
          %8175 = dma.done %s8171, 256
        $region64: #{tpu_custom_call.1} parent=59 // pred_fallthru
          _
      $region60: #{tpu_custom_call.1} parent=5 // pred_fallthru
        _
    $region6: #{tpu_custom_call.1} parent=1 // loop_footer
      %s22 = sadd.s32 1, %s18
    $region7: #{tpu_custom_call.1} parent=1 // loop_footer_branch
      %17 = sbr.rel target = $region3
    $region8: #{tpu_custom_call.1} parent=1 // loop_exit
      _
    %8176 = vsyncpa [#allocation3], 1
    %s8177 = scalar_lea.sflag [#allocation3], 1
    %8178 = vsyncpa %s8177, 1
    %8179 = vsyncpa [#allocation6], 1
    %s8180 = scalar_lea.sflag [#allocation6], 1
    %8181 = vsyncpa %s8180, 1
    %8182 = vsyncpa [#allocation4], 1
    %s8183 = scalar_lea.sflag [#allocation4], 1
    %8184 = vsyncpa %s8183, 1

</llo_original>
